<compile_context>
chip_gen: v5e
topology: v5e:2x2
jax: 0.10.0
libtpu: 0.0.40
codegen_flags: <defaults>
</compile_context>

<pallas_src>
import functools
import itertools

import numpy as np
import jax
import jax.numpy as jnp
from jax.experimental import pallas as pl
from jax.experimental.pallas import tpu as pltpu

# ----------------------- model hyper-parameters (scaled down) ----------------
IMG = 32                  # input resolution
PATCH = 4
WS = 4                    # window size
SH = WS // 2              # cyclic shift of the shifted-window block
D1, D2 = 32, 64           # stage embed dims   (real swin-base: 128 .. 1024)
HEADS1, HEADS2 = 2, 4     # heads per stage    (real swin-base: 4 .. 32)
CLS_HIDDEN = 64           # classifier hidden  (real: 512)
NUM_LABELS = 8
LN_EPS = 1e-5
BN_EPS = 1e-5

HP = WP = IMG // PATCH             # 8x8 tokens after patch embed
NW1 = (HP // WS) * (WP // WS)      # windows per image in stage 1 (= 4)
N_TOK = WS * WS                    # tokens per window           (= 16)
R1 = HP * WP                       # tokens per image, stage 1   (= 64)
R2 = (HP // 2) * (WP // 2)         # tokens per image, stage 2   (= 16)


# ============================ in-kernel helpers ==============================

def _ln(z, g, b, eps):
    """f32 LayerNorm over the last dim."""
    mu = jnp.mean(z, axis=-1, keepdims=True)
    zc = z - mu
    var = jnp.mean(zc * zc, axis=-1, keepdims=True)
    return zc * jax.lax.rsqrt(var + eps) * g + b


def _block_math(x, brefs, heads, nw, n, c):
    """One swin block (pre-norm W-MSA + MLP) on (nw*n, c) f32 tokens.

    All heavy matmuls use bf16 operands with f32 accumulation; the attention
    is batched over (heads * windows); the q-scale is already folded into the
    qkv weights and the (rel-pos-bias [+ shift mask]) is a precomputed
    (heads*nw, n, n) operand.
    """
    (ln1g, ln1b, qkvw, qkvb, bias, projw, projb,
     ln2g, ln2b, fc1w, fc1b, fc2w, fc2b) = brefs
    hd = c // heads
    r = nw * n

    xn = _ln(x, ln1g[...], ln1b[...], LN_EPS)
    qkv = jnp.dot(xn.astype(jnp.bfloat16), qkvw[...],
                  preferred_element_type=jnp.float32) + qkvb[...]      # (r, 3c)

    def heads_batched(base):
        parts = [qkv[:, base + h * hd: base + (h + 1) * hd].reshape(nw, n, hd)
                 for h in range(heads)]
        return jnp.stack(parts, axis=0).reshape(heads * nw, n, hd)

    q = heads_batched(0)          # q-scale folded into qkv_w / qkv_b
    k = heads_batched(c)
    v = heads_batched(2 * c)

    s = jnp.einsum("bnd,bmd->bnm", q.astype(jnp.bfloat16), k.astype(jnp.bfloat16),
                   preferred_element_type=jnp.float32) + bias[...]     # (h*nw,n,n)
    s = s - jnp.max(s, axis=-1, keepdims=True)
    attn = jnp.exp(s)
    attn = attn * pl.reciprocal(jnp.sum(attn, axis=-1, keepdims=True), approx=True)

    o = jnp.einsum("bnm,bmd->bnd", attn.astype(jnp.bfloat16), v.astype(jnp.bfloat16),
                   preferred_element_type=jnp.float32)                 # (h*nw,n,hd)
    o = o.reshape(heads, nw, n, hd).reshape(heads, r, hd)
    proj = jnp.einsum("hrd,hdc->hrc", o.astype(jnp.bfloat16), projw[...],
                      preferred_element_type=jnp.float32)              # (heads,r,c)
    x = x + jnp.sum(proj, axis=0) + projb[...]                         # residual 1

    xn2 = _ln(x, ln2g[...], ln2b[...], LN_EPS)
    hmid = jnp.dot(xn2.astype(jnp.bfloat16), fc1w[...],
                   preferred_element_type=jnp.float32) + fc1b[...]
    hmid = jax.nn.gelu(hmid, approximate=True)          # TODO(synk): exact erf
    y = jnp.dot(hmid.astype(jnp.bfloat16), fc2w[...],
                preferred_element_type=jnp.float32) + fc2b[...]
    return x + y                                                       # residual 2


# ====================== kernel 1: patch embed + stage 1 ======================

def _stage1_kernel(*refs, heads):
    (x_ref, pw, pb, peg, peb, pwin, pshift, pout) = refs[:8]
    blk1, blk2 = refs[8:21], refs[21:34]
    o_ref = refs[34]
    c = pw.shape[1]

    # Patch embed: unfolded-pixel matmul + LayerNorm (tokens in spatial order).
    x = jnp.dot(x_ref[...].reshape(R1, pw.shape[0]), pw[...],
                preferred_element_type=jnp.float32) + pb[...]
    x = _ln(x, peg[...], peb[...], LN_EPS)

    # spatial -> regular-window token order (exact 0/1 permutation matmul).
    x = jnp.dot(pwin[...], x, preferred_element_type=jnp.float32)
    x = _block_math(x, blk1, heads, NW1, N_TOK, c)          # regular windows

    # cyclic shift (-SH,-SH) + re-partition, fused into one permutation.
    x = jnp.dot(pshift[...], x, preferred_element_type=jnp.float32)
    x = _block_math(x, blk2, heads, NW1, N_TOK, c)          # shifted windows

    # un-shift + window-reverse back to spatial token order.
    x = jnp.dot(pout[...], x, preferred_element_type=jnp.float32)
    o_ref[...] = x.reshape(1, R1, c).astype(o_ref.dtype)


# ================ kernel 2: patch merge + stage 2 + final LN =================

def _stage2_kernel(*refs, heads):
    (x_ref, pmerge, mg_g, mg_b, red_w) = refs[:5]
    blk1, blk2 = refs[5:18], refs[18:31]
    fin_g, fin_b = refs[31], refs[32]
    o_ref = refs[33]

    c1 = x_ref.shape[2]
    x = x_ref[...].reshape(R1, c1).astype(jnp.float32)

    # Patch merging: 2x2 neighbourhood gather via a permutation matmul, then
    # LayerNorm over the 4*c1 concatenated channels and the 4C->2C reduction
    # as a batched matmul summed over the 4 parts (no channel concat needed).
    xm = jnp.dot(pmerge[...], x, preferred_element_type=jnp.float32)   # merge order
    parts = xm.reshape(4, R2, c1)                                      # (4,16,c1)
    mu = jnp.sum(jnp.sum(parts, axis=0), axis=-1, keepdims=True) / (4.0 * c1)
    ctr = parts - mu[None]
    var = jnp.sum(jnp.sum(ctr * ctr, axis=0), axis=-1, keepdims=True) / (4.0 * c1)
    nrm = ctr * jax.lax.rsqrt(var + LN_EPS)[None] * mg_g[...] + mg_b[...]
    xm2 = jnp.sum(jnp.einsum("qmc,qcd->qmd", nrm.astype(jnp.bfloat16), red_w[...],
                             preferred_element_type=jnp.float32), axis=0)  # (16,2c1)

    c2 = xm2.shape[1]
    x2 = _block_math(xm2, blk1, heads, 1, R2, c2)
    x2 = _block_math(x2, blk2, heads, 1, R2, c2)
    x2 = _ln(x2, fin_g[...], fin_b[...], LN_EPS)
    o_ref[...] = x2.reshape(1, R2, c2).astype(o_ref.dtype)


# ============================ kernel 3: classifier ===========================

def _classifier_kernel(x_ref, w1, b1, w2, b2, o_ref):
    # Linear -> ReLU -> (BatchNorm folded into w2/b2) -> Linear, one grid step
    # (no K-tiling: the whole GEMM fits VMEM trivially).
    h = jnp.dot(x_ref[...], w1[...], preferred_element_type=jnp.float32) + b1[...]
    h = jnp.maximum(h, 0.0)
    y = jnp.dot(h.astype(jnp.bfloat16), w2[...],
                preferred_element_type=jnp.float32) + b2[...]
    o_ref[...] = y.astype(o_ref.dtype)


# ============================ pallas_call wrappers ===========================

_BLOCK_KEYS = ("ln1_g", "ln1_b", "qkv_w", "qkv_b", "bias", "proj_w", "proj_b",
               "ln2_g", "ln2_b", "fc1_w", "fc1_b", "fc2_w", "fc2_b")


def _block_args(bp):
    return [bp[k] for k in _BLOCK_KEYS]


def _const_spec(arr):
    zeros = (0,) * arr.ndim
    return pl.BlockSpec(arr.shape, lambda i, _z=zeros: _z)


def pallas_stage1(x, p):
    """x: (B, 64, 48) bf16 unfolded patches, spatial order -> (B, 64, D1) bf16."""
    B = x.shape[0]
    consts = [p["patch_w"], p["patch_b"], p["pe_ln_g"], p["pe_ln_b"],
              p["p_win"], p["p_shift"], p["p_out"]]
    consts += _block_args(p["stage1"][0]) + _block_args(p["stage1"][1])
    in_specs = [pl.BlockSpec((1,) + x.shape[1:], lambda b: (b, 0, 0))]
    in_specs += [_const_spec(a) for a in consts]
    return pl.pallas_call(
        functools.partial(_stage1_kernel, heads=HEADS1),
        out_shape=jax.ShapeDtypeStruct((B, R1, D1), jnp.bfloat16),
        grid=(B,),
        in_specs=in_specs,
        out_specs=pl.BlockSpec((1, R1, D1), lambda b: (b, 0, 0)),
        compiler_params=pltpu.CompilerParams(dimension_semantics=("parallel",)),
    )(x, *consts)


def pallas_stage2(x, p):
    """x: (B, 64, D1) bf16 spatial tokens -> (B, 16, D2) bf16 encoder output."""
    B = x.shape[0]
    consts = [p["p_merge"], p["merge"]["ln_g"], p["merge"]["ln_b"], p["merge"]["red_w"]]
    consts += _block_args(p["stage2"][0]) + _block_args(p["stage2"][1])
    consts += [p["final_ln_g"], p["final_ln_b"]]
    in_specs = [pl.BlockSpec((1, R1, D1), lambda b: (b, 0, 0))]
    in_specs += [_const_spec(a) for a in consts]
    return pl.pallas_call(
        functools.partial(_stage2_kernel, heads=HEADS2),
        out_shape=jax.ShapeDtypeStruct((B, R2, D2), jnp.bfloat16),
        grid=(B,),
        in_specs=in_specs,
        out_specs=pl.BlockSpec((1, R2, D2), lambda b: (b, 0, 0)),
        compiler_params=pltpu.CompilerParams(dimension_semantics=("parallel",)),
    )(x, *consts)


def pallas_classifier(features, cls):
    B, F = features.shape
    Hd = cls["w1"].shape[1]
    L = cls["w2"].shape[1]
    return pl.pallas_call(
        _classifier_kernel,
        out_shape=jax.ShapeDtypeStruct((B, L), jnp.float32),
        grid=(1,),
        in_specs=[
            pl.BlockSpec((B, F), lambda i: (0, 0)),
            pl.BlockSpec((F, Hd), lambda i: (0, 0)),
            pl.BlockSpec((1, Hd), lambda i: (0, 0)),
            pl.BlockSpec((Hd, L), lambda i: (0, 0)),
            pl.BlockSpec((1, L), lambda i: (0, 0)),
        ],
        out_specs=pl.BlockSpec((B, L), lambda i: (0, 0)),
        compiler_params=pltpu.CompilerParams(dimension_semantics=("arbitrary",)),
    )(features, cls["w1"], cls["b1"], cls["w2"], cls["b2"])


# ====================== static index / permutation tables ====================

def _relative_position_index(ws):
    coords = np.stack(np.meshgrid(np.arange(ws), np.arange(ws), indexing="ij"))
    flat = coords.reshape(2, -1)
    rel = flat[:, :, None] - flat[:, None, :]
    rel = rel.transpose(1, 2, 0).astype(np.int64)
    rel[:, :, 0] += ws - 1
    rel[:, :, 1] += ws - 1
    rel[:, :, 0] *= 2 * ws - 1
    return jnp.asarray(rel.sum(-1), jnp.int32)          # (ws*ws, ws*ws)


REL_IDX = _relative_position_index(WS)


def _attn_mask(Hp, Wp, ws, shift):
    """Standard shifted-window attention mask, (nW, N, N) of {0, -100}."""
    img = np.zeros((Hp, Wp), np.float32)
    cnt = 0
    for hs in (slice(0, -ws), slice(-ws, -shift), slice(-shift, None)):
        for wsl in (slice(0, -ws), slice(-ws, -shift), slice(-shift, None)):
            img[hs, wsl] = cnt
            cnt += 1
    mw = img.reshape(Hp // ws, ws, Wp // ws, ws).transpose(0, 2, 1, 3).reshape(-1, ws * ws)
    diff = mw[:, None, :] - mw[:, :, None]
    return jnp.asarray(np.where(diff != 0, -100.0, 0.0).astype(np.float32))


def _win_index(h, w):
    """(window index, in-window token index) for spatial coords (h, w)."""
    return (h // WS) * (WP // WS) + (w // WS), (h % WS) * WS + (w % WS)


def _perm_matrix(perm):
    m = np.zeros((perm.size, perm.size), np.float32)
    m[np.arange(perm.size), perm] = 1.0
    return jnp.asarray(m)


def _stage1_perms():
    """Row-permutation matrices used inside the stage-1 kernel:
    spatial->windowed, windowed->shifted-windowed (cyclic roll by -SH fused
    with the window re-partition), shifted-windowed->spatial."""
    perm_win = np.zeros(R1, np.int32)
    for h in range(HP):
        for w in range(WP):
            win, n = _win_index(h, w)
            perm_win[win * N_TOK + n] = h * WP + w
    perm_shift = np.zeros(R1, np.int32)
    perm_out = np.zeros(R1, np.int32)
    for h2 in range(HP):                          # coords in the rolled image
        for w2 in range(WP):
            win2, n2 = _win_index(h2, w2)
            ho, wo = (h2 + SH) % HP, (w2 + SH) % WP          # source coords
            win1, n1 = _win_index(ho, wo)
            perm_shift[win2 * N_TOK + n2] = win1 * N_TOK + n1
            perm_out[ho * WP + wo] = win2 * N_TOK + n2
    return _perm_matrix(perm_win), _perm_matrix(perm_shift), _perm_matrix(perm_out)


def _merge_perm():
    """Spatial tokens -> [x0|x1|x2|x3] merge order (4 groups of R2 rows)."""
    offs = ((0, 0), (1, 0), (0, 1), (1, 1))      # x0, x1, x2, x3 as in Swin
    hm, wm = HP // 2, WP // 2
    perm = np.zeros(4 * R2, np.int32)
    for q, (dh, dw) in enumerate(offs):
        for i in range(hm):
            for j in range(wm):
                perm[q * R2 + i * wm + j] = (2 * i + dh) * WP + (2 * j + dw)
    return _perm_matrix(perm)


# ============================ forward pass ===================================

def swin_m3sda_forward(params, images):
    """forward(): labels = classifier1(encoder(images).reshape(B, -1))."""
    B, Cin, H, W = images.shape
    hp, wp = H // PATCH, W // PATCH
    # Conv2d(k=4, s=4) patch embedding expressed as XLA unfold + in-kernel matmul.
    x = images.reshape(B, Cin, hp, PATCH, wp, PATCH)
    x = x.transpose(0, 2, 4, 1, 3, 5).reshape(B, hp * wp, Cin * PATCH * PATCH)
    x = x.astype(jnp.bfloat16)

    x = pallas_stage1(x, params)                    # (B, 64, D1) bf16, spatial order
    x = pallas_stage2(x, params)                    # (B, 16, D2) bf16
    feats = x.reshape(B, R2 * D2)                   # (B, 1024)
    return pallas_classifier(feats, params["cls"])  # (B, NUM_LABELS) f32


# ============================ deterministic parameters =======================

_BASE_KEY = jax.random.PRNGKey(0)
_COUNTER = itertools.count()


def _init(shape, scale=0.02):
    k = jax.random.fold_in(_BASE_KEY, next(_COUNTER))
    return jax.random.normal(k, shape, jnp.float32) * scale


def make_params(num_labels=NUM_LABELS):
    def block_params(C, heads):
        return dict(
            ln1_g=1.0 + _init((C,)), ln1_b=_init((C,)),
            qkv_w=_init((C, 3 * C)), qkv_b=_init((3 * C,)),
            rpb=_init(((2 * WS - 1) ** 2, heads)),
            proj_w=_init((C, C)), proj_b=_init((C,)),
            ln2_g=1.0 + _init((C,)), ln2_b=_init((C,)),
            fc1_w=_init((C, 4 * C)), fc1_b=_init((4 * C,)),
            fc2_w=_init((4 * C, C)), fc2_b=_init((C,)),
        )

    Cin = 3
    p = dict(
        patch_w=_init((Cin * PATCH * PATCH, D1)), patch_b=_init((D1,)),
        pe_ln_g=1.0 + _init((D1,)), pe_ln_b=_init((D1,)),
        stage1=[block_params(D1, HEADS1) for _ in range(2)],
        merge=dict(ln_g=1.0 + _init((4 * D1,)), ln_b=_init((4 * D1,)),
                   red_w=_init((4 * D1, 2 * D1))),
        stage2=[block_params(D2, HEADS2) for _ in range(2)],
        final_ln_g=1.0 + _init((D2,)), final_ln_b=_init((D2,)),
    )
    F = R2 * D2  # (= 49*1024 in the full-size model)
    p["cls"] = dict(
        w1=_init((F, CLS_HIDDEN)), b1=_init((CLS_HIDDEN,)),
        bn_g=1.0 + _init((CLS_HIDDEN,)), bn_b=_init((CLS_HIDDEN,)),
        bn_mean=_init((CLS_HIDDEN,)), bn_var=jnp.abs(_init((CLS_HIDDEN,))) + 0.9,
        w2=_init((CLS_HIDDEN, num_labels)), b2=_init((num_labels,)),
    )
    return p


def prepare_params(params):
    """One-time inference prep: fold the q-scale into qkv, pre-add the shift
    mask into the relative-position bias, precompute the window / shift /
    merge permutation matrices, fold BatchNorm (eval) into the classifier's
    second linear, reshape biases to (1, n) and cast matmul weights to bf16
    (accumulation stays f32)."""
    rel = REL_IDX.reshape(-1)

    def prep_block(bp, heads, n_win, mask=None):
        C = bp["qkv_w"].shape[0]
        hd = C // heads
        scale = float(hd) ** -0.5
        qkv_w = bp["qkv_w"].at[:, :C].multiply(scale)    # fold q-scale into W_q
        qkv_b = bp["qkv_b"].at[:C].multiply(scale)       # ... and into b_q
        rpb_hnn = bp["rpb"][rel].reshape(N_TOK, N_TOK, heads).transpose(2, 0, 1)
        bias = jnp.broadcast_to(rpb_hnn[:, None], (heads, n_win, N_TOK, N_TOK))
        if mask is not None:
            bias = bias + mask[None]
        return dict(
            ln1_g=bp["ln1_g"].reshape(1, C), ln1_b=bp["ln1_b"].reshape(1, C),
            qkv_w=qkv_w.astype(jnp.bfloat16), qkv_b=qkv_b.reshape(1, 3 * C),
            bias=bias.reshape(heads * n_win, N_TOK, N_TOK).astype(jnp.float32),
            proj_w=bp["proj_w"].reshape(heads, hd, C).astype(jnp.bfloat16),
            proj_b=bp["proj_b"].reshape(1, C),
            ln2_g=bp["ln2_g"].reshape(1, C), ln2_b=bp["ln2_b"].reshape(1, C),
            fc1_w=bp["fc1_w"].astype(jnp.bfloat16), fc1_b=bp["fc1_b"].reshape(1, 4 * C),
            fc2_w=bp["fc2_w"].astype(jnp.bfloat16), fc2_b=bp["fc2_b"].reshape(1, C),
        )

    p_win, p_shift, p_out = _stage1_perms()
    mask1 = _attn_mask(HP, WP, WS, SH)

    cls = params["cls"]
    # Linear -> ReLU -> BN(eval) -> Dropout -> Linear: BN after ReLU folds into
    # the second linear:  BN(r)@W2 + b2 == r@(scale[:,None]*W2) + (shift@W2 + b2).
    scale = cls["bn_g"] * jax.lax.rsqrt(cls["bn_var"] + BN_EPS)
    shift = cls["bn_b"] - cls["bn_mean"] * scale
    w2_eff = scale[:, None] * cls["w2"]
    b2_eff = cls["b2"] + shift @ cls["w2"]

    return dict(
        patch_w=params["patch_w"].astype(jnp.bfloat16),
        patch_b=params["patch_b"].reshape(1, D1),
        pe_ln_g=params["pe_ln_g"].reshape(1, D1),
        pe_ln_b=params["pe_ln_b"].reshape(1, D1),
        p_win=p_win, p_shift=p_shift, p_out=p_out, p_merge=_merge_perm(),
        stage1=[prep_block(params["stage1"][0], HEADS1, NW1, mask=None),
                prep_block(params["stage1"][1], HEADS1, NW1, mask=mask1)],
        merge=dict(ln_g=params["merge"]["ln_g"].reshape(4, 1, D1),
                   ln_b=params["merge"]["ln_b"].reshape(4, 1, D1),
                   red_w=params["merge"]["red_w"].reshape(4, D1, 2 * D1).astype(jnp.bfloat16)),
        stage2=[prep_block(bp, HEADS2, 1, mask=None) for bp in params["stage2"]],
        final_ln_g=params["final_ln_g"].reshape(1, D2),
        final_ln_b=params["final_ln_b"].reshape(1, D2),
        cls=dict(w1=cls["w1"].astype(jnp.bfloat16), b1=cls["b1"].reshape(1, CLS_HIDDEN),
                 w2=w2_eff.astype(jnp.bfloat16), b2=b2_eff.reshape(1, NUM_LABELS)),
    )


# ============================ main ===========================================

if __name__ == "__main__":
    key = jax.random.PRNGKey(0)
    images = jax.random.normal(key, (2, 3, IMG, IMG), jnp.float32)   # NCHW
    raw_params = make_params()
    params = prepare_params(raw_params)

    fwd = jax.jit(swin_m3sda_forward)
    labels = fwd(params, images)
    jax.block_until_ready(labels)
    assert labels.shape == (2, NUM_LABELS)
    assert bool(jnp.all(jnp.isfinite(labels)))
    print("KERNEL_OK")
</pallas_src>

<mosaic_0001>
module attributes {stable_mosaic.version = 11 : i64} {
  func.func @_stage2_kernel(%arg0: i32, %arg1: memref<1x64x32xbf16, #tpu.memory_space<vmem>>, %arg2: memref<64x64xf32, #tpu.memory_space<vmem>>, %arg3: memref<4x1x32xf32, #tpu.memory_space<vmem>>, %arg4: memref<4x1x32xf32, #tpu.memory_space<vmem>>, %arg5: memref<4x32x64xbf16, #tpu.memory_space<vmem>>, %arg6: memref<1x64xf32, #tpu.memory_space<vmem>>, %arg7: memref<1x64xf32, #tpu.memory_space<vmem>>, %arg8: memref<64x192xbf16, #tpu.memory_space<vmem>>, %arg9: memref<1x192xf32, #tpu.memory_space<vmem>>, %arg10: memref<4x16x16xf32, #tpu.memory_space<vmem>>, %arg11: memref<4x16x64xbf16, #tpu.memory_space<vmem>>, %arg12: memref<1x64xf32, #tpu.memory_space<vmem>>, %arg13: memref<1x64xf32, #tpu.memory_space<vmem>>, %arg14: memref<1x64xf32, #tpu.memory_space<vmem>>, %arg15: memref<64x256xbf16, #tpu.memory_space<vmem>>, %arg16: memref<1x256xf32, #tpu.memory_space<vmem>>, %arg17: memref<256x64xbf16, #tpu.memory_space<vmem>>, %arg18: memref<1x64xf32, #tpu.memory_space<vmem>>, %arg19: memref<1x64xf32, #tpu.memory_space<vmem>>, %arg20: memref<1x64xf32, #tpu.memory_space<vmem>>, %arg21: memref<64x192xbf16, #tpu.memory_space<vmem>>, %arg22: memref<1x192xf32, #tpu.memory_space<vmem>>, %arg23: memref<4x16x16xf32, #tpu.memory_space<vmem>>, %arg24: memref<4x16x64xbf16, #tpu.memory_space<vmem>>, %arg25: memref<1x64xf32, #tpu.memory_space<vmem>>, %arg26: memref<1x64xf32, #tpu.memory_space<vmem>>, %arg27: memref<1x64xf32, #tpu.memory_space<vmem>>, %arg28: memref<64x256xbf16, #tpu.memory_space<vmem>>, %arg29: memref<1x256xf32, #tpu.memory_space<vmem>>, %arg30: memref<256x64xbf16, #tpu.memory_space<vmem>>, %arg31: memref<1x64xf32, #tpu.memory_space<vmem>>, %arg32: memref<1x64xf32, #tpu.memory_space<vmem>>, %arg33: memref<1x64xf32, #tpu.memory_space<vmem>>, %arg34: memref<1x16x64xbf16, #tpu.memory_space<vmem>>) attributes {dimension_semantics = [#tpu.dimension_semantics<parallel>], iteration_bounds = array<i64: 2>, scalar_prefetch = 0 : i64, scratch_operands = 0 : i64, tpu.core_type = #tpu.core_type<tc>, window_params = [{transform_indices = @transform_0, window_bounds = array<i64: 1, 64, 32>}, {pipeline_mode = #tpu.pipeline_mode<synchronous>, transform_indices = @transform_1, window_bounds = array<i64: 64, 64>}, {pipeline_mode = #tpu.pipeline_mode<synchronous>, transform_indices = @transform_2, window_bounds = array<i64: 4, 1, 32>}, {pipeline_mode = #tpu.pipeline_mode<synchronous>, transform_indices = @transform_3, window_bounds = array<i64: 4, 1, 32>}, {pipeline_mode = #tpu.pipeline_mode<synchronous>, transform_indices = @transform_4, window_bounds = array<i64: 4, 32, 64>}, {pipeline_mode = #tpu.pipeline_mode<synchronous>, transform_indices = @transform_5, window_bounds = array<i64: 1, 64>}, {pipeline_mode = #tpu.pipeline_mode<synchronous>, transform_indices = @transform_6, window_bounds = array<i64: 1, 64>}, {pipeline_mode = #tpu.pipeline_mode<synchronous>, transform_indices = @transform_7, window_bounds = array<i64: 64, 192>}, {pipeline_mode = #tpu.pipeline_mode<synchronous>, transform_indices = @transform_8, window_bounds = array<i64: 1, 192>}, {pipeline_mode = #tpu.pipeline_mode<synchronous>, transform_indices = @transform_9, window_bounds = array<i64: 4, 16, 16>}, {pipeline_mode = #tpu.pipeline_mode<synchronous>, transform_indices = @transform_10, window_bounds = array<i64: 4, 16, 64>}, {pipeline_mode = #tpu.pipeline_mode<synchronous>, transform_indices = @transform_11, window_bounds = array<i64: 1, 64>}, {pipeline_mode = #tpu.pipeline_mode<synchronous>, transform_indices = @transform_12, window_bounds = array<i64: 1, 64>}, {pipeline_mode = #tpu.pipeline_mode<synchronous>, transform_indices = @transform_13, window_bounds = array<i64: 1, 64>}, {pipeline_mode = #tpu.pipeline_mode<synchronous>, transform_indices = @transform_14, window_bounds = array<i64: 64, 256>}, {pipeline_mode = #tpu.pipeline_mode<synchronous>, transform_indices = @transform_15, window_bounds = array<i64: 1, 256>}, {pipeline_mode = #tpu.pipeline_mode<synchronous>, transform_indices = @transform_16, window_bounds = array<i64: 256, 64>}, {pipeline_mode = #tpu.pipeline_mode<synchronous>, transform_indices = @transform_17, window_bounds = array<i64: 1, 64>}, {pipeline_mode = #tpu.pipeline_mode<synchronous>, transform_indices = @transform_18, window_bounds = array<i64: 1, 64>}, {pipeline_mode = #tpu.pipeline_mode<synchronous>, transform_indices = @transform_19, window_bounds = array<i64: 1, 64>}, {pipeline_mode = #tpu.pipeline_mode<synchronous>, transform_indices = @transform_20, window_bounds = array<i64: 64, 192>}, {pipeline_mode = #tpu.pipeline_mode<synchronous>, transform_indices = @transform_21, window_bounds = array<i64: 1, 192>}, {pipeline_mode = #tpu.pipeline_mode<synchronous>, transform_indices = @transform_22, window_bounds = array<i64: 4, 16, 16>}, {pipeline_mode = #tpu.pipeline_mode<synchronous>, transform_indices = @transform_23, window_bounds = array<i64: 4, 16, 64>}, {pipeline_mode = #tpu.pipeline_mode<synchronous>, transform_indices = @transform_24, window_bounds = array<i64: 1, 64>}, {pipeline_mode = #tpu.pipeline_mode<synchronous>, transform_indices = @transform_25, window_bounds = array<i64: 1, 64>}, {pipeline_mode = #tpu.pipeline_mode<synchronous>, transform_indices = @transform_26, window_bounds = array<i64: 1, 64>}, {pipeline_mode = #tpu.pipeline_mode<synchronous>, transform_indices = @transform_27, window_bounds = array<i64: 64, 256>}, {pipeline_mode = #tpu.pipeline_mode<synchronous>, transform_indices = @transform_28, window_bounds = array<i64: 1, 256>}, {pipeline_mode = #tpu.pipeline_mode<synchronous>, transform_indices = @transform_29, window_bounds = array<i64: 256, 64>}, {pipeline_mode = #tpu.pipeline_mode<synchronous>, transform_indices = @transform_30, window_bounds = array<i64: 1, 64>}, {pipeline_mode = #tpu.pipeline_mode<synchronous>, transform_indices = @transform_31, window_bounds = array<i64: 1, 64>}, {pipeline_mode = #tpu.pipeline_mode<synchronous>, transform_indices = @transform_32, window_bounds = array<i64: 1, 64>}, {transform_indices = @transform_33, window_bounds = array<i64: 1, 16, 64>}]} {
    %c0 = arith.constant 0 : index
    %c0_0 = arith.constant 0 : index
    %c0_1 = arith.constant 0 : index
    %0 = vector.load %arg1[%c0, %c0_0, %c0_1] : memref<1x64x32xbf16, #tpu.memory_space<vmem>>, vector<1x64x32xbf16>
    %1 = vector.shape_cast %0 : vector<1x64x32xbf16> to vector<64x32xbf16>
    %2 = arith.extf %1 : vector<64x32xbf16> to vector<64x32xf32>
    %c0_2 = arith.constant 0 : index
    %c0_3 = arith.constant 0 : index
    %3 = vector.load %arg2[%c0_2, %c0_3] : memref<64x64xf32, #tpu.memory_space<vmem>>, vector<64x64xf32>
    %cst = arith.constant dense<0.000000e+00> : vector<64x32xf32>
    %4 = tpu.matmul %3, %2, %cst {dimension_numbers = #tpu.dot_dimension_numbers<[1], [0], [0], [1], [0, 0, 1, 1], [], []>} : vector<64x64xf32>, vector<64x32xf32>, vector<64x32xf32> -> vector<64x32xf32>
    %5 = vector.shape_cast %4 : vector<64x32xf32> to vector<4x16x32xf32>
    %cst_4 = arith.constant dense<0.000000e+00> : vector<16x32xf32>
    %6 = vector.multi_reduction <add>, %5, %cst_4 [0] : vector<4x16x32xf32> to vector<16x32xf32>
    %cst_5 = arith.constant dense<0.000000e+00> : vector<16xf32>
    %7 = vector.multi_reduction <add>, %6, %cst_5 [1] : vector<16x32xf32> to vector<16xf32>
    %8 = vector.shape_cast %7 : vector<16xf32> to vector<16x1xf32>
    %cst_6 = arith.constant 1.280000e+02 : f32
    %9 = vector.broadcast %cst_6 : f32 to vector<16x1xf32>
    %10 = arith.divf %8, %9 : vector<16x1xf32>
    %11 = vector.shape_cast %10 : vector<16x1xf32> to vector<1x16x1xf32>
    %12 = vector.broadcast %11 : vector<1x16x1xf32> to vector<4x16x32xf32>
    %13 = arith.subf %5, %12 : vector<4x16x32xf32>
    %14 = arith.mulf %13, %13 : vector<4x16x32xf32>
    %cst_7 = arith.constant dense<0.000000e+00> : vector<16x32xf32>
    %15 = vector.multi_reduction <add>, %14, %cst_7 [0] : vector<4x16x32xf32> to vector<16x32xf32>
    %cst_8 = arith.constant dense<0.000000e+00> : vector<16xf32>
    %16 = vector.multi_reduction <add>, %15, %cst_8 [1] : vector<16x32xf32> to vector<16xf32>
    %17 = vector.shape_cast %16 : vector<16xf32> to vector<16x1xf32>
    %cst_9 = arith.constant 1.280000e+02 : f32
    %18 = vector.broadcast %cst_9 : f32 to vector<16x1xf32>
    %19 = arith.divf %17, %18 : vector<16x1xf32>
    %cst_10 = arith.constant 9.99999974E-6 : f32
    %20 = vector.broadcast %cst_10 : f32 to vector<16x1xf32>
    %21 = arith.addf %19, %20 : vector<16x1xf32>
    %22 = math.rsqrt %21 : vector<16x1xf32>
    %23 = vector.shape_cast %22 : vector<16x1xf32> to vector<1x16x1xf32>
    %24 = vector.broadcast %23 : vector<1x16x1xf32> to vector<4x16x32xf32>
    %25 = arith.mulf %13, %24 : vector<4x16x32xf32>
    %c0_11 = arith.constant 0 : index
    %c0_12 = arith.constant 0 : index
    %c0_13 = arith.constant 0 : index
    %26 = vector.load %arg3[%c0_11, %c0_12, %c0_13] : memref<4x1x32xf32, #tpu.memory_space<vmem>>, vector<4x1x32xf32>
    %27 = vector.broadcast %26 : vector<4x1x32xf32> to vector<4x16x32xf32>
    %28 = arith.mulf %25, %27 : vector<4x16x32xf32>
    %c0_14 = arith.constant 0 : index
    %c0_15 = arith.constant 0 : index
    %c0_16 = arith.constant 0 : index
    %29 = vector.load %arg4[%c0_14, %c0_15, %c0_16] : memref<4x1x32xf32, #tpu.memory_space<vmem>>, vector<4x1x32xf32>
    %30 = vector.broadcast %29 : vector<4x1x32xf32> to vector<4x16x32xf32>
    %31 = arith.addf %28, %30 : vector<4x16x32xf32>
    %32 = arith.truncf %31 : vector<4x16x32xf32> to vector<4x16x32xbf16>
    %c0_17 = arith.constant 0 : index
    %c0_18 = arith.constant 0 : index
    %c0_19 = arith.constant 0 : index
    %33 = vector.load %arg5[%c0_17, %c0_18, %c0_19] : memref<4x32x64xbf16, #tpu.memory_space<vmem>>, vector<4x32x64xbf16>
    "tpu.trace_start"() <{level = 10 : i32, message = "qmc,qcd->qmd"}> : () -> ()
    %cst_20 = arith.constant dense<0.000000e+00> : vector<4x16x64xf32>
    %34 = tpu.matmul %32, %33, %cst_20 {dimension_numbers = #tpu.dot_dimension_numbers<[2], [1], [1], [2], [0, 0, 0, 1, 1, 2], [0], [0]>} : vector<4x16x32xbf16>, vector<4x32x64xbf16>, vector<4x16x64xf32> -> vector<4x16x64xf32>
    "tpu.trace_stop"() : () -> ()
    %cst_21 = arith.constant dense<0.000000e+00> : vector<16x64xf32>
    %35 = vector.multi_reduction <add>, %34, %cst_21 [0] : vector<4x16x64xf32> to vector<16x64xf32>
    %c0_22 = arith.constant 0 : index
    %c0_23 = arith.constant 0 : index
    %36 = vector.load %arg6[%c0_22, %c0_23] : memref<1x64xf32, #tpu.memory_space<vmem>>, vector<1x64xf32>
    %c0_24 = arith.constant 0 : index
    %c0_25 = arith.constant 0 : index
    %37 = vector.load %arg7[%c0_24, %c0_25] : memref<1x64xf32, #tpu.memory_space<vmem>>, vector<1x64xf32>
    %cst_26 = arith.constant dense<0.000000e+00> : vector<16xf32>
    %38 = vector.multi_reduction <add>, %35, %cst_26 [1] : vector<16x64xf32> to vector<16xf32>
    %39 = vector.shape_cast %38 : vector<16xf32> to vector<16x1xf32>
    %cst_27 = arith.constant 6.400000e+01 : f32
    %40 = vector.broadcast %cst_27 : f32 to vector<16x1xf32>
    %41 = arith.divf %39, %40 : vector<16x1xf32>
    %42 = vector.broadcast %41 : vector<16x1xf32> to vector<16x64xf32>
    %43 = arith.subf %35, %42 : vector<16x64xf32>
    %44 = arith.mulf %43, %43 : vector<16x64xf32>
    %cst_28 = arith.constant dense<0.000000e+00> : vector<16xf32>
    %45 = vector.multi_reduction <add>, %44, %cst_28 [1] : vector<16x64xf32> to vector<16xf32>
    %46 = vector.shape_cast %45 : vector<16xf32> to vector<16x1xf32>
    %cst_29 = arith.constant 6.400000e+01 : f32
    %47 = vector.broadcast %cst_29 : f32 to vector<16x1xf32>
    %48 = arith.divf %46, %47 : vector<16x1xf32>
    %cst_30 = arith.constant 9.99999974E-6 : f32
    %49 = vector.broadcast %cst_30 : f32 to vector<16x1xf32>
    %50 = arith.addf %48, %49 : vector<16x1xf32>
    %51 = math.rsqrt %50 : vector<16x1xf32>
    %52 = vector.broadcast %51 : vector<16x1xf32> to vector<16x64xf32>
    %53 = arith.mulf %43, %52 : vector<16x64xf32>
    %54 = vector.broadcast %36 : vector<1x64xf32> to vector<16x64xf32>
    %55 = arith.mulf %53, %54 : vector<16x64xf32>
    %56 = vector.broadcast %37 : vector<1x64xf32> to vector<16x64xf32>
    %57 = arith.addf %55, %56 : vector<16x64xf32>
    %58 = arith.truncf %57 : vector<16x64xf32> to vector<16x64xbf16>
    %c0_31 = arith.constant 0 : index
    %c0_32 = arith.constant 0 : index
    %59 = vector.load %arg8[%c0_31, %c0_32] : memref<64x192xbf16, #tpu.memory_space<vmem>>, vector<64x192xbf16>
    %cst_33 = arith.constant dense<0.000000e+00> : vector<16x192xf32>
    %60 = tpu.matmul %58, %59, %cst_33 {dimension_numbers = #tpu.dot_dimension_numbers<[1], [0], [0], [1], [0, 0, 1, 1], [], []>} : vector<16x64xbf16>, vector<64x192xbf16>, vector<16x192xf32> -> vector<16x192xf32>
    %c0_34 = arith.constant 0 : index
    %c0_35 = arith.constant 0 : index
    %61 = vector.load %arg9[%c0_34, %c0_35] : memref<1x192xf32, #tpu.memory_space<vmem>>, vector<1x192xf32>
    %62 = vector.broadcast %61 : vector<1x192xf32> to vector<16x192xf32>
    %63 = arith.addf %60, %62 : vector<16x192xf32>
    %64 = vector.extract_strided_slice %63 {offsets = [0, 0], sizes = [16, 16], strides = [1, 1]} : vector<16x192xf32> to vector<16x16xf32>
    %65 = vector.shape_cast %64 : vector<16x16xf32> to vector<1x16x16xf32>
    %66 = vector.extract_strided_slice %63 {offsets = [0, 16], sizes = [16, 16], strides = [1, 1]} : vector<16x192xf32> to vector<16x16xf32>
    %67 = vector.shape_cast %66 : vector<16x16xf32> to vector<1x16x16xf32>
    %68 = vector.extract_strided_slice %63 {offsets = [0, 32], sizes = [16, 16], strides = [1, 1]} : vector<16x192xf32> to vector<16x16xf32>
    %69 = vector.shape_cast %68 : vector<16x16xf32> to vector<1x16x16xf32>
    %70 = vector.extract_strided_slice %63 {offsets = [0, 48], sizes = [16, 16], strides = [1, 1]} : vector<16x192xf32> to vector<16x16xf32>
    %71 = vector.shape_cast %70 : vector<16x16xf32> to vector<1x16x16xf32>
    %72 = vector.shape_cast %65 : vector<1x16x16xf32> to vector<1x1x16x16xf32>
    %73 = vector.shape_cast %67 : vector<1x16x16xf32> to vector<1x1x16x16xf32>
    %74 = vector.shape_cast %69 : vector<1x16x16xf32> to vector<1x1x16x16xf32>
    %75 = vector.shape_cast %71 : vector<1x16x16xf32> to vector<1x1x16x16xf32>
    %76 = tpu.concatenate %72, %73, %74, %75 in 0 : vector<1x1x16x16xf32>, vector<1x1x16x16xf32>, vector<1x1x16x16xf32>, vector<1x1x16x16xf32> -> vector<4x1x16x16xf32>
    %77 = vector.shape_cast %76 : vector<4x1x16x16xf32> to vector<4x16x16xf32>
    %78 = vector.extract_strided_slice %63 {offsets = [0, 64], sizes = [16, 16], strides = [1, 1]} : vector<16x192xf32> to vector<16x16xf32>
    %79 = vector.shape_cast %78 : vector<16x16xf32> to vector<1x16x16xf32>
    %80 = vector.extract_strided_slice %63 {offsets = [0, 80], sizes = [16, 16], strides = [1, 1]} : vector<16x192xf32> to vector<16x16xf32>
    %81 = vector.shape_cast %80 : vector<16x16xf32> to vector<1x16x16xf32>
    %82 = vector.extract_strided_slice %63 {offsets = [0, 96], sizes = [16, 16], strides = [1, 1]} : vector<16x192xf32> to vector<16x16xf32>
    %83 = vector.shape_cast %82 : vector<16x16xf32> to vector<1x16x16xf32>
    %84 = vector.extract_strided_slice %63 {offsets = [0, 112], sizes = [16, 16], strides = [1, 1]} : vector<16x192xf32> to vector<16x16xf32>
    %85 = vector.shape_cast %84 : vector<16x16xf32> to vector<1x16x16xf32>
    %86 = vector.shape_cast %79 : vector<1x16x16xf32> to vector<1x1x16x16xf32>
    %87 = vector.shape_cast %81 : vector<1x16x16xf32> to vector<1x1x16x16xf32>
    %88 = vector.shape_cast %83 : vector<1x16x16xf32> to vector<1x1x16x16xf32>
    %89 = vector.shape_cast %85 : vector<1x16x16xf32> to vector<1x1x16x16xf32>
    %90 = tpu.concatenate %86, %87, %88, %89 in 0 : vector<1x1x16x16xf32>, vector<1x1x16x16xf32>, vector<1x1x16x16xf32>, vector<1x1x16x16xf32> -> vector<4x1x16x16xf32>
    %91 = vector.shape_cast %90 : vector<4x1x16x16xf32> to vector<4x16x16xf32>
    %92 = vector.extract_strided_slice %63 {offsets = [0, 128], sizes = [16, 16], strides = [1, 1]} : vector<16x192xf32> to vector<16x16xf32>
    %93 = vector.shape_cast %92 : vector<16x16xf32> to vector<1x16x16xf32>
    %94 = vector.extract_strided_slice %63 {offsets = [0, 144], sizes = [16, 16], strides = [1, 1]} : vector<16x192xf32> to vector<16x16xf32>
    %95 = vector.shape_cast %94 : vector<16x16xf32> to vector<1x16x16xf32>
    %96 = vector.extract_strided_slice %63 {offsets = [0, 160], sizes = [16, 16], strides = [1, 1]} : vector<16x192xf32> to vector<16x16xf32>
    %97 = vector.shape_cast %96 : vector<16x16xf32> to vector<1x16x16xf32>
    %98 = vector.extract_strided_slice %63 {offsets = [0, 176], sizes = [16, 16], strides = [1, 1]} : vector<16x192xf32> to vector<16x16xf32>
    %99 = vector.shape_cast %98 : vector<16x16xf32> to vector<1x16x16xf32>
    %100 = vector.shape_cast %93 : vector<1x16x16xf32> to vector<1x1x16x16xf32>
    %101 = vector.shape_cast %95 : vector<1x16x16xf32> to vector<1x1x16x16xf32>
    %102 = vector.shape_cast %97 : vector<1x16x16xf32> to vector<1x1x16x16xf32>
    %103 = vector.shape_cast %99 : vector<1x16x16xf32> to vector<1x1x16x16xf32>
    %104 = tpu.concatenate %100, %101, %102, %103 in 0 : vector<1x1x16x16xf32>, vector<1x1x16x16xf32>, vector<1x1x16x16xf32>, vector<1x1x16x16xf32> -> vector<4x1x16x16xf32>
    %105 = vector.shape_cast %104 : vector<4x1x16x16xf32> to vector<4x16x16xf32>
    %106 = arith.truncf %77 : vector<4x16x16xf32> to vector<4x16x16xbf16>
    %107 = arith.truncf %91 : vector<4x16x16xf32> to vector<4x16x16xbf16>
    "tpu.trace_start"() <{level = 10 : i32, message = "bnd,bmd->bnm"}> : () -> ()
    %cst_36 = arith.constant dense<0.000000e+00> : vector<4x16x16xf32>
    %108 = tpu.matmul %106, %107, %cst_36 {dimension_numbers = #tpu.dot_dimension_numbers<[2], [2], [1], [1], [0, 0, 0, 1, 1, 1], [0], [0]>} : vector<4x16x16xbf16>, vector<4x16x16xbf16>, vector<4x16x16xf32> -> vector<4x16x16xf32>
    "tpu.trace_stop"() : () -> ()
    %c0_37 = arith.constant 0 : index
    %c0_38 = arith.constant 0 : index
    %c0_39 = arith.constant 0 : index
    %109 = vector.load %arg10[%c0_37, %c0_38, %c0_39] : memref<4x16x16xf32, #tpu.memory_space<vmem>>, vector<4x16x16xf32>
    %110 = arith.addf %108, %109 : vector<4x16x16xf32>
    %cst_40 = arith.constant dense<0xFF800000> : vector<4x16xf32>
    %111 = vector.multi_reduction <maximumf>, %110, %cst_40 [2] : vector<4x16x16xf32> to vector<4x16xf32>
    %112 = vector.shape_cast %111 : vector<4x16xf32> to vector<4x16x1xf32>
    %113 = vector.broadcast %112 : vector<4x16x1xf32> to vector<4x16x16xf32>
    %114 = arith.subf %110, %113 : vector<4x16x16xf32>
    %115 = math.exp %114 : vector<4x16x16xf32>
    %cst_41 = arith.constant dense<0.000000e+00> : vector<4x16xf32>
    %116 = vector.multi_reduction <add>, %115, %cst_41 [2] : vector<4x16x16xf32> to vector<4x16xf32>
    %117 = vector.shape_cast %116 : vector<4x16xf32> to vector<4x16x1xf32>
    %118 = tpu.reciprocal %117 {approx = true} : vector<4x16x1xf32> -> vector<4x16x1xf32>
    %119 = vector.broadcast %118 : vector<4x16x1xf32> to vector<4x16x16xf32>
    %120 = arith.mulf %115, %119 : vector<4x16x16xf32>
    %121 = arith.truncf %120 : vector<4x16x16xf32> to vector<4x16x16xbf16>
    %122 = arith.truncf %105 : vector<4x16x16xf32> to vector<4x16x16xbf16>
    "tpu.trace_start"() <{level = 10 : i32, message = "bnm,bmd->bnd"}> : () -> ()
    %cst_42 = arith.constant dense<0.000000e+00> : vector<4x16x16xf32>
    %123 = tpu.matmul %121, %122, %cst_42 {dimension_numbers = #tpu.dot_dimension_numbers<[2], [1], [1], [2], [0, 0, 0, 1, 1, 2], [0], [0]>} : vector<4x16x16xbf16>, vector<4x16x16xbf16>, vector<4x16x16xf32> -> vector<4x16x16xf32>
    "tpu.trace_stop"() : () -> ()
    %124 = vector.shape_cast %123 : vector<4x16x16xf32> to vector<4x1x16x16xf32>
    %125 = vector.shape_cast %124 : vector<4x1x16x16xf32> to vector<4x16x16xf32>
    %126 = arith.truncf %125 : vector<4x16x16xf32> to vector<4x16x16xbf16>
    %c0_43 = arith.constant 0 : index
    %c0_44 = arith.constant 0 : index
    %c0_45 = arith.constant 0 : index
    %127 = vector.load %arg11[%c0_43, %c0_44, %c0_45] : memref<4x16x64xbf16, #tpu.memory_space<vmem>>, vector<4x16x64xbf16>
    "tpu.trace_start"() <{level = 10 : i32, message = "hrd,hdc->hrc"}> : () -> ()
    %cst_46 = arith.constant dense<0.000000e+00> : vector<4x16x64xf32>
    %128 = tpu.matmul %126, %127, %cst_46 {dimension_numbers = #tpu.dot_dimension_numbers<[2], [1], [1], [2], [0, 0, 0, 1, 1, 2], [0], [0]>} : vector<4x16x16xbf16>, vector<4x16x64xbf16>, vector<4x16x64xf32> -> vector<4x16x64xf32>
    "tpu.trace_stop"() : () -> ()
    %cst_47 = arith.constant dense<0.000000e+00> : vector<16x64xf32>
    %129 = vector.multi_reduction <add>, %128, %cst_47 [0] : vector<4x16x64xf32> to vector<16x64xf32>
    %130 = arith.addf %35, %129 : vector<16x64xf32>
    %c0_48 = arith.constant 0 : index
    %c0_49 = arith.constant 0 : index
    %131 = vector.load %arg12[%c0_48, %c0_49] : memref<1x64xf32, #tpu.memory_space<vmem>>, vector<1x64xf32>
    %132 = vector.broadcast %131 : vector<1x64xf32> to vector<16x64xf32>
    %133 = arith.addf %130, %132 : vector<16x64xf32>
    %c0_50 = arith.constant 0 : index
    %c0_51 = arith.constant 0 : index
    %134 = vector.load %arg13[%c0_50, %c0_51] : memref<1x64xf32, #tpu.memory_space<vmem>>, vector<1x64xf32>
    %c0_52 = arith.constant 0 : index
    %c0_53 = arith.constant 0 : index
    %135 = vector.load %arg14[%c0_52, %c0_53] : memref<1x64xf32, #tpu.memory_space<vmem>>, vector<1x64xf32>
    %cst_54 = arith.constant dense<0.000000e+00> : vector<16xf32>
    %136 = vector.multi_reduction <add>, %133, %cst_54 [1] : vector<16x64xf32> to vector<16xf32>
    %137 = vector.shape_cast %136 : vector<16xf32> to vector<16x1xf32>
    %cst_55 = arith.constant 6.400000e+01 : f32
    %138 = vector.broadcast %cst_55 : f32 to vector<16x1xf32>
    %139 = arith.divf %137, %138 : vector<16x1xf32>
    %140 = vector.broadcast %139 : vector<16x1xf32> to vector<16x64xf32>
    %141 = arith.subf %133, %140 : vector<16x64xf32>
    %142 = arith.mulf %141, %141 : vector<16x64xf32>
    %cst_56 = arith.constant dense<0.000000e+00> : vector<16xf32>
    %143 = vector.multi_reduction <add>, %142, %cst_56 [1] : vector<16x64xf32> to vector<16xf32>
    %144 = vector.shape_cast %143 : vector<16xf32> to vector<16x1xf32>
    %cst_57 = arith.constant 6.400000e+01 : f32
    %145 = vector.broadcast %cst_57 : f32 to vector<16x1xf32>
    %146 = arith.divf %144, %145 : vector<16x1xf32>
    %cst_58 = arith.constant 9.99999974E-6 : f32
    %147 = vector.broadcast %cst_58 : f32 to vector<16x1xf32>
    %148 = arith.addf %146, %147 : vector<16x1xf32>
    %149 = math.rsqrt %148 : vector<16x1xf32>
    %150 = vector.broadcast %149 : vector<16x1xf32> to vector<16x64xf32>
    %151 = arith.mulf %141, %150 : vector<16x64xf32>
    %152 = vector.broadcast %134 : vector<1x64xf32> to vector<16x64xf32>
    %153 = arith.mulf %151, %152 : vector<16x64xf32>
    %154 = vector.broadcast %135 : vector<1x64xf32> to vector<16x64xf32>
    %155 = arith.addf %153, %154 : vector<16x64xf32>
    %156 = arith.truncf %155 : vector<16x64xf32> to vector<16x64xbf16>
    %c0_59 = arith.constant 0 : index
    %c0_60 = arith.constant 0 : index
    %157 = vector.load %arg15[%c0_59, %c0_60] : memref<64x256xbf16, #tpu.memory_space<vmem>>, vector<64x256xbf16>
    %cst_61 = arith.constant dense<0.000000e+00> : vector<16x256xf32>
    %158 = tpu.matmul %156, %157, %cst_61 {dimension_numbers = #tpu.dot_dimension_numbers<[1], [0], [0], [1], [0, 0, 1, 1], [], []>} : vector<16x64xbf16>, vector<64x256xbf16>, vector<16x256xf32> -> vector<16x256xf32>
    %c0_62 = arith.constant 0 : index
    %c0_63 = arith.constant 0 : index
    %159 = vector.load %arg16[%c0_62, %c0_63] : memref<1x256xf32, #tpu.memory_space<vmem>>, vector<1x256xf32>
    %160 = vector.broadcast %159 : vector<1x256xf32> to vector<16x256xf32>
    %161 = arith.addf %158, %160 : vector<16x256xf32>
    %162 = arith.mulf %161, %161 : vector<16x256xf32>
    %163 = arith.mulf %161, %162 : vector<16x256xf32>
    %cst_64 = arith.constant 4.471500e-02 : f32
    %164 = vector.broadcast %cst_64 : f32 to vector<16x256xf32>
    %165 = arith.mulf %164, %163 : vector<16x256xf32>
    %166 = arith.addf %161, %165 : vector<16x256xf32>
    %cst_65 = arith.constant 0.797884583 : f32
    %167 = vector.broadcast %cst_65 : f32 to vector<16x256xf32>
    %168 = arith.mulf %167, %166 : vector<16x256xf32>
    %169 = math.tanh %168 : vector<16x256xf32>
    %cst_66 = arith.constant 1.000000e+00 : f32
    %170 = vector.broadcast %cst_66 : f32 to vector<16x256xf32>
    %171 = arith.addf %170, %169 : vector<16x256xf32>
    %cst_67 = arith.constant 5.000000e-01 : f32
    %172 = vector.broadcast %cst_67 : f32 to vector<16x256xf32>
    %173 = arith.mulf %172, %171 : vector<16x256xf32>
    %174 = arith.mulf %161, %173 : vector<16x256xf32>
    %175 = arith.truncf %174 : vector<16x256xf32> to vector<16x256xbf16>
    %c0_68 = arith.constant 0 : index
    %c0_69 = arith.constant 0 : index
    %176 = vector.load %arg17[%c0_68, %c0_69] : memref<256x64xbf16, #tpu.memory_space<vmem>>, vector<256x64xbf16>
    %cst_70 = arith.constant dense<0.000000e+00> : vector<16x64xf32>
    %177 = tpu.matmul %175, %176, %cst_70 {dimension_numbers = #tpu.dot_dimension_numbers<[1], [0], [0], [1], [0, 0, 1, 1], [], []>} : vector<16x256xbf16>, vector<256x64xbf16>, vector<16x64xf32> -> vector<16x64xf32>
    %c0_71 = arith.constant 0 : index
    %c0_72 = arith.constant 0 : index
    %178 = vector.load %arg18[%c0_71, %c0_72] : memref<1x64xf32, #tpu.memory_space<vmem>>, vector<1x64xf32>
    %179 = vector.broadcast %178 : vector<1x64xf32> to vector<16x64xf32>
    %180 = arith.addf %177, %179 : vector<16x64xf32>
    %181 = arith.addf %133, %180 : vector<16x64xf32>
    %c0_73 = arith.constant 0 : index
    %c0_74 = arith.constant 0 : index
    %182 = vector.load %arg19[%c0_73, %c0_74] : memref<1x64xf32, #tpu.memory_space<vmem>>, vector<1x64xf32>
    %c0_75 = arith.constant 0 : index
    %c0_76 = arith.constant 0 : index
    %183 = vector.load %arg20[%c0_75, %c0_76] : memref<1x64xf32, #tpu.memory_space<vmem>>, vector<1x64xf32>
    %cst_77 = arith.constant dense<0.000000e+00> : vector<16xf32>
    %184 = vector.multi_reduction <add>, %181, %cst_77 [1] : vector<16x64xf32> to vector<16xf32>
    %185 = vector.shape_cast %184 : vector<16xf32> to vector<16x1xf32>
    %cst_78 = arith.constant 6.400000e+01 : f32
    %186 = vector.broadcast %cst_78 : f32 to vector<16x1xf32>
    %187 = arith.divf %185, %186 : vector<16x1xf32>
    %188 = vector.broadcast %187 : vector<16x1xf32> to vector<16x64xf32>
    %189 = arith.subf %181, %188 : vector<16x64xf32>
    %190 = arith.mulf %189, %189 : vector<16x64xf32>
    %cst_79 = arith.constant dense<0.000000e+00> : vector<16xf32>
    %191 = vector.multi_reduction <add>, %190, %cst_79 [1] : vector<16x64xf32> to vector<16xf32>
    %192 = vector.shape_cast %191 : vector<16xf32> to vector<16x1xf32>
    %cst_80 = arith.constant 6.400000e+01 : f32
    %193 = vector.broadcast %cst_80 : f32 to vector<16x1xf32>
    %194 = arith.divf %192, %193 : vector<16x1xf32>
    %cst_81 = arith.constant 9.99999974E-6 : f32
    %195 = vector.broadcast %cst_81 : f32 to vector<16x1xf32>
    %196 = arith.addf %194, %195 : vector<16x1xf32>
    %197 = math.rsqrt %196 : vector<16x1xf32>
    %198 = vector.broadcast %197 : vector<16x1xf32> to vector<16x64xf32>
    %199 = arith.mulf %189, %198 : vector<16x64xf32>
    %200 = vector.broadcast %182 : vector<1x64xf32> to vector<16x64xf32>
    %201 = arith.mulf %199, %200 : vector<16x64xf32>
    %202 = vector.broadcast %183 : vector<1x64xf32> to vector<16x64xf32>
    %203 = arith.addf %201, %202 : vector<16x64xf32>
    %204 = arith.truncf %203 : vector<16x64xf32> to vector<16x64xbf16>
    %c0_82 = arith.constant 0 : index
    %c0_83 = arith.constant 0 : index
    %205 = vector.load %arg21[%c0_82, %c0_83] : memref<64x192xbf16, #tpu.memory_space<vmem>>, vector<64x192xbf16>
    %cst_84 = arith.constant dense<0.000000e+00> : vector<16x192xf32>
    %206 = tpu.matmul %204, %205, %cst_84 {dimension_numbers = #tpu.dot_dimension_numbers<[1], [0], [0], [1], [0, 0, 1, 1], [], []>} : vector<16x64xbf16>, vector<64x192xbf16>, vector<16x192xf32> -> vector<16x192xf32>
    %c0_85 = arith.constant 0 : index
    %c0_86 = arith.constant 0 : index
    %207 = vector.load %arg22[%c0_85, %c0_86] : memref<1x192xf32, #tpu.memory_space<vmem>>, vector<1x192xf32>
    %208 = vector.broadcast %207 : vector<1x192xf32> to vector<16x192xf32>
    %209 = arith.addf %206, %208 : vector<16x192xf32>
    %210 = vector.extract_strided_slice %209 {offsets = [0, 0], sizes = [16, 16], strides = [1, 1]} : vector<16x192xf32> to vector<16x16xf32>
    %211 = vector.shape_cast %210 : vector<16x16xf32> to vector<1x16x16xf32>
    %212 = vector.extract_strided_slice %209 {offsets = [0, 16], sizes = [16, 16], strides = [1, 1]} : vector<16x192xf32> to vector<16x16xf32>
    %213 = vector.shape_cast %212 : vector<16x16xf32> to vector<1x16x16xf32>
    %214 = vector.extract_strided_slice %209 {offsets = [0, 32], sizes = [16, 16], strides = [1, 1]} : vector<16x192xf32> to vector<16x16xf32>
    %215 = vector.shape_cast %214 : vector<16x16xf32> to vector<1x16x16xf32>
    %216 = vector.extract_strided_slice %209 {offsets = [0, 48], sizes = [16, 16], strides = [1, 1]} : vector<16x192xf32> to vector<16x16xf32>
    %217 = vector.shape_cast %216 : vector<16x16xf32> to vector<1x16x16xf32>
    %218 = vector.shape_cast %211 : vector<1x16x16xf32> to vector<1x1x16x16xf32>
    %219 = vector.shape_cast %213 : vector<1x16x16xf32> to vector<1x1x16x16xf32>
    %220 = vector.shape_cast %215 : vector<1x16x16xf32> to vector<1x1x16x16xf32>
    %221 = vector.shape_cast %217 : vector<1x16x16xf32> to vector<1x1x16x16xf32>
    %222 = tpu.concatenate %218, %219, %220, %221 in 0 : vector<1x1x16x16xf32>, vector<1x1x16x16xf32>, vector<1x1x16x16xf32>, vector<1x1x16x16xf32> -> vector<4x1x16x16xf32>
    %223 = vector.shape_cast %222 : vector<4x1x16x16xf32> to vector<4x16x16xf32>
    %224 = vector.extract_strided_slice %209 {offsets = [0, 64], sizes = [16, 16], strides = [1, 1]} : vector<16x192xf32> to vector<16x16xf32>
    %225 = vector.shape_cast %224 : vector<16x16xf32> to vector<1x16x16xf32>
    %226 = vector.extract_strided_slice %209 {offsets = [0, 80], sizes = [16, 16], strides = [1, 1]} : vector<16x192xf32> to vector<16x16xf32>
    %227 = vector.shape_cast %226 : vector<16x16xf32> to vector<1x16x16xf32>
    %228 = vector.extract_strided_slice %209 {offsets = [0, 96], sizes = [16, 16], strides = [1, 1]} : vector<16x192xf32> to vector<16x16xf32>
    %229 = vector.shape_cast %228 : vector<16x16xf32> to vector<1x16x16xf32>
    %230 = vector.extract_strided_slice %209 {offsets = [0, 112], sizes = [16, 16], strides = [1, 1]} : vector<16x192xf32> to vector<16x16xf32>
    %231 = vector.shape_cast %230 : vector<16x16xf32> to vector<1x16x16xf32>
    %232 = vector.shape_cast %225 : vector<1x16x16xf32> to vector<1x1x16x16xf32>
    %233 = vector.shape_cast %227 : vector<1x16x16xf32> to vector<1x1x16x16xf32>
    %234 = vector.shape_cast %229 : vector<1x16x16xf32> to vector<1x1x16x16xf32>
    %235 = vector.shape_cast %231 : vector<1x16x16xf32> to vector<1x1x16x16xf32>
    %236 = tpu.concatenate %232, %233, %234, %235 in 0 : vector<1x1x16x16xf32>, vector<1x1x16x16xf32>, vector<1x1x16x16xf32>, vector<1x1x16x16xf32> -> vector<4x1x16x16xf32>
    %237 = vector.shape_cast %236 : vector<4x1x16x16xf32> to vector<4x16x16xf32>
    %238 = vector.extract_strided_slice %209 {offsets = [0, 128], sizes = [16, 16], strides = [1, 1]} : vector<16x192xf32> to vector<16x16xf32>
    %239 = vector.shape_cast %238 : vector<16x16xf32> to vector<1x16x16xf32>
    %240 = vector.extract_strided_slice %209 {offsets = [0, 144], sizes = [16, 16], strides = [1, 1]} : vector<16x192xf32> to vector<16x16xf32>
    %241 = vector.shape_cast %240 : vector<16x16xf32> to vector<1x16x16xf32>
    %242 = vector.extract_strided_slice %209 {offsets = [0, 160], sizes = [16, 16], strides = [1, 1]} : vector<16x192xf32> to vector<16x16xf32>
    %243 = vector.shape_cast %242 : vector<16x16xf32> to vector<1x16x16xf32>
    %244 = vector.extract_strided_slice %209 {offsets = [0, 176], sizes = [16, 16], strides = [1, 1]} : vector<16x192xf32> to vector<16x16xf32>
    %245 = vector.shape_cast %244 : vector<16x16xf32> to vector<1x16x16xf32>
    %246 = vector.shape_cast %239 : vector<1x16x16xf32> to vector<1x1x16x16xf32>
    %247 = vector.shape_cast %241 : vector<1x16x16xf32> to vector<1x1x16x16xf32>
    %248 = vector.shape_cast %243 : vector<1x16x16xf32> to vector<1x1x16x16xf32>
    %249 = vector.shape_cast %245 : vector<1x16x16xf32> to vector<1x1x16x16xf32>
    %250 = tpu.concatenate %246, %247, %248, %249 in 0 : vector<1x1x16x16xf32>, vector<1x1x16x16xf32>, vector<1x1x16x16xf32>, vector<1x1x16x16xf32> -> vector<4x1x16x16xf32>
    %251 = vector.shape_cast %250 : vector<4x1x16x16xf32> to vector<4x16x16xf32>
    %252 = arith.truncf %223 : vector<4x16x16xf32> to vector<4x16x16xbf16>
    %253 = arith.truncf %237 : vector<4x16x16xf32> to vector<4x16x16xbf16>
    "tpu.trace_start"() <{level = 10 : i32, message = "bnd,bmd->bnm"}> : () -> ()
    %cst_87 = arith.constant dense<0.000000e+00> : vector<4x16x16xf32>
    %254 = tpu.matmul %252, %253, %cst_87 {dimension_numbers = #tpu.dot_dimension_numbers<[2], [2], [1], [1], [0, 0, 0, 1, 1, 1], [0], [0]>} : vector<4x16x16xbf16>, vector<4x16x16xbf16>, vector<4x16x16xf32> -> vector<4x16x16xf32>
    "tpu.trace_stop"() : () -> ()
    %c0_88 = arith.constant 0 : index
    %c0_89 = arith.constant 0 : index
    %c0_90 = arith.constant 0 : index
    %255 = vector.load %arg23[%c0_88, %c0_89, %c0_90] : memref<4x16x16xf32, #tpu.memory_space<vmem>>, vector<4x16x16xf32>
    %256 = arith.addf %254, %255 : vector<4x16x16xf32>
    %cst_91 = arith.constant dense<0xFF800000> : vector<4x16xf32>
    %257 = vector.multi_reduction <maximumf>, %256, %cst_91 [2] : vector<4x16x16xf32> to vector<4x16xf32>
    %258 = vector.shape_cast %257 : vector<4x16xf32> to vector<4x16x1xf32>
    %259 = vector.broadcast %258 : vector<4x16x1xf32> to vector<4x16x16xf32>
    %260 = arith.subf %256, %259 : vector<4x16x16xf32>
    %261 = math.exp %260 : vector<4x16x16xf32>
    %cst_92 = arith.constant dense<0.000000e+00> : vector<4x16xf32>
    %262 = vector.multi_reduction <add>, %261, %cst_92 [2] : vector<4x16x16xf32> to vector<4x16xf32>
    %263 = vector.shape_cast %262 : vector<4x16xf32> to vector<4x16x1xf32>
    %264 = tpu.reciprocal %263 {approx = true} : vector<4x16x1xf32> -> vector<4x16x1xf32>
    %265 = vector.broadcast %264 : vector<4x16x1xf32> to vector<4x16x16xf32>
    %266 = arith.mulf %261, %265 : vector<4x16x16xf32>
    %267 = arith.truncf %266 : vector<4x16x16xf32> to vector<4x16x16xbf16>
    %268 = arith.truncf %251 : vector<4x16x16xf32> to vector<4x16x16xbf16>
    "tpu.trace_start"() <{level = 10 : i32, message = "bnm,bmd->bnd"}> : () -> ()
    %cst_93 = arith.constant dense<0.000000e+00> : vector<4x16x16xf32>
    %269 = tpu.matmul %267, %268, %cst_93 {dimension_numbers = #tpu.dot_dimension_numbers<[2], [1], [1], [2], [0, 0, 0, 1, 1, 2], [0], [0]>} : vector<4x16x16xbf16>, vector<4x16x16xbf16>, vector<4x16x16xf32> -> vector<4x16x16xf32>
    "tpu.trace_stop"() : () -> ()
    %270 = vector.shape_cast %269 : vector<4x16x16xf32> to vector<4x1x16x16xf32>
    %271 = vector.shape_cast %270 : vector<4x1x16x16xf32> to vector<4x16x16xf32>
    %272 = arith.truncf %271 : vector<4x16x16xf32> to vector<4x16x16xbf16>
    %c0_94 = arith.constant 0 : index
    %c0_95 = arith.constant 0 : index
    %c0_96 = arith.constant 0 : index
    %273 = vector.load %arg24[%c0_94, %c0_95, %c0_96] : memref<4x16x64xbf16, #tpu.memory_space<vmem>>, vector<4x16x64xbf16>
    "tpu.trace_start"() <{level = 10 : i32, message = "hrd,hdc->hrc"}> : () -> ()
    %cst_97 = arith.constant dense<0.000000e+00> : vector<4x16x64xf32>
    %274 = tpu.matmul %272, %273, %cst_97 {dimension_numbers = #tpu.dot_dimension_numbers<[2], [1], [1], [2], [0, 0, 0, 1, 1, 2], [0], [0]>} : vector<4x16x16xbf16>, vector<4x16x64xbf16>, vector<4x16x64xf32> -> vector<4x16x64xf32>
    "tpu.trace_stop"() : () -> ()
    %cst_98 = arith.constant dense<0.000000e+00> : vector<16x64xf32>
    %275 = vector.multi_reduction <add>, %274, %cst_98 [0] : vector<4x16x64xf32> to vector<16x64xf32>
    %276 = arith.addf %181, %275 : vector<16x64xf32>
    %c0_99 = arith.constant 0 : index
    %c0_100 = arith.constant 0 : index
    %277 = vector.load %arg25[%c0_99, %c0_100] : memref<1x64xf32, #tpu.memory_space<vmem>>, vector<1x64xf32>
    %278 = vector.broadcast %277 : vector<1x64xf32> to vector<16x64xf32>
    %279 = arith.addf %276, %278 : vector<16x64xf32>
    %c0_101 = arith.constant 0 : index
    %c0_102 = arith.constant 0 : index
    %280 = vector.load %arg26[%c0_101, %c0_102] : memref<1x64xf32, #tpu.memory_space<vmem>>, vector<1x64xf32>
    %c0_103 = arith.constant 0 : index
    %c0_104 = arith.constant 0 : index
    %281 = vector.load %arg27[%c0_103, %c0_104] : memref<1x64xf32, #tpu.memory_space<vmem>>, vector<1x64xf32>
    %cst_105 = arith.constant dense<0.000000e+00> : vector<16xf32>
    %282 = vector.multi_reduction <add>, %279, %cst_105 [1] : vector<16x64xf32> to vector<16xf32>
    %283 = vector.shape_cast %282 : vector<16xf32> to vector<16x1xf32>
    %cst_106 = arith.constant 6.400000e+01 : f32
    %284 = vector.broadcast %cst_106 : f32 to vector<16x1xf32>
    %285 = arith.divf %283, %284 : vector<16x1xf32>
    %286 = vector.broadcast %285 : vector<16x1xf32> to vector<16x64xf32>
    %287 = arith.subf %279, %286 : vector<16x64xf32>
    %288 = arith.mulf %287, %287 : vector<16x64xf32>
    %cst_107 = arith.constant dense<0.000000e+00> : vector<16xf32>
    %289 = vector.multi_reduction <add>, %288, %cst_107 [1] : vector<16x64xf32> to vector<16xf32>
    %290 = vector.shape_cast %289 : vector<16xf32> to vector<16x1xf32>
    %cst_108 = arith.constant 6.400000e+01 : f32
    %291 = vector.broadcast %cst_108 : f32 to vector<16x1xf32>
    %292 = arith.divf %290, %291 : vector<16x1xf32>
    %cst_109 = arith.constant 9.99999974E-6 : f32
    %293 = vector.broadcast %cst_109 : f32 to vector<16x1xf32>
    %294 = arith.addf %292, %293 : vector<16x1xf32>
    %295 = math.rsqrt %294 : vector<16x1xf32>
    %296 = vector.broadcast %295 : vector<16x1xf32> to vector<16x64xf32>
    %297 = arith.mulf %287, %296 : vector<16x64xf32>
    %298 = vector.broadcast %280 : vector<1x64xf32> to vector<16x64xf32>
    %299 = arith.mulf %297, %298 : vector<16x64xf32>
    %300 = vector.broadcast %281 : vector<1x64xf32> to vector<16x64xf32>
    %301 = arith.addf %299, %300 : vector<16x64xf32>
    %302 = arith.truncf %301 : vector<16x64xf32> to vector<16x64xbf16>
    %c0_110 = arith.constant 0 : index
    %c0_111 = arith.constant 0 : index
    %303 = vector.load %arg28[%c0_110, %c0_111] : memref<64x256xbf16, #tpu.memory_space<vmem>>, vector<64x256xbf16>
    %cst_112 = arith.constant dense<0.000000e+00> : vector<16x256xf32>
    %304 = tpu.matmul %302, %303, %cst_112 {dimension_numbers = #tpu.dot_dimension_numbers<[1], [0], [0], [1], [0, 0, 1, 1], [], []>} : vector<16x64xbf16>, vector<64x256xbf16>, vector<16x256xf32> -> vector<16x256xf32>
    %c0_113 = arith.constant 0 : index
    %c0_114 = arith.constant 0 : index
    %305 = vector.load %arg29[%c0_113, %c0_114] : memref<1x256xf32, #tpu.memory_space<vmem>>, vector<1x256xf32>
    %306 = vector.broadcast %305 : vector<1x256xf32> to vector<16x256xf32>
    %307 = arith.addf %304, %306 : vector<16x256xf32>
    %308 = arith.mulf %307, %307 : vector<16x256xf32>
    %309 = arith.mulf %307, %308 : vector<16x256xf32>
    %cst_115 = arith.constant 4.471500e-02 : f32
    %310 = vector.broadcast %cst_115 : f32 to vector<16x256xf32>
    %311 = arith.mulf %310, %309 : vector<16x256xf32>
    %312 = arith.addf %307, %311 : vector<16x256xf32>
    %cst_116 = arith.constant 0.797884583 : f32
    %313 = vector.broadcast %cst_116 : f32 to vector<16x256xf32>
    %314 = arith.mulf %313, %312 : vector<16x256xf32>
    %315 = math.tanh %314 : vector<16x256xf32>
    %cst_117 = arith.constant 1.000000e+00 : f32
    %316 = vector.broadcast %cst_117 : f32 to vector<16x256xf32>
    %317 = arith.addf %316, %315 : vector<16x256xf32>
    %cst_118 = arith.constant 5.000000e-01 : f32
    %318 = vector.broadcast %cst_118 : f32 to vector<16x256xf32>
    %319 = arith.mulf %318, %317 : vector<16x256xf32>
    %320 = arith.mulf %307, %319 : vector<16x256xf32>
    %321 = arith.truncf %320 : vector<16x256xf32> to vector<16x256xbf16>
    %c0_119 = arith.constant 0 : index
    %c0_120 = arith.constant 0 : index
    %322 = vector.load %arg30[%c0_119, %c0_120] : memref<256x64xbf16, #tpu.memory_space<vmem>>, vector<256x64xbf16>
    %cst_121 = arith.constant dense<0.000000e+00> : vector<16x64xf32>
    %323 = tpu.matmul %321, %322, %cst_121 {dimension_numbers = #tpu.dot_dimension_numbers<[1], [0], [0], [1], [0, 0, 1, 1], [], []>} : vector<16x256xbf16>, vector<256x64xbf16>, vector<16x64xf32> -> vector<16x64xf32>
    %c0_122 = arith.constant 0 : index
    %c0_123 = arith.constant 0 : index
    %324 = vector.load %arg31[%c0_122, %c0_123] : memref<1x64xf32, #tpu.memory_space<vmem>>, vector<1x64xf32>
    %325 = vector.broadcast %324 : vector<1x64xf32> to vector<16x64xf32>
    %326 = arith.addf %323, %325 : vector<16x64xf32>
    %327 = arith.addf %279, %326 : vector<16x64xf32>
    %c0_124 = arith.constant 0 : index
    %c0_125 = arith.constant 0 : index
    %328 = vector.load %arg32[%c0_124, %c0_125] : memref<1x64xf32, #tpu.memory_space<vmem>>, vector<1x64xf32>
    %c0_126 = arith.constant 0 : index
    %c0_127 = arith.constant 0 : index
    %329 = vector.load %arg33[%c0_126, %c0_127] : memref<1x64xf32, #tpu.memory_space<vmem>>, vector<1x64xf32>
    %cst_128 = arith.constant dense<0.000000e+00> : vector<16xf32>
    %330 = vector.multi_reduction <add>, %327, %cst_128 [1] : vector<16x64xf32> to vector<16xf32>
    %331 = vector.shape_cast %330 : vector<16xf32> to vector<16x1xf32>
    %cst_129 = arith.constant 6.400000e+01 : f32
    %332 = vector.broadcast %cst_129 : f32 to vector<16x1xf32>
    %333 = arith.divf %331, %332 : vector<16x1xf32>
    %334 = vector.broadcast %333 : vector<16x1xf32> to vector<16x64xf32>
    %335 = arith.subf %327, %334 : vector<16x64xf32>
    %336 = arith.mulf %335, %335 : vector<16x64xf32>
    %cst_130 = arith.constant dense<0.000000e+00> : vector<16xf32>
    %337 = vector.multi_reduction <add>, %336, %cst_130 [1] : vector<16x64xf32> to vector<16xf32>
    %338 = vector.shape_cast %337 : vector<16xf32> to vector<16x1xf32>
    %cst_131 = arith.constant 6.400000e+01 : f32
    %339 = vector.broadcast %cst_131 : f32 to vector<16x1xf32>
    %340 = arith.divf %338, %339 : vector<16x1xf32>
    %cst_132 = arith.constant 9.99999974E-6 : f32
    %341 = vector.broadcast %cst_132 : f32 to vector<16x1xf32>
    %342 = arith.addf %340, %341 : vector<16x1xf32>
    %343 = math.rsqrt %342 : vector<16x1xf32>
    %344 = vector.broadcast %343 : vector<16x1xf32> to vector<16x64xf32>
    %345 = arith.mulf %335, %344 : vector<16x64xf32>
    %346 = vector.broadcast %328 : vector<1x64xf32> to vector<16x64xf32>
    %347 = arith.mulf %345, %346 : vector<16x64xf32>
    %348 = vector.broadcast %329 : vector<1x64xf32> to vector<16x64xf32>
    %349 = arith.addf %347, %348 : vector<16x64xf32>
    %350 = vector.shape_cast %349 : vector<16x64xf32> to vector<1x16x64xf32>
    %351 = arith.truncf %350 : vector<1x16x64xf32> to vector<1x16x64xbf16>
    %c0_133 = arith.constant 0 : index
    %c0_134 = arith.constant 0 : index
    %c0_135 = arith.constant 0 : index
    %352 = vector.load %arg34[%c0_133, %c0_134, %c0_135] : memref<1x16x64xbf16, #tpu.memory_space<vmem>>, vector<1x16x64xbf16>
    tpu.vector_store %arg34[%c0_133, %c0_134, %c0_135], %351 {strides = array<i32>} : memref<1x16x64xbf16, #tpu.memory_space<vmem>>, vector<1x16x64xbf16>,
    return
  }
  func.func @transform_0(%arg0: i32) -> (i32, i32, i32) {
    %c0_i32 = arith.constant 0 : i32
    %c0_i32_0 = arith.constant 0 : i32
    %c0_i32_1 = arith.constant 0 : i32
    return %arg0, %c0_i32, %c0_i32_0 : i32, i32, i32
  }
  func.func @transform_1(%arg0: i32) -> (i32, i32) {
    %c0_i32 = arith.constant 0 : i32
    %c0_i32_0 = arith.constant 0 : i32
    %c0_i32_1 = arith.constant 0 : i32
    return %c0_i32, %c0_i32_0 : i32, i32
  }
  func.func @transform_2(%arg0: i32) -> (i32, i32, i32) {
    %c0_i32 = arith.constant 0 : i32
    %c0_i32_0 = arith.constant 0 : i32
    %c0_i32_1 = arith.constant 0 : i32
    %c0_i32_2 = arith.constant 0 : i32
    return %c0_i32, %c0_i32_0, %c0_i32_1 : i32, i32, i32
  }
  func.func @transform_3(%arg0: i32) -> (i32, i32, i32) {
    %c0_i32 = arith.constant 0 : i32
    %c0_i32_0 = arith.constant 0 : i32
    %c0_i32_1 = arith.constant 0 : i32
    %c0_i32_2 = arith.constant 0 : i32
    return %c0_i32, %c0_i32_0, %c0_i32_1 : i32, i32, i32
  }
  func.func @transform_4(%arg0: i32) -> (i32, i32, i32) {
    %c0_i32 = arith.constant 0 : i32
    %c0_i32_0 = arith.constant 0 : i32
    %c0_i32_1 = arith.constant 0 : i32
    %c0_i32_2 = arith.constant 0 : i32
    return %c0_i32, %c0_i32_0, %c0_i32_1 : i32, i32, i32
  }
  func.func @transform_5(%arg0: i32) -> (i32, i32) {
    %c0_i32 = arith.constant 0 : i32
    %c0_i32_0 = arith.constant 0 : i32
    %c0_i32_1 = arith.constant 0 : i32
    return %c0_i32, %c0_i32_0 : i32, i32
  }
  func.func @transform_6(%arg0: i32) -> (i32, i32) {
    %c0_i32 = arith.constant 0 : i32
    %c0_i32_0 = arith.constant 0 : i32
    %c0_i32_1 = arith.constant 0 : i32
    return %c0_i32, %c0_i32_0 : i32, i32
  }
  func.func @transform_7(%arg0: i32) -> (i32, i32) {
    %c0_i32 = arith.constant 0 : i32
    %c0_i32_0 = arith.constant 0 : i32
    %c0_i32_1 = arith.constant 0 : i32
    return %c0_i32, %c0_i32_0 : i32, i32
  }
  func.func @transform_8(%arg0: i32) -> (i32, i32) {
    %c0_i32 = arith.constant 0 : i32
    %c0_i32_0 = arith.constant 0 : i32
    %c0_i32_1 = arith.constant 0 : i32
    return %c0_i32, %c0_i32_0 : i32, i32
  }
  func.func @transform_9(%arg0: i32) -> (i32, i32, i32) {
    %c0_i32 = arith.constant 0 : i32
    %c0_i32_0 = arith.constant 0 : i32
    %c0_i32_1 = arith.constant 0 : i32
    %c0_i32_2 = arith.constant 0 : i32
    return %c0_i32, %c0_i32_0, %c0_i32_1 : i32, i32, i32
  }
  func.func @transform_10(%arg0: i32) -> (i32, i32, i32) {
    %c0_i32 = arith.constant 0 : i32
    %c0_i32_0 = arith.constant 0 : i32
    %c0_i32_1 = arith.constant 0 : i32
    %c0_i32_2 = arith.constant 0 : i32
    return %c0_i32, %c0_i32_0, %c0_i32_1 : i32, i32, i32
  }
  func.func @transform_11(%arg0: i32) -> (i32, i32) {
    %c0_i32 = arith.constant 0 : i32
    %c0_i32_0 = arith.constant 0 : i32
    %c0_i32_1 = arith.constant 0 : i32
    return %c0_i32, %c0_i32_0 : i32, i32
  }
  func.func @transform_12(%arg0: i32) -> (i32, i32) {
    %c0_i32 = arith.constant 0 : i32
    %c0_i32_0 = arith.constant 0 : i32
    %c0_i32_1 = arith.constant 0 : i32
    return %c0_i32, %c0_i32_0 : i32, i32
  }
  func.func @transform_13(%arg0: i32) -> (i32, i32) {
    %c0_i32 = arith.constant 0 : i32
    %c0_i32_0 = arith.constant 0 : i32
    %c0_i32_1 = arith.constant 0 : i32
    return %c0_i32, %c0_i32_0 : i32, i32
  }
  func.func @transform_14(%arg0: i32) -> (i32, i32) {
    %c0_i32 = arith.constant 0 : i32
    %c0_i32_0 = arith.constant 0 : i32
    %c0_i32_1 = arith.constant 0 : i32
    return %c0_i32, %c0_i32_0 : i32, i32
  }
  func.func @transform_15(%arg0: i32) -> (i32, i32) {
    %c0_i32 = arith.constant 0 : i32
    %c0_i32_0 = arith.constant 0 : i32
    %c0_i32_1 = arith.constant 0 : i32
    return %c0_i32, %c0_i32_0 : i32, i32
  }
  func.func @transform_16(%arg0: i32) -> (i32, i32) {
    %c0_i32 = arith.constant 0 : i32
    %c0_i32_0 = arith.constant 0 : i32
    %c0_i32_1 = arith.constant 0 : i32
    return %c0_i32, %c0_i32_0 : i32, i32
  }
  func.func @transform_17(%arg0: i32) -> (i32, i32) {
    %c0_i32 = arith.constant 0 : i32
    %c0_i32_0 = arith.constant 0 : i32
    %c0_i32_1 = arith.constant 0 : i32
    return %c0_i32, %c0_i32_0 : i32, i32
  }
  func.func @transform_18(%arg0: i32) -> (i32, i32) {
    %c0_i32 = arith.constant 0 : i32
    %c0_i32_0 = arith.constant 0 : i32
    %c0_i32_1 = arith.constant 0 : i32
    return %c0_i32, %c0_i32_0 : i32, i32
  }
  func.func @transform_19(%arg0: i32) -> (i32, i32) {
    %c0_i32 = arith.constant 0 : i32
    %c0_i32_0 = arith.constant 0 : i32
    %c0_i32_1 = arith.constant 0 : i32
    return %c0_i32, %c0_i32_0 : i32, i32
  }
  func.func @transform_20(%arg0: i32) -> (i32, i32) {
    %c0_i32 = arith.constant 0 : i32
    %c0_i32_0 = arith.constant 0 : i32
    %c0_i32_1 = arith.constant 0 : i32
    return %c0_i32, %c0_i32_0 : i32, i32
  }
  func.func @transform_21(%arg0: i32) -> (i32, i32) {
    %c0_i32 = arith.constant 0 : i32
    %c0_i32_0 = arith.constant 0 : i32
    %c0_i32_1 = arith.constant 0 : i32
    return %c0_i32, %c0_i32_0 : i32, i32
  }
  func.func @transform_22(%arg0: i32) -> (i32, i32, i32) {
    %c0_i32 = arith.constant 0 : i32
    %c0_i32_0 = arith.constant 0 : i32
    %c0_i32_1 = arith.constant 0 : i32
    %c0_i32_2 = arith.constant 0 : i32
    return %c0_i32, %c0_i32_0, %c0_i32_1 : i32, i32, i32
  }
  func.func @transform_23(%arg0: i32) -> (i32, i32, i32) {
    %c0_i32 = arith.constant 0 : i32
    %c0_i32_0 = arith.constant 0 : i32
    %c0_i32_1 = arith.constant 0 : i32
    %c0_i32_2 = arith.constant 0 : i32
    return %c0_i32, %c0_i32_0, %c0_i32_1 : i32, i32, i32
  }
  func.func @transform_24(%arg0: i32) -> (i32, i32) {
    %c0_i32 = arith.constant 0 : i32
    %c0_i32_0 = arith.constant 0 : i32
    %c0_i32_1 = arith.constant 0 : i32
    return %c0_i32, %c0_i32_0 : i32, i32
  }
  func.func @transform_25(%arg0: i32) -> (i32, i32) {
    %c0_i32 = arith.constant 0 : i32
    %c0_i32_0 = arith.constant 0 : i32
    %c0_i32_1 = arith.constant 0 : i32
    return %c0_i32, %c0_i32_0 : i32, i32
  }
  func.func @transform_26(%arg0: i32) -> (i32, i32) {
    %c0_i32 = arith.constant 0 : i32
    %c0_i32_0 = arith.constant 0 : i32
    %c0_i32_1 = arith.constant 0 : i32
    return %c0_i32, %c0_i32_0 : i32, i32
  }
  func.func @transform_27(%arg0: i32) -> (i32, i32) {
    %c0_i32 = arith.constant 0 : i32
    %c0_i32_0 = arith.constant 0 : i32
    %c0_i32_1 = arith.constant 0 : i32
    return %c0_i32, %c0_i32_0 : i32, i32
  }
  func.func @transform_28(%arg0: i32) -> (i32, i32) {
    %c0_i32 = arith.constant 0 : i32
    %c0_i32_0 = arith.constant 0 : i32
    %c0_i32_1 = arith.constant 0 : i32
    return %c0_i32, %c0_i32_0 : i32, i32
  }
  func.func @transform_29(%arg0: i32) -> (i32, i32) {
    %c0_i32 = arith.constant 0 : i32
    %c0_i32_0 = arith.constant 0 : i32
    %c0_i32_1 = arith.constant 0 : i32
    return %c0_i32, %c0_i32_0 : i32, i32
  }
  func.func @transform_30(%arg0: i32) -> (i32, i32) {
    %c0_i32 = arith.constant 0 : i32
    %c0_i32_0 = arith.constant 0 : i32
    %c0_i32_1 = arith.constant 0 : i32
    return %c0_i32, %c0_i32_0 : i32, i32
  }
  func.func @transform_31(%arg0: i32) -> (i32, i32) {
    %c0_i32 = arith.constant 0 : i32
    %c0_i32_0 = arith.constant 0 : i32
    %c0_i32_1 = arith.constant 0 : i32
    return %c0_i32, %c0_i32_0 : i32, i32
  }
  func.func @transform_32(%arg0: i32) -> (i32, i32) {
    %c0_i32 = arith.constant 0 : i32
    %c0_i32_0 = arith.constant 0 : i32
    %c0_i32_1 = arith.constant 0 : i32
    return %c0_i32, %c0_i32_0 : i32, i32
  }
  func.func @transform_33(%arg0: i32) -> (i32, i32, i32) {
    %c0_i32 = arith.constant 0 : i32
    %c0_i32_0 = arith.constant 0 : i32
    %c0_i32_1 = arith.constant 0 : i32
    return %arg0, %c0_i32, %c0_i32_0 : i32, i32, i32
  }
}

module attributes {stable_mosaic.version = 11 : i64} {
  func.func @_stage1_kernel(%arg0: i32, %arg1: memref<1x64x48xbf16, #tpu.memory_space<vmem>>, %arg2: memref<48x32xbf16, #tpu.memory_space<vmem>>, %arg3: memref<1x32xf32, #tpu.memory_space<vmem>>, %arg4: memref<1x32xf32, #tpu.memory_space<vmem>>, %arg5: memref<1x32xf32, #tpu.memory_space<vmem>>, %arg6: memref<64x64xf32, #tpu.memory_space<vmem>>, %arg7: memref<64x64xf32, #tpu.memory_space<vmem>>, %arg8: memref<64x64xf32, #tpu.memory_space<vmem>>, %arg9: memref<1x32xf32, #tpu.memory_space<vmem>>, %arg10: memref<1x32xf32, #tpu.memory_space<vmem>>, %arg11: memref<32x96xbf16, #tpu.memory_space<vmem>>, %arg12: memref<1x96xf32, #tpu.memory_space<vmem>>, %arg13: memref<8x16x16xf32, #tpu.memory_space<vmem>>, %arg14: memref<2x16x32xbf16, #tpu.memory_space<vmem>>, %arg15: memref<1x32xf32, #tpu.memory_space<vmem>>, %arg16: memref<1x32xf32, #tpu.memory_space<vmem>>, %arg17: memref<1x32xf32, #tpu.memory_space<vmem>>, %arg18: memref<32x128xbf16, #tpu.memory_space<vmem>>, %arg19: memref<1x128xf32, #tpu.memory_space<vmem>>, %arg20: memref<128x32xbf16, #tpu.memory_space<vmem>>, %arg21: memref<1x32xf32, #tpu.memory_space<vmem>>, %arg22: memref<1x32xf32, #tpu.memory_space<vmem>>, %arg23: memref<1x32xf32, #tpu.memory_space<vmem>>, %arg24: memref<32x96xbf16, #tpu.memory_space<vmem>>, %arg25: memref<1x96xf32, #tpu.memory_space<vmem>>, %arg26: memref<8x16x16xf32, #tpu.memory_space<vmem>>, %arg27: memref<2x16x32xbf16, #tpu.memory_space<vmem>>, %arg28: memref<1x32xf32, #tpu.memory_space<vmem>>, %arg29: memref<1x32xf32, #tpu.memory_space<vmem>>, %arg30: memref<1x32xf32, #tpu.memory_space<vmem>>, %arg31: memref<32x128xbf16, #tpu.memory_space<vmem>>, %arg32: memref<1x128xf32, #tpu.memory_space<vmem>>, %arg33: memref<128x32xbf16, #tpu.memory_space<vmem>>, %arg34: memref<1x32xf32, #tpu.memory_space<vmem>>, %arg35: memref<1x64x32xbf16, #tpu.memory_space<vmem>>) attributes {dimension_semantics = [#tpu.dimension_semantics<parallel>], iteration_bounds = array<i64: 2>, scalar_prefetch = 0 : i64, scratch_operands = 0 : i64, tpu.core_type = #tpu.core_type<tc>, window_params = [{transform_indices = @transform_0, window_bounds = array<i64: 1, 64, 48>}, {pipeline_mode = #tpu.pipeline_mode<synchronous>, transform_indices = @transform_1, window_bounds = array<i64: 48, 32>}, {pipeline_mode = #tpu.pipeline_mode<synchronous>, transform_indices = @transform_2, window_bounds = array<i64: 1, 32>}, {pipeline_mode = #tpu.pipeline_mode<synchronous>, transform_indices = @transform_3, window_bounds = array<i64: 1, 32>}, {pipeline_mode = #tpu.pipeline_mode<synchronous>, transform_indices = @transform_4, window_bounds = array<i64: 1, 32>}, {pipeline_mode = #tpu.pipeline_mode<synchronous>, transform_indices = @transform_5, window_bounds = array<i64: 64, 64>}, {pipeline_mode = #tpu.pipeline_mode<synchronous>, transform_indices = @transform_6, window_bounds = array<i64: 64, 64>}, {pipeline_mode = #tpu.pipeline_mode<synchronous>, transform_indices = @transform_7, window_bounds = array<i64: 64, 64>}, {pipeline_mode = #tpu.pipeline_mode<synchronous>, transform_indices = @transform_8, window_bounds = array<i64: 1, 32>}, {pipeline_mode = #tpu.pipeline_mode<synchronous>, transform_indices = @transform_9, window_bounds = array<i64: 1, 32>}, {pipeline_mode = #tpu.pipeline_mode<synchronous>, transform_indices = @transform_10, window_bounds = array<i64: 32, 96>}, {pipeline_mode = #tpu.pipeline_mode<synchronous>, transform_indices = @transform_11, window_bounds = array<i64: 1, 96>}, {pipeline_mode = #tpu.pipeline_mode<synchronous>, transform_indices = @transform_12, window_bounds = array<i64: 8, 16, 16>}, {pipeline_mode = #tpu.pipeline_mode<synchronous>, transform_indices = @transform_13, window_bounds = array<i64: 2, 16, 32>}, {pipeline_mode = #tpu.pipeline_mode<synchronous>, transform_indices = @transform_14, window_bounds = array<i64: 1, 32>}, {pipeline_mode = #tpu.pipeline_mode<synchronous>, transform_indices = @transform_15, window_bounds = array<i64: 1, 32>}, {pipeline_mode = #tpu.pipeline_mode<synchronous>, transform_indices = @transform_16, window_bounds = array<i64: 1, 32>}, {pipeline_mode = #tpu.pipeline_mode<synchronous>, transform_indices = @transform_17, window_bounds = array<i64: 32, 128>}, {pipeline_mode = #tpu.pipeline_mode<synchronous>, transform_indices = @transform_18, window_bounds = array<i64: 1, 128>}, {pipeline_mode = #tpu.pipeline_mode<synchronous>, transform_indices = @transform_19, window_bounds = array<i64: 128, 32>}, {pipeline_mode = #tpu.pipeline_mode<synchronous>, transform_indices = @transform_20, window_bounds = array<i64: 1, 32>}, {pipeline_mode = #tpu.pipeline_mode<synchronous>, transform_indices = @transform_21, window_bounds = array<i64: 1, 32>}, {pipeline_mode = #tpu.pipeline_mode<synchronous>, transform_indices = @transform_22, window_bounds = array<i64: 1, 32>}, {pipeline_mode = #tpu.pipeline_mode<synchronous>, transform_indices = @transform_23, window_bounds = array<i64: 32, 96>}, {pipeline_mode = #tpu.pipeline_mode<synchronous>, transform_indices = @transform_24, window_bounds = array<i64: 1, 96>}, {pipeline_mode = #tpu.pipeline_mode<synchronous>, transform_indices = @transform_25, window_bounds = array<i64: 8, 16, 16>}, {pipeline_mode = #tpu.pipeline_mode<synchronous>, transform_indices = @transform_26, window_bounds = array<i64: 2, 16, 32>}, {pipeline_mode = #tpu.pipeline_mode<synchronous>, transform_indices = @transform_27, window_bounds = array<i64: 1, 32>}, {pipeline_mode = #tpu.pipeline_mode<synchronous>, transform_indices = @transform_28, window_bounds = array<i64: 1, 32>}, {pipeline_mode = #tpu.pipeline_mode<synchronous>, transform_indices = @transform_29, window_bounds = array<i64: 1, 32>}, {pipeline_mode = #tpu.pipeline_mode<synchronous>, transform_indices = @transform_30, window_bounds = array<i64: 32, 128>}, {pipeline_mode = #tpu.pipeline_mode<synchronous>, transform_indices = @transform_31, window_bounds = array<i64: 1, 128>}, {pipeline_mode = #tpu.pipeline_mode<synchronous>, transform_indices = @transform_32, window_bounds = array<i64: 128, 32>}, {pipeline_mode = #tpu.pipeline_mode<synchronous>, transform_indices = @transform_33, window_bounds = array<i64: 1, 32>}, {transform_indices = @transform_34, window_bounds = array<i64: 1, 64, 32>}]} {
    %c0 = arith.constant 0 : index
    %c0_0 = arith.constant 0 : index
    %c0_1 = arith.constant 0 : index
    %0 = vector.load %arg1[%c0, %c0_0, %c0_1] : memref<1x64x48xbf16, #tpu.memory_space<vmem>>, vector<1x64x48xbf16>
    %1 = vector.shape_cast %0 : vector<1x64x48xbf16> to vector<64x48xbf16>
    %c0_2 = arith.constant 0 : index
    %c0_3 = arith.constant 0 : index
    %2 = vector.load %arg2[%c0_2, %c0_3] : memref<48x32xbf16, #tpu.memory_space<vmem>>, vector<48x32xbf16>
    %cst = arith.constant dense<0.000000e+00> : vector<64x32xf32>
    %3 = tpu.matmul %1, %2, %cst {dimension_numbers = #tpu.dot_dimension_numbers<[1], [0], [0], [1], [0, 0, 1, 1], [], []>} : vector<64x48xbf16>, vector<48x32xbf16>, vector<64x32xf32> -> vector<64x32xf32>
    %c0_4 = arith.constant 0 : index
    %c0_5 = arith.constant 0 : index
    %4 = vector.load %arg3[%c0_4, %c0_5] : memref<1x32xf32, #tpu.memory_space<vmem>>, vector<1x32xf32>
    %5 = vector.broadcast %4 : vector<1x32xf32> to vector<64x32xf32>
    %6 = arith.addf %3, %5 : vector<64x32xf32>
    %c0_6 = arith.constant 0 : index
    %c0_7 = arith.constant 0 : index
    %7 = vector.load %arg4[%c0_6, %c0_7] : memref<1x32xf32, #tpu.memory_space<vmem>>, vector<1x32xf32>
    %c0_8 = arith.constant 0 : index
    %c0_9 = arith.constant 0 : index
    %8 = vector.load %arg5[%c0_8, %c0_9] : memref<1x32xf32, #tpu.memory_space<vmem>>, vector<1x32xf32>
    %cst_10 = arith.constant dense<0.000000e+00> : vector<64xf32>
    %9 = vector.multi_reduction <add>, %6, %cst_10 [1] : vector<64x32xf32> to vector<64xf32>
    %10 = vector.shape_cast %9 : vector<64xf32> to vector<64x1xf32>
    %cst_11 = arith.constant 3.200000e+01 : f32
    %11 = vector.broadcast %cst_11 : f32 to vector<64x1xf32>
    %12 = arith.divf %10, %11 : vector<64x1xf32>
    %13 = vector.broadcast %12 : vector<64x1xf32> to vector<64x32xf32>
    %14 = arith.subf %6, %13 : vector<64x32xf32>
    %15 = arith.mulf %14, %14 : vector<64x32xf32>
    %cst_12 = arith.constant dense<0.000000e+00> : vector<64xf32>
    %16 = vector.multi_reduction <add>, %15, %cst_12 [1] : vector<64x32xf32> to vector<64xf32>
    %17 = vector.shape_cast %16 : vector<64xf32> to vector<64x1xf32>
    %cst_13 = arith.constant 3.200000e+01 : f32
    %18 = vector.broadcast %cst_13 : f32 to vector<64x1xf32>
    %19 = arith.divf %17, %18 : vector<64x1xf32>
    %cst_14 = arith.constant 9.99999974E-6 : f32
    %20 = vector.broadcast %cst_14 : f32 to vector<64x1xf32>
    %21 = arith.addf %19, %20 : vector<64x1xf32>
    %22 = math.rsqrt %21 : vector<64x1xf32>
    %23 = vector.broadcast %22 : vector<64x1xf32> to vector<64x32xf32>
    %24 = arith.mulf %14, %23 : vector<64x32xf32>
    %25 = vector.broadcast %7 : vector<1x32xf32> to vector<64x32xf32>
    %26 = arith.mulf %24, %25 : vector<64x32xf32>
    %27 = vector.broadcast %8 : vector<1x32xf32> to vector<64x32xf32>
    %28 = arith.addf %26, %27 : vector<64x32xf32>
    %c0_15 = arith.constant 0 : index
    %c0_16 = arith.constant 0 : index
    %29 = vector.load %arg6[%c0_15, %c0_16] : memref<64x64xf32, #tpu.memory_space<vmem>>, vector<64x64xf32>
    %cst_17 = arith.constant dense<0.000000e+00> : vector<64x32xf32>
    %30 = tpu.matmul %29, %28, %cst_17 {dimension_numbers = #tpu.dot_dimension_numbers<[1], [0], [0], [1], [0, 0, 1, 1], [], []>} : vector<64x64xf32>, vector<64x32xf32>, vector<64x32xf32> -> vector<64x32xf32>
    %c0_18 = arith.constant 0 : index
    %c0_19 = arith.constant 0 : index
    %31 = vector.load %arg9[%c0_18, %c0_19] : memref<1x32xf32, #tpu.memory_space<vmem>>, vector<1x32xf32>
    %c0_20 = arith.constant 0 : index
    %c0_21 = arith.constant 0 : index
    %32 = vector.load %arg10[%c0_20, %c0_21] : memref<1x32xf32, #tpu.memory_space<vmem>>, vector<1x32xf32>
    %cst_22 = arith.constant dense<0.000000e+00> : vector<64xf32>
    %33 = vector.multi_reduction <add>, %30, %cst_22 [1] : vector<64x32xf32> to vector<64xf32>
    %34 = vector.shape_cast %33 : vector<64xf32> to vector<64x1xf32>
    %cst_23 = arith.constant 3.200000e+01 : f32
    %35 = vector.broadcast %cst_23 : f32 to vector<64x1xf32>
    %36 = arith.divf %34, %35 : vector<64x1xf32>
    %37 = vector.broadcast %36 : vector<64x1xf32> to vector<64x32xf32>
    %38 = arith.subf %30, %37 : vector<64x32xf32>
    %39 = arith.mulf %38, %38 : vector<64x32xf32>
    %cst_24 = arith.constant dense<0.000000e+00> : vector<64xf32>
    %40 = vector.multi_reduction <add>, %39, %cst_24 [1] : vector<64x32xf32> to vector<64xf32>
    %41 = vector.shape_cast %40 : vector<64xf32> to vector<64x1xf32>
    %cst_25 = arith.constant 3.200000e+01 : f32
    %42 = vector.broadcast %cst_25 : f32 to vector<64x1xf32>
    %43 = arith.divf %41, %42 : vector<64x1xf32>
    %cst_26 = arith.constant 9.99999974E-6 : f32
    %44 = vector.broadcast %cst_26 : f32 to vector<64x1xf32>
    %45 = arith.addf %43, %44 : vector<64x1xf32>
    %46 = math.rsqrt %45 : vector<64x1xf32>
    %47 = vector.broadcast %46 : vector<64x1xf32> to vector<64x32xf32>
    %48 = arith.mulf %38, %47 : vector<64x32xf32>
    %49 = vector.broadcast %31 : vector<1x32xf32> to vector<64x32xf32>
    %50 = arith.mulf %48, %49 : vector<64x32xf32>
    %51 = vector.broadcast %32 : vector<1x32xf32> to vector<64x32xf32>
    %52 = arith.addf %50, %51 : vector<64x32xf32>
    %53 = arith.truncf %52 : vector<64x32xf32> to vector<64x32xbf16>
    %c0_27 = arith.constant 0 : index
    %c0_28 = arith.constant 0 : index
    %54 = vector.load %arg11[%c0_27, %c0_28] : memref<32x96xbf16, #tpu.memory_space<vmem>>, vector<32x96xbf16>
    %cst_29 = arith.constant dense<0.000000e+00> : vector<64x96xf32>
    %55 = tpu.matmul %53, %54, %cst_29 {dimension_numbers = #tpu.dot_dimension_numbers<[1], [0], [0], [1], [0, 0, 1, 1], [], []>} : vector<64x32xbf16>, vector<32x96xbf16>, vector<64x96xf32> -> vector<64x96xf32>
    %c0_30 = arith.constant 0 : index
    %c0_31 = arith.constant 0 : index
    %56 = vector.load %arg12[%c0_30, %c0_31] : memref<1x96xf32, #tpu.memory_space<vmem>>, vector<1x96xf32>
    %57 = vector.broadcast %56 : vector<1x96xf32> to vector<64x96xf32>
    %58 = arith.addf %55, %57 : vector<64x96xf32>
    %59 = vector.extract_strided_slice %58 {offsets = [0, 0], sizes = [64, 16], strides = [1, 1]} : vector<64x96xf32> to vector<64x16xf32>
    %60 = vector.shape_cast %59 : vector<64x16xf32> to vector<4x16x16xf32>
    %61 = vector.extract_strided_slice %58 {offsets = [0, 16], sizes = [64, 16], strides = [1, 1]} : vector<64x96xf32> to vector<64x16xf32>
    %62 = vector.shape_cast %61 : vector<64x16xf32> to vector<4x16x16xf32>
    %63 = vector.shape_cast %60 : vector<4x16x16xf32> to vector<1x4x16x16xf32>
    %64 = vector.shape_cast %62 : vector<4x16x16xf32> to vector<1x4x16x16xf32>
    %65 = tpu.concatenate %63, %64 in 0 : vector<1x4x16x16xf32>, vector<1x4x16x16xf32> -> vector<2x4x16x16xf32>
    %66 = vector.shape_cast %65 : vector<2x4x16x16xf32> to vector<8x16x16xf32>
    %67 = vector.extract_strided_slice %58 {offsets = [0, 32], sizes = [64, 16], strides = [1, 1]} : vector<64x96xf32> to vector<64x16xf32>
    %68 = vector.shape_cast %67 : vector<64x16xf32> to vector<4x16x16xf32>
    %69 = vector.extract_strided_slice %58 {offsets = [0, 48], sizes = [64, 16], strides = [1, 1]} : vector<64x96xf32> to vector<64x16xf32>
    %70 = vector.shape_cast %69 : vector<64x16xf32> to vector<4x16x16xf32>
    %71 = vector.shape_cast %68 : vector<4x16x16xf32> to vector<1x4x16x16xf32>
    %72 = vector.shape_cast %70 : vector<4x16x16xf32> to vector<1x4x16x16xf32>
    %73 = tpu.concatenate %71, %72 in 0 : vector<1x4x16x16xf32>, vector<1x4x16x16xf32> -> vector<2x4x16x16xf32>
    %74 = vector.shape_cast %73 : vector<2x4x16x16xf32> to vector<8x16x16xf32>
    %75 = vector.extract_strided_slice %58 {offsets = [0, 64], sizes = [64, 16], strides = [1, 1]} : vector<64x96xf32> to vector<64x16xf32>
    %76 = vector.shape_cast %75 : vector<64x16xf32> to vector<4x16x16xf32>
    %77 = vector.extract_strided_slice %58 {offsets = [0, 80], sizes = [64, 16], strides = [1, 1]} : vector<64x96xf32> to vector<64x16xf32>
    %78 = vector.shape_cast %77 : vector<64x16xf32> to vector<4x16x16xf32>
    %79 = vector.shape_cast %76 : vector<4x16x16xf32> to vector<1x4x16x16xf32>
    %80 = vector.shape_cast %78 : vector<4x16x16xf32> to vector<1x4x16x16xf32>
    %81 = tpu.concatenate %79, %80 in 0 : vector<1x4x16x16xf32>, vector<1x4x16x16xf32> -> vector<2x4x16x16xf32>
    %82 = vector.shape_cast %81 : vector<2x4x16x16xf32> to vector<8x16x16xf32>
    %83 = arith.truncf %66 : vector<8x16x16xf32> to vector<8x16x16xbf16>
    %84 = arith.truncf %74 : vector<8x16x16xf32> to vector<8x16x16xbf16>
    "tpu.trace_start"() <{level = 10 : i32, message = "bnd,bmd->bnm"}> : () -> ()
    %cst_32 = arith.constant dense<0.000000e+00> : vector<8x16x16xf32>
    %85 = tpu.matmul %83, %84, %cst_32 {dimension_numbers = #tpu.dot_dimension_numbers<[2], [2], [1], [1], [0, 0, 0, 1, 1, 1], [0], [0]>} : vector<8x16x16xbf16>, vector<8x16x16xbf16>, vector<8x16x16xf32> -> vector<8x16x16xf32>
    "tpu.trace_stop"() : () -> ()
    %c0_33 = arith.constant 0 : index
    %c0_34 = arith.constant 0 : index
    %c0_35 = arith.constant 0 : index
    %86 = vector.load %arg13[%c0_33, %c0_34, %c0_35] : memref<8x16x16xf32, #tpu.memory_space<vmem>>, vector<8x16x16xf32>
    %87 = arith.addf %85, %86 : vector<8x16x16xf32>
    %cst_36 = arith.constant dense<0xFF800000> : vector<8x16xf32>
    %88 = vector.multi_reduction <maximumf>, %87, %cst_36 [2] : vector<8x16x16xf32> to vector<8x16xf32>
    %89 = vector.shape_cast %88 : vector<8x16xf32> to vector<8x16x1xf32>
    %90 = vector.broadcast %89 : vector<8x16x1xf32> to vector<8x16x16xf32>
    %91 = arith.subf %87, %90 : vector<8x16x16xf32>
    %92 = math.exp %91 : vector<8x16x16xf32>
    %cst_37 = arith.constant dense<0.000000e+00> : vector<8x16xf32>
    %93 = vector.multi_reduction <add>, %92, %cst_37 [2] : vector<8x16x16xf32> to vector<8x16xf32>
    %94 = vector.shape_cast %93 : vector<8x16xf32> to vector<8x16x1xf32>
    %95 = tpu.reciprocal %94 {approx = true} : vector<8x16x1xf32> -> vector<8x16x1xf32>
    %96 = vector.broadcast %95 : vector<8x16x1xf32> to vector<8x16x16xf32>
    %97 = arith.mulf %92, %96 : vector<8x16x16xf32>
    %98 = arith.truncf %97 : vector<8x16x16xf32> to vector<8x16x16xbf16>
    %99 = arith.truncf %82 : vector<8x16x16xf32> to vector<8x16x16xbf16>
    "tpu.trace_start"() <{level = 10 : i32, message = "bnm,bmd->bnd"}> : () -> ()
    %cst_38 = arith.constant dense<0.000000e+00> : vector<8x16x16xf32>
    %100 = tpu.matmul %98, %99, %cst_38 {dimension_numbers = #tpu.dot_dimension_numbers<[2], [1], [1], [2], [0, 0, 0, 1, 1, 2], [0], [0]>} : vector<8x16x16xbf16>, vector<8x16x16xbf16>, vector<8x16x16xf32> -> vector<8x16x16xf32>
    "tpu.trace_stop"() : () -> ()
    %101 = vector.shape_cast %100 : vector<8x16x16xf32> to vector<2x4x16x16xf32>
    %102 = vector.shape_cast %101 : vector<2x4x16x16xf32> to vector<2x64x16xf32>
    %103 = arith.truncf %102 : vector<2x64x16xf32> to vector<2x64x16xbf16>
    %c0_39 = arith.constant 0 : index
    %c0_40 = arith.constant 0 : index
    %c0_41 = arith.constant 0 : index
    %104 = vector.load %arg14[%c0_39, %c0_40, %c0_41] : memref<2x16x32xbf16, #tpu.memory_space<vmem>>, vector<2x16x32xbf16>
    "tpu.trace_start"() <{level = 10 : i32, message = "hrd,hdc->hrc"}> : () -> ()
    %cst_42 = arith.constant dense<0.000000e+00> : vector<2x64x32xf32>
    %105 = tpu.matmul %103, %104, %cst_42 {dimension_numbers = #tpu.dot_dimension_numbers<[2], [1], [1], [2], [0, 0, 0, 1, 1, 2], [0], [0]>} : vector<2x64x16xbf16>, vector<2x16x32xbf16>, vector<2x64x32xf32> -> vector<2x64x32xf32>
    "tpu.trace_stop"() : () -> ()
    %cst_43 = arith.constant dense<0.000000e+00> : vector<64x32xf32>
    %106 = vector.multi_reduction <add>, %105, %cst_43 [0] : vector<2x64x32xf32> to vector<64x32xf32>
    %107 = arith.addf %30, %106 : vector<64x32xf32>
    %c0_44 = arith.constant 0 : index
    %c0_45 = arith.constant 0 : index
    %108 = vector.load %arg15[%c0_44, %c0_45] : memref<1x32xf32, #tpu.memory_space<vmem>>, vector<1x32xf32>
    %109 = vector.broadcast %108 : vector<1x32xf32> to vector<64x32xf32>
    %110 = arith.addf %107, %109 : vector<64x32xf32>
    %c0_46 = arith.constant 0 : index
    %c0_47 = arith.constant 0 : index
    %111 = vector.load %arg16[%c0_46, %c0_47] : memref<1x32xf32, #tpu.memory_space<vmem>>, vector<1x32xf32>
    %c0_48 = arith.constant 0 : index
    %c0_49 = arith.constant 0 : index
    %112 = vector.load %arg17[%c0_48, %c0_49] : memref<1x32xf32, #tpu.memory_space<vmem>>, vector<1x32xf32>
    %cst_50 = arith.constant dense<0.000000e+00> : vector<64xf32>
    %113 = vector.multi_reduction <add>, %110, %cst_50 [1] : vector<64x32xf32> to vector<64xf32>
    %114 = vector.shape_cast %113 : vector<64xf32> to vector<64x1xf32>
    %cst_51 = arith.constant 3.200000e+01 : f32
    %115 = vector.broadcast %cst_51 : f32 to vector<64x1xf32>
    %116 = arith.divf %114, %115 : vector<64x1xf32>
    %117 = vector.broadcast %116 : vector<64x1xf32> to vector<64x32xf32>
    %118 = arith.subf %110, %117 : vector<64x32xf32>
    %119 = arith.mulf %118, %118 : vector<64x32xf32>
    %cst_52 = arith.constant dense<0.000000e+00> : vector<64xf32>
    %120 = vector.multi_reduction <add>, %119, %cst_52 [1] : vector<64x32xf32> to vector<64xf32>
    %121 = vector.shape_cast %120 : vector<64xf32> to vector<64x1xf32>
    %cst_53 = arith.constant 3.200000e+01 : f32
    %122 = vector.broadcast %cst_53 : f32 to vector<64x1xf32>
    %123 = arith.divf %121, %122 : vector<64x1xf32>
    %cst_54 = arith.constant 9.99999974E-6 : f32
    %124 = vector.broadcast %cst_54 : f32 to vector<64x1xf32>
    %125 = arith.addf %123, %124 : vector<64x1xf32>
    %126 = math.rsqrt %125 : vector<64x1xf32>
    %127 = vector.broadcast %126 : vector<64x1xf32> to vector<64x32xf32>
    %128 = arith.mulf %118, %127 : vector<64x32xf32>
    %129 = vector.broadcast %111 : vector<1x32xf32> to vector<64x32xf32>
    %130 = arith.mulf %128, %129 : vector<64x32xf32>
    %131 = vector.broadcast %112 : vector<1x32xf32> to vector<64x32xf32>
    %132 = arith.addf %130, %131 : vector<64x32xf32>
    %133 = arith.truncf %132 : vector<64x32xf32> to vector<64x32xbf16>
    %c0_55 = arith.constant 0 : index
    %c0_56 = arith.constant 0 : index
    %134 = vector.load %arg18[%c0_55, %c0_56] : memref<32x128xbf16, #tpu.memory_space<vmem>>, vector<32x128xbf16>
    %cst_57 = arith.constant dense<0.000000e+00> : vector<64x128xf32>
    %135 = tpu.matmul %133, %134, %cst_57 {dimension_numbers = #tpu.dot_dimension_numbers<[1], [0], [0], [1], [0, 0, 1, 1], [], []>} : vector<64x32xbf16>, vector<32x128xbf16>, vector<64x128xf32> -> vector<64x128xf32>
    %c0_58 = arith.constant 0 : index
    %c0_59 = arith.constant 0 : index
    %136 = vector.load %arg19[%c0_58, %c0_59] : memref<1x128xf32, #tpu.memory_space<vmem>>, vector<1x128xf32>
    %137 = vector.broadcast %136 : vector<1x128xf32> to vector<64x128xf32>
    %138 = arith.addf %135, %137 : vector<64x128xf32>
    %139 = arith.mulf %138, %138 : vector<64x128xf32>
    %140 = arith.mulf %138, %139 : vector<64x128xf32>
    %cst_60 = arith.constant 4.471500e-02 : f32
    %141 = vector.broadcast %cst_60 : f32 to vector<64x128xf32>
    %142 = arith.mulf %141, %140 : vector<64x128xf32>
    %143 = arith.addf %138, %142 : vector<64x128xf32>
    %cst_61 = arith.constant 0.797884583 : f32
    %144 = vector.broadcast %cst_61 : f32 to vector<64x128xf32>
    %145 = arith.mulf %144, %143 : vector<64x128xf32>
    %146 = math.tanh %145 : vector<64x128xf32>
    %cst_62 = arith.constant 1.000000e+00 : f32
    %147 = vector.broadcast %cst_62 : f32 to vector<64x128xf32>
    %148 = arith.addf %147, %146 : vector<64x128xf32>
    %cst_63 = arith.constant 5.000000e-01 : f32
    %149 = vector.broadcast %cst_63 : f32 to vector<64x128xf32>
    %150 = arith.mulf %149, %148 : vector<64x128xf32>
    %151 = arith.mulf %138, %150 : vector<64x128xf32>
    %152 = arith.truncf %151 : vector<64x128xf32> to vector<64x128xbf16>
    %c0_64 = arith.constant 0 : index
    %c0_65 = arith.constant 0 : index
    %153 = vector.load %arg20[%c0_64, %c0_65] : memref<128x32xbf16, #tpu.memory_space<vmem>>, vector<128x32xbf16>
    %cst_66 = arith.constant dense<0.000000e+00> : vector<64x32xf32>
    %154 = tpu.matmul %152, %153, %cst_66 {dimension_numbers = #tpu.dot_dimension_numbers<[1], [0], [0], [1], [0, 0, 1, 1], [], []>} : vector<64x128xbf16>, vector<128x32xbf16>, vector<64x32xf32> -> vector<64x32xf32>
    %c0_67 = arith.constant 0 : index
    %c0_68 = arith.constant 0 : index
    %155 = vector.load %arg21[%c0_67, %c0_68] : memref<1x32xf32, #tpu.memory_space<vmem>>, vector<1x32xf32>
    %156 = vector.broadcast %155 : vector<1x32xf32> to vector<64x32xf32>
    %157 = arith.addf %154, %156 : vector<64x32xf32>
    %158 = arith.addf %110, %157 : vector<64x32xf32>
    %c0_69 = arith.constant 0 : index
    %c0_70 = arith.constant 0 : index
    %159 = vector.load %arg7[%c0_69, %c0_70] : memref<64x64xf32, #tpu.memory_space<vmem>>, vector<64x64xf32>
    %cst_71 = arith.constant dense<0.000000e+00> : vector<64x32xf32>
    %160 = tpu.matmul %159, %158, %cst_71 {dimension_numbers = #tpu.dot_dimension_numbers<[1], [0], [0], [1], [0, 0, 1, 1], [], []>} : vector<64x64xf32>, vector<64x32xf32>, vector<64x32xf32> -> vector<64x32xf32>
    %c0_72 = arith.constant 0 : index
    %c0_73 = arith.constant 0 : index
    %161 = vector.load %arg22[%c0_72, %c0_73] : memref<1x32xf32, #tpu.memory_space<vmem>>, vector<1x32xf32>
    %c0_74 = arith.constant 0 : index
    %c0_75 = arith.constant 0 : index
    %162 = vector.load %arg23[%c0_74, %c0_75] : memref<1x32xf32, #tpu.memory_space<vmem>>, vector<1x32xf32>
    %cst_76 = arith.constant dense<0.000000e+00> : vector<64xf32>
    %163 = vector.multi_reduction <add>, %160, %cst_76 [1] : vector<64x32xf32> to vector<64xf32>
    %164 = vector.shape_cast %163 : vector<64xf32> to vector<64x1xf32>
    %cst_77 = arith.constant 3.200000e+01 : f32
    %165 = vector.broadcast %cst_77 : f32 to vector<64x1xf32>
    %166 = arith.divf %164, %165 : vector<64x1xf32>
    %167 = vector.broadcast %166 : vector<64x1xf32> to vector<64x32xf32>
    %168 = arith.subf %160, %167 : vector<64x32xf32>
    %169 = arith.mulf %168, %168 : vector<64x32xf32>
    %cst_78 = arith.constant dense<0.000000e+00> : vector<64xf32>
    %170 = vector.multi_reduction <add>, %169, %cst_78 [1] : vector<64x32xf32> to vector<64xf32>
    %171 = vector.shape_cast %170 : vector<64xf32> to vector<64x1xf32>
    %cst_79 = arith.constant 3.200000e+01 : f32
    %172 = vector.broadcast %cst_79 : f32 to vector<64x1xf32>
    %173 = arith.divf %171, %172 : vector<64x1xf32>
    %cst_80 = arith.constant 9.99999974E-6 : f32
    %174 = vector.broadcast %cst_80 : f32 to vector<64x1xf32>
    %175 = arith.addf %173, %174 : vector<64x1xf32>
    %176 = math.rsqrt %175 : vector<64x1xf32>
    %177 = vector.broadcast %176 : vector<64x1xf32> to vector<64x32xf32>
    %178 = arith.mulf %168, %177 : vector<64x32xf32>
    %179 = vector.broadcast %161 : vector<1x32xf32> to vector<64x32xf32>
    %180 = arith.mulf %178, %179 : vector<64x32xf32>
    %181 = vector.broadcast %162 : vector<1x32xf32> to vector<64x32xf32>
    %182 = arith.addf %180, %181 : vector<64x32xf32>
    %183 = arith.truncf %182 : vector<64x32xf32> to vector<64x32xbf16>
    %c0_81 = arith.constant 0 : index
    %c0_82 = arith.constant 0 : index
    %184 = vector.load %arg24[%c0_81, %c0_82] : memref<32x96xbf16, #tpu.memory_space<vmem>>, vector<32x96xbf16>
    %cst_83 = arith.constant dense<0.000000e+00> : vector<64x96xf32>
    %185 = tpu.matmul %183, %184, %cst_83 {dimension_numbers = #tpu.dot_dimension_numbers<[1], [0], [0], [1], [0, 0, 1, 1], [], []>} : vector<64x32xbf16>, vector<32x96xbf16>, vector<64x96xf32> -> vector<64x96xf32>
    %c0_84 = arith.constant 0 : index
    %c0_85 = arith.constant 0 : index
    %186 = vector.load %arg25[%c0_84, %c0_85] : memref<1x96xf32, #tpu.memory_space<vmem>>, vector<1x96xf32>
    %187 = vector.broadcast %186 : vector<1x96xf32> to vector<64x96xf32>
    %188 = arith.addf %185, %187 : vector<64x96xf32>
    %189 = vector.extract_strided_slice %188 {offsets = [0, 0], sizes = [64, 16], strides = [1, 1]} : vector<64x96xf32> to vector<64x16xf32>
    %190 = vector.shape_cast %189 : vector<64x16xf32> to vector<4x16x16xf32>
    %191 = vector.extract_strided_slice %188 {offsets = [0, 16], sizes = [64, 16], strides = [1, 1]} : vector<64x96xf32> to vector<64x16xf32>
    %192 = vector.shape_cast %191 : vector<64x16xf32> to vector<4x16x16xf32>
    %193 = vector.shape_cast %190 : vector<4x16x16xf32> to vector<1x4x16x16xf32>
    %194 = vector.shape_cast %192 : vector<4x16x16xf32> to vector<1x4x16x16xf32>
    %195 = tpu.concatenate %193, %194 in 0 : vector<1x4x16x16xf32>, vector<1x4x16x16xf32> -> vector<2x4x16x16xf32>
    %196 = vector.shape_cast %195 : vector<2x4x16x16xf32> to vector<8x16x16xf32>
    %197 = vector.extract_strided_slice %188 {offsets = [0, 32], sizes = [64, 16], strides = [1, 1]} : vector<64x96xf32> to vector<64x16xf32>
    %198 = vector.shape_cast %197 : vector<64x16xf32> to vector<4x16x16xf32>
    %199 = vector.extract_strided_slice %188 {offsets = [0, 48], sizes = [64, 16], strides = [1, 1]} : vector<64x96xf32> to vector<64x16xf32>
    %200 = vector.shape_cast %199 : vector<64x16xf32> to vector<4x16x16xf32>
    %201 = vector.shape_cast %198 : vector<4x16x16xf32> to vector<1x4x16x16xf32>
    %202 = vector.shape_cast %200 : vector<4x16x16xf32> to vector<1x4x16x16xf32>
    %203 = tpu.concatenate %201, %202 in 0 : vector<1x4x16x16xf32>, vector<1x4x16x16xf32> -> vector<2x4x16x16xf32>
    %204 = vector.shape_cast %203 : vector<2x4x16x16xf32> to vector<8x16x16xf32>
    %205 = vector.extract_strided_slice %188 {offsets = [0, 64], sizes = [64, 16], strides = [1, 1]} : vector<64x96xf32> to vector<64x16xf32>
    %206 = vector.shape_cast %205 : vector<64x16xf32> to vector<4x16x16xf32>
    %207 = vector.extract_strided_slice %188 {offsets = [0, 80], sizes = [64, 16], strides = [1, 1]} : vector<64x96xf32> to vector<64x16xf32>
    %208 = vector.shape_cast %207 : vector<64x16xf32> to vector<4x16x16xf32>
    %209 = vector.shape_cast %206 : vector<4x16x16xf32> to vector<1x4x16x16xf32>
    %210 = vector.shape_cast %208 : vector<4x16x16xf32> to vector<1x4x16x16xf32>
    %211 = tpu.concatenate %209, %210 in 0 : vector<1x4x16x16xf32>, vector<1x4x16x16xf32> -> vector<2x4x16x16xf32>
    %212 = vector.shape_cast %211 : vector<2x4x16x16xf32> to vector<8x16x16xf32>
    %213 = arith.truncf %196 : vector<8x16x16xf32> to vector<8x16x16xbf16>
    %214 = arith.truncf %204 : vector<8x16x16xf32> to vector<8x16x16xbf16>
    "tpu.trace_start"() <{level = 10 : i32, message = "bnd,bmd->bnm"}> : () -> ()
    %cst_86 = arith.constant dense<0.000000e+00> : vector<8x16x16xf32>
    %215 = tpu.matmul %213, %214, %cst_86 {dimension_numbers = #tpu.dot_dimension_numbers<[2], [2], [1], [1], [0, 0, 0, 1, 1, 1], [0], [0]>} : vector<8x16x16xbf16>, vector<8x16x16xbf16>, vector<8x16x16xf32> -> vector<8x16x16xf32>
    "tpu.trace_stop"() : () -> ()
    %c0_87 = arith.constant 0 : index
    %c0_88 = arith.constant 0 : index
    %c0_89 = arith.constant 0 : index
    %216 = vector.load %arg26[%c0_87, %c0_88, %c0_89] : memref<8x16x16xf32, #tpu.memory_space<vmem>>, vector<8x16x16xf32>
    %217 = arith.addf %215, %216 : vector<8x16x16xf32>
    %cst_90 = arith.constant dense<0xFF800000> : vector<8x16xf32>
    %218 = vector.multi_reduction <maximumf>, %217, %cst_90 [2] : vector<8x16x16xf32> to vector<8x16xf32>
    %219 = vector.shape_cast %218 : vector<8x16xf32> to vector<8x16x1xf32>
    %220 = vector.broadcast %219 : vector<8x16x1xf32> to vector<8x16x16xf32>
    %221 = arith.subf %217, %220 : vector<8x16x16xf32>
    %222 = math.exp %221 : vector<8x16x16xf32>
    %cst_91 = arith.constant dense<0.000000e+00> : vector<8x16xf32>
    %223 = vector.multi_reduction <add>, %222, %cst_91 [2] : vector<8x16x16xf32> to vector<8x16xf32>
    %224 = vector.shape_cast %223 : vector<8x16xf32> to vector<8x16x1xf32>
    %225 = tpu.reciprocal %224 {approx = true} : vector<8x16x1xf32> -> vector<8x16x1xf32>
    %226 = vector.broadcast %225 : vector<8x16x1xf32> to vector<8x16x16xf32>
    %227 = arith.mulf %222, %226 : vector<8x16x16xf32>
    %228 = arith.truncf %227 : vector<8x16x16xf32> to vector<8x16x16xbf16>
    %229 = arith.truncf %212 : vector<8x16x16xf32> to vector<8x16x16xbf16>
    "tpu.trace_start"() <{level = 10 : i32, message = "bnm,bmd->bnd"}> : () -> ()
    %cst_92 = arith.constant dense<0.000000e+00> : vector<8x16x16xf32>
    %230 = tpu.matmul %228, %229, %cst_92 {dimension_numbers = #tpu.dot_dimension_numbers<[2], [1], [1], [2], [0, 0, 0, 1, 1, 2], [0], [0]>} : vector<8x16x16xbf16>, vector<8x16x16xbf16>, vector<8x16x16xf32> -> vector<8x16x16xf32>
    "tpu.trace_stop"() : () -> ()
    %231 = vector.shape_cast %230 : vector<8x16x16xf32> to vector<2x4x16x16xf32>
    %232 = vector.shape_cast %231 : vector<2x4x16x16xf32> to vector<2x64x16xf32>
    %233 = arith.truncf %232 : vector<2x64x16xf32> to vector<2x64x16xbf16>
    %c0_93 = arith.constant 0 : index
    %c0_94 = arith.constant 0 : index
    %c0_95 = arith.constant 0 : index
    %234 = vector.load %arg27[%c0_93, %c0_94, %c0_95] : memref<2x16x32xbf16, #tpu.memory_space<vmem>>, vector<2x16x32xbf16>
    "tpu.trace_start"() <{level = 10 : i32, message = "hrd,hdc->hrc"}> : () -> ()
    %cst_96 = arith.constant dense<0.000000e+00> : vector<2x64x32xf32>
    %235 = tpu.matmul %233, %234, %cst_96 {dimension_numbers = #tpu.dot_dimension_numbers<[2], [1], [1], [2], [0, 0, 0, 1, 1, 2], [0], [0]>} : vector<2x64x16xbf16>, vector<2x16x32xbf16>, vector<2x64x32xf32> -> vector<2x64x32xf32>
    "tpu.trace_stop"() : () -> ()
    %cst_97 = arith.constant dense<0.000000e+00> : vector<64x32xf32>
    %236 = vector.multi_reduction <add>, %235, %cst_97 [0] : vector<2x64x32xf32> to vector<64x32xf32>
    %237 = arith.addf %160, %236 : vector<64x32xf32>
    %c0_98 = arith.constant 0 : index
    %c0_99 = arith.constant 0 : index
    %238 = vector.load %arg28[%c0_98, %c0_99] : memref<1x32xf32, #tpu.memory_space<vmem>>, vector<1x32xf32>
    %239 = vector.broadcast %238 : vector<1x32xf32> to vector<64x32xf32>
    %240 = arith.addf %237, %239 : vector<64x32xf32>
    %c0_100 = arith.constant 0 : index
    %c0_101 = arith.constant 0 : index
    %241 = vector.load %arg29[%c0_100, %c0_101] : memref<1x32xf32, #tpu.memory_space<vmem>>, vector<1x32xf32>
    %c0_102 = arith.constant 0 : index
    %c0_103 = arith.constant 0 : index
    %242 = vector.load %arg30[%c0_102, %c0_103] : memref<1x32xf32, #tpu.memory_space<vmem>>, vector<1x32xf32>
    %cst_104 = arith.constant dense<0.000000e+00> : vector<64xf32>
    %243 = vector.multi_reduction <add>, %240, %cst_104 [1] : vector<64x32xf32> to vector<64xf32>
    %244 = vector.shape_cast %243 : vector<64xf32> to vector<64x1xf32>
    %cst_105 = arith.constant 3.200000e+01 : f32
    %245 = vector.broadcast %cst_105 : f32 to vector<64x1xf32>
    %246 = arith.divf %244, %245 : vector<64x1xf32>
    %247 = vector.broadcast %246 : vector<64x1xf32> to vector<64x32xf32>
    %248 = arith.subf %240, %247 : vector<64x32xf32>
    %249 = arith.mulf %248, %248 : vector<64x32xf32>
    %cst_106 = arith.constant dense<0.000000e+00> : vector<64xf32>
    %250 = vector.multi_reduction <add>, %249, %cst_106 [1] : vector<64x32xf32> to vector<64xf32>
    %251 = vector.shape_cast %250 : vector<64xf32> to vector<64x1xf32>
    %cst_107 = arith.constant 3.200000e+01 : f32
    %252 = vector.broadcast %cst_107 : f32 to vector<64x1xf32>
    %253 = arith.divf %251, %252 : vector<64x1xf32>
    %cst_108 = arith.constant 9.99999974E-6 : f32
    %254 = vector.broadcast %cst_108 : f32 to vector<64x1xf32>
    %255 = arith.addf %253, %254 : vector<64x1xf32>
    %256 = math.rsqrt %255 : vector<64x1xf32>
    %257 = vector.broadcast %256 : vector<64x1xf32> to vector<64x32xf32>
    %258 = arith.mulf %248, %257 : vector<64x32xf32>
    %259 = vector.broadcast %241 : vector<1x32xf32> to vector<64x32xf32>
    %260 = arith.mulf %258, %259 : vector<64x32xf32>
    %261 = vector.broadcast %242 : vector<1x32xf32> to vector<64x32xf32>
    %262 = arith.addf %260, %261 : vector<64x32xf32>
    %263 = arith.truncf %262 : vector<64x32xf32> to vector<64x32xbf16>
    %c0_109 = arith.constant 0 : index
    %c0_110 = arith.constant 0 : index
    %264 = vector.load %arg31[%c0_109, %c0_110] : memref<32x128xbf16, #tpu.memory_space<vmem>>, vector<32x128xbf16>
    %cst_111 = arith.constant dense<0.000000e+00> : vector<64x128xf32>
    %265 = tpu.matmul %263, %264, %cst_111 {dimension_numbers = #tpu.dot_dimension_numbers<[1], [0], [0], [1], [0, 0, 1, 1], [], []>} : vector<64x32xbf16>, vector<32x128xbf16>, vector<64x128xf32> -> vector<64x128xf32>
    %c0_112 = arith.constant 0 : index
    %c0_113 = arith.constant 0 : index
    %266 = vector.load %arg32[%c0_112, %c0_113] : memref<1x128xf32, #tpu.memory_space<vmem>>, vector<1x128xf32>
    %267 = vector.broadcast %266 : vector<1x128xf32> to vector<64x128xf32>
    %268 = arith.addf %265, %267 : vector<64x128xf32>
    %269 = arith.mulf %268, %268 : vector<64x128xf32>
    %270 = arith.mulf %268, %269 : vector<64x128xf32>
    %cst_114 = arith.constant 4.471500e-02 : f32
    %271 = vector.broadcast %cst_114 : f32 to vector<64x128xf32>
    %272 = arith.mulf %271, %270 : vector<64x128xf32>
    %273 = arith.addf %268, %272 : vector<64x128xf32>
    %cst_115 = arith.constant 0.797884583 : f32
    %274 = vector.broadcast %cst_115 : f32 to vector<64x128xf32>
    %275 = arith.mulf %274, %273 : vector<64x128xf32>
    %276 = math.tanh %275 : vector<64x128xf32>
    %cst_116 = arith.constant 1.000000e+00 : f32
    %277 = vector.broadcast %cst_116 : f32 to vector<64x128xf32>
    %278 = arith.addf %277, %276 : vector<64x128xf32>
    %cst_117 = arith.constant 5.000000e-01 : f32
    %279 = vector.broadcast %cst_117 : f32 to vector<64x128xf32>
    %280 = arith.mulf %279, %278 : vector<64x128xf32>
    %281 = arith.mulf %268, %280 : vector<64x128xf32>
    %282 = arith.truncf %281 : vector<64x128xf32> to vector<64x128xbf16>
    %c0_118 = arith.constant 0 : index
    %c0_119 = arith.constant 0 : index
    %283 = vector.load %arg33[%c0_118, %c0_119] : memref<128x32xbf16, #tpu.memory_space<vmem>>, vector<128x32xbf16>
    %cst_120 = arith.constant dense<0.000000e+00> : vector<64x32xf32>
    %284 = tpu.matmul %282, %283, %cst_120 {dimension_numbers = #tpu.dot_dimension_numbers<[1], [0], [0], [1], [0, 0, 1, 1], [], []>} : vector<64x128xbf16>, vector<128x32xbf16>, vector<64x32xf32> -> vector<64x32xf32>
    %c0_121 = arith.constant 0 : index
    %c0_122 = arith.constant 0 : index
    %285 = vector.load %arg34[%c0_121, %c0_122] : memref<1x32xf32, #tpu.memory_space<vmem>>, vector<1x32xf32>
    %286 = vector.broadcast %285 : vector<1x32xf32> to vector<64x32xf32>
    %287 = arith.addf %284, %286 : vector<64x32xf32>
    %288 = arith.addf %240, %287 : vector<64x32xf32>
    %c0_123 = arith.constant 0 : index
    %c0_124 = arith.constant 0 : index
    %289 = vector.load %arg8[%c0_123, %c0_124] : memref<64x64xf32, #tpu.memory_space<vmem>>, vector<64x64xf32>
    %cst_125 = arith.constant dense<0.000000e+00> : vector<64x32xf32>
    %290 = tpu.matmul %289, %288, %cst_125 {dimension_numbers = #tpu.dot_dimension_numbers<[1], [0], [0], [1], [0, 0, 1, 1], [], []>} : vector<64x64xf32>, vector<64x32xf32>, vector<64x32xf32> -> vector<64x32xf32>
    %291 = vector.shape_cast %290 : vector<64x32xf32> to vector<1x64x32xf32>
    %292 = arith.truncf %291 : vector<1x64x32xf32> to vector<1x64x32xbf16>
    %c0_126 = arith.constant 0 : index
    %c0_127 = arith.constant 0 : index
    %c0_128 = arith.constant 0 : index
    %293 = vector.load %arg35[%c0_126, %c0_127, %c0_128] : memref<1x64x32xbf16, #tpu.memory_space<vmem>>, vector<1x64x32xbf16>
    tpu.vector_store %arg35[%c0_126, %c0_127, %c0_128], %292 {strides = array<i32>} : memref<1x64x32xbf16, #tpu.memory_space<vmem>>, vector<1x64x32xbf16>,
    return
  }
  func.func @transform_0(%arg0: i32) -> (i32, i32, i32) {
    %c0_i32 = arith.constant 0 : i32
    %c0_i32_0 = arith.constant 0 : i32
    %c0_i32_1 = arith.constant 0 : i32
    return %arg0, %c0_i32, %c0_i32_0 : i32, i32, i32
  }
  func.func @transform_1(%arg0: i32) -> (i32, i32) {
    %c0_i32 = arith.constant 0 : i32
    %c0_i32_0 = arith.constant 0 : i32
    %c0_i32_1 = arith.constant 0 : i32
    return %c0_i32, %c0_i32_0 : i32, i32
  }
  func.func @transform_2(%arg0: i32) -> (i32, i32) {
    %c0_i32 = arith.constant 0 : i32
    %c0_i32_0 = arith.constant 0 : i32
    %c0_i32_1 = arith.constant 0 : i32
    return %c0_i32, %c0_i32_0 : i32, i32
  }
  func.func @transform_3(%arg0: i32) -> (i32, i32) {
    %c0_i32 = arith.constant 0 : i32
    %c0_i32_0 = arith.constant 0 : i32
    %c0_i32_1 = arith.constant 0 : i32
    return %c0_i32, %c0_i32_0 : i32, i32
  }
  func.func @transform_4(%arg0: i32) -> (i32, i32) {
    %c0_i32 = arith.constant 0 : i32
    %c0_i32_0 = arith.constant 0 : i32
    %c0_i32_1 = arith.constant 0 : i32
    return %c0_i32, %c0_i32_0 : i32, i32
  }
  func.func @transform_5(%arg0: i32) -> (i32, i32) {
    %c0_i32 = arith.constant 0 : i32
    %c0_i32_0 = arith.constant 0 : i32
    %c0_i32_1 = arith.constant 0 : i32
    return %c0_i32, %c0_i32_0 : i32, i32
  }
  func.func @transform_6(%arg0: i32) -> (i32, i32) {
    %c0_i32 = arith.constant 0 : i32
    %c0_i32_0 = arith.constant 0 : i32
    %c0_i32_1 = arith.constant 0 : i32
    return %c0_i32, %c0_i32_0 : i32, i32
  }
  func.func @transform_7(%arg0: i32) -> (i32, i32) {
    %c0_i32 = arith.constant 0 : i32
    %c0_i32_0 = arith.constant 0 : i32
    %c0_i32_1 = arith.constant 0 : i32
    return %c0_i32, %c0_i32_0 : i32, i32
  }
  func.func @transform_8(%arg0: i32) -> (i32, i32) {
    %c0_i32 = arith.constant 0 : i32
    %c0_i32_0 = arith.constant 0 : i32
    %c0_i32_1 = arith.constant 0 : i32
    return %c0_i32, %c0_i32_0 : i32, i32
  }
  func.func @transform_9(%arg0: i32) -> (i32, i32) {
    %c0_i32 = arith.constant 0 : i32
    %c0_i32_0 = arith.constant 0 : i32
    %c0_i32_1 = arith.constant 0 : i32
    return %c0_i32, %c0_i32_0 : i32, i32
  }
  func.func @transform_10(%arg0: i32) -> (i32, i32) {
    %c0_i32 = arith.constant 0 : i32
    %c0_i32_0 = arith.constant 0 : i32
    %c0_i32_1 = arith.constant 0 : i32
    return %c0_i32, %c0_i32_0 : i32, i32
  }
  func.func @transform_11(%arg0: i32) -> (i32, i32) {
    %c0_i32 = arith.constant 0 : i32
    %c0_i32_0 = arith.constant 0 : i32
    %c0_i32_1 = arith.constant 0 : i32
    return %c0_i32, %c0_i32_0 : i32, i32
  }
  func.func @transform_12(%arg0: i32) -> (i32, i32, i32) {
    %c0_i32 = arith.constant 0 : i32
    %c0_i32_0 = arith.constant 0 : i32
    %c0_i32_1 = arith.constant 0 : i32
    %c0_i32_2 = arith.constant 0 : i32
    return %c0_i32, %c0_i32_0, %c0_i32_1 : i32, i32, i32
  }
  func.func @transform_13(%arg0: i32) -> (i32, i32, i32) {
    %c0_i32 = arith.constant 0 : i32
    %c0_i32_0 = arith.constant 0 : i32
    %c0_i32_1 = arith.constant 0 : i32
    %c0_i32_2 = arith.constant 0 : i32
    return %c0_i32, %c0_i32_0, %c0_i32_1 : i32, i32, i32
  }
  func.func @transform_14(%arg0: i32) -> (i32, i32) {
    %c0_i32 = arith.constant 0 : i32
    %c0_i32_0 = arith.constant 0 : i32
    %c0_i32_1 = arith.constant 0 : i32
    return %c0_i32, %c0_i32_0 : i32, i32
  }
  func.func @transform_15(%arg0: i32) -> (i32, i32) {
    %c0_i32 = arith.constant 0 : i32
    %c0_i32_0 = arith.constant 0 : i32
    %c0_i32_1 = arith.constant 0 : i32
    return %c0_i32, %c0_i32_0 : i32, i32
  }
  func.func @transform_16(%arg0: i32) -> (i32, i32) {
    %c0_i32 = arith.constant 0 : i32
    %c0_i32_0 = arith.constant 0 : i32
    %c0_i32_1 = arith.constant 0 : i32
    return %c0_i32, %c0_i32_0 : i32, i32
  }
  func.func @transform_17(%arg0: i32) -> (i32, i32) {
    %c0_i32 = arith.constant 0 : i32
    %c0_i32_0 = arith.constant 0 : i32
    %c0_i32_1 = arith.constant 0 : i32
    return %c0_i32, %c0_i32_0 : i32, i32
  }
  func.func @transform_18(%arg0: i32) -> (i32, i32) {
    %c0_i32 = arith.constant 0 : i32
    %c0_i32_0 = arith.constant 0 : i32
    %c0_i32_1 = arith.constant 0 : i32
    return %c0_i32, %c0_i32_0 : i32, i32
  }
  func.func @transform_19(%arg0: i32) -> (i32, i32) {
    %c0_i32 = arith.constant 0 : i32
    %c0_i32_0 = arith.constant 0 : i32
    %c0_i32_1 = arith.constant 0 : i32
    return %c0_i32, %c0_i32_0 : i32, i32
  }
  func.func @transform_20(%arg0: i32) -> (i32, i32) {
    %c0_i32 = arith.constant 0 : i32
    %c0_i32_0 = arith.constant 0 : i32
    %c0_i32_1 = arith.constant 0 : i32
    return %c0_i32, %c0_i32_0 : i32, i32
  }
  func.func @transform_21(%arg0: i32) -> (i32, i32) {
    %c0_i32 = arith.constant 0 : i32
    %c0_i32_0 = arith.constant 0 : i32
    %c0_i32_1 = arith.constant 0 : i32
    return %c0_i32, %c0_i32_0 : i32, i32
  }
  func.func @transform_22(%arg0: i32) -> (i32, i32) {
    %c0_i32 = arith.constant 0 : i32
    %c0_i32_0 = arith.constant 0 : i32
    %c0_i32_1 = arith.constant 0 : i32
    return %c0_i32, %c0_i32_0 : i32, i32
  }
  func.func @transform_23(%arg0: i32) -> (i32, i32) {
    %c0_i32 = arith.constant 0 : i32
    %c0_i32_0 = arith.constant 0 : i32
    %c0_i32_1 = arith.constant 0 : i32
    return %c0_i32, %c0_i32_0 : i32, i32
  }
  func.func @transform_24(%arg0: i32) -> (i32, i32) {
    %c0_i32 = arith.constant 0 : i32
    %c0_i32_0 = arith.constant 0 : i32
    %c0_i32_1 = arith.constant 0 : i32
    return %c0_i32, %c0_i32_0 : i32, i32
  }
  func.func @transform_25(%arg0: i32) -> (i32, i32, i32) {
    %c0_i32 = arith.constant 0 : i32
    %c0_i32_0 = arith.constant 0 : i32
    %c0_i32_1 = arith.constant 0 : i32
    %c0_i32_2 = arith.constant 0 : i32
    return %c0_i32, %c0_i32_0, %c0_i32_1 : i32, i32, i32
  }
  func.func @transform_26(%arg0: i32) -> (i32, i32, i32) {
    %c0_i32 = arith.constant 0 : i32
    %c0_i32_0 = arith.constant 0 : i32
    %c0_i32_1 = arith.constant 0 : i32
    %c0_i32_2 = arith.constant 0 : i32
    return %c0_i32, %c0_i32_0, %c0_i32_1 : i32, i32, i32
  }
  func.func @transform_27(%arg0: i32) -> (i32, i32) {
    %c0_i32 = arith.constant 0 : i32
    %c0_i32_0 = arith.constant 0 : i32
    %c0_i32_1 = arith.constant 0 : i32
    return %c0_i32, %c0_i32_0 : i32, i32
  }
  func.func @transform_28(%arg0: i32) -> (i32, i32) {
    %c0_i32 = arith.constant 0 : i32
    %c0_i32_0 = arith.constant 0 : i32
    %c0_i32_1 = arith.constant 0 : i32
    return %c0_i32, %c0_i32_0 : i32, i32
  }
  func.func @transform_29(%arg0: i32) -> (i32, i32) {
    %c0_i32 = arith.constant 0 : i32
    %c0_i32_0 = arith.constant 0 : i32
    %c0_i32_1 = arith.constant 0 : i32
    return %c0_i32, %c0_i32_0 : i32, i32
  }
  func.func @transform_30(%arg0: i32) -> (i32, i32) {
    %c0_i32 = arith.constant 0 : i32
    %c0_i32_0 = arith.constant 0 : i32
    %c0_i32_1 = arith.constant 0 : i32
    return %c0_i32, %c0_i32_0 : i32, i32
  }
  func.func @transform_31(%arg0: i32) -> (i32, i32) {
    %c0_i32 = arith.constant 0 : i32
    %c0_i32_0 = arith.constant 0 : i32
    %c0_i32_1 = arith.constant 0 : i32
    return %c0_i32, %c0_i32_0 : i32, i32
  }
  func.func @transform_32(%arg0: i32) -> (i32, i32) {
    %c0_i32 = arith.constant 0 : i32
    %c0_i32_0 = arith.constant 0 : i32
    %c0_i32_1 = arith.constant 0 : i32
    return %c0_i32, %c0_i32_0 : i32, i32
  }
  func.func @transform_33(%arg0: i32) -> (i32, i32) {
    %c0_i32 = arith.constant 0 : i32
    %c0_i32_0 = arith.constant 0 : i32
    %c0_i32_1 = arith.constant 0 : i32
    return %c0_i32, %c0_i32_0 : i32, i32
  }
  func.func @transform_34(%arg0: i32) -> (i32, i32, i32) {
    %c0_i32 = arith.constant 0 : i32
    %c0_i32_0 = arith.constant 0 : i32
    %c0_i32_1 = arith.constant 0 : i32
    return %arg0, %c0_i32, %c0_i32_0 : i32, i32, i32
  }
}

module attributes {stable_mosaic.version = 11 : i64} {
  func.func @_classifier_kernel(%arg0: i32, %arg1: memref<2x1024xbf16, #tpu.memory_space<vmem>>, %arg2: memref<1024x64xbf16, #tpu.memory_space<vmem>>, %arg3: memref<1x64xf32, #tpu.memory_space<vmem>>, %arg4: memref<64x8xbf16, #tpu.memory_space<vmem>>, %arg5: memref<1x8xf32, #tpu.memory_space<vmem>>, %arg6: memref<2x8xf32, #tpu.memory_space<vmem>>) attributes {dimension_semantics = [#tpu.dimension_semantics<arbitrary>], iteration_bounds = array<i64: 1>, scalar_prefetch = 0 : i64, scratch_operands = 0 : i64, tpu.core_type = #tpu.core_type<tc>, window_params = [{pipeline_mode = #tpu.pipeline_mode<synchronous>, transform_indices = @transform_0, window_bounds = array<i64: 2, 1024>}, {pipeline_mode = #tpu.pipeline_mode<synchronous>, transform_indices = @transform_1, window_bounds = array<i64: 1024, 64>}, {pipeline_mode = #tpu.pipeline_mode<synchronous>, transform_indices = @transform_2, window_bounds = array<i64: 1, 64>}, {pipeline_mode = #tpu.pipeline_mode<synchronous>, transform_indices = @transform_3, window_bounds = array<i64: 64, 8>}, {pipeline_mode = #tpu.pipeline_mode<synchronous>, transform_indices = @transform_4, window_bounds = array<i64: 1, 8>}, {pipeline_mode = #tpu.pipeline_mode<synchronous>, transform_indices = @transform_5, window_bounds = array<i64: 2, 8>}]} {
    %c0 = arith.constant 0 : index
    %c0_0 = arith.constant 0 : index
    %0 = vector.load %arg1[%c0, %c0_0] : memref<2x1024xbf16, #tpu.memory_space<vmem>>, vector<2x1024xbf16>
    %c0_1 = arith.constant 0 : index
    %c0_2 = arith.constant 0 : index
    %1 = vector.load %arg2[%c0_1, %c0_2] : memref<1024x64xbf16, #tpu.memory_space<vmem>>, vector<1024x64xbf16>
    %cst = arith.constant dense<0.000000e+00> : vector<2x64xf32>
    %2 = tpu.matmul %0, %1, %cst {dimension_numbers = #tpu.dot_dimension_numbers<[1], [0], [0], [1], [0, 0, 1, 1], [], []>} : vector<2x1024xbf16>, vector<1024x64xbf16>, vector<2x64xf32> -> vector<2x64xf32>
    %c0_3 = arith.constant 0 : index
    %c0_4 = arith.constant 0 : index
    %3 = vector.load %arg3[%c0_3, %c0_4] : memref<1x64xf32, #tpu.memory_space<vmem>>, vector<1x64xf32>
    %4 = vector.broadcast %3 : vector<1x64xf32> to vector<2x64xf32>
    %5 = arith.addf %2, %4 : vector<2x64xf32>
    %cst_5 = arith.constant 0.000000e+00 : f32
    %6 = vector.broadcast %cst_5 : f32 to vector<2x64xf32>
    %7 = arith.maximumf %5, %6 : vector<2x64xf32>
    %8 = arith.truncf %7 : vector<2x64xf32> to vector<2x64xbf16>
    %c0_6 = arith.constant 0 : index
    %c0_7 = arith.constant 0 : index
    %9 = vector.load %arg4[%c0_6, %c0_7] : memref<64x8xbf16, #tpu.memory_space<vmem>>, vector<64x8xbf16>
    %cst_8 = arith.constant dense<0.000000e+00> : vector<2x8xf32>
    %10 = tpu.matmul %8, %9, %cst_8 {dimension_numbers = #tpu.dot_dimension_numbers<[1], [0], [0], [1], [0, 0, 1, 1], [], []>} : vector<2x64xbf16>, vector<64x8xbf16>, vector<2x8xf32> -> vector<2x8xf32>
    %c0_9 = arith.constant 0 : index
    %c0_10 = arith.constant 0 : index
    %11 = vector.load %arg5[%c0_9, %c0_10] : memref<1x8xf32, #tpu.memory_space<vmem>>, vector<1x8xf32>
    %12 = vector.broadcast %11 : vector<1x8xf32> to vector<2x8xf32>
    %13 = arith.addf %10, %12 : vector<2x8xf32>
    %c0_11 = arith.constant 0 : index
    %c0_12 = arith.constant 0 : index
    %14 = vector.load %arg6[%c0_11, %c0_12] : memref<2x8xf32, #tpu.memory_space<vmem>>, vector<2x8xf32>
    tpu.vector_store %arg6[%c0_11, %c0_12], %13 {strides = array<i32>} : memref<2x8xf32, #tpu.memory_space<vmem>>, vector<2x8xf32>,
    return
  }
  func.func @transform_0(%arg0: i32) -> (i32, i32) {
    %c0_i32 = arith.constant 0 : i32
    %c0_i32_0 = arith.constant 0 : i32
    %c0_i32_1 = arith.constant 0 : i32
    return %c0_i32, %c0_i32_0 : i32, i32
  }
  func.func @transform_1(%arg0: i32) -> (i32, i32) {
    %c0_i32 = arith.constant 0 : i32
    %c0_i32_0 = arith.constant 0 : i32
    %c0_i32_1 = arith.constant 0 : i32
    return %c0_i32, %c0_i32_0 : i32, i32
  }
  func.func @transform_2(%arg0: i32) -> (i32, i32) {
    %c0_i32 = arith.constant 0 : i32
    %c0_i32_0 = arith.constant 0 : i32
    %c0_i32_1 = arith.constant 0 : i32
    return %c0_i32, %c0_i32_0 : i32, i32
  }
  func.func @transform_3(%arg0: i32) -> (i32, i32) {
    %c0_i32 = arith.constant 0 : i32
    %c0_i32_0 = arith.constant 0 : i32
    %c0_i32_1 = arith.constant 0 : i32
    return %c0_i32, %c0_i32_0 : i32, i32
  }
  func.func @transform_4(%arg0: i32) -> (i32, i32) {
    %c0_i32 = arith.constant 0 : i32
    %c0_i32_0 = arith.constant 0 : i32
    %c0_i32_1 = arith.constant 0 : i32
    return %c0_i32, %c0_i32_0 : i32, i32
  }
  func.func @transform_5(%arg0: i32) -> (i32, i32) {
    %c0_i32 = arith.constant 0 : i32
    %c0_i32_0 = arith.constant 0 : i32
    %c0_i32_1 = arith.constant 0 : i32
    return %c0_i32, %c0_i32_0 : i32, i32
  }
}

</mosaic_0001>

<llo_original>
// kernel: swin_m3sda_forward.5
$region0: #{swin_m3sda_forward.5}
  #allocation0 [shape = 'u32[]', space=smem, size = 0x4, offset = 0x4, fixed_abs, tag = 'smem constant byte address 0x4 - core index']
  #allocation1 [shape = 'u32[72,128]{1,0:T(1,128)}', space=vmem, size = 0x9000, scoped, tag = 'internal scratch']
  %s0 = inlined_call_operand.vmem [shape: bf16[2,1024], index: 0, kind: input, shape index: {}]
  %s1 = inlined_call_operand.vmem [shape: bf16[1024,64], index: 1, kind: input, shape index: {}]
  %s2 = inlined_call_operand.vmem [shape: f32[1,64], index: 2, kind: input, shape index: {}]
  %s3 = inlined_call_operand.vmem [shape: bf16[64,8], index: 3, kind: input, shape index: {}]
  %s4 = inlined_call_operand.vmem [shape: f32[1,8], index: 4, kind: input, shape index: {}]
  %s5 = inlined_call_operand.hbm [shape: f32[2,8], index: 5, kind: output, shape index: {}]
  %s6 = sld [smem:[#allocation0]]
  $region30: #{swin_m3sda_forward.5} parent=0
    _
  %s8 = ssub.s32 1, %s6
  %s9 = scalar_select 0, %s8, %s6
  $region1: #{swin_m3sda_forward.5} parent=0
    #allocation2 [shape = 'u8[1024]{0}', space=vmem, size = 0x400, scoped, tag = 'output window, operand 0, single buffered']
    #allocation3 [shape = 's32[1]{0}', space=sflag, size = 0x4, scoped, tag = 'scoped memory for swin_m3sda_forward.5']
    %10 = vsyncpa [#allocation3], 0
    // Predicated region
    $region2: #{swin_m3sda_forward.5} parent=1 // pred_check
      _
    $region3: #{swin_m3sda_forward.5} parent=1 // pred_check_branch
      %12 = sbr.rel (0) target = $region5
    $region4: #{swin_m3sda_forward.5} parent=1 // pred_region
      _
    $region5: #{swin_m3sda_forward.5} parent=1 // pred_fallthru
      _
    // Predicated region
    $region6: #{swin_m3sda_forward.5} parent=1 // pred_check
      _
    $region7: #{swin_m3sda_forward.5} parent=1 // pred_check_branch
      %14 = sbr.rel (0) target = $region9
    $region8: #{swin_m3sda_forward.5} parent=1 // pred_region
      _
    $region9: #{swin_m3sda_forward.5} parent=1 // pred_fallthru
      _
    // Predicated region
    $region10: #{swin_m3sda_forward.5} parent=1 // pred_check
      _
    $region11: #{swin_m3sda_forward.5} parent=1 // pred_check_branch
      %16 = sbr.rel (0) target = $region13
    $region12: #{swin_m3sda_forward.5} parent=1 // pred_region
      _
    $region13: #{swin_m3sda_forward.5} parent=1 // pred_fallthru
      _
    // Predicated region
    $region14: #{swin_m3sda_forward.5} parent=1 // pred_check
      _
    $region15: #{swin_m3sda_forward.5} parent=1 // pred_check_branch
      %18 = sbr.rel (0) target = $region17
    $region16: #{swin_m3sda_forward.5} parent=1 // pred_region
      _
    $region17: #{swin_m3sda_forward.5} parent=1 // pred_fallthru
      _
    // Predicated region
    $region18: #{swin_m3sda_forward.5} parent=1 // pred_check
      _
    $region19: #{swin_m3sda_forward.5} parent=1 // pred_check_branch
      %20 = sbr.rel (0) target = $region21
    $region20: #{swin_m3sda_forward.5} parent=1 // pred_region
      _
    $region21: #{swin_m3sda_forward.5} parent=1 // pred_fallthru
      _
    %v22 = vld [vmem:[%s0] sm:$0xff]
    %v23 = vld [vmem:[%s1] sm:$0xf]
    %v24 = vld [vmem:[%s1 + $0x4] sm:$0xf]
    %v25 = vld [vmem:[%s1 + $0x8] sm:$0xf]
    %v26 = vld [vmem:[%s1 + $0xc] sm:$0xf]
    %v27 = vld [vmem:[%s1 + $0x10] sm:$0xf]
    %v28 = vld [vmem:[%s1 + $0x14] sm:$0xf]
    %v29 = vld [vmem:[%s1 + $0x18] sm:$0xf]
    %v30 = vld [vmem:[%s1 + $0x1c] sm:$0xf]
    %v31 = vld [vmem:[%s1 + $0x20] sm:$0xf]
    %v32 = vld [vmem:[%s1 + $0x24] sm:$0xf]
    %v33 = vld [vmem:[%s1 + $0x28] sm:$0xf]
    %v34 = vld [vmem:[%s1 + $0x2c] sm:$0xf]
    %v35 = vld [vmem:[%s1 + $0x30] sm:$0xf]
    %v36 = vld [vmem:[%s1 + $0x34] sm:$0xf]
    %v37 = vld [vmem:[%s1 + $0x38] sm:$0xf]
    %v38 = vld [vmem:[%s1 + $0x3c] sm:$0xf]
    %v39 = vld [vmem:[%s1 + $0x40] sm:$0xf]
    %v40 = vld [vmem:[%s1 + $0x44] sm:$0xf]
    %v41 = vld [vmem:[%s1 + $0x48] sm:$0xf]
    %v42 = vld [vmem:[%s1 + $0x4c] sm:$0xf]
    %v43 = vld [vmem:[%s1 + $0x50] sm:$0xf]
    %v44 = vld [vmem:[%s1 + $0x54] sm:$0xf]
    %v45 = vld [vmem:[%s1 + $0x58] sm:$0xf]
    %v46 = vld [vmem:[%s1 + $0x5c] sm:$0xf]
    %v47 = vld [vmem:[%s1 + $0x60] sm:$0xf]
    %v48 = vld [vmem:[%s1 + $0x64] sm:$0xf]
    %v49 = vld [vmem:[%s1 + $0x68] sm:$0xf]
    %v50 = vld [vmem:[%s1 + $0x6c] sm:$0xf]
    %v51 = vld [vmem:[%s1 + $0x70] sm:$0xf]
    %v52 = vld [vmem:[%s1 + $0x74] sm:$0xf]
    %v53 = vld [vmem:[%s1 + $0x78] sm:$0xf]
    %v54 = vld [vmem:[%s1 + $0x7c] sm:$0xf]
    %v55 = vld [vmem:[%s1 + $0x80] sm:$0xf]
    %v56 = vld [vmem:[%s1 + $0x84] sm:$0xf]
    %v57 = vld [vmem:[%s1 + $0x88] sm:$0xf]
    %v58 = vld [vmem:[%s1 + $0x8c] sm:$0xf]
    %v59 = vld [vmem:[%s1 + $0x90] sm:$0xf]
    %v60 = vld [vmem:[%s1 + $0x94] sm:$0xf]
    %v61 = vld [vmem:[%s1 + $0x98] sm:$0xf]
    %v62 = vld [vmem:[%s1 + $0x9c] sm:$0xf]
    %v63 = vld [vmem:[%s1 + $0xa0] sm:$0xf]
    %v64 = vld [vmem:[%s1 + $0xa4] sm:$0xf]
    %v65 = vld [vmem:[%s1 + $0xa8] sm:$0xf]
    %v66 = vld [vmem:[%s1 + $0xac] sm:$0xf]
    %v67 = vld [vmem:[%s1 + $0xb0] sm:$0xf]
    %v68 = vld [vmem:[%s1 + $0xb4] sm:$0xf]
    %v69 = vld [vmem:[%s1 + $0xb8] sm:$0xf]
    %v70 = vld [vmem:[%s1 + $0xbc] sm:$0xf]
    %v71 = vld [vmem:[%s1 + $0xc0] sm:$0xf]
    %v72 = vld [vmem:[%s1 + $0xc4] sm:$0xf]
    %v73 = vld [vmem:[%s1 + $0xc8] sm:$0xf]
    %v74 = vld [vmem:[%s1 + $0xcc] sm:$0xf]
    %v75 = vld [vmem:[%s1 + $0xd0] sm:$0xf]
    %v76 = vld [vmem:[%s1 + $0xd4] sm:$0xf]
    %v77 = vld [vmem:[%s1 + $0xd8] sm:$0xf]
    %v78 = vld [vmem:[%s1 + $0xdc] sm:$0xf]
    %v79 = vld [vmem:[%s1 + $0xe0] sm:$0xf]
    %v80 = vld [vmem:[%s1 + $0xe4] sm:$0xf]
    %v81 = vld [vmem:[%s1 + $0xe8] sm:$0xf]
    %v82 = vld [vmem:[%s1 + $0xec] sm:$0xf]
    %v83 = vld [vmem:[%s1 + $0xf0] sm:$0xf]
    %v84 = vld [vmem:[%s1 + $0xf4] sm:$0xf]
    %v85 = vld [vmem:[%s1 + $0xf8] sm:$0xf]
    %v86 = vld [vmem:[%s1 + $0xfc] sm:$0xf]
    %v87 = vld [vmem:[%s1 + $0x100] sm:$0xf]
    %v88 = vld [vmem:[%s1 + $0x104] sm:$0xf]
    %v89 = vld [vmem:[%s1 + $0x108] sm:$0xf]
    %v90 = vld [vmem:[%s1 + $0x10c] sm:$0xf]
    %v91 = vld [vmem:[%s1 + $0x110] sm:$0xf]
    %v92 = vld [vmem:[%s1 + $0x114] sm:$0xf]
    %v93 = vld [vmem:[%s1 + $0x118] sm:$0xf]
    %v94 = vld [vmem:[%s1 + $0x11c] sm:$0xf]
    %v95 = vld [vmem:[%s1 + $0x120] sm:$0xf]
    %v96 = vld [vmem:[%s1 + $0x124] sm:$0xf]
    %v97 = vld [vmem:[%s1 + $0x128] sm:$0xf]
    %v98 = vld [vmem:[%s1 + $0x12c] sm:$0xf]
    %v99 = vld [vmem:[%s1 + $0x130] sm:$0xf]
    %v100 = vld [vmem:[%s1 + $0x134] sm:$0xf]
    %v101 = vld [vmem:[%s1 + $0x138] sm:$0xf]
    %v102 = vld [vmem:[%s1 + $0x13c] sm:$0xf]
    %v103 = vld [vmem:[%s1 + $0x140] sm:$0xf]
    %v104 = vld [vmem:[%s1 + $0x144] sm:$0xf]
    %v105 = vld [vmem:[%s1 + $0x148] sm:$0xf]
    %v106 = vld [vmem:[%s1 + $0x14c] sm:$0xf]
    %v107 = vld [vmem:[%s1 + $0x150] sm:$0xf]
    %v108 = vld [vmem:[%s1 + $0x154] sm:$0xf]
    %v109 = vld [vmem:[%s1 + $0x158] sm:$0xf]
    %v110 = vld [vmem:[%s1 + $0x15c] sm:$0xf]
    %v111 = vld [vmem:[%s1 + $0x160] sm:$0xf]
    %v112 = vld [vmem:[%s1 + $0x164] sm:$0xf]
    %v113 = vld [vmem:[%s1 + $0x168] sm:$0xf]
    %v114 = vld [vmem:[%s1 + $0x16c] sm:$0xf]
    %v115 = vld [vmem:[%s1 + $0x170] sm:$0xf]
    %v116 = vld [vmem:[%s1 + $0x174] sm:$0xf]
    %v117 = vld [vmem:[%s1 + $0x178] sm:$0xf]
    %v118 = vld [vmem:[%s1 + $0x17c] sm:$0xf]
    %v119 = vld [vmem:[%s1 + $0x180] sm:$0xf]
    %v120 = vld [vmem:[%s1 + $0x184] sm:$0xf]
    %v121 = vld [vmem:[%s1 + $0x188] sm:$0xf]
    %v122 = vld [vmem:[%s1 + $0x18c] sm:$0xf]
    %v123 = vld [vmem:[%s1 + $0x190] sm:$0xf]
    %v124 = vld [vmem:[%s1 + $0x194] sm:$0xf]
    %v125 = vld [vmem:[%s1 + $0x198] sm:$0xf]
    %v126 = vld [vmem:[%s1 + $0x19c] sm:$0xf]
    %v127 = vld [vmem:[%s1 + $0x1a0] sm:$0xf]
    %v128 = vld [vmem:[%s1 + $0x1a4] sm:$0xf]
    %v129 = vld [vmem:[%s1 + $0x1a8] sm:$0xf]
    %v130 = vld [vmem:[%s1 + $0x1ac] sm:$0xf]
    %v131 = vld [vmem:[%s1 + $0x1b0] sm:$0xf]
    %v132 = vld [vmem:[%s1 + $0x1b4] sm:$0xf]
    %v133 = vld [vmem:[%s1 + $0x1b8] sm:$0xf]
    %v134 = vld [vmem:[%s1 + $0x1bc] sm:$0xf]
    %v135 = vld [vmem:[%s1 + $0x1c0] sm:$0xf]
    %v136 = vld [vmem:[%s1 + $0x1c4] sm:$0xf]
    %v137 = vld [vmem:[%s1 + $0x1c8] sm:$0xf]
    %v138 = vld [vmem:[%s1 + $0x1cc] sm:$0xf]
    %v139 = vld [vmem:[%s1 + $0x1d0] sm:$0xf]
    %v140 = vld [vmem:[%s1 + $0x1d4] sm:$0xf]
    %v141 = vld [vmem:[%s1 + $0x1d8] sm:$0xf]
    %v142 = vld [vmem:[%s1 + $0x1dc] sm:$0xf]
    %v143 = vld [vmem:[%s1 + $0x1e0] sm:$0xf]
    %v144 = vld [vmem:[%s1 + $0x1e4] sm:$0xf]
    %v145 = vld [vmem:[%s1 + $0x1e8] sm:$0xf]
    %v146 = vld [vmem:[%s1 + $0x1ec] sm:$0xf]
    %v147 = vld [vmem:[%s1 + $0x1f0] sm:$0xf]
    %v148 = vld [vmem:[%s1 + $0x1f4] sm:$0xf]
    %v149 = vld [vmem:[%s1 + $0x1f8] sm:$0xf]
    %v150 = vld [vmem:[%s1 + $0x1fc] sm:$0xf]
    %v151 = vld [vmem:[%s2] sm:$0x1]
    %v153 = vperm.slane %v151, 0
    %156 = vst [vmem:[#allocation1] ss:$9 sm:$0xff] %v22
    %v157 = vld [vmem:[#allocation1] sm:$0xff]
    %v158 = vld [vmem:[#allocation1 + $0x9] sm:$0xff]
    %v159 = vld [vmem:[#allocation1 + $0x12] sm:$0xff]
    %v160 = vld [vmem:[#allocation1 + $0x1b] sm:$0xff]
    %v161 = vld [vmem:[#allocation1 + $0x24] sm:$0xff]
    %v162 = vld [vmem:[#allocation1 + $0x2d] sm:$0xff]
    %v163 = vld [vmem:[#allocation1 + $0x36] sm:$0xff]
    %v164 = vld [vmem:[#allocation1 + $0x3f] sm:$0xff]
    %v301 = vunpack.c.l.b16 %v23
    %v302 = vunpack.c.l.b16 %v24
    %v303 = vunpack.c.l.b16 %v25
    %v304 = vunpack.c.l.b16 %v26
    %v305 = vunpack.c.l.b16 %v27
    %v306 = vunpack.c.l.b16 %v28
    %v307 = vunpack.c.l.b16 %v29
    %v308 = vunpack.c.l.b16 %v30
    %v309 = vunpack.c.l.b16 %v31
    %v310 = vunpack.c.l.b16 %v32
    %v311 = vunpack.c.l.b16 %v33
    %v312 = vunpack.c.l.b16 %v34
    %v313 = vunpack.c.l.b16 %v35
    %v314 = vunpack.c.l.b16 %v36
    %v315 = vunpack.c.l.b16 %v37
    %v316 = vunpack.c.l.b16 %v38
    %v317 = vunpack.c.l.b16 %v39
    %v318 = vunpack.c.l.b16 %v40
    %v319 = vunpack.c.l.b16 %v41
    %v320 = vunpack.c.l.b16 %v42
    %v321 = vunpack.c.l.b16 %v43
    %v322 = vunpack.c.l.b16 %v44
    %v323 = vunpack.c.l.b16 %v45
    %v324 = vunpack.c.l.b16 %v46
    %v325 = vunpack.c.l.b16 %v47
    %v326 = vunpack.c.l.b16 %v48
    %v327 = vunpack.c.l.b16 %v49
    %v328 = vunpack.c.l.b16 %v50
    %v329 = vunpack.c.l.b16 %v51
    %v330 = vunpack.c.l.b16 %v52
    %v331 = vunpack.c.l.b16 %v53
    %v332 = vunpack.c.l.b16 %v54
    %v333 = vunpack.c.l.b16 %v55
    %v334 = vunpack.c.l.b16 %v56
    %v335 = vunpack.c.l.b16 %v57
    %v336 = vunpack.c.l.b16 %v58
    %v337 = vunpack.c.l.b16 %v59
    %v338 = vunpack.c.l.b16 %v60
    %v339 = vunpack.c.l.b16 %v61
    %v340 = vunpack.c.l.b16 %v62
    %v341 = vunpack.c.l.b16 %v63
    %v342 = vunpack.c.l.b16 %v64
    %v343 = vunpack.c.l.b16 %v65
    %v344 = vunpack.c.l.b16 %v66
    %v345 = vunpack.c.l.b16 %v67
    %v346 = vunpack.c.l.b16 %v68
    %v347 = vunpack.c.l.b16 %v69
    %v348 = vunpack.c.l.b16 %v70
    %v349 = vunpack.c.l.b16 %v71
    %v350 = vunpack.c.l.b16 %v72
    %v351 = vunpack.c.l.b16 %v73
    %v352 = vunpack.c.l.b16 %v74
    %v353 = vunpack.c.l.b16 %v75
    %v354 = vunpack.c.l.b16 %v76
    %v355 = vunpack.c.l.b16 %v77
    %v356 = vunpack.c.l.b16 %v78
    %v357 = vunpack.c.l.b16 %v79
    %v358 = vunpack.c.l.b16 %v80
    %v359 = vunpack.c.l.b16 %v81
    %v360 = vunpack.c.l.b16 %v82
    %v361 = vunpack.c.l.b16 %v83
    %v362 = vunpack.c.l.b16 %v84
    %v363 = vunpack.c.l.b16 %v85
    %v364 = vunpack.c.l.b16 %v86
    %v365 = vunpack.c.l.b16 %v87
    %v366 = vunpack.c.l.b16 %v88
    %v367 = vunpack.c.l.b16 %v89
    %v368 = vunpack.c.l.b16 %v90
    %v369 = vunpack.c.l.b16 %v91
    %v370 = vunpack.c.l.b16 %v92
    %v371 = vunpack.c.l.b16 %v93
    %v372 = vunpack.c.l.b16 %v94
    %v373 = vunpack.c.l.b16 %v95
    %v374 = vunpack.c.l.b16 %v96
    %v375 = vunpack.c.l.b16 %v97
    %v376 = vunpack.c.l.b16 %v98
    %v377 = vunpack.c.l.b16 %v99
    %v378 = vunpack.c.l.b16 %v100
    %v379 = vunpack.c.l.b16 %v101
    %v380 = vunpack.c.l.b16 %v102
    %v381 = vunpack.c.l.b16 %v103
    %v382 = vunpack.c.l.b16 %v104
    %v383 = vunpack.c.l.b16 %v105
    %v384 = vunpack.c.l.b16 %v106
    %v385 = vunpack.c.l.b16 %v107
    %v386 = vunpack.c.l.b16 %v108
    %v387 = vunpack.c.l.b16 %v109
    %v388 = vunpack.c.l.b16 %v110
    %v389 = vunpack.c.l.b16 %v111
    %v390 = vunpack.c.l.b16 %v112
    %v391 = vunpack.c.l.b16 %v113
    %v392 = vunpack.c.l.b16 %v114
    %v393 = vunpack.c.l.b16 %v115
    %v394 = vunpack.c.l.b16 %v116
    %v395 = vunpack.c.l.b16 %v117
    %v396 = vunpack.c.l.b16 %v118
    %v397 = vunpack.c.l.b16 %v119
    %v398 = vunpack.c.l.b16 %v120
    %v399 = vunpack.c.l.b16 %v121
    %v400 = vunpack.c.l.b16 %v122
    %v401 = vunpack.c.l.b16 %v123
    %v402 = vunpack.c.l.b16 %v124
    %v403 = vunpack.c.l.b16 %v125
    %v404 = vunpack.c.l.b16 %v126
    %v405 = vunpack.c.l.b16 %v127
    %v406 = vunpack.c.l.b16 %v128
    %v407 = vunpack.c.l.b16 %v129
    %v408 = vunpack.c.l.b16 %v130
    %v409 = vunpack.c.l.b16 %v131
    %v410 = vunpack.c.l.b16 %v132
    %v411 = vunpack.c.l.b16 %v133
    %v412 = vunpack.c.l.b16 %v134
    %v413 = vunpack.c.l.b16 %v135
    %v414 = vunpack.c.l.b16 %v136
    %v415 = vunpack.c.l.b16 %v137
    %v416 = vunpack.c.l.b16 %v138
    %v417 = vunpack.c.l.b16 %v139
    %v418 = vunpack.c.l.b16 %v140
    %v419 = vunpack.c.l.b16 %v141
    %v420 = vunpack.c.l.b16 %v142
    %v421 = vunpack.c.l.b16 %v143
    %v422 = vunpack.c.l.b16 %v144
    %v423 = vunpack.c.l.b16 %v145
    %v424 = vunpack.c.l.b16 %v146
    %v425 = vunpack.c.l.b16 %v147
    %v426 = vunpack.c.l.b16 %v148
    %v427 = vunpack.c.l.b16 %v149
    %v428 = vunpack.c.l.b16 %v150
    %v429 = vpack.c.b16 %v302, %v301
    %v430 = vpack.c.b16 %v304, %v303
    %v431 = vpack.c.b16 %v306, %v305
    %v432 = vpack.c.b16 %v308, %v307
    %v433 = vpack.c.b16 %v310, %v309
    %v434 = vpack.c.b16 %v312, %v311
    %v435 = vpack.c.b16 %v314, %v313
    %v436 = vpack.c.b16 %v316, %v315
    %v437 = vpack.c.b16 %v318, %v317
    %v438 = vpack.c.b16 %v320, %v319
    %v439 = vpack.c.b16 %v322, %v321
    %v440 = vpack.c.b16 %v324, %v323
    %v441 = vpack.c.b16 %v326, %v325
    %v442 = vpack.c.b16 %v328, %v327
    %v443 = vpack.c.b16 %v330, %v329
    %v444 = vpack.c.b16 %v332, %v331
    %v445 = vpack.c.b16 %v334, %v333
    %v446 = vpack.c.b16 %v336, %v335
    %v447 = vpack.c.b16 %v338, %v337
    %v448 = vpack.c.b16 %v340, %v339
    %v449 = vpack.c.b16 %v342, %v341
    %v450 = vpack.c.b16 %v344, %v343
    %v451 = vpack.c.b16 %v346, %v345
    %v452 = vpack.c.b16 %v348, %v347
    %v453 = vpack.c.b16 %v350, %v349
    %v454 = vpack.c.b16 %v352, %v351
    %v455 = vpack.c.b16 %v354, %v353
    %v456 = vpack.c.b16 %v356, %v355
    %v457 = vpack.c.b16 %v358, %v357
    %v458 = vpack.c.b16 %v360, %v359
    %v459 = vpack.c.b16 %v362, %v361
    %v460 = vpack.c.b16 %v364, %v363
    %v461 = vpack.c.b16 %v366, %v365
    %v462 = vpack.c.b16 %v368, %v367
    %v463 = vpack.c.b16 %v370, %v369
    %v464 = vpack.c.b16 %v372, %v371
    %v465 = vpack.c.b16 %v374, %v373
    %v466 = vpack.c.b16 %v376, %v375
    %v467 = vpack.c.b16 %v378, %v377
    %v468 = vpack.c.b16 %v380, %v379
    %v469 = vpack.c.b16 %v382, %v381
    %v470 = vpack.c.b16 %v384, %v383
    %v471 = vpack.c.b16 %v386, %v385
    %v472 = vpack.c.b16 %v388, %v387
    %v473 = vpack.c.b16 %v390, %v389
    %v474 = vpack.c.b16 %v392, %v391
    %v475 = vpack.c.b16 %v394, %v393
    %v476 = vpack.c.b16 %v396, %v395
    %v477 = vpack.c.b16 %v398, %v397
    %v478 = vpack.c.b16 %v400, %v399
    %v479 = vpack.c.b16 %v402, %v401
    %v480 = vpack.c.b16 %v404, %v403
    %v481 = vpack.c.b16 %v406, %v405
    %v482 = vpack.c.b16 %v408, %v407
    %v483 = vpack.c.b16 %v410, %v409
    %v484 = vpack.c.b16 %v412, %v411
    %v485 = vpack.c.b16 %v414, %v413
    %v486 = vpack.c.b16 %v416, %v415
    %v487 = vpack.c.b16 %v418, %v417
    %v488 = vpack.c.b16 %v420, %v419
    %v489 = vpack.c.b16 %v422, %v421
    %v490 = vpack.c.b16 %v424, %v423
    %v491 = vpack.c.b16 %v426, %v425
    %v492 = vpack.c.b16 %v428, %v427
    %557 = vmatpush.bf16.msra.mxu0 %v436
    %558 = vmatpush.bf16.msra.mxu0 %v435
    %559 = vmatpush.bf16.msra.mxu0 %v434
    %560 = vmatpush.bf16.msra.mxu0 %v433
    %561 = vmatpush.bf16.msra.mxu0 %v432
    %562 = vmatpush.bf16.msra.mxu0 %v431
    %563 = vmatpush.bf16.msra.mxu0 %v430
    %564 = vmatpush.bf16.msra.mxu0 %v429
    %565 = vmatmul.bf16.gmra.mxu0 %v157
    %v566 = vpop.f32.mrf.mxu0
    %v567 = vadd.f32 %v153, %v566
    %v568 = vpop.f32.mrf.mxu0
    %569 = vdwg.mxu0
    %570 = vmatpush.bf16.msra.mxu0 %v444
    %571 = vmatpush.bf16.msra.mxu0 %v443
    %572 = vmatpush.bf16.msra.mxu0 %v442
    %573 = vmatpush.bf16.msra.mxu0 %v441
    %574 = vmatpush.bf16.msra.mxu0 %v440
    %575 = vmatpush.bf16.msra.mxu0 %v439
    %576 = vmatpush.bf16.msra.mxu0 %v438
    %577 = vmatpush.bf16.msra.mxu0 %v437
    %578 = vmatmul.bf16.gmra.mxu0 %v158
    %v579 = vpop.f32.mrf.mxu0
    %v580 = vadd.f32 %v567, %v579
    %v581 = vpop.f32.mrf.mxu0
    %582 = vdwg.mxu0
    %583 = vmatpush.bf16.msra.mxu0 %v452
    %584 = vmatpush.bf16.msra.mxu0 %v451
    %585 = vmatpush.bf16.msra.mxu0 %v450
    %586 = vmatpush.bf16.msra.mxu0 %v449
    %587 = vmatpush.bf16.msra.mxu0 %v448
    %588 = vmatpush.bf16.msra.mxu0 %v447
    %589 = vmatpush.bf16.msra.mxu0 %v446
    %590 = vmatpush.bf16.msra.mxu0 %v445
    %591 = vmatmul.bf16.gmra.mxu0 %v159
    %v592 = vpop.f32.mrf.mxu0
    %v593 = vadd.f32 %v580, %v592
    %v594 = vpop.f32.mrf.mxu0
    %595 = vdwg.mxu0
    %596 = vmatpush.bf16.msra.mxu0 %v460
    %597 = vmatpush.bf16.msra.mxu0 %v459
    %598 = vmatpush.bf16.msra.mxu0 %v458
    %599 = vmatpush.bf16.msra.mxu0 %v457
    %600 = vmatpush.bf16.msra.mxu0 %v456
    %601 = vmatpush.bf16.msra.mxu0 %v455
    %602 = vmatpush.bf16.msra.mxu0 %v454
    %603 = vmatpush.bf16.msra.mxu0 %v453
    %604 = vmatmul.bf16.gmra.mxu0 %v160
    %v605 = vpop.f32.mrf.mxu0
    %v606 = vadd.f32 %v593, %v605
    %v607 = vpop.f32.mrf.mxu0
    %608 = vdwg.mxu0
    %609 = vmatpush.bf16.msra.mxu0 %v468
    %610 = vmatpush.bf16.msra.mxu0 %v467
    %611 = vmatpush.bf16.msra.mxu0 %v466
    %612 = vmatpush.bf16.msra.mxu0 %v465
    %613 = vmatpush.bf16.msra.mxu0 %v464
    %614 = vmatpush.bf16.msra.mxu0 %v463
    %615 = vmatpush.bf16.msra.mxu0 %v462
    %616 = vmatpush.bf16.msra.mxu0 %v461
    %617 = vmatmul.bf16.gmra.mxu0 %v161
    %v618 = vpop.f32.mrf.mxu0
    %v619 = vadd.f32 %v606, %v618
    %v620 = vpop.f32.mrf.mxu0
    %621 = vdwg.mxu0
    %622 = vmatpush.bf16.msra.mxu0 %v476
    %623 = vmatpush.bf16.msra.mxu0 %v475
    %624 = vmatpush.bf16.msra.mxu0 %v474
    %625 = vmatpush.bf16.msra.mxu0 %v473
    %626 = vmatpush.bf16.msra.mxu0 %v472
    %627 = vmatpush.bf16.msra.mxu0 %v471
    %628 = vmatpush.bf16.msra.mxu0 %v470
    %629 = vmatpush.bf16.msra.mxu0 %v469
    %630 = vmatmul.bf16.gmra.mxu0 %v162
    %v631 = vpop.f32.mrf.mxu0
    %v632 = vadd.f32 %v619, %v631
    %v633 = vpop.f32.mrf.mxu0
    %634 = vdwg.mxu0
    %635 = vmatpush.bf16.msra.mxu0 %v484
    %636 = vmatpush.bf16.msra.mxu0 %v483
    %637 = vmatpush.bf16.msra.mxu0 %v482
    %638 = vmatpush.bf16.msra.mxu0 %v481
    %639 = vmatpush.bf16.msra.mxu0 %v480
    %640 = vmatpush.bf16.msra.mxu0 %v479
    %641 = vmatpush.bf16.msra.mxu0 %v478
    %642 = vmatpush.bf16.msra.mxu0 %v477
    %643 = vmatmul.bf16.gmra.mxu0 %v163
    %v644 = vpop.f32.mrf.mxu0
    %v645 = vadd.f32 %v632, %v644
    %v646 = vpop.f32.mrf.mxu0
    %647 = vdwg.mxu0
    %648 = vmatpush.bf16.msra.mxu0 %v492
    %649 = vmatpush.bf16.msra.mxu0 %v491
    %650 = vmatpush.bf16.msra.mxu0 %v490
    %651 = vmatpush.bf16.msra.mxu0 %v489
    %652 = vmatpush.bf16.msra.mxu0 %v488
    %653 = vmatpush.bf16.msra.mxu0 %v487
    %654 = vmatpush.bf16.msra.mxu0 %v486
    %655 = vmatpush.bf16.msra.mxu0 %v485
    %656 = vmatmul.bf16.gmra.mxu0 %v164
    %v657 = vpop.f32.mrf.mxu0
    %v658 = vadd.f32 %v645, %v657
    %v659 = vpop.f32.mrf.mxu0
    %660 = vdwg.mxu0
    %v661 = vmax.f32 %v658, 0.0
    %v662 = vpack.c.bf16 %v661, %v661
    %v663 = vld [vmem:[%s3] sm:$0xf]
    %v664 = vld [vmem:[%s3 + $0x4] sm:$0xf]
    %v665 = vld [vmem:[%s3 + $0x8] sm:$0xf]
    %v666 = vld [vmem:[%s3 + $0xc] sm:$0xf]
    %v667 = vld [vmem:[%s3 + $0x10] sm:$0xf]
    %v668 = vld [vmem:[%s3 + $0x14] sm:$0xf]
    %v669 = vld [vmem:[%s3 + $0x18] sm:$0xf]
    %v670 = vld [vmem:[%s3 + $0x1c] sm:$0xf]
    %v671 = vld [vmem:[%s4] sm:$0x1]
    %v673 = vperm.slane %v671, 0
    %v683 = vunpack.c.l.b16 %v663
    %v684 = vunpack.c.l.b16 %v664
    %v685 = vunpack.c.l.b16 %v665
    %v686 = vunpack.c.l.b16 %v666
    %v687 = vunpack.c.l.b16 %v667
    %v688 = vunpack.c.l.b16 %v668
    %v689 = vunpack.c.l.b16 %v669
    %v690 = vunpack.c.l.b16 %v670
    %v691 = vpack.c.b16 %v684, %v683
    %v692 = vpack.c.b16 %v686, %v685
    %v693 = vpack.c.b16 %v688, %v687
    %v694 = vpack.c.b16 %v690, %v689
    %vm699 = vcmask 523264
    %v701 = vsel %vm699, %v662, 0
    %703 = vmatpush.bf16.msra.mxu0 0
    %704 = vmatpush.bf16.msra.mxu0 0
    %705 = vmatpush.bf16.msra.mxu0 0
    %706 = vmatpush.bf16.msra.mxu0 0
    %707 = vmatpush.bf16.msra.mxu0 %v694
    %708 = vmatpush.bf16.msra.mxu0 %v693
    %709 = vmatpush.bf16.msra.mxu0 %v692
    %710 = vmatpush.bf16.msra.mxu0 %v691
    %711 = vmatmul.bf16.gmra.mxu0 %v701
    %v712 = vpop.f32.mrf.mxu0
    %v713 = vadd.f32 %v673, %v712
    %v714 = vpop.f32.mrf.mxu0
    %715 = vdwg.mxu0
    %vm716 = vcmask 58368
    %717 = vst.msk [vmem:[#allocation2] sm:$0x3] %vm716, %v713
    // Predicated region
    $region22: #{swin_m3sda_forward.5} parent=1 // pred_check
      _
    $region23: #{swin_m3sda_forward.5} parent=1 // pred_check_branch
      %719 = sbr.rel (0) target = $region25
    $region24: #{swin_m3sda_forward.5} parent=1 // pred_region
      %721 = vsyncadd [#allocation3], 0
      %s723 = sshll.u32 [#allocation2], 4
      %s724 = int_to_ptr.vmem [resolvable:$true] %s723
      %s725 = sshll.u32 %s5, 4
      %s726 = int_to_ptr.hbm [resolvable:$true] %s725
      %728 = dma.vmem_to_hbm [thread:$0]  %s724, 32, %s726, [#allocation3]
    $region25: #{swin_m3sda_forward.5} parent=1 // pred_fallthru
      _
    // Predicated region
    $region26: #{swin_m3sda_forward.5} parent=1 // pred_check
      _
    $region27: #{swin_m3sda_forward.5} parent=1 // pred_check_branch
      %730 = sbr.rel (0) target = $region29
    $region28: #{swin_m3sda_forward.5} parent=1 // pred_region
      %732 = dma.done [#allocation3], 32
    $region29: #{swin_m3sda_forward.5} parent=1 // pred_fallthru
      _
    %733 = vsyncpa [#allocation3], 1

// kernel: swin_m3sda_forward.4
$region0: #{swin_m3sda_forward.4}
  #allocation0 [shape = 'u32[]', space=smem, size = 0x4, offset = 0x4, fixed_abs, tag = 'smem constant byte address 0x4 - core index']
  #allocation1 [shape = 'u32[72,128]{1,0:T(1,128)}', space=vmem, size = 0x9000, scoped, tag = 'internal scratch']
  %s0 = inlined_call_operand.smem [shape: u32[34], index: -1, kind: input, shape index: {}]
  %s1 = sld [smem:[%s0]]
  %s2 = scalar_lea.smem %s0, 1
  %s3 = sld [smem:[%s2]]
  %s4 = scalar_lea.smem %s0, 2
  %s5 = sld [smem:[%s4]]
  %s6 = scalar_lea.smem %s0, 3
  %s7 = sld [smem:[%s6]]
  %s8 = scalar_lea.smem %s0, 4
  %s9 = sld [smem:[%s8]]
  %s10 = scalar_lea.smem %s0, 5
  %s11 = sld [smem:[%s10]]
  %s12 = scalar_lea.smem %s0, 6
  %s13 = sld [smem:[%s12]]
  %s14 = scalar_lea.smem %s0, 7
  %s15 = sld [smem:[%s14]]
  %s16 = scalar_lea.smem %s0, 8
  %s17 = sld [smem:[%s16]]
  %s18 = scalar_lea.smem %s0, 9
  %s19 = sld [smem:[%s18]]
  %s20 = scalar_lea.smem %s0, 10
  %s21 = sld [smem:[%s20]]
  %s22 = scalar_lea.smem %s0, 11
  %s23 = sld [smem:[%s22]]
  %s24 = scalar_lea.smem %s0, 12
  %s25 = sld [smem:[%s24]]
  %s26 = scalar_lea.smem %s0, 13
  %s27 = sld [smem:[%s26]]
  %s28 = scalar_lea.smem %s0, 14
  %s29 = sld [smem:[%s28]]
  %s30 = scalar_lea.smem %s0, 15
  %s31 = sld [smem:[%s30]]
  %s32 = scalar_lea.smem %s0, 16
  %s33 = sld [smem:[%s32]]
  %s34 = scalar_lea.smem %s0, 17
  %s35 = sld [smem:[%s34]]
  %s36 = scalar_lea.smem %s0, 18
  %s37 = sld [smem:[%s36]]
  %s38 = scalar_lea.smem %s0, 19
  %s39 = sld [smem:[%s38]]
  %s40 = scalar_lea.smem %s0, 20
  %s41 = sld [smem:[%s40]]
  %s42 = scalar_lea.smem %s0, 21
  %s43 = sld [smem:[%s42]]
  %s44 = scalar_lea.smem %s0, 22
  %s45 = sld [smem:[%s44]]
  %s46 = scalar_lea.smem %s0, 23
  %s47 = sld [smem:[%s46]]
  %s48 = scalar_lea.smem %s0, 24
  %s49 = sld [smem:[%s48]]
  %s50 = scalar_lea.smem %s0, 25
  %s51 = sld [smem:[%s50]]
  %s52 = scalar_lea.smem %s0, 26
  %s53 = sld [smem:[%s52]]
  %s54 = scalar_lea.smem %s0, 27
  %s55 = sld [smem:[%s54]]
  %s56 = scalar_lea.smem %s0, 28
  %s57 = sld [smem:[%s56]]
  %s58 = scalar_lea.smem %s0, 29
  %s59 = sld [smem:[%s58]]
  %s60 = scalar_lea.smem %s0, 30
  %s61 = sld [smem:[%s60]]
  %s62 = scalar_lea.smem %s0, 31
  %s63 = sld [smem:[%s62]]
  %s64 = scalar_lea.smem %s0, 32
  %s65 = sld [smem:[%s64]]
  %s66 = scalar_lea.smem %s0, 33
  %s67 = sld [smem:[%s66]]
  %s68 = sld [smem:[#allocation0]]
  $region221: #{swin_m3sda_forward.4} parent=0
    _
  %s70 = ssub.s32 1, %s68
  %s71 = scalar_select 0, %s70, %s68
  $region1: #{swin_m3sda_forward.4} parent=0
    #allocation2 [shape = 'u8[512]{0}', space=vmem, size = 0x400, scoped, tag = 'input window, operand 5, single buffered']
    #allocation3 [shape = 's32[2]{0}', space=sflag, size = 0x8, scoped, tag = 'scoped memory for swin_m3sda_forward.4']
    #allocation4 [shape = 'u8[512]{0}', space=vmem, size = 0x400, scoped, tag = 'input window, operand 6, single buffered']
    #allocation5 [shape = 's32[1]{0}', space=sflag, size = 0x4, scoped, tag = 'scoped memory for swin_m3sda_forward.4']
    #allocation6 [shape = 'u8[512]{0}', space=vmem, size = 0x400, scoped, tag = 'input window, operand 11, single buffered']
    #allocation7 [shape = 'u8[512]{0}', space=vmem, size = 0x400, scoped, tag = 'input window, operand 12, single buffered']
    #allocation8 [shape = 's32[1]{0}', space=sflag, size = 0x4, scoped, tag = 'scoped memory for swin_m3sda_forward.4']
    #allocation9 [shape = 'u8[512]{0}', space=vmem, size = 0x400, scoped, tag = 'input window, operand 13, single buffered']
    #allocation10 [shape = 'u8[512]{0}', space=vmem, size = 0x400, scoped, tag = 'input window, operand 17, single buffered']
    #allocation11 [shape = 's32[1]{0}', space=sflag, size = 0x4, scoped, tag = 'scoped memory for swin_m3sda_forward.4']
    #allocation12 [shape = 'u8[512]{0}', space=vmem, size = 0x400, scoped, tag = 'input window, operand 18, single buffered']
    #allocation13 [shape = 'u8[512]{0}', space=vmem, size = 0x400, scoped, tag = 'input window, operand 19, single buffered']
    #allocation14 [shape = 's32[1]{0}', space=sflag, size = 0x4, scoped, tag = 'scoped memory for swin_m3sda_forward.4']
    #allocation15 [shape = 'u8[512]{0}', space=vmem, size = 0x400, scoped, tag = 'input window, operand 24, single buffered']
    #allocation16 [shape = 'u8[512]{0}', space=vmem, size = 0x400, scoped, tag = 'input window, operand 25, single buffered']
    #allocation17 [shape = 's32[1]{0}', space=sflag, size = 0x4, scoped, tag = 'scoped memory for swin_m3sda_forward.4']
    #allocation18 [shape = 'u8[512]{0}', space=vmem, size = 0x400, scoped, tag = 'input window, operand 26, single buffered']
    #allocation19 [shape = 'u8[512]{0}', space=vmem, size = 0x400, scoped, tag = 'input window, operand 30, single buffered']
    #allocation20 [shape = 's32[1]{0}', space=sflag, size = 0x4, scoped, tag = 'scoped memory for swin_m3sda_forward.4']
    #allocation21 [shape = 'u8[512]{0}', space=vmem, size = 0x400, scoped, tag = 'input window, operand 31, single buffered']
    #allocation22 [shape = 'u8[512]{0}', space=vmem, size = 0x400, scoped, tag = 'input window, operand 32, single buffered']
    #allocation23 [shape = 's32[1]{0}', space=sflag, size = 0x4, scoped, tag = 'scoped memory for swin_m3sda_forward.4']
    %72 = vsyncpa [#allocation3], 0
    %73 = vsyncpa [#allocation5], 0
    %74 = vsyncpa [#allocation8], 0
    %75 = vsyncpa [#allocation11], 0
    %76 = vsyncpa [#allocation14], 0
    %77 = vsyncpa [#allocation17], 0
    %78 = vsyncpa [#allocation20], 0
    %79 = vsyncpa [#allocation23], 0
    loop: start=0, step=1, limit=4
    $region2: #{swin_m3sda_forward.4} parent=1 // loop_pre_header
      _
    $region3: #{swin_m3sda_forward.4} parent=1 // loop_header
      %s81 = sphi 0, %s85
      %p82 = scmp.ge.s32.totalorder %s81, 4
      %s91 = sphi 0, %s93
      %s94 = sphi 0, %s91
      %s95 = sphi 0, %s94
      %s111 = sphi 0, %s95
      %s115 = sphi 0, %s115
      %s117 = sphi 0, %s115
      %s118 = sphi 0, %s117
      %s132 = sphi 0, %s118
      %s136 = sphi 0, %s136
      %s138 = sphi 0, %s136
      %s139 = sphi 0, %s138
      %s153 = sphi 0, %s139
      %s157 = sphi 0, %s157
      %s159 = sphi 0, %s157
      %s160 = sphi 0, %s159
      %s174 = sphi 0, %s160
      %s178 = sphi 0, %s178
      %s180 = sphi 0, %s178
      %s181 = sphi 0, %s180
      %s195 = sphi 0, %s181
      %s199 = sphi 0, %s199
      %s201 = sphi 0, %s199
      %s202 = sphi 0, %s201
      %s216 = sphi 0, %s202
      %s220 = sphi 0, %s220
      %s222 = sphi 0, %s220
      %s223 = sphi 0, %s222
      %s237 = sphi 0, %s223
      %s241 = sphi 0, %s241
      %s243 = sphi 0, %s241
      %s244 = sphi 0, %s243
      %s258 = sphi 0, %s244
      %s262 = sphi 0, %s262
      %s264 = sphi 0, %s262
      %s265 = sphi 0, %s264
      %s279 = sphi 0, %s265
      %s283 = sphi 0, %s283
      %s285 = sphi 0, %s283
      %s286 = sphi 0, %s285
      %s300 = sphi 0, %s286
      %s304 = sphi 0, %s304
      %s306 = sphi 0, %s304
      %s307 = sphi 0, %s306
      %s321 = sphi 0, %s307
      %s325 = sphi 0, %s325
      %s327 = sphi 0, %s325
      %s328 = sphi 0, %s327
      %s342 = sphi 0, %s328
      %s346 = sphi 0, %s346
      %s348 = sphi 0, %s346
      %s349 = sphi 0, %s348
      %s363 = sphi 0, %s349
      %s367 = sphi 0, %s367
      %s369 = sphi 0, %s367
      %s370 = sphi 0, %s369
      %s384 = sphi 0, %s370
      %s388 = sphi 0, %s388
      %s390 = sphi 0, %s388
      %s391 = sphi 0, %s390
      %s405 = sphi 0, %s391
      %s409 = sphi 0, %s409
      %s411 = sphi 0, %s409
      %s412 = sphi 0, %s411
      %s426 = sphi 0, %s412
      %s430 = sphi 0, %s430
      %s432 = sphi 0, %s430
      %s433 = sphi 0, %s432
      %s447 = sphi 0, %s433
      %s451 = sphi 0, %s451
      %s453 = sphi 0, %s451
      %s454 = sphi 0, %s453
      %s468 = sphi 0, %s454
      %s472 = sphi 0, %s472
      %s474 = sphi 0, %s472
      %s475 = sphi 0, %s474
      %s489 = sphi 0, %s475
      %s493 = sphi 0, %s493
      %s495 = sphi 0, %s493
      %s496 = sphi 0, %s495
      %s510 = sphi 0, %s496
      %s514 = sphi 0, %s514
      %s516 = sphi 0, %s514
      %s517 = sphi 0, %s516
      %s531 = sphi 0, %s517
      %s535 = sphi 0, %s535
      %s537 = sphi 0, %s535
      %s538 = sphi 0, %s537
      %s552 = sphi 0, %s538
      %s556 = sphi 0, %s556
      %s558 = sphi 0, %s556
      %s559 = sphi 0, %s558
      %s573 = sphi 0, %s559
      %s577 = sphi 0, %s577
      %s579 = sphi 0, %s577
      %s580 = sphi 0, %s579
      %s594 = sphi 0, %s580
      %s598 = sphi 0, %s598
      %s600 = sphi 0, %s598
      %s601 = sphi 0, %s600
      %s615 = sphi 0, %s601
      %s619 = sphi 0, %s619
      %s621 = sphi 0, %s619
      %s622 = sphi 0, %s621
      %s636 = sphi 0, %s622
      %s640 = sphi 0, %s640
      %s642 = sphi 0, %s640
      %s643 = sphi 0, %s642
      %s657 = sphi 0, %s643
      %s661 = sphi 0, %s661
      %s663 = sphi 0, %s661
      %s664 = sphi 0, %s663
      %s678 = sphi 0, %s664
      %s682 = sphi 0, %s682
      %s684 = sphi 0, %s682
      %s685 = sphi 0, %s684
      %s699 = sphi 0, %s685
      %s703 = sphi 0, %s703
      %s705 = sphi 0, %s703
      %s706 = sphi 0, %s705
      %s720 = sphi 0, %s706
      %s724 = sphi 0, %s724
      %s726 = sphi 0, %s724
      %s727 = sphi 0, %s726
      %s741 = sphi 0, %s727
      %s745 = sphi 0, %s745
      %s747 = sphi 0, %s745
      %s748 = sphi 0, %s747
      %s762 = sphi 0, %s748
      %s766 = sphi 0, %s766
      %s768 = sphi 0, %s766
      %s769 = sphi 0, %s768
      %s783 = sphi 0, %s769
      %s789 = sphi 0, %s791
      %s792 = sphi 0, %s789
      %s793 = sphi 0, %s792
      %s809 = sphi 0, %s793
    $region4: #{swin_m3sda_forward.4} parent=1 // loop_header_branch
      %84 = sbr.rel (%p82) target = $region8
    $region5: #{swin_m3sda_forward.4} parent=1 // loop_body
      %s86 = ssub.s32 %s81, 1
      %s87 = ssub.s32 %s81, 2
      %s88 = sadd.s32 %s81, 1
      %s89 = ssub.s32 %s81, %s88
      %p90 = scmp.eq.s32.totalorder %s89, 0
      %s92 = sadd.s32 %s91, 1
      %s93 = scalar_select %p90, %s91, %s92
      %p96 = pneg %p90
      %p97 = scmp.eq.s32.totalorder %s81, 1
      %p98 = por %p96, %p97
      %p99 = scmp.ne.s32.totalorder %s91, %s94
      %p100 = scmp.eq.s32.totalorder %s81, 0
      %p101 = por %p99, %p100
      %p102 = scmp.ne.s32.totalorder %s91, %s94
      %p103 = scmp.eq.s32.totalorder %s86, 1
      %p104 = por %p102, %p103
      %p105 = scmp.ne.s32.totalorder %s94, %s95
      %p106 = scmp.eq.s32.totalorder %s86, 0
      %p107 = por %p105, %p106
      %p108 = scmp.ne.s32.totalorder %s94, %s95
      %p109 = scmp.eq.s32.totalorder %s87, 1
      %p110 = por %p108, %p109
      %p112 = scmp.ne.s32.totalorder %s95, %s111
      %p113 = scmp.eq.s32.totalorder %s87, 0
      %p114 = por %p112, %p113
      %s116 = sadd.s32 %s115, 1
      %p119 = scmp.eq.s32.totalorder %s81, 1
      %p120 = scmp.ne.s32.totalorder %s115, %s117
      %p121 = scmp.eq.s32.totalorder %s81, 0
      %p122 = por %p120, %p121
      %p123 = scmp.ne.s32.totalorder %s115, %s117
      %p124 = scmp.eq.s32.totalorder %s86, 1
      %p125 = por %p123, %p124
      %p126 = scmp.ne.s32.totalorder %s117, %s118
      %p127 = scmp.eq.s32.totalorder %s86, 0
      %p128 = por %p126, %p127
      %p129 = scmp.ne.s32.totalorder %s117, %s118
      %p130 = scmp.eq.s32.totalorder %s87, 1
      %p131 = por %p129, %p130
      %p133 = scmp.ne.s32.totalorder %s118, %s132
      %p134 = scmp.eq.s32.totalorder %s87, 0
      %p135 = por %p133, %p134
      %s137 = sadd.s32 %s136, 1
      %p140 = scmp.eq.s32.totalorder %s81, 1
      %p141 = scmp.ne.s32.totalorder %s136, %s138
      %p142 = scmp.eq.s32.totalorder %s81, 0
      %p143 = por %p141, %p142
      %p144 = scmp.ne.s32.totalorder %s136, %s138
      %p145 = scmp.eq.s32.totalorder %s86, 1
      %p146 = por %p144, %p145
      %p147 = scmp.ne.s32.totalorder %s138, %s139
      %p148 = scmp.eq.s32.totalorder %s86, 0
      %p149 = por %p147, %p148
      %p150 = scmp.ne.s32.totalorder %s138, %s139
      %p151 = scmp.eq.s32.totalorder %s87, 1
      %p152 = por %p150, %p151
      %p154 = scmp.ne.s32.totalorder %s139, %s153
      %p155 = scmp.eq.s32.totalorder %s87, 0
      %p156 = por %p154, %p155
      %s158 = sadd.s32 %s157, 1
      %p161 = scmp.eq.s32.totalorder %s81, 1
      %p162 = scmp.ne.s32.totalorder %s157, %s159
      %p163 = scmp.eq.s32.totalorder %s81, 0
      %p164 = por %p162, %p163
      %p165 = scmp.ne.s32.totalorder %s157, %s159
      %p166 = scmp.eq.s32.totalorder %s86, 1
      %p167 = por %p165, %p166
      %p168 = scmp.ne.s32.totalorder %s159, %s160
      %p169 = scmp.eq.s32.totalorder %s86, 0
      %p170 = por %p168, %p169
      %p171 = scmp.ne.s32.totalorder %s159, %s160
      %p172 = scmp.eq.s32.totalorder %s87, 1
      %p173 = por %p171, %p172
      %p175 = scmp.ne.s32.totalorder %s160, %s174
      %p176 = scmp.eq.s32.totalorder %s87, 0
      %p177 = por %p175, %p176
      %s179 = sadd.s32 %s178, 1
      %p182 = scmp.eq.s32.totalorder %s81, 1
      %p183 = scmp.ne.s32.totalorder %s178, %s180
      %p184 = scmp.eq.s32.totalorder %s81, 0
      %p185 = por %p183, %p184
      %p186 = scmp.ne.s32.totalorder %s178, %s180
      %p187 = scmp.eq.s32.totalorder %s86, 1
      %p188 = por %p186, %p187
      %p189 = scmp.ne.s32.totalorder %s180, %s181
      %p190 = scmp.eq.s32.totalorder %s86, 0
      %p191 = por %p189, %p190
      %p192 = scmp.ne.s32.totalorder %s180, %s181
      %p193 = scmp.eq.s32.totalorder %s87, 1
      %p194 = por %p192, %p193
      %p196 = scmp.ne.s32.totalorder %s181, %s195
      %p197 = scmp.eq.s32.totalorder %s87, 0
      %p198 = por %p196, %p197
      %s200 = sadd.s32 %s199, 1
      %p203 = scmp.eq.s32.totalorder %s81, 1
      %p204 = scmp.ne.s32.totalorder %s199, %s201
      %p205 = scmp.eq.s32.totalorder %s81, 0
      %p206 = por %p204, %p205
      %p207 = scmp.ne.s32.totalorder %s199, %s201
      %p208 = scmp.eq.s32.totalorder %s86, 1
      %p209 = por %p207, %p208
      %p210 = scmp.ne.s32.totalorder %s201, %s202
      %p211 = scmp.eq.s32.totalorder %s86, 0
      %p212 = por %p210, %p211
      %p213 = scmp.ne.s32.totalorder %s201, %s202
      %p214 = scmp.eq.s32.totalorder %s87, 1
      %p215 = por %p213, %p214
      %p217 = scmp.ne.s32.totalorder %s202, %s216
      %p218 = scmp.eq.s32.totalorder %s87, 0
      %p219 = por %p217, %p218
      %s221 = sadd.s32 %s220, 1
      %p224 = scmp.eq.s32.totalorder %s81, 1
      %p225 = scmp.ne.s32.totalorder %s220, %s222
      %p226 = scmp.eq.s32.totalorder %s81, 0
      %p227 = por %p225, %p226
      %p228 = scmp.ne.s32.totalorder %s220, %s222
      %p229 = scmp.eq.s32.totalorder %s86, 1
      %p230 = por %p228, %p229
      %p231 = scmp.ne.s32.totalorder %s222, %s223
      %p232 = scmp.eq.s32.totalorder %s86, 0
      %p233 = por %p231, %p232
      %p234 = scmp.ne.s32.totalorder %s222, %s223
      %p235 = scmp.eq.s32.totalorder %s87, 1
      %p236 = por %p234, %p235
      %p238 = scmp.ne.s32.totalorder %s223, %s237
      %p239 = scmp.eq.s32.totalorder %s87, 0
      %p240 = por %p238, %p239
      %s242 = sadd.s32 %s241, 1
      %p245 = scmp.eq.s32.totalorder %s81, 1
      %p246 = scmp.ne.s32.totalorder %s241, %s243
      %p247 = scmp.eq.s32.totalorder %s81, 0
      %p248 = por %p246, %p247
      %p249 = scmp.ne.s32.totalorder %s241, %s243
      %p250 = scmp.eq.s32.totalorder %s86, 1
      %p251 = por %p249, %p250
      %p252 = scmp.ne.s32.totalorder %s243, %s244
      %p253 = scmp.eq.s32.totalorder %s86, 0
      %p254 = por %p252, %p253
      %p255 = scmp.ne.s32.totalorder %s243, %s244
      %p256 = scmp.eq.s32.totalorder %s87, 1
      %p257 = por %p255, %p256
      %p259 = scmp.ne.s32.totalorder %s244, %s258
      %p260 = scmp.eq.s32.totalorder %s87, 0
      %p261 = por %p259, %p260
      %s263 = sadd.s32 %s262, 1
      %p266 = scmp.eq.s32.totalorder %s81, 1
      %p267 = scmp.ne.s32.totalorder %s262, %s264
      %p268 = scmp.eq.s32.totalorder %s81, 0
      %p269 = por %p267, %p268
      %p270 = scmp.ne.s32.totalorder %s262, %s264
      %p271 = scmp.eq.s32.totalorder %s86, 1
      %p272 = por %p270, %p271
      %p273 = scmp.ne.s32.totalorder %s264, %s265
      %p274 = scmp.eq.s32.totalorder %s86, 0
      %p275 = por %p273, %p274
      %p276 = scmp.ne.s32.totalorder %s264, %s265
      %p277 = scmp.eq.s32.totalorder %s87, 1
      %p278 = por %p276, %p277
      %p280 = scmp.ne.s32.totalorder %s265, %s279
      %p281 = scmp.eq.s32.totalorder %s87, 0
      %p282 = por %p280, %p281
      %s284 = sadd.s32 %s283, 1
      %p287 = scmp.eq.s32.totalorder %s81, 1
      %p288 = scmp.ne.s32.totalorder %s283, %s285
      %p289 = scmp.eq.s32.totalorder %s81, 0
      %p290 = por %p288, %p289
      %p291 = scmp.ne.s32.totalorder %s283, %s285
      %p292 = scmp.eq.s32.totalorder %s86, 1
      %p293 = por %p291, %p292
      %p294 = scmp.ne.s32.totalorder %s285, %s286
      %p295 = scmp.eq.s32.totalorder %s86, 0
      %p296 = por %p294, %p295
      %p297 = scmp.ne.s32.totalorder %s285, %s286
      %p298 = scmp.eq.s32.totalorder %s87, 1
      %p299 = por %p297, %p298
      %p301 = scmp.ne.s32.totalorder %s286, %s300
      %p302 = scmp.eq.s32.totalorder %s87, 0
      %p303 = por %p301, %p302
      %s305 = sadd.s32 %s304, 1
      %p308 = scmp.eq.s32.totalorder %s81, 1
      %p309 = scmp.ne.s32.totalorder %s304, %s306
      %p310 = scmp.eq.s32.totalorder %s81, 0
      %p311 = por %p309, %p310
      %p312 = scmp.ne.s32.totalorder %s304, %s306
      %p313 = scmp.eq.s32.totalorder %s86, 1
      %p314 = por %p312, %p313
      %p315 = scmp.ne.s32.totalorder %s306, %s307
      %p316 = scmp.eq.s32.totalorder %s86, 0
      %p317 = por %p315, %p316
      %p318 = scmp.ne.s32.totalorder %s306, %s307
      %p319 = scmp.eq.s32.totalorder %s87, 1
      %p320 = por %p318, %p319
      %p322 = scmp.ne.s32.totalorder %s307, %s321
      %p323 = scmp.eq.s32.totalorder %s87, 0
      %p324 = por %p322, %p323
      %s326 = sadd.s32 %s325, 1
      %p329 = scmp.eq.s32.totalorder %s81, 1
      %p330 = scmp.ne.s32.totalorder %s325, %s327
      %p331 = scmp.eq.s32.totalorder %s81, 0
      %p332 = por %p330, %p331
      %p333 = scmp.ne.s32.totalorder %s325, %s327
      %p334 = scmp.eq.s32.totalorder %s86, 1
      %p335 = por %p333, %p334
      %p336 = scmp.ne.s32.totalorder %s327, %s328
      %p337 = scmp.eq.s32.totalorder %s86, 0
      %p338 = por %p336, %p337
      %p339 = scmp.ne.s32.totalorder %s327, %s328
      %p340 = scmp.eq.s32.totalorder %s87, 1
      %p341 = por %p339, %p340
      %p343 = scmp.ne.s32.totalorder %s328, %s342
      %p344 = scmp.eq.s32.totalorder %s87, 0
      %p345 = por %p343, %p344
      %s347 = sadd.s32 %s346, 1
      %p350 = scmp.eq.s32.totalorder %s81, 1
      %p351 = scmp.ne.s32.totalorder %s346, %s348
      %p352 = scmp.eq.s32.totalorder %s81, 0
      %p353 = por %p351, %p352
      %p354 = scmp.ne.s32.totalorder %s346, %s348
      %p355 = scmp.eq.s32.totalorder %s86, 1
      %p356 = por %p354, %p355
      %p357 = scmp.ne.s32.totalorder %s348, %s349
      %p358 = scmp.eq.s32.totalorder %s86, 0
      %p359 = por %p357, %p358
      %p360 = scmp.ne.s32.totalorder %s348, %s349
      %p361 = scmp.eq.s32.totalorder %s87, 1
      %p362 = por %p360, %p361
      %p364 = scmp.ne.s32.totalorder %s349, %s363
      %p365 = scmp.eq.s32.totalorder %s87, 0
      %p366 = por %p364, %p365
      %s368 = sadd.s32 %s367, 1
      %p371 = scmp.eq.s32.totalorder %s81, 1
      %p372 = scmp.ne.s32.totalorder %s367, %s369
      %p373 = scmp.eq.s32.totalorder %s81, 0
      %p374 = por %p372, %p373
      %p375 = scmp.ne.s32.totalorder %s367, %s369
      %p376 = scmp.eq.s32.totalorder %s86, 1
      %p377 = por %p375, %p376
      %p378 = scmp.ne.s32.totalorder %s369, %s370
      %p379 = scmp.eq.s32.totalorder %s86, 0
      %p380 = por %p378, %p379
      %p381 = scmp.ne.s32.totalorder %s369, %s370
      %p382 = scmp.eq.s32.totalorder %s87, 1
      %p383 = por %p381, %p382
      %p385 = scmp.ne.s32.totalorder %s370, %s384
      %p386 = scmp.eq.s32.totalorder %s87, 0
      %p387 = por %p385, %p386
      %s389 = sadd.s32 %s388, 1
      %p392 = scmp.eq.s32.totalorder %s81, 1
      %p393 = scmp.ne.s32.totalorder %s388, %s390
      %p394 = scmp.eq.s32.totalorder %s81, 0
      %p395 = por %p393, %p394
      %p396 = scmp.ne.s32.totalorder %s388, %s390
      %p397 = scmp.eq.s32.totalorder %s86, 1
      %p398 = por %p396, %p397
      %p399 = scmp.ne.s32.totalorder %s390, %s391
      %p400 = scmp.eq.s32.totalorder %s86, 0
      %p401 = por %p399, %p400
      %p402 = scmp.ne.s32.totalorder %s390, %s391
      %p403 = scmp.eq.s32.totalorder %s87, 1
      %p404 = por %p402, %p403
      %p406 = scmp.ne.s32.totalorder %s391, %s405
      %p407 = scmp.eq.s32.totalorder %s87, 0
      %p408 = por %p406, %p407
      %s410 = sadd.s32 %s409, 1
      %p413 = scmp.eq.s32.totalorder %s81, 1
      %p414 = scmp.ne.s32.totalorder %s409, %s411
      %p415 = scmp.eq.s32.totalorder %s81, 0
      %p416 = por %p414, %p415
      %p417 = scmp.ne.s32.totalorder %s409, %s411
      %p418 = scmp.eq.s32.totalorder %s86, 1
      %p419 = por %p417, %p418
      %p420 = scmp.ne.s32.totalorder %s411, %s412
      %p421 = scmp.eq.s32.totalorder %s86, 0
      %p422 = por %p420, %p421
      %p423 = scmp.ne.s32.totalorder %s411, %s412
      %p424 = scmp.eq.s32.totalorder %s87, 1
      %p425 = por %p423, %p424
      %p427 = scmp.ne.s32.totalorder %s412, %s426
      %p428 = scmp.eq.s32.totalorder %s87, 0
      %p429 = por %p427, %p428
      %s431 = sadd.s32 %s430, 1
      %p434 = scmp.eq.s32.totalorder %s81, 1
      %p435 = scmp.ne.s32.totalorder %s430, %s432
      %p436 = scmp.eq.s32.totalorder %s81, 0
      %p437 = por %p435, %p436
      %p438 = scmp.ne.s32.totalorder %s430, %s432
      %p439 = scmp.eq.s32.totalorder %s86, 1
      %p440 = por %p438, %p439
      %p441 = scmp.ne.s32.totalorder %s432, %s433
      %p442 = scmp.eq.s32.totalorder %s86, 0
      %p443 = por %p441, %p442
      %p444 = scmp.ne.s32.totalorder %s432, %s433
      %p445 = scmp.eq.s32.totalorder %s87, 1
      %p446 = por %p444, %p445
      %p448 = scmp.ne.s32.totalorder %s433, %s447
      %p449 = scmp.eq.s32.totalorder %s87, 0
      %p450 = por %p448, %p449
      %s452 = sadd.s32 %s451, 1
      %p455 = scmp.eq.s32.totalorder %s81, 1
      %p456 = scmp.ne.s32.totalorder %s451, %s453
      %p457 = scmp.eq.s32.totalorder %s81, 0
      %p458 = por %p456, %p457
      %p459 = scmp.ne.s32.totalorder %s451, %s453
      %p460 = scmp.eq.s32.totalorder %s86, 1
      %p461 = por %p459, %p460
      %p462 = scmp.ne.s32.totalorder %s453, %s454
      %p463 = scmp.eq.s32.totalorder %s86, 0
      %p464 = por %p462, %p463
      %p465 = scmp.ne.s32.totalorder %s453, %s454
      %p466 = scmp.eq.s32.totalorder %s87, 1
      %p467 = por %p465, %p466
      %p469 = scmp.ne.s32.totalorder %s454, %s468
      %p470 = scmp.eq.s32.totalorder %s87, 0
      %p471 = por %p469, %p470
      %s473 = sadd.s32 %s472, 1
      %p476 = scmp.eq.s32.totalorder %s81, 1
      %p477 = scmp.ne.s32.totalorder %s472, %s474
      %p478 = scmp.eq.s32.totalorder %s81, 0
      %p479 = por %p477, %p478
      %p480 = scmp.ne.s32.totalorder %s472, %s474
      %p481 = scmp.eq.s32.totalorder %s86, 1
      %p482 = por %p480, %p481
      %p483 = scmp.ne.s32.totalorder %s474, %s475
      %p484 = scmp.eq.s32.totalorder %s86, 0
      %p485 = por %p483, %p484
      %p486 = scmp.ne.s32.totalorder %s474, %s475
      %p487 = scmp.eq.s32.totalorder %s87, 1
      %p488 = por %p486, %p487
      %p490 = scmp.ne.s32.totalorder %s475, %s489
      %p491 = scmp.eq.s32.totalorder %s87, 0
      %p492 = por %p490, %p491
      %s494 = sadd.s32 %s493, 1
      %p497 = scmp.eq.s32.totalorder %s81, 1
      %p498 = scmp.ne.s32.totalorder %s493, %s495
      %p499 = scmp.eq.s32.totalorder %s81, 0
      %p500 = por %p498, %p499
      %p501 = scmp.ne.s32.totalorder %s493, %s495
      %p502 = scmp.eq.s32.totalorder %s86, 1
      %p503 = por %p501, %p502
      %p504 = scmp.ne.s32.totalorder %s495, %s496
      %p505 = scmp.eq.s32.totalorder %s86, 0
      %p506 = por %p504, %p505
      %p507 = scmp.ne.s32.totalorder %s495, %s496
      %p508 = scmp.eq.s32.totalorder %s87, 1
      %p509 = por %p507, %p508
      %p511 = scmp.ne.s32.totalorder %s496, %s510
      %p512 = scmp.eq.s32.totalorder %s87, 0
      %p513 = por %p511, %p512
      %s515 = sadd.s32 %s514, 1
      %p518 = scmp.eq.s32.totalorder %s81, 1
      %p519 = scmp.ne.s32.totalorder %s514, %s516
      %p520 = scmp.eq.s32.totalorder %s81, 0
      %p521 = por %p519, %p520
      %p522 = scmp.ne.s32.totalorder %s514, %s516
      %p523 = scmp.eq.s32.totalorder %s86, 1
      %p524 = por %p522, %p523
      %p525 = scmp.ne.s32.totalorder %s516, %s517
      %p526 = scmp.eq.s32.totalorder %s86, 0
      %p527 = por %p525, %p526
      %p528 = scmp.ne.s32.totalorder %s516, %s517
      %p529 = scmp.eq.s32.totalorder %s87, 1
      %p530 = por %p528, %p529
      %p532 = scmp.ne.s32.totalorder %s517, %s531
      %p533 = scmp.eq.s32.totalorder %s87, 0
      %p534 = por %p532, %p533
      %s536 = sadd.s32 %s535, 1
      %p539 = scmp.eq.s32.totalorder %s81, 1
      %p540 = scmp.ne.s32.totalorder %s535, %s537
      %p541 = scmp.eq.s32.totalorder %s81, 0
      %p542 = por %p540, %p541
      %p543 = scmp.ne.s32.totalorder %s535, %s537
      %p544 = scmp.eq.s32.totalorder %s86, 1
      %p545 = por %p543, %p544
      %p546 = scmp.ne.s32.totalorder %s537, %s538
      %p547 = scmp.eq.s32.totalorder %s86, 0
      %p548 = por %p546, %p547
      %p549 = scmp.ne.s32.totalorder %s537, %s538
      %p550 = scmp.eq.s32.totalorder %s87, 1
      %p551 = por %p549, %p550
      %p553 = scmp.ne.s32.totalorder %s538, %s552
      %p554 = scmp.eq.s32.totalorder %s87, 0
      %p555 = por %p553, %p554
      %s557 = sadd.s32 %s556, 1
      %p560 = scmp.eq.s32.totalorder %s81, 1
      %p561 = scmp.ne.s32.totalorder %s556, %s558
      %p562 = scmp.eq.s32.totalorder %s81, 0
      %p563 = por %p561, %p562
      %p564 = scmp.ne.s32.totalorder %s556, %s558
      %p565 = scmp.eq.s32.totalorder %s86, 1
      %p566 = por %p564, %p565
      %p567 = scmp.ne.s32.totalorder %s558, %s559
      %p568 = scmp.eq.s32.totalorder %s86, 0
      %p569 = por %p567, %p568
      %p570 = scmp.ne.s32.totalorder %s558, %s559
      %p571 = scmp.eq.s32.totalorder %s87, 1
      %p572 = por %p570, %p571
      %p574 = scmp.ne.s32.totalorder %s559, %s573
      %p575 = scmp.eq.s32.totalorder %s87, 0
      %p576 = por %p574, %p575
      %s578 = sadd.s32 %s577, 1
      %p581 = scmp.eq.s32.totalorder %s81, 1
      %p582 = scmp.ne.s32.totalorder %s577, %s579
      %p583 = scmp.eq.s32.totalorder %s81, 0
      %p584 = por %p582, %p583
      %p585 = scmp.ne.s32.totalorder %s577, %s579
      %p586 = scmp.eq.s32.totalorder %s86, 1
      %p587 = por %p585, %p586
      %p588 = scmp.ne.s32.totalorder %s579, %s580
      %p589 = scmp.eq.s32.totalorder %s86, 0
      %p590 = por %p588, %p589
      %p591 = scmp.ne.s32.totalorder %s579, %s580
      %p592 = scmp.eq.s32.totalorder %s87, 1
      %p593 = por %p591, %p592
      %p595 = scmp.ne.s32.totalorder %s580, %s594
      %p596 = scmp.eq.s32.totalorder %s87, 0
      %p597 = por %p595, %p596
      %s599 = sadd.s32 %s598, 1
      %p602 = scmp.eq.s32.totalorder %s81, 1
      %p603 = scmp.ne.s32.totalorder %s598, %s600
      %p604 = scmp.eq.s32.totalorder %s81, 0
      %p605 = por %p603, %p604
      %p606 = scmp.ne.s32.totalorder %s598, %s600
      %p607 = scmp.eq.s32.totalorder %s86, 1
      %p608 = por %p606, %p607
      %p609 = scmp.ne.s32.totalorder %s600, %s601
      %p610 = scmp.eq.s32.totalorder %s86, 0
      %p611 = por %p609, %p610
      %p612 = scmp.ne.s32.totalorder %s600, %s601
      %p613 = scmp.eq.s32.totalorder %s87, 1
      %p614 = por %p612, %p613
      %p616 = scmp.ne.s32.totalorder %s601, %s615
      %p617 = scmp.eq.s32.totalorder %s87, 0
      %p618 = por %p616, %p617
      %s620 = sadd.s32 %s619, 1
      %p623 = scmp.eq.s32.totalorder %s81, 1
      %p624 = scmp.ne.s32.totalorder %s619, %s621
      %p625 = scmp.eq.s32.totalorder %s81, 0
      %p626 = por %p624, %p625
      %p627 = scmp.ne.s32.totalorder %s619, %s621
      %p628 = scmp.eq.s32.totalorder %s86, 1
      %p629 = por %p627, %p628
      %p630 = scmp.ne.s32.totalorder %s621, %s622
      %p631 = scmp.eq.s32.totalorder %s86, 0
      %p632 = por %p630, %p631
      %p633 = scmp.ne.s32.totalorder %s621, %s622
      %p634 = scmp.eq.s32.totalorder %s87, 1
      %p635 = por %p633, %p634
      %p637 = scmp.ne.s32.totalorder %s622, %s636
      %p638 = scmp.eq.s32.totalorder %s87, 0
      %p639 = por %p637, %p638
      %s641 = sadd.s32 %s640, 1
      %p644 = scmp.eq.s32.totalorder %s81, 1
      %p645 = scmp.ne.s32.totalorder %s640, %s642
      %p646 = scmp.eq.s32.totalorder %s81, 0
      %p647 = por %p645, %p646
      %p648 = scmp.ne.s32.totalorder %s640, %s642
      %p649 = scmp.eq.s32.totalorder %s86, 1
      %p650 = por %p648, %p649
      %p651 = scmp.ne.s32.totalorder %s642, %s643
      %p652 = scmp.eq.s32.totalorder %s86, 0
      %p653 = por %p651, %p652
      %p654 = scmp.ne.s32.totalorder %s642, %s643
      %p655 = scmp.eq.s32.totalorder %s87, 1
      %p656 = por %p654, %p655
      %p658 = scmp.ne.s32.totalorder %s643, %s657
      %p659 = scmp.eq.s32.totalorder %s87, 0
      %p660 = por %p658, %p659
      %s662 = sadd.s32 %s661, 1
      %p665 = scmp.eq.s32.totalorder %s81, 1
      %p666 = scmp.ne.s32.totalorder %s661, %s663
      %p667 = scmp.eq.s32.totalorder %s81, 0
      %p668 = por %p666, %p667
      %p669 = scmp.ne.s32.totalorder %s661, %s663
      %p670 = scmp.eq.s32.totalorder %s86, 1
      %p671 = por %p669, %p670
      %p672 = scmp.ne.s32.totalorder %s663, %s664
      %p673 = scmp.eq.s32.totalorder %s86, 0
      %p674 = por %p672, %p673
      %p675 = scmp.ne.s32.totalorder %s663, %s664
      %p676 = scmp.eq.s32.totalorder %s87, 1
      %p677 = por %p675, %p676
      %p679 = scmp.ne.s32.totalorder %s664, %s678
      %p680 = scmp.eq.s32.totalorder %s87, 0
      %p681 = por %p679, %p680
      %s683 = sadd.s32 %s682, 1
      %p686 = scmp.eq.s32.totalorder %s81, 1
      %p687 = scmp.ne.s32.totalorder %s682, %s684
      %p688 = scmp.eq.s32.totalorder %s81, 0
      %p689 = por %p687, %p688
      %p690 = scmp.ne.s32.totalorder %s682, %s684
      %p691 = scmp.eq.s32.totalorder %s86, 1
      %p692 = por %p690, %p691
      %p693 = scmp.ne.s32.totalorder %s684, %s685
      %p694 = scmp.eq.s32.totalorder %s86, 0
      %p695 = por %p693, %p694
      %p696 = scmp.ne.s32.totalorder %s684, %s685
      %p697 = scmp.eq.s32.totalorder %s87, 1
      %p698 = por %p696, %p697
      %p700 = scmp.ne.s32.totalorder %s685, %s699
      %p701 = scmp.eq.s32.totalorder %s87, 0
      %p702 = por %p700, %p701
      %s704 = sadd.s32 %s703, 1
      %p707 = scmp.eq.s32.totalorder %s81, 1
      %p708 = scmp.ne.s32.totalorder %s703, %s705
      %p709 = scmp.eq.s32.totalorder %s81, 0
      %p710 = por %p708, %p709
      %p711 = scmp.ne.s32.totalorder %s703, %s705
      %p712 = scmp.eq.s32.totalorder %s86, 1
      %p713 = por %p711, %p712
      %p714 = scmp.ne.s32.totalorder %s705, %s706
      %p715 = scmp.eq.s32.totalorder %s86, 0
      %p716 = por %p714, %p715
      %p717 = scmp.ne.s32.totalorder %s705, %s706
      %p718 = scmp.eq.s32.totalorder %s87, 1
      %p719 = por %p717, %p718
      %p721 = scmp.ne.s32.totalorder %s706, %s720
      %p722 = scmp.eq.s32.totalorder %s87, 0
      %p723 = por %p721, %p722
      %s725 = sadd.s32 %s724, 1
      %p728 = scmp.eq.s32.totalorder %s81, 1
      %p729 = scmp.ne.s32.totalorder %s724, %s726
      %p730 = scmp.eq.s32.totalorder %s81, 0
      %p731 = por %p729, %p730
      %p732 = scmp.ne.s32.totalorder %s724, %s726
      %p733 = scmp.eq.s32.totalorder %s86, 1
      %p734 = por %p732, %p733
      %p735 = scmp.ne.s32.totalorder %s726, %s727
      %p736 = scmp.eq.s32.totalorder %s86, 0
      %p737 = por %p735, %p736
      %p738 = scmp.ne.s32.totalorder %s726, %s727
      %p739 = scmp.eq.s32.totalorder %s87, 1
      %p740 = por %p738, %p739
      %p742 = scmp.ne.s32.totalorder %s727, %s741
      %p743 = scmp.eq.s32.totalorder %s87, 0
      %p744 = por %p742, %p743
      %s746 = sadd.s32 %s745, 1
      %p749 = scmp.eq.s32.totalorder %s81, 1
      %p750 = scmp.ne.s32.totalorder %s745, %s747
      %p751 = scmp.eq.s32.totalorder %s81, 0
      %p752 = por %p750, %p751
      %p753 = scmp.ne.s32.totalorder %s745, %s747
      %p754 = scmp.eq.s32.totalorder %s86, 1
      %p755 = por %p753, %p754
      %p756 = scmp.ne.s32.totalorder %s747, %s748
      %p757 = scmp.eq.s32.totalorder %s86, 0
      %p758 = por %p756, %p757
      %p759 = scmp.ne.s32.totalorder %s747, %s748
      %p760 = scmp.eq.s32.totalorder %s87, 1
      %p761 = por %p759, %p760
      %p763 = scmp.ne.s32.totalorder %s748, %s762
      %p764 = scmp.eq.s32.totalorder %s87, 0
      %p765 = por %p763, %p764
      %s767 = sadd.s32 %s766, 1
      %p770 = scmp.eq.s32.totalorder %s81, 1
      %p771 = scmp.ne.s32.totalorder %s766, %s768
      %p772 = scmp.eq.s32.totalorder %s81, 0
      %p773 = por %p771, %p772
      %p774 = scmp.ne.s32.totalorder %s766, %s768
      %p775 = scmp.eq.s32.totalorder %s86, 1
      %p776 = por %p774, %p775
      %p777 = scmp.ne.s32.totalorder %s768, %s769
      %p778 = scmp.eq.s32.totalorder %s86, 0
      %p779 = por %p777, %p778
      %p780 = scmp.ne.s32.totalorder %s768, %s769
      %p781 = scmp.eq.s32.totalorder %s87, 1
      %p782 = por %p780, %p781
      %p784 = scmp.ne.s32.totalorder %s769, %s783
      %p785 = scmp.eq.s32.totalorder %s87, 0
      %p786 = por %p784, %p785
      %s787 = ssub.s32 %s81, %s88
      %p788 = scmp.eq.s32.totalorder %s787, 0
      %s790 = sadd.s32 %s789, 1
      %s791 = scalar_select %p788, %s789, %s790
      %p794 = pneg %p788
      %p795 = scmp.eq.s32.totalorder %s81, 1
      %p796 = por %p794, %p795
      %p797 = scmp.ne.s32.totalorder %s789, %s792
      %p798 = scmp.eq.s32.totalorder %s81, 0
      %p799 = por %p797, %p798
      %p800 = scmp.ne.s32.totalorder %s789, %s792
      %p801 = scmp.eq.s32.totalorder %s86, 1
      %p802 = por %p800, %p801
      %p803 = scmp.ne.s32.totalorder %s792, %s793
      %p804 = scmp.eq.s32.totalorder %s86, 0
      %p805 = por %p803, %p804
      %p806 = scmp.ne.s32.totalorder %s792, %s793
      %p807 = scmp.eq.s32.totalorder %s87, 1
      %p808 = por %p806, %p807
      %p810 = scmp.ne.s32.totalorder %s793, %s809
      %p811 = scmp.eq.s32.totalorder %s87, 0
      %p812 = por %p810, %p811
      %p813 = scmp.le.s32.totalorder 1, %s81
      %p814 = scmp.lt.s32.totalorder %s81, 3
      %p815 = pnand %p813, %p814
      %p816 = pneg %p815
      // Predicated region
      $region9: #{swin_m3sda_forward.4} parent=5 // pred_check
        _
      $region10: #{swin_m3sda_forward.4} parent=5 // pred_check_branch
        %818 = sbr.rel (%p815) target = $region12
      $region11: #{swin_m3sda_forward.4} parent=5 // pred_region
        %s819 = ssub.s32 %s81, 1
        // Predicated region
        $region13: #{swin_m3sda_forward.4} parent=11 // pred_check
          %p820 = pneg %p128
        $region14: #{swin_m3sda_forward.4} parent=11 // pred_check_branch
          %822 = sbr.rel (%p820) target = $region16
        $region15: #{swin_m3sda_forward.4} parent=11 // pred_region
          _
        $region16: #{swin_m3sda_forward.4} parent=11 // pred_fallthru
          _
        // Predicated region
        $region17: #{swin_m3sda_forward.4} parent=11 // pred_check
          %p823 = pneg %p149
        $region18: #{swin_m3sda_forward.4} parent=11 // pred_check_branch
          %825 = sbr.rel (%p823) target = $region20
        $region19: #{swin_m3sda_forward.4} parent=11 // pred_region
          _
        $region20: #{swin_m3sda_forward.4} parent=11 // pred_fallthru
          _
        // Predicated region
        $region21: #{swin_m3sda_forward.4} parent=11 // pred_check
          %p826 = pneg %p170
        $region22: #{swin_m3sda_forward.4} parent=11 // pred_check_branch
          %828 = sbr.rel (%p826) target = $region24
        $region23: #{swin_m3sda_forward.4} parent=11 // pred_region
          _
        $region24: #{swin_m3sda_forward.4} parent=11 // pred_fallthru
          _
        // Predicated region
        $region25: #{swin_m3sda_forward.4} parent=11 // pred_check
          %p829 = pneg %p191
        $region26: #{swin_m3sda_forward.4} parent=11 // pred_check_branch
          %831 = sbr.rel (%p829) target = $region28
        $region27: #{swin_m3sda_forward.4} parent=11 // pred_region
          _
        $region28: #{swin_m3sda_forward.4} parent=11 // pred_fallthru
          _
        // Predicated region
        $region29: #{swin_m3sda_forward.4} parent=11 // pred_check
          %p832 = pneg %p212
        $region30: #{swin_m3sda_forward.4} parent=11 // pred_check_branch
          %834 = sbr.rel (%p832) target = $region32
        $region31: #{swin_m3sda_forward.4} parent=11 // pred_region
          %836 = vsyncadd [#allocation3], 0
          %s838 = sshll.u32 %s11, 4
          %s839 = int_to_ptr.hbm [resolvable:$true] %s838
          %s840 = sshll.u32 [#allocation2], 4
          %s841 = int_to_ptr.vmem [resolvable:$true] %s840
          %843 = dma.hbm_to_vmem [thread:$0]  %s839, 16, %s841, [#allocation3]
        $region32: #{swin_m3sda_forward.4} parent=11 // pred_fallthru
          _
        // Predicated region
        $region33: #{swin_m3sda_forward.4} parent=11 // pred_check
          %p844 = pneg %p233
        $region34: #{swin_m3sda_forward.4} parent=11 // pred_check_branch
          %846 = sbr.rel (%p844) target = $region36
        $region35: #{swin_m3sda_forward.4} parent=11 // pred_region
          %848 = vsyncadd [#allocation5], 0
          %s850 = sshll.u32 %s13, 4
          %s851 = int_to_ptr.hbm [resolvable:$true] %s850
          %s852 = sshll.u32 [#allocation4], 4
          %s853 = int_to_ptr.vmem [resolvable:$true] %s852
          %855 = dma.hbm_to_vmem [thread:$0]  %s851, 16, %s853, [#allocation5]
        $region36: #{swin_m3sda_forward.4} parent=11 // pred_fallthru
          _
        // Predicated region
        $region37: #{swin_m3sda_forward.4} parent=11 // pred_check
          %p856 = pneg %p254
        $region38: #{swin_m3sda_forward.4} parent=11 // pred_check_branch
          %858 = sbr.rel (%p856) target = $region40
        $region39: #{swin_m3sda_forward.4} parent=11 // pred_region
          _
        $region40: #{swin_m3sda_forward.4} parent=11 // pred_fallthru
          _
        // Predicated region
        $region41: #{swin_m3sda_forward.4} parent=11 // pred_check
          %p859 = pneg %p275
        $region42: #{swin_m3sda_forward.4} parent=11 // pred_check_branch
          %861 = sbr.rel (%p859) target = $region44
        $region43: #{swin_m3sda_forward.4} parent=11 // pred_region
          _
        $region44: #{swin_m3sda_forward.4} parent=11 // pred_fallthru
          _
        // Predicated region
        $region45: #{swin_m3sda_forward.4} parent=11 // pred_check
          %p862 = pneg %p296
        $region46: #{swin_m3sda_forward.4} parent=11 // pred_check_branch
          %864 = sbr.rel (%p862) target = $region48
        $region47: #{swin_m3sda_forward.4} parent=11 // pred_region
          _
        $region48: #{swin_m3sda_forward.4} parent=11 // pred_fallthru
          _
        // Predicated region
        $region49: #{swin_m3sda_forward.4} parent=11 // pred_check
          %p865 = pneg %p317
        $region50: #{swin_m3sda_forward.4} parent=11 // pred_check_branch
          %867 = sbr.rel (%p865) target = $region52
        $region51: #{swin_m3sda_forward.4} parent=11 // pred_region
          _
        $region52: #{swin_m3sda_forward.4} parent=11 // pred_fallthru
          _
        // Predicated region
        $region53: #{swin_m3sda_forward.4} parent=11 // pred_check
          %p868 = pneg %p338
        $region54: #{swin_m3sda_forward.4} parent=11 // pred_check_branch
          %870 = sbr.rel (%p868) target = $region56
        $region55: #{swin_m3sda_forward.4} parent=11 // pred_region
          %872 = vsyncadd [#allocation5], 0
          %s874 = sshll.u32 %s23, 4
          %s875 = int_to_ptr.hbm [resolvable:$true] %s874
          %s876 = sshll.u32 [#allocation6], 4
          %s877 = int_to_ptr.vmem [resolvable:$true] %s876
          %879 = dma.hbm_to_vmem [thread:$0]  %s875, 16, %s877, [#allocation5]
        $region56: #{swin_m3sda_forward.4} parent=11 // pred_fallthru
          _
        // Predicated region
        $region57: #{swin_m3sda_forward.4} parent=11 // pred_check
          %p880 = pneg %p359
        $region58: #{swin_m3sda_forward.4} parent=11 // pred_check_branch
          %882 = sbr.rel (%p880) target = $region60
        $region59: #{swin_m3sda_forward.4} parent=11 // pred_region
          %884 = vsyncadd [#allocation8], 0
          %s886 = sshll.u32 %s25, 4
          %s887 = int_to_ptr.hbm [resolvable:$true] %s886
          %s888 = sshll.u32 [#allocation7], 4
          %s889 = int_to_ptr.vmem [resolvable:$true] %s888
          %891 = dma.hbm_to_vmem [thread:$0]  %s887, 16, %s889, [#allocation8]
        $region60: #{swin_m3sda_forward.4} parent=11 // pred_fallthru
          _
        // Predicated region
        $region61: #{swin_m3sda_forward.4} parent=11 // pred_check
          %p892 = pneg %p380
        $region62: #{swin_m3sda_forward.4} parent=11 // pred_check_branch
          %894 = sbr.rel (%p892) target = $region64
        $region63: #{swin_m3sda_forward.4} parent=11 // pred_region
          %896 = vsyncadd [#allocation8], 0
          %s898 = sshll.u32 %s27, 4
          %s899 = int_to_ptr.hbm [resolvable:$true] %s898
          %s900 = sshll.u32 [#allocation9], 4
          %s901 = int_to_ptr.vmem [resolvable:$true] %s900
          %903 = dma.hbm_to_vmem [thread:$0]  %s899, 16, %s901, [#allocation8]
        $region64: #{swin_m3sda_forward.4} parent=11 // pred_fallthru
          _
        // Predicated region
        $region65: #{swin_m3sda_forward.4} parent=11 // pred_check
          %p904 = pneg %p401
        $region66: #{swin_m3sda_forward.4} parent=11 // pred_check_branch
          %906 = sbr.rel (%p904) target = $region68
        $region67: #{swin_m3sda_forward.4} parent=11 // pred_region
          _
        $region68: #{swin_m3sda_forward.4} parent=11 // pred_fallthru
          _
        // Predicated region
        $region69: #{swin_m3sda_forward.4} parent=11 // pred_check
          %p907 = pneg %p422
        $region70: #{swin_m3sda_forward.4} parent=11 // pred_check_branch
          %909 = sbr.rel (%p907) target = $region72
        $region71: #{swin_m3sda_forward.4} parent=11 // pred_region
          _
        $region72: #{swin_m3sda_forward.4} parent=11 // pred_fallthru
          _
        // Predicated region
        $region73: #{swin_m3sda_forward.4} parent=11 // pred_check
          %p910 = pneg %p443
        $region74: #{swin_m3sda_forward.4} parent=11 // pred_check_branch
          %912 = sbr.rel (%p910) target = $region76
        $region75: #{swin_m3sda_forward.4} parent=11 // pred_region
          _
        $region76: #{swin_m3sda_forward.4} parent=11 // pred_fallthru
          _
        // Predicated region
        $region77: #{swin_m3sda_forward.4} parent=11 // pred_check
          %p913 = pneg %p464
        $region78: #{swin_m3sda_forward.4} parent=11 // pred_check_branch
          %915 = sbr.rel (%p913) target = $region80
        $region79: #{swin_m3sda_forward.4} parent=11 // pred_region
          %917 = vsyncadd [#allocation11], 0
          %s919 = sshll.u32 %s35, 4
          %s920 = int_to_ptr.hbm [resolvable:$true] %s919
          %s921 = sshll.u32 [#allocation10], 4
          %s922 = int_to_ptr.vmem [resolvable:$true] %s921
          %924 = dma.hbm_to_vmem [thread:$0]  %s920, 16, %s922, [#allocation11]
        $region80: #{swin_m3sda_forward.4} parent=11 // pred_fallthru
          _
        // Predicated region
        $region81: #{swin_m3sda_forward.4} parent=11 // pred_check
          %p925 = pneg %p485
        $region82: #{swin_m3sda_forward.4} parent=11 // pred_check_branch
          %927 = sbr.rel (%p925) target = $region84
        $region83: #{swin_m3sda_forward.4} parent=11 // pred_region
          %929 = vsyncadd [#allocation11], 0
          %s931 = sshll.u32 %s37, 4
          %s932 = int_to_ptr.hbm [resolvable:$true] %s931
          %s933 = sshll.u32 [#allocation12], 4
          %s934 = int_to_ptr.vmem [resolvable:$true] %s933
          %936 = dma.hbm_to_vmem [thread:$0]  %s932, 16, %s934, [#allocation11]
        $region84: #{swin_m3sda_forward.4} parent=11 // pred_fallthru
          _
        // Predicated region
        $region85: #{swin_m3sda_forward.4} parent=11 // pred_check
          %p937 = pneg %p506
        $region86: #{swin_m3sda_forward.4} parent=11 // pred_check_branch
          %939 = sbr.rel (%p937) target = $region88
        $region87: #{swin_m3sda_forward.4} parent=11 // pred_region
          %941 = vsyncadd [#allocation14], 0
          %s943 = sshll.u32 %s39, 4
          %s944 = int_to_ptr.hbm [resolvable:$true] %s943
          %s945 = sshll.u32 [#allocation13], 4
          %s946 = int_to_ptr.vmem [resolvable:$true] %s945
          %948 = dma.hbm_to_vmem [thread:$0]  %s944, 16, %s946, [#allocation14]
        $region88: #{swin_m3sda_forward.4} parent=11 // pred_fallthru
          _
        // Predicated region
        $region89: #{swin_m3sda_forward.4} parent=11 // pred_check
          %p949 = pneg %p527
        $region90: #{swin_m3sda_forward.4} parent=11 // pred_check_branch
          %951 = sbr.rel (%p949) target = $region92
        $region91: #{swin_m3sda_forward.4} parent=11 // pred_region
          _
        $region92: #{swin_m3sda_forward.4} parent=11 // pred_fallthru
          _
        // Predicated region
        $region93: #{swin_m3sda_forward.4} parent=11 // pred_check
          %p952 = pneg %p548
        $region94: #{swin_m3sda_forward.4} parent=11 // pred_check_branch
          %954 = sbr.rel (%p952) target = $region96
        $region95: #{swin_m3sda_forward.4} parent=11 // pred_region
          _
        $region96: #{swin_m3sda_forward.4} parent=11 // pred_fallthru
          _
        // Predicated region
        $region97: #{swin_m3sda_forward.4} parent=11 // pred_check
          %p955 = pneg %p569
        $region98: #{swin_m3sda_forward.4} parent=11 // pred_check_branch
          %957 = sbr.rel (%p955) target = $region100
        $region99: #{swin_m3sda_forward.4} parent=11 // pred_region
          _
        $region100: #{swin_m3sda_forward.4} parent=11 // pred_fallthru
          _
        // Predicated region
        $region101: #{swin_m3sda_forward.4} parent=11 // pred_check
          %p958 = pneg %p590
        $region102: #{swin_m3sda_forward.4} parent=11 // pred_check_branch
          %960 = sbr.rel (%p958) target = $region104
        $region103: #{swin_m3sda_forward.4} parent=11 // pred_region
          _
        $region104: #{swin_m3sda_forward.4} parent=11 // pred_fallthru
          _
        // Predicated region
        $region105: #{swin_m3sda_forward.4} parent=11 // pred_check
          %p961 = pneg %p611
        $region106: #{swin_m3sda_forward.4} parent=11 // pred_check_branch
          %963 = sbr.rel (%p961) target = $region108
        $region107: #{swin_m3sda_forward.4} parent=11 // pred_region
          %965 = vsyncadd [#allocation14], 0
          %s967 = sshll.u32 %s49, 4
          %s968 = int_to_ptr.hbm [resolvable:$true] %s967
          %s969 = sshll.u32 [#allocation15], 4
          %s970 = int_to_ptr.vmem [resolvable:$true] %s969
          %972 = dma.hbm_to_vmem [thread:$0]  %s968, 16, %s970, [#allocation14]
        $region108: #{swin_m3sda_forward.4} parent=11 // pred_fallthru
          _
        // Predicated region
        $region109: #{swin_m3sda_forward.4} parent=11 // pred_check
          %p973 = pneg %p632
        $region110: #{swin_m3sda_forward.4} parent=11 // pred_check_branch
          %975 = sbr.rel (%p973) target = $region112
        $region111: #{swin_m3sda_forward.4} parent=11 // pred_region
          %977 = vsyncadd [#allocation17], 0
          %s979 = sshll.u32 %s51, 4
          %s980 = int_to_ptr.hbm [resolvable:$true] %s979
          %s981 = sshll.u32 [#allocation16], 4
          %s982 = int_to_ptr.vmem [resolvable:$true] %s981
          %984 = dma.hbm_to_vmem [thread:$0]  %s980, 16, %s982, [#allocation17]
        $region112: #{swin_m3sda_forward.4} parent=11 // pred_fallthru
          _
        // Predicated region
        $region113: #{swin_m3sda_forward.4} parent=11 // pred_check
          %p985 = pneg %p653
        $region114: #{swin_m3sda_forward.4} parent=11 // pred_check_branch
          %987 = sbr.rel (%p985) target = $region116
        $region115: #{swin_m3sda_forward.4} parent=11 // pred_region
          %989 = vsyncadd [#allocation17], 0
          %s991 = sshll.u32 %s53, 4
          %s992 = int_to_ptr.hbm [resolvable:$true] %s991
          %s993 = sshll.u32 [#allocation18], 4
          %s994 = int_to_ptr.vmem [resolvable:$true] %s993
          %996 = dma.hbm_to_vmem [thread:$0]  %s992, 16, %s994, [#allocation17]
        $region116: #{swin_m3sda_forward.4} parent=11 // pred_fallthru
          _
        // Predicated region
        $region117: #{swin_m3sda_forward.4} parent=11 // pred_check
          %p997 = pneg %p674
        $region118: #{swin_m3sda_forward.4} parent=11 // pred_check_branch
          %999 = sbr.rel (%p997) target = $region120
        $region119: #{swin_m3sda_forward.4} parent=11 // pred_region
          _
        $region120: #{swin_m3sda_forward.4} parent=11 // pred_fallthru
          _
        // Predicated region
        $region121: #{swin_m3sda_forward.4} parent=11 // pred_check
          %p1000 = pneg %p695
        $region122: #{swin_m3sda_forward.4} parent=11 // pred_check_branch
          %1002 = sbr.rel (%p1000) target = $region124
        $region123: #{swin_m3sda_forward.4} parent=11 // pred_region
          _
        $region124: #{swin_m3sda_forward.4} parent=11 // pred_fallthru
          _
        // Predicated region
        $region125: #{swin_m3sda_forward.4} parent=11 // pred_check
          %p1003 = pneg %p716
        $region126: #{swin_m3sda_forward.4} parent=11 // pred_check_branch
          %1005 = sbr.rel (%p1003) target = $region128
        $region127: #{swin_m3sda_forward.4} parent=11 // pred_region
          _
        $region128: #{swin_m3sda_forward.4} parent=11 // pred_fallthru
          _
        // Predicated region
        $region129: #{swin_m3sda_forward.4} parent=11 // pred_check
          %p1006 = pneg %p737
        $region130: #{swin_m3sda_forward.4} parent=11 // pred_check_branch
          %1008 = sbr.rel (%p1006) target = $region132
        $region131: #{swin_m3sda_forward.4} parent=11 // pred_region
          %1010 = vsyncadd [#allocation20], 0
          %s1012 = sshll.u32 %s61, 4
          %s1013 = int_to_ptr.hbm [resolvable:$true] %s1012
          %s1014 = sshll.u32 [#allocation19], 4
          %s1015 = int_to_ptr.vmem [resolvable:$true] %s1014
          %1017 = dma.hbm_to_vmem [thread:$0]  %s1013, 16, %s1015, [#allocation20]
        $region132: #{swin_m3sda_forward.4} parent=11 // pred_fallthru
          _
        // Predicated region
        $region133: #{swin_m3sda_forward.4} parent=11 // pred_check
          %p1018 = pneg %p758
        $region134: #{swin_m3sda_forward.4} parent=11 // pred_check_branch
          %1020 = sbr.rel (%p1018) target = $region136
        $region135: #{swin_m3sda_forward.4} parent=11 // pred_region
          %1022 = vsyncadd [#allocation20], 0
          %s1024 = sshll.u32 %s63, 4
          %s1025 = int_to_ptr.hbm [resolvable:$true] %s1024
          %s1026 = sshll.u32 [#allocation21], 4
          %s1027 = int_to_ptr.vmem [resolvable:$true] %s1026
          %1029 = dma.hbm_to_vmem [thread:$0]  %s1025, 16, %s1027, [#allocation20]
        $region136: #{swin_m3sda_forward.4} parent=11 // pred_fallthru
          _
        // Predicated region
        $region137: #{swin_m3sda_forward.4} parent=11 // pred_check
          %p1030 = pneg %p779
        $region138: #{swin_m3sda_forward.4} parent=11 // pred_check_branch
          %1032 = sbr.rel (%p1030) target = $region140
        $region139: #{swin_m3sda_forward.4} parent=11 // pred_region
          %1034 = vsyncadd [#allocation23], 0
          %s1036 = sshll.u32 %s65, 4
          %s1037 = int_to_ptr.hbm [resolvable:$true] %s1036
          %s1038 = sshll.u32 [#allocation22], 4
          %s1039 = int_to_ptr.vmem [resolvable:$true] %s1038
          %1041 = dma.hbm_to_vmem [thread:$0]  %s1037, 16, %s1039, [#allocation23]
        $region140: #{swin_m3sda_forward.4} parent=11 // pred_fallthru
          _
      $region12: #{swin_m3sda_forward.4} parent=5 // pred_fallthru
        _
      %p1042 = scmp.lt.s32.totalorder %s81, 2
      // Predicated region
      $region141: #{swin_m3sda_forward.4} parent=5 // pred_check
        %p1043 = pneg %p1042
      $region142: #{swin_m3sda_forward.4} parent=5 // pred_check_branch
        %1045 = sbr.rel (%p1043) target = $region144
      $region143: #{swin_m3sda_forward.4} parent=5 // pred_region
        // Predicated region
        $region145: #{swin_m3sda_forward.4} parent=143 // pred_check
          %p1046 = pneg %p101
        $region146: #{swin_m3sda_forward.4} parent=143 // pred_check_branch
          %1048 = sbr.rel (%p1046) target = $region148
        $region147: #{swin_m3sda_forward.4} parent=143 // pred_region
          %p1049 = scmp.lt.s32.totalorder %s81, 1
          %s1050 = scalar_select %p1049, %s81, 1
          %s1051 = smul.addr %s1050, 8
          %s1052 = smul.addr %s1051, 4
          %s1053 = scalar_lea.vmem %s1, %s1052
        $region148: #{swin_m3sda_forward.4} parent=143 // pred_fallthru
          _
      $region144: #{swin_m3sda_forward.4} parent=5 // pred_fallthru
        _
      %p1054 = scmp.le.s32.totalorder 1, %s81
      %p1055 = scmp.lt.s32.totalorder %s81, 3
      %p1056 = pnand %p1054, %p1055
      %p1057 = pneg %p1056
      // Predicated region
      $region149: #{swin_m3sda_forward.4} parent=5 // pred_check
        _
      $region150: #{swin_m3sda_forward.4} parent=5 // pred_check_branch
        %1059 = sbr.rel (%p1056) target = $region152
      $region151: #{swin_m3sda_forward.4} parent=5 // pred_region
        %s1060 = ssub.s32 %s81, 1
        // Predicated region
        $region153: #{swin_m3sda_forward.4} parent=151 // pred_check
          %p1061 = pneg %p212
        $region154: #{swin_m3sda_forward.4} parent=151 // pred_check_branch
          %1063 = sbr.rel (%p1061) target = $region156
        $region155: #{swin_m3sda_forward.4} parent=151 // pred_region
          %1065 = dma.done [#allocation3], 16
        $region156: #{swin_m3sda_forward.4} parent=151 // pred_fallthru
          _
        // Predicated region
        $region157: #{swin_m3sda_forward.4} parent=151 // pred_check
          %p1066 = pneg %p233
        $region158: #{swin_m3sda_forward.4} parent=151 // pred_check_branch
          %1068 = sbr.rel (%p1066) target = $region160
        $region159: #{swin_m3sda_forward.4} parent=151 // pred_region
          %1070 = dma.done [#allocation5], 16
        $region160: #{swin_m3sda_forward.4} parent=151 // pred_fallthru
          _
        // Predicated region
        $region161: #{swin_m3sda_forward.4} parent=151 // pred_check
          %p1071 = pneg %p338
        $region162: #{swin_m3sda_forward.4} parent=151 // pred_check_branch
          %1073 = sbr.rel (%p1071) target = $region164
        $region163: #{swin_m3sda_forward.4} parent=151 // pred_region
          %1075 = dma.done [#allocation5], 16
        $region164: #{swin_m3sda_forward.4} parent=151 // pred_fallthru
          _
        // Predicated region
        $region165: #{swin_m3sda_forward.4} parent=151 // pred_check
          %p1076 = pneg %p359
        $region166: #{swin_m3sda_forward.4} parent=151 // pred_check_branch
          %1078 = sbr.rel (%p1076) target = $region168
        $region167: #{swin_m3sda_forward.4} parent=151 // pred_region
          %1080 = dma.done [#allocation8], 16
        $region168: #{swin_m3sda_forward.4} parent=151 // pred_fallthru
          _
        // Predicated region
        $region169: #{swin_m3sda_forward.4} parent=151 // pred_check
          %p1081 = pneg %p380
        $region170: #{swin_m3sda_forward.4} parent=151 // pred_check_branch
          %1083 = sbr.rel (%p1081) target = $region172
        $region171: #{swin_m3sda_forward.4} parent=151 // pred_region
          %1085 = dma.done [#allocation8], 16
        $region172: #{swin_m3sda_forward.4} parent=151 // pred_fallthru
          _
        // Predicated region
        $region173: #{swin_m3sda_forward.4} parent=151 // pred_check
          %p1086 = pneg %p464
        $region174: #{swin_m3sda_forward.4} parent=151 // pred_check_branch
          %1088 = sbr.rel (%p1086) target = $region176
        $region175: #{swin_m3sda_forward.4} parent=151 // pred_region
          %1090 = dma.done [#allocation11], 16
        $region176: #{swin_m3sda_forward.4} parent=151 // pred_fallthru
          _
        // Predicated region
        $region177: #{swin_m3sda_forward.4} parent=151 // pred_check
          %p1091 = pneg %p485
        $region178: #{swin_m3sda_forward.4} parent=151 // pred_check_branch
          %1093 = sbr.rel (%p1091) target = $region180
        $region179: #{swin_m3sda_forward.4} parent=151 // pred_region
          %1095 = dma.done [#allocation11], 16
        $region180: #{swin_m3sda_forward.4} parent=151 // pred_fallthru
          _
        // Predicated region
        $region181: #{swin_m3sda_forward.4} parent=151 // pred_check
          %p1096 = pneg %p506
        $region182: #{swin_m3sda_forward.4} parent=151 // pred_check_branch
          %1098 = sbr.rel (%p1096) target = $region184
        $region183: #{swin_m3sda_forward.4} parent=151 // pred_region
          %1100 = dma.done [#allocation14], 16
        $region184: #{swin_m3sda_forward.4} parent=151 // pred_fallthru
          _
        // Predicated region
        $region185: #{swin_m3sda_forward.4} parent=151 // pred_check
          %p1101 = pneg %p611
        $region186: #{swin_m3sda_forward.4} parent=151 // pred_check_branch
          %1103 = sbr.rel (%p1101) target = $region188
        $region187: #{swin_m3sda_forward.4} parent=151 // pred_region
          %1105 = dma.done [#allocation14], 16
        $region188: #{swin_m3sda_forward.4} parent=151 // pred_fallthru
          _
        // Predicated region
        $region189: #{swin_m3sda_forward.4} parent=151 // pred_check
          %p1106 = pneg %p632
        $region190: #{swin_m3sda_forward.4} parent=151 // pred_check_branch
          %1108 = sbr.rel (%p1106) target = $region192
        $region191: #{swin_m3sda_forward.4} parent=151 // pred_region
          %1110 = dma.done [#allocation17], 16
        $region192: #{swin_m3sda_forward.4} parent=151 // pred_fallthru
          _
        // Predicated region
        $region193: #{swin_m3sda_forward.4} parent=151 // pred_check
          %p1111 = pneg %p653
        $region194: #{swin_m3sda_forward.4} parent=151 // pred_check_branch
          %1113 = sbr.rel (%p1111) target = $region196
        $region195: #{swin_m3sda_forward.4} parent=151 // pred_region
          %1115 = dma.done [#allocation17], 16
        $region196: #{swin_m3sda_forward.4} parent=151 // pred_fallthru
          _
        // Predicated region
        $region197: #{swin_m3sda_forward.4} parent=151 // pred_check
          %p1116 = pneg %p737
        $region198: #{swin_m3sda_forward.4} parent=151 // pred_check_branch
          %1118 = sbr.rel (%p1116) target = $region200
        $region199: #{swin_m3sda_forward.4} parent=151 // pred_region
          %1120 = dma.done [#allocation20], 16
        $region200: #{swin_m3sda_forward.4} parent=151 // pred_fallthru
          _
        // Predicated region
        $region201: #{swin_m3sda_forward.4} parent=151 // pred_check
          %p1121 = pneg %p758
        $region202: #{swin_m3sda_forward.4} parent=151 // pred_check_branch
          %1123 = sbr.rel (%p1121) target = $region204
        $region203: #{swin_m3sda_forward.4} parent=151 // pred_region
          %1125 = dma.done [#allocation20], 16
        $region204: #{swin_m3sda_forward.4} parent=151 // pred_fallthru
          _
        // Predicated region
        $region205: #{swin_m3sda_forward.4} parent=151 // pred_check
          %p1126 = pneg %p779
        $region206: #{swin_m3sda_forward.4} parent=151 // pred_check_branch
          %1128 = sbr.rel (%p1126) target = $region208
        $region207: #{swin_m3sda_forward.4} parent=151 // pred_region
          %1130 = dma.done [#allocation23], 16
        $region208: #{swin_m3sda_forward.4} parent=151 // pred_fallthru
          _
        %p1131 = scmp.lt.s32.totalorder %s86, 1
        %s1132 = scalar_select %p1131, %s86, 1
        %s1133 = smul.addr %s1132, 8
        %s1134 = smul.addr %s1133, 4
        %s1135 = scalar_lea.vmem %s1, %s1134
        %p1136 = pneg %p107
        %p1137 = pneg %p104
        %p1138 = pneg %p128
        %p1139 = pneg %p125
        %p1140 = pneg %p149
        %p1141 = pneg %p146
        %p1142 = pneg %p170
        %p1143 = pneg %p167
        %p1144 = pneg %p191
        %p1145 = pneg %p188
        %p1146 = pneg %p212
        %p1147 = pneg %p209
        %p1148 = pneg %p233
        %p1149 = pneg %p230
        %p1150 = pneg %p254
        %p1151 = pneg %p251
        %p1152 = pneg %p275
        %p1153 = pneg %p272
        %p1154 = pneg %p296
        %p1155 = pneg %p293
        %p1156 = pneg %p317
        %p1157 = pneg %p314
        %p1158 = pneg %p338
        %p1159 = pneg %p335
        %p1160 = pneg %p359
        %p1161 = pneg %p356
        %p1162 = pneg %p380
        %p1163 = pneg %p377
        %p1164 = pneg %p401
        %p1165 = pneg %p398
        %p1166 = pneg %p422
        %p1167 = pneg %p419
        %p1168 = pneg %p443
        %p1169 = pneg %p440
        %p1170 = pneg %p464
        %p1171 = pneg %p461
        %p1172 = pneg %p485
        %p1173 = pneg %p482
        %p1174 = pneg %p506
        %p1175 = pneg %p503
        %p1176 = pneg %p527
        %p1177 = pneg %p524
        %p1178 = pneg %p548
        %p1179 = pneg %p545
        %p1180 = pneg %p569
        %p1181 = pneg %p566
        %p1182 = pneg %p590
        %p1183 = pneg %p587
        %p1184 = pneg %p611
        %p1185 = pneg %p608
        %p1186 = pneg %p632
        %p1187 = pneg %p629
        %p1188 = pneg %p653
        %p1189 = pneg %p650
        %p1190 = pneg %p674
        %p1191 = pneg %p671
        %p1192 = pneg %p695
        %p1193 = pneg %p692
        %p1194 = pneg %p716
        %p1195 = pneg %p713
        %p1196 = pneg %p737
        %p1197 = pneg %p734
        %p1198 = pneg %p758
        %p1199 = pneg %p755
        %p1200 = pneg %p779
        %p1201 = pneg %p776
        %p1202 = pneg %p805
        %p1203 = pneg %p802
        %p1204 = scmp.lt.s32.totalorder %s86, 1
        %s1205 = scalar_select %p1204, %s86, 1
        %s1206 = smul.addr %s1205, 2
        %s1207 = smul.addr %s1206, 4
        %s1208 = scalar_lea.vmem %s67, %s1207
        %p1209 = scmp.lt.s32.totalorder %s86, 1
        %s1210 = scalar_select %p1209, %s86, 1
        %s1211 = smul.addr %s1210, 8
        %s1212 = smul.addr %s1211, 4
        %s1213 = scalar_lea.vmem %s1, %s1212
        %p1214 = scmp.lt.s32.totalorder %s86, 1
        %s1215 = scalar_select %p1214, %s86, 1
        %s1216 = smul.addr %s1215, 2
        %s1217 = smul.addr %s1216, 4
        %s1218 = scalar_lea.vmem %s67, %s1217
        %v1220 = vld [vmem:[%s1213] sm:$0xf]
        %v1221 = vld [vmem:[%s1213 + $0x4] sm:$0xf]
        %v1222 = vld [vmem:[%s1213 + $0x8] sm:$0xf]
        %v1223 = vld [vmem:[%s1213 + $0xc] sm:$0xf]
        %v1224 = vld [vmem:[%s1213 + $0x10] sm:$0xf]
        %v1225 = vld [vmem:[%s1213 + $0x14] sm:$0xf]
        %v1226 = vld [vmem:[%s1213 + $0x18] sm:$0xf]
        %v1227 = vld [vmem:[%s1213 + $0x1c] sm:$0xf]
        %v1228 = vunpack.c.l.bf16 %v1220
        %v1229 = vunpack.c.l.bf16 %v1221
        %v1230 = vunpack.c.l.bf16 %v1222
        %v1231 = vunpack.c.l.bf16 %v1223
        %v1232 = vunpack.c.l.bf16 %v1224
        %v1233 = vunpack.c.l.bf16 %v1225
        %v1234 = vunpack.c.l.bf16 %v1226
        %v1235 = vunpack.c.l.bf16 %v1227
        %v1236 = vld [vmem:[%s3] sm:$0xff]
        %v1237 = vld [vmem:[%s3 + $0x8] sm:$0xff]
        %v1238 = vld [vmem:[%s3 + $0x10] sm:$0xff]
        %v1239 = vld [vmem:[%s3 + $0x18] sm:$0xff]
        %v1240 = vld [vmem:[%s3 + $0x20] sm:$0xff]
        %v1241 = vld [vmem:[%s3 + $0x28] sm:$0xff]
        %v1242 = vld [vmem:[%s3 + $0x30] sm:$0xff]
        %v1243 = vld [vmem:[%s3 + $0x38] sm:$0xff]
        %vm1244 = vcmask 523264
        %v1246 = vsel %vm1244, %v1236, 0
        %v1249 = vsel %vm1244, %v1237, 0
        %v1252 = vsel %vm1244, %v1238, 0
        %v1255 = vsel %vm1244, %v1239, 0
        %v1258 = vsel %vm1244, %v1240, 0
        %v1261 = vsel %vm1244, %v1241, 0
        %v1264 = vsel %vm1244, %v1242, 0
        %v1267 = vsel %vm1244, %v1243, 0
        %1269 = vmatpush.msra.mxu0 0.0
        %1270 = vmatpush.msra.mxu0 0.0
        %1271 = vmatpush.msra.mxu0 0.0
        %1272 = vmatpush.msra.mxu0 0.0
        %1273 = vmatpush.msra.mxu0 0.0
        %1274 = vmatpush.msra.mxu0 0.0
        %1275 = vmatpush.msra.mxu0 0.0
        %1276 = vmatpush.msra.mxu0 0.0
        %1277 = vmatpush.msra.mxu0 %v1235
        %1278 = vmatpush.msra.mxu0 %v1234
        %1279 = vmatpush.msra.mxu0 %v1233
        %1280 = vmatpush.msra.mxu0 %v1232
        %1281 = vmatpush.msra.mxu0 %v1231
        %1282 = vmatpush.msra.mxu0 %v1230
        %1283 = vmatpush.msra.mxu0 %v1229
        %1284 = vmatpush.msra.mxu0 %v1228
        %1285 = vmatmul.f32.gmra.mxu0 %v1246
        %v1286 = vpop.f32.mrf.mxu0
        %v1287 = vadd.f32 0.0, %v1286
        %1288 = vmatmul.f32.gmra.mxu0 %v1249
        %v1289 = vpop.f32.mrf.mxu0
        %v1290 = vadd.f32 0.0, %v1289
        %1291 = vmatmul.f32.gmra.mxu0 %v1252
        %v1292 = vpop.f32.mrf.mxu0
        %v1293 = vadd.f32 0.0, %v1292
        %1294 = vmatmul.f32.gmra.mxu0 %v1255
        %v1295 = vpop.f32.mrf.mxu0
        %v1296 = vadd.f32 0.0, %v1295
        %1297 = vmatmul.f32.gmra.mxu0 %v1258
        %v1298 = vpop.f32.mrf.mxu0
        %v1299 = vadd.f32 0.0, %v1298
        %1300 = vmatmul.f32.gmra.mxu0 %v1261
        %v1301 = vpop.f32.mrf.mxu0
        %v1302 = vadd.f32 0.0, %v1301
        %1303 = vmatmul.f32.gmra.mxu0 %v1264
        %v1304 = vpop.f32.mrf.mxu0
        %v1305 = vadd.f32 0.0, %v1304
        %1306 = vmatmul.f32.gmra.mxu0 %v1267
        %v1307 = vpop.f32.mrf.mxu0
        %v1308 = vadd.f32 0.0, %v1307
        %1309 = vdwg.mxu0
        %vm1310 = vcmask 261120
        %v1311 = vsel %vm1310, %v1287, 0.0
        %v1312 = vsel %vm1310, %v1293, 0.0
        %v1313 = vadd.f32 %v1311, %v1312
        %v1314 = vsel %vm1310, %v1299, 0.0
        %v1315 = vadd.f32 %v1313, %v1314
        %v1316 = vsel %vm1310, %v1305, 0.0
        %v1317 = vadd.f32 %v1315, %v1316
        %v1318 = vsel %vm1310, %v1290, 0.0
        %v1319 = vsel %vm1310, %v1296, 0.0
        %v1320 = vadd.f32 %v1318, %v1319
        %v1321 = vsel %vm1310, %v1302, 0.0
        %v1322 = vadd.f32 %v1320, %v1321
        %v1323 = vsel %vm1310, %v1308, 0.0
        %v1324 = vadd.f32 %v1322, %v1323
        %v1325 = vsel %vm1310, %v1317, 0.0
        %1326 = vadd.xlane.f32.xlu0 %v1325
        %v1327 = vpop.xlane.xlu0 %1326
        %v1328 = vsel %vm1310, %v1324, 0.0
        %1329 = vadd.xlane.f32.xlu0 %v1328
        %v1330 = vpop.xlane.xlu0 %1329
        %v1331 = vrcp.pop 128.0
        %v1332 = vmul.f32 128.0, %v1331
        %v1333 = vsub.f32 1.0, %v1332
        %v1334 = vmul.f32 %v1331, %v1333
        %v1335 = vadd.f32 %v1331, %v1334
        %vm1336 = vweird.f32 %v1331
        %v1337 = vsel %vm1336, %v1331, %v1335
        %v1338 = vmul.f32 %v1327, %v1337
        %v1339 = vmul.f32 %v1330, %v1337
        %v1340 = vsub.f32 %v1287, %v1338
        %v1341 = vsub.f32 %v1290, %v1339
        %v1342 = vsub.f32 %v1293, %v1338
        %v1343 = vsub.f32 %v1296, %v1339
        %v1344 = vsub.f32 %v1299, %v1338
        %v1345 = vsub.f32 %v1302, %v1339
        %v1346 = vsub.f32 %v1305, %v1338
        %v1347 = vsub.f32 %v1308, %v1339
        %v1348 = vmul.f32 %v1340, %v1340
        %v1349 = vmul.f32 %v1341, %v1341
        %v1350 = vmul.f32 %v1342, %v1342
        %v1351 = vmul.f32 %v1343, %v1343
        %v1352 = vmul.f32 %v1344, %v1344
        %v1353 = vmul.f32 %v1345, %v1345
        %v1354 = vmul.f32 %v1346, %v1346
        %v1355 = vmul.f32 %v1347, %v1347
        %v1356 = vsel %vm1310, %v1348, 0.0
        %v1357 = vsel %vm1310, %v1350, 0.0
        %v1358 = vadd.f32 %v1356, %v1357
        %v1359 = vsel %vm1310, %v1352, 0.0
        %v1360 = vadd.f32 %v1358, %v1359
        %v1361 = vsel %vm1310, %v1354, 0.0
        %v1362 = vadd.f32 %v1360, %v1361
        %v1363 = vsel %vm1310, %v1349, 0.0
        %v1364 = vsel %vm1310, %v1351, 0.0
        %v1365 = vadd.f32 %v1363, %v1364
        %v1366 = vsel %vm1310, %v1353, 0.0
        %v1367 = vadd.f32 %v1365, %v1366
        %v1368 = vsel %vm1310, %v1355, 0.0
        %v1369 = vadd.f32 %v1367, %v1368
        %v1370 = vsel %vm1310, %v1362, 0.0
        %1371 = vadd.xlane.f32.xlu0 %v1370
        %v1372 = vpop.xlane.xlu0 %1371
        %v1373 = vsel %vm1310, %v1369, 0.0
        %1374 = vadd.xlane.f32.xlu0 %v1373
        %v1375 = vpop.xlane.xlu0 %1374
        %v1376 = vmul.f32 %v1372, %v1337
        %v1377 = vmul.f32 %v1375, %v1337
        %v1378 = vadd.f32 %v1376, 1e-05
        %v1379 = vadd.f32 %v1377, 1e-05
        %v1380 = vrsqrt.pop %v1378
        %v1381 = vmul.f32 %v1380, %v1378
        %v1382 = vmul.f32 %v1381, %v1380
        %v1383 = vmul.f32 0.5, %v1382
        %v1384 = vsub.f32 1.5, %v1383
        %v1385 = vmul.f32 %v1380, %v1384
        %vm1386 = vweird.f32 %v1378
        %vm1387 = vweird.f32 %v1380
        %vm1388 = vmor %vm1386, %vm1387
        %v1389 = vsel %vm1388, %v1380, %v1385
        %v1390 = vrsqrt.pop %v1379
        %v1391 = vmul.f32 %v1390, %v1379
        %v1392 = vmul.f32 %v1391, %v1390
        %v1393 = vmul.f32 0.5, %v1392
        %v1394 = vsub.f32 1.5, %v1393
        %v1395 = vmul.f32 %v1390, %v1394
        %vm1396 = vweird.f32 %v1379
        %vm1397 = vweird.f32 %v1390
        %vm1398 = vmor %vm1396, %vm1397
        %v1399 = vsel %vm1398, %v1390, %v1395
        %v1400 = vmul.f32 %v1340, %v1389
        %v1401 = vmul.f32 %v1341, %v1399
        %v1402 = vmul.f32 %v1342, %v1389
        %v1403 = vmul.f32 %v1343, %v1399
        %v1404 = vmul.f32 %v1344, %v1389
        %v1405 = vmul.f32 %v1345, %v1399
        %v1406 = vmul.f32 %v1346, %v1389
        %v1407 = vmul.f32 %v1347, %v1399
        %v1408 = vld [vmem:[%s5] sm:$0x1]
        %v1409 = vld [vmem:[%s5 + $0x1] sm:$0x1]
        %v1410 = vld [vmem:[%s5 + $0x2] sm:$0x1]
        %v1411 = vld [vmem:[%s5 + $0x3] sm:$0x1]
        %v1416 = vperm.slane %v1408, 0
        %v1417 = vperm.slane %v1409, 0
        %v1418 = vperm.slane %v1410, 0
        %v1419 = vperm.slane %v1411, 0
        %v1424 = vmul.f32 %v1400, %v1416
        %v1425 = vmul.f32 %v1401, %v1416
        %v1426 = vmul.f32 %v1402, %v1417
        %v1427 = vmul.f32 %v1403, %v1417
        %v1428 = vmul.f32 %v1404, %v1418
        %v1429 = vmul.f32 %v1405, %v1418
        %v1430 = vmul.f32 %v1406, %v1419
        %v1431 = vmul.f32 %v1407, %v1419
        %v1432 = vld [vmem:[%s7] sm:$0x1]
        %v1433 = vld [vmem:[%s7 + $0x1] sm:$0x1]
        %v1434 = vld [vmem:[%s7 + $0x2] sm:$0x1]
        %v1435 = vld [vmem:[%s7 + $0x3] sm:$0x1]
        %v1440 = vperm.slane %v1432, 0
        %v1441 = vperm.slane %v1433, 0
        %v1442 = vperm.slane %v1434, 0
        %v1443 = vperm.slane %v1435, 0
        %v1448 = vadd.f32 %v1424, %v1440
        %v1449 = vadd.f32 %v1425, %v1440
        %v1450 = vadd.f32 %v1426, %v1441
        %v1451 = vadd.f32 %v1427, %v1441
        %v1452 = vadd.f32 %v1428, %v1442
        %v1453 = vadd.f32 %v1429, %v1442
        %v1454 = vadd.f32 %v1430, %v1443
        %v1455 = vadd.f32 %v1431, %v1443
        %v1456 = vpack.c.bf16 %v1448, %v1448
        %v1457 = vpack.c.bf16 %v1449, %v1449
        %v1458 = vpack.c.bf16 %v1450, %v1450
        %v1459 = vpack.c.bf16 %v1451, %v1451
        %v1460 = vpack.c.bf16 %v1452, %v1452
        %v1461 = vpack.c.bf16 %v1453, %v1453
        %v1462 = vpack.c.bf16 %v1454, %v1454
        %v1463 = vpack.c.bf16 %v1455, %v1455
        %v1464 = vld [vmem:[%s9] sm:$0xf]
        %v1465 = vld [vmem:[%s9 + $0x4] sm:$0xf]
        %v1466 = vld [vmem:[%s9 + $0x8] sm:$0xf]
        %v1467 = vld [vmem:[%s9 + $0xc] sm:$0xf]
        %v1468 = vld [vmem:[%s9 + $0x10] sm:$0xf]
        %v1469 = vld [vmem:[%s9 + $0x14] sm:$0xf]
        %v1470 = vld [vmem:[%s9 + $0x18] sm:$0xf]
        %v1471 = vld [vmem:[%s9 + $0x1c] sm:$0xf]
        %v1472 = vld [vmem:[%s9 + $0x20] sm:$0xf]
        %v1473 = vld [vmem:[%s9 + $0x24] sm:$0xf]
        %v1474 = vld [vmem:[%s9 + $0x28] sm:$0xf]
        %v1475 = vld [vmem:[%s9 + $0x2c] sm:$0xf]
        %v1476 = vld [vmem:[%s9 + $0x30] sm:$0xf]
        %v1477 = vld [vmem:[%s9 + $0x34] sm:$0xf]
        %v1478 = vld [vmem:[%s9 + $0x38] sm:$0xf]
        %v1479 = vld [vmem:[%s9 + $0x3c] sm:$0xf]
        %v1482 = vunpack.c.l.b16 %v1456
        %v1483 = vunpack.c.l.b16 %v1457
        %v1484 = vpack.c.b16 %v1483, %v1482
        %v1489 = vunpack.c.l.b16 %v1464
        %v1490 = vunpack.c.l.b16 %v1465
        %v1491 = vunpack.c.l.b16 %v1466
        %v1492 = vunpack.c.l.b16 %v1467
        %v1493 = vpack.c.b16 %v1490, %v1489
        %v1494 = vpack.c.b16 %v1492, %v1491
        %v1498 = vsel %vm1310, %v1484, 0
        %1500 = vmatpush.bf16.msra.mxu0 0
        %1501 = vmatpush.bf16.msra.mxu0 0
        %1502 = vmatpush.bf16.msra.mxu0 0
        %1503 = vmatpush.bf16.msra.mxu0 0
        %1504 = vmatpush.bf16.msra.mxu0 0
        %1505 = vmatpush.bf16.msra.mxu0 0
        %1506 = vmatpush.bf16.msra.mxu0 %v1494
        %1507 = vmatpush.bf16.msra.mxu0 %v1493
        %1508 = vmatmul.bf16.gmra.mxu0 %v1498
        %v1509 = vpop.f32.mrf.mxu0
        %v1510 = vadd.f32 0.0, %v1509
        %v1511 = vpop.f32.mrf.mxu0
        %v1512 = vadd.f32 0.0, %v1511
        %1513 = vdwg.mxu0
        %v1516 = vunpack.c.l.b16 %v1458
        %v1517 = vunpack.c.l.b16 %v1459
        %v1518 = vpack.c.b16 %v1517, %v1516
        %v1523 = vunpack.c.l.b16 %v1468
        %v1524 = vunpack.c.l.b16 %v1469
        %v1525 = vunpack.c.l.b16 %v1470
        %v1526 = vunpack.c.l.b16 %v1471
        %v1527 = vpack.c.b16 %v1524, %v1523
        %v1528 = vpack.c.b16 %v1526, %v1525
        %v1532 = vsel %vm1310, %v1518, 0
        %1534 = vmatpush.bf16.msra.mxu0 0
        %1535 = vmatpush.bf16.msra.mxu0 0
        %1536 = vmatpush.bf16.msra.mxu0 0
        %1537 = vmatpush.bf16.msra.mxu0 0
        %1538 = vmatpush.bf16.msra.mxu0 0
        %1539 = vmatpush.bf16.msra.mxu0 0
        %1540 = vmatpush.bf16.msra.mxu0 %v1528
        %1541 = vmatpush.bf16.msra.mxu0 %v1527
        %1542 = vmatmul.bf16.gmra.mxu0 %v1532
        %v1543 = vpop.f32.mrf.mxu0
        %v1544 = vadd.f32 0.0, %v1543
        %v1545 = vpop.f32.mrf.mxu0
        %v1546 = vadd.f32 0.0, %v1545
        %1547 = vdwg.mxu0
        %v1550 = vunpack.c.l.b16 %v1460
        %v1551 = vunpack.c.l.b16 %v1461
        %v1552 = vpack.c.b16 %v1551, %v1550
        %v1557 = vunpack.c.l.b16 %v1472
        %v1558 = vunpack.c.l.b16 %v1473
        %v1559 = vunpack.c.l.b16 %v1474
        %v1560 = vunpack.c.l.b16 %v1475
        %v1561 = vpack.c.b16 %v1558, %v1557
        %v1562 = vpack.c.b16 %v1560, %v1559
        %v1566 = vsel %vm1310, %v1552, 0
        %1568 = vmatpush.bf16.msra.mxu0 0
        %1569 = vmatpush.bf16.msra.mxu0 0
        %1570 = vmatpush.bf16.msra.mxu0 0
        %1571 = vmatpush.bf16.msra.mxu0 0
        %1572 = vmatpush.bf16.msra.mxu0 0
        %1573 = vmatpush.bf16.msra.mxu0 0
        %1574 = vmatpush.bf16.msra.mxu0 %v1562
        %1575 = vmatpush.bf16.msra.mxu0 %v1561
        %1576 = vmatmul.bf16.gmra.mxu0 %v1566
        %v1577 = vpop.f32.mrf.mxu0
        %v1578 = vadd.f32 0.0, %v1577
        %v1579 = vpop.f32.mrf.mxu0
        %v1580 = vadd.f32 0.0, %v1579
        %1581 = vdwg.mxu0
        %v1584 = vunpack.c.l.b16 %v1462
        %v1585 = vunpack.c.l.b16 %v1463
        %v1586 = vpack.c.b16 %v1585, %v1584
        %v1591 = vunpack.c.l.b16 %v1476
        %v1592 = vunpack.c.l.b16 %v1477
        %v1593 = vunpack.c.l.b16 %v1478
        %v1594 = vunpack.c.l.b16 %v1479
        %v1595 = vpack.c.b16 %v1592, %v1591
        %v1596 = vpack.c.b16 %v1594, %v1593
        %v1600 = vsel %vm1310, %v1586, 0
        %1602 = vmatpush.bf16.msra.mxu0 0
        %1603 = vmatpush.bf16.msra.mxu0 0
        %1604 = vmatpush.bf16.msra.mxu0 0
        %1605 = vmatpush.bf16.msra.mxu0 0
        %1606 = vmatpush.bf16.msra.mxu0 0
        %1607 = vmatpush.bf16.msra.mxu0 0
        %1608 = vmatpush.bf16.msra.mxu0 %v1596
        %1609 = vmatpush.bf16.msra.mxu0 %v1595
        %1610 = vmatmul.bf16.gmra.mxu0 %v1600
        %v1611 = vpop.f32.mrf.mxu0
        %v1612 = vadd.f32 0.0, %v1611
        %v1613 = vpop.f32.mrf.mxu0
        %v1614 = vadd.f32 0.0, %v1613
        %1615 = vdwg.mxu0
        %v1616 = vsel %vm1244, %v1510, 0.0
        %v1617 = vsel %vm1244, %v1544, 0.0
        %v1618 = vadd.f32 %v1616, %v1617
        %v1619 = vsel %vm1244, %v1578, 0.0
        %v1620 = vadd.f32 %v1618, %v1619
        %v1621 = vsel %vm1244, %v1612, 0.0
        %v1622 = vadd.f32 %v1620, %v1621
        %v1623 = vsel %vm1244, %v1512, 0.0
        %v1624 = vsel %vm1244, %v1546, 0.0
        %v1625 = vadd.f32 %v1623, %v1624
        %v1626 = vsel %vm1244, %v1580, 0.0
        %v1627 = vadd.f32 %v1625, %v1626
        %v1628 = vsel %vm1244, %v1614, 0.0
        %v1629 = vadd.f32 %v1627, %v1628
        %v1630 = vld [vmem:[#allocation2] sm:$0x1]
        %v1631 = vld [vmem:[#allocation4] sm:$0x1]
        %v1632 = vsel %vm1244, %v1622, 0.0
        %1633 = vadd.xlane.f32.xlu0 %v1632
        %v1634 = vpop.xlane.xlu0 %1633
        %v1635 = vsel %vm1244, %v1629, 0.0
        %1636 = vadd.xlane.f32.xlu0 %v1635
        %v1637 = vpop.xlane.xlu0 %1636
        %v1638 = vrcp.pop 64.0
        %v1639 = vmul.f32 64.0, %v1638
        %v1640 = vsub.f32 1.0, %v1639
        %v1641 = vmul.f32 %v1638, %v1640
        %v1642 = vadd.f32 %v1638, %v1641
        %vm1643 = vweird.f32 %v1638
        %v1644 = vsel %vm1643, %v1638, %v1642
        %v1645 = vmul.f32 %v1634, %v1644
        %v1646 = vmul.f32 %v1637, %v1644
        %v1647 = vsub.f32 %v1622, %v1645
        %v1648 = vsub.f32 %v1629, %v1646
        %v1649 = vmul.f32 %v1647, %v1647
        %v1650 = vmul.f32 %v1648, %v1648
        %v1651 = vsel %vm1244, %v1649, 0.0
        %1652 = vadd.xlane.f32.xlu0 %v1651
        %v1653 = vpop.xlane.xlu0 %1652
        %v1654 = vsel %vm1244, %v1650, 0.0
        %1655 = vadd.xlane.f32.xlu0 %v1654
        %v1656 = vpop.xlane.xlu0 %1655
        %v1657 = vmul.f32 %v1653, %v1644
        %v1658 = vmul.f32 %v1656, %v1644
        %v1659 = vadd.f32 %v1657, 1e-05
        %v1660 = vadd.f32 %v1658, 1e-05
        %v1661 = vrsqrt.pop %v1659
        %v1662 = vmul.f32 %v1661, %v1659
        %v1663 = vmul.f32 %v1662, %v1661
        %v1664 = vmul.f32 0.5, %v1663
        %v1665 = vsub.f32 1.5, %v1664
        %v1666 = vmul.f32 %v1661, %v1665
        %vm1667 = vweird.f32 %v1659
        %vm1668 = vweird.f32 %v1661
        %vm1669 = vmor %vm1667, %vm1668
        %v1670 = vsel %vm1669, %v1661, %v1666
        %v1671 = vrsqrt.pop %v1660
        %v1672 = vmul.f32 %v1671, %v1660
        %v1673 = vmul.f32 %v1672, %v1671
        %v1674 = vmul.f32 0.5, %v1673
        %v1675 = vsub.f32 1.5, %v1674
        %v1676 = vmul.f32 %v1671, %v1675
        %vm1677 = vweird.f32 %v1660
        %vm1678 = vweird.f32 %v1671
        %vm1679 = vmor %vm1677, %vm1678
        %v1680 = vsel %vm1679, %v1671, %v1676
        %v1681 = vmul.f32 %v1647, %v1670
        %v1682 = vmul.f32 %v1648, %v1680
        %v1684 = vperm.slane %v1630, 0
        %v1686 = vmul.f32 %v1681, %v1684
        %v1687 = vmul.f32 %v1682, %v1684
        %v1689 = vperm.slane %v1631, 0
        %v1691 = vadd.f32 %v1686, %v1689
        %v1692 = vadd.f32 %v1687, %v1689
        %v1693 = vpack.c.bf16 %v1692, %v1691
        %v1694 = vld [vmem:[%s15] sm:$0xff]
        %v1695 = vld [vmem:[%s15 + $0x8] sm:$0xff]
        %v1696 = vld [vmem:[%s15 + $0x10] sm:$0xff]
        %v1697 = vld [vmem:[%s15 + $0x18] sm:$0xff]
        %v1698 = vld [vmem:[%s15 + $0x20] sm:$0xff]
        %v1699 = vld [vmem:[%s15 + $0x28] sm:$0xff]
        %v1700 = vld [vmem:[%s15 + $0x30] sm:$0xff]
        %v1701 = vld [vmem:[%s15 + $0x38] sm:$0xff]
        %v1702 = vld [vmem:[%s17] sm:$0x3]
        %v1704 = vperm.slane %v1702, 0
        %v1705 = vperm.slane %v1702, 1
        %v1716 = vunpack.c.l.b16 %v1694
        %v1717 = vunpack.c.h.b16 %v1694
        %v1718 = vunpack.c.l.b16 %v1695
        %v1719 = vunpack.c.h.b16 %v1695
        %v1720 = vunpack.c.l.b16 %v1696
        %v1721 = vunpack.c.h.b16 %v1696
        %v1722 = vunpack.c.l.b16 %v1697
        %v1723 = vunpack.c.h.b16 %v1697
        %v1724 = vunpack.c.l.b16 %v1698
        %v1725 = vunpack.c.h.b16 %v1698
        %v1726 = vunpack.c.l.b16 %v1699
        %v1727 = vunpack.c.h.b16 %v1699
        %v1728 = vunpack.c.l.b16 %v1700
        %v1729 = vunpack.c.h.b16 %v1700
        %v1730 = vunpack.c.l.b16 %v1701
        %v1731 = vunpack.c.h.b16 %v1701
        %v1732 = vpack.c.b16 %v1718, %v1716
        %v1733 = vpack.c.b16 %v1719, %v1717
        %v1734 = vpack.c.b16 %v1722, %v1720
        %v1735 = vpack.c.b16 %v1723, %v1721
        %v1736 = vpack.c.b16 %v1726, %v1724
        %v1737 = vpack.c.b16 %v1727, %v1725
        %v1738 = vpack.c.b16 %v1730, %v1728
        %v1739 = vpack.c.b16 %v1731, %v1729
        %v1749 = vsel %vm1244, %v1693, 0
        %1751 = vmatpush.bf16.msra.mxu0 0
        %1752 = vmatpush.bf16.msra.mxu0 0
        %1753 = vmatpush.bf16.msra.mxu0 0
        %1754 = vmatpush.bf16.msra.mxu0 0
        %1755 = vmatpush.bf16.msra.mxu0 %v1738
        %1756 = vmatpush.bf16.msra.mxu0 %v1736
        %1757 = vmatpush.bf16.msra.mxu0 %v1734
        %1758 = vmatpush.bf16.msra.mxu0 %v1732
        %1759 = vmatmul.bf16.gmra.mxu0 %v1749
        %v1760 = vpop.f32.mrf.mxu0
        %v1761 = vadd.f32 %v1704, %v1760
        %v1762 = vpop.f32.mrf.mxu0
        %v1763 = vadd.f32 %v1704, %v1762
        %1764 = vdwg.mxu0
        %1765 = vmatpush.bf16.msra.mxu0 0
        %1766 = vmatpush.bf16.msra.mxu0 0
        %1767 = vmatpush.bf16.msra.mxu0 0
        %1768 = vmatpush.bf16.msra.mxu0 0
        %1769 = vmatpush.bf16.msra.mxu0 %v1739
        %1770 = vmatpush.bf16.msra.mxu0 %v1737
        %1771 = vmatpush.bf16.msra.mxu0 %v1735
        %1772 = vmatpush.bf16.msra.mxu0 %v1733
        %1773 = vmatmul.bf16.gmra.mxu0 %v1749
        %v1774 = vpop.f32.mrf.mxu0
        %v1775 = vadd.f32 %v1705, %v1774
        %v1776 = vpop.f32.mrf.mxu0
        %v1777 = vadd.f32 %v1705, %v1776
        %1778 = vdwg.mxu0
        %1781 = vrot.lane.b32.xlu0 %v1761, 112
        %v1782 = vpop.permute.xlu0 %1781
        %1783 = vrot.lane.b32.xlu0 %v1763, 112
        %v1784 = vpop.permute.xlu0 %1783
        %1787 = vrot.lane.b32.xlu0 %v1761, 96
        %v1788 = vpop.permute.xlu0 %1787
        %1789 = vrot.lane.b32.xlu0 %v1763, 96
        %v1790 = vpop.permute.xlu0 %1789
        %1793 = vrot.lane.b32.xlu0 %v1761, 80
        %v1794 = vpop.permute.xlu0 %1793
        %1795 = vrot.lane.b32.xlu0 %v1763, 80
        %v1796 = vpop.permute.xlu0 %1795
        %1801 = vrot.lane.b32.xlu0 %v1775, 112
        %v1802 = vpop.permute.xlu0 %1801
        %1803 = vrot.lane.b32.xlu0 %v1777, 112
        %v1804 = vpop.permute.xlu0 %1803
        %1807 = vrot.lane.b32.xlu0 %v1775, 96
        %v1808 = vpop.permute.xlu0 %1807
        %1809 = vrot.lane.b32.xlu0 %v1777, 96
        %v1810 = vpop.permute.xlu0 %1809
        %1813 = vrot.lane.b32.xlu0 %v1775, 80
        %v1814 = vpop.permute.xlu0 %1813
        %1815 = vrot.lane.b32.xlu0 %v1777, 80
        %v1816 = vpop.permute.xlu0 %1815
        %v1819 = vpack.c.bf16 %v1761, %v1761
        %v1820 = vpack.c.bf16 %v1763, %v1763
        %v1821 = vpack.c.bf16 %v1782, %v1782
        %v1822 = vpack.c.bf16 %v1784, %v1784
        %v1823 = vpack.c.bf16 %v1788, %v1788
        %v1824 = vpack.c.bf16 %v1790, %v1790
        %v1825 = vpack.c.bf16 %v1794, %v1794
        %v1826 = vpack.c.bf16 %v1796, %v1796
        %v1827 = vld [vmem:[%s19] sm:$0xff]
        %v1828 = vld [vmem:[%s19 + $0x8] sm:$0xff]
        %v1829 = vld [vmem:[%s19 + $0x10] sm:$0xff]
        %v1830 = vld [vmem:[%s19 + $0x18] sm:$0xff]
        %v1831 = vld [vmem:[%s19 + $0x20] sm:$0xff]
        %v1832 = vld [vmem:[%s19 + $0x28] sm:$0xff]
        %v1833 = vld [vmem:[%s19 + $0x30] sm:$0xff]
        %v1834 = vld [vmem:[%s19 + $0x38] sm:$0xff]
        %v1837 = vunpack.c.l.b16 %v1819
        %v1838 = vunpack.c.l.b16 %v1820
        %v1839 = vpack.c.b16 %v1838, %v1837
        %1840 = vrot.lane.b32.xlu0 %v1839, 64
        %v1841 = vpop.permute.xlu0 %1840
        %vm1842 = vcmask 130048
        %v1844 = vsel %vm1842, %v1839, 0
        %v1847 = vsel %vm1842, %v1841, 0
        %1849 = vmatpush.bf16.xpose.msra.mxu0 0
        %1850 = vmatpush.bf16.xpose.msra.mxu0 0
        %1851 = vmatpush.bf16.xpose.msra.mxu0 0
        %1852 = vmatpush.bf16.xpose.msra.mxu0 0
        %1853 = vmatpush.bf16.xpose.msra.mxu0 0
        %1854 = vmatpush.bf16.xpose.msra.mxu0 0
        %1855 = vmatpush.bf16.xpose.msra.mxu0 0
        %1856 = vmatpush.bf16.xpose.msra.mxu0 %v1847
        %1857 = vmatmul.bf16.gmra.mxu0 %v1844
        %v1858 = vpop.f32.mrf.mxu0
        %v1859 = vadd.f32 %v1827, %v1858
        %v1860 = vpop.f32.mrf.mxu0
        %v1861 = vadd.f32 %v1828, %v1860
        %1862 = vdwg.mxu0
        %v1865 = vunpack.c.l.b16 %v1821
        %v1866 = vunpack.c.l.b16 %v1822
        %v1867 = vpack.c.b16 %v1866, %v1865
        %1868 = vrot.lane.b32.xlu0 %v1867, 64
        %v1869 = vpop.permute.xlu0 %1868
        %v1871 = vsel %vm1842, %v1867, 0
        %v1874 = vsel %vm1842, %v1869, 0
        %1876 = vmatpush.bf16.xpose.msra.mxu0 0
        %1877 = vmatpush.bf16.xpose.msra.mxu0 0
        %1878 = vmatpush.bf16.xpose.msra.mxu0 0
        %1879 = vmatpush.bf16.xpose.msra.mxu0 0
        %1880 = vmatpush.bf16.xpose.msra.mxu0 0
        %1881 = vmatpush.bf16.xpose.msra.mxu0 0
        %1882 = vmatpush.bf16.xpose.msra.mxu0 0
        %1883 = vmatpush.bf16.xpose.msra.mxu0 %v1874
        %1884 = vmatmul.bf16.gmra.mxu0 %v1871
        %v1885 = vpop.f32.mrf.mxu0
        %v1886 = vadd.f32 %v1829, %v1885
        %v1887 = vpop.f32.mrf.mxu0
        %v1888 = vadd.f32 %v1830, %v1887
        %1889 = vdwg.mxu0
        %v1892 = vunpack.c.l.b16 %v1823
        %v1893 = vunpack.c.l.b16 %v1824
        %v1894 = vpack.c.b16 %v1893, %v1892
        %1895 = vrot.lane.b32.xlu0 %v1894, 64
        %v1896 = vpop.permute.xlu0 %1895
        %v1898 = vsel %vm1842, %v1894, 0
        %v1901 = vsel %vm1842, %v1896, 0
        %1903 = vmatpush.bf16.xpose.msra.mxu0 0
        %1904 = vmatpush.bf16.xpose.msra.mxu0 0
        %1905 = vmatpush.bf16.xpose.msra.mxu0 0
        %1906 = vmatpush.bf16.xpose.msra.mxu0 0
        %1907 = vmatpush.bf16.xpose.msra.mxu0 0
        %1908 = vmatpush.bf16.xpose.msra.mxu0 0
        %1909 = vmatpush.bf16.xpose.msra.mxu0 0
        %1910 = vmatpush.bf16.xpose.msra.mxu0 %v1901
        %1911 = vmatmul.bf16.gmra.mxu0 %v1898
        %v1912 = vpop.f32.mrf.mxu0
        %v1913 = vadd.f32 %v1831, %v1912
        %v1914 = vpop.f32.mrf.mxu0
        %v1915 = vadd.f32 %v1832, %v1914
        %1916 = vdwg.mxu0
        %v1919 = vunpack.c.l.b16 %v1825
        %v1920 = vunpack.c.l.b16 %v1826
        %v1921 = vpack.c.b16 %v1920, %v1919
        %1922 = vrot.lane.b32.xlu0 %v1921, 64
        %v1923 = vpop.permute.xlu0 %1922
        %v1925 = vsel %vm1842, %v1921, 0
        %v1928 = vsel %vm1842, %v1923, 0
        %1930 = vmatpush.bf16.xpose.msra.mxu0 0
        %1931 = vmatpush.bf16.xpose.msra.mxu0 0
        %1932 = vmatpush.bf16.xpose.msra.mxu0 0
        %1933 = vmatpush.bf16.xpose.msra.mxu0 0
        %1934 = vmatpush.bf16.xpose.msra.mxu0 0
        %1935 = vmatpush.bf16.xpose.msra.mxu0 0
        %1936 = vmatpush.bf16.xpose.msra.mxu0 0
        %1937 = vmatpush.bf16.xpose.msra.mxu0 %v1928
        %1938 = vmatmul.bf16.gmra.mxu0 %v1925
        %v1939 = vpop.f32.mrf.mxu0
        %v1940 = vadd.f32 %v1833, %v1939
        %v1941 = vpop.f32.mrf.mxu0
        %v1942 = vadd.f32 %v1834, %v1941
        %1943 = vdwg.mxu0
        %v1944 = vsel %vm1842, %v1859, -inf
        %1945 = vmax.xlane.f32.xlu0 %v1944
        %v1946 = vpop.xlane.xlu0 %1945
        %v1947 = vsel %vm1842, %v1861, -inf
        %1948 = vmax.xlane.f32.xlu0 %v1947
        %v1949 = vpop.xlane.xlu0 %1948
        %v1950 = vsel %vm1842, %v1886, -inf
        %1951 = vmax.xlane.f32.xlu0 %v1950
        %v1952 = vpop.xlane.xlu0 %1951
        %v1953 = vsel %vm1842, %v1888, -inf
        %1954 = vmax.xlane.f32.xlu0 %v1953
        %v1955 = vpop.xlane.xlu0 %1954
        %v1956 = vsel %vm1842, %v1913, -inf
        %1957 = vmax.xlane.f32.xlu0 %v1956
        %v1958 = vpop.xlane.xlu0 %1957
        %v1959 = vsel %vm1842, %v1915, -inf
        %1960 = vmax.xlane.f32.xlu0 %v1959
        %v1961 = vpop.xlane.xlu0 %1960
        %v1962 = vsel %vm1842, %v1940, -inf
        %1963 = vmax.xlane.f32.xlu0 %v1962
        %v1964 = vpop.xlane.xlu0 %1963
        %v1965 = vsel %vm1842, %v1942, -inf
        %1966 = vmax.xlane.f32.xlu0 %v1965
        %v1967 = vpop.xlane.xlu0 %1966
        %v1968 = vsub.f32 %v1859, %v1946
        %v1969 = vsub.f32 %v1861, %v1949
        %v1970 = vsub.f32 %v1886, %v1952
        %v1971 = vsub.f32 %v1888, %v1955
        %v1972 = vsub.f32 %v1913, %v1958
        %v1973 = vsub.f32 %v1915, %v1961
        %v1974 = vsub.f32 %v1940, %v1964
        %v1975 = vsub.f32 %v1942, %v1967
        %v1976 = vmul.f32 %v1968, 1.442695
        %v1977 = vpow.pop %v1976
        %v1978 = vmul.f32 %v1969, 1.442695
        %v1979 = vpow.pop %v1978
        %v1980 = vmul.f32 %v1970, 1.442695
        %v1981 = vpow.pop %v1980
        %v1982 = vmul.f32 %v1971, 1.442695
        %v1983 = vpow.pop %v1982
        %v1984 = vmul.f32 %v1972, 1.442695
        %v1985 = vpow.pop %v1984
        %v1986 = vmul.f32 %v1973, 1.442695
        %v1987 = vpow.pop %v1986
        %v1988 = vmul.f32 %v1974, 1.442695
        %v1989 = vpow.pop %v1988
        %v1990 = vmul.f32 %v1975, 1.442695
        %v1991 = vpow.pop %v1990
        %v1992 = vsel %vm1842, %v1977, 0.0
        %1993 = vadd.xlane.f32.xlu0 %v1992
        %v1994 = vpop.xlane.xlu0 %1993
        %v1995 = vsel %vm1842, %v1979, 0.0
        %1996 = vadd.xlane.f32.xlu0 %v1995
        %v1997 = vpop.xlane.xlu0 %1996
        %v1998 = vsel %vm1842, %v1981, 0.0
        %1999 = vadd.xlane.f32.xlu0 %v1998
        %v2000 = vpop.xlane.xlu0 %1999
        %v2001 = vsel %vm1842, %v1983, 0.0
        %2002 = vadd.xlane.f32.xlu0 %v2001
        %v2003 = vpop.xlane.xlu0 %2002
        %v2004 = vsel %vm1842, %v1985, 0.0
        %2005 = vadd.xlane.f32.xlu0 %v2004
        %v2006 = vpop.xlane.xlu0 %2005
        %v2007 = vsel %vm1842, %v1987, 0.0
        %2008 = vadd.xlane.f32.xlu0 %v2007
        %v2009 = vpop.xlane.xlu0 %2008
        %v2010 = vsel %vm1842, %v1989, 0.0
        %2011 = vadd.xlane.f32.xlu0 %v2010
        %v2012 = vpop.xlane.xlu0 %2011
        %v2013 = vsel %vm1842, %v1991, 0.0
        %2014 = vadd.xlane.f32.xlu0 %v2013
        %v2015 = vpop.xlane.xlu0 %2014
        %v2016 = vrcp.pop %v1994
        %v2017 = vrcp.pop %v1997
        %v2018 = vrcp.pop %v2000
        %v2019 = vrcp.pop %v2003
        %v2020 = vrcp.pop %v2006
        %v2021 = vrcp.pop %v2009
        %v2022 = vrcp.pop %v2012
        %v2023 = vrcp.pop %v2015
        %v2024 = vmul.f32 %v1977, %v2016
        %v2025 = vmul.f32 %v1979, %v2017
        %v2026 = vmul.f32 %v1981, %v2018
        %v2027 = vmul.f32 %v1983, %v2019
        %v2028 = vmul.f32 %v1985, %v2020
        %v2029 = vmul.f32 %v1987, %v2021
        %v2030 = vmul.f32 %v1989, %v2022
        %v2031 = vmul.f32 %v1991, %v2023
        %v2032 = vpack.c.bf16 %v2024, %v2024
        %v2033 = vpack.c.bf16 %v2025, %v2025
        %v2034 = vpack.c.bf16 %v2026, %v2026
        %v2035 = vpack.c.bf16 %v2027, %v2027
        %v2036 = vpack.c.bf16 %v2028, %v2028
        %v2037 = vpack.c.bf16 %v2029, %v2029
        %v2038 = vpack.c.bf16 %v2030, %v2030
        %v2039 = vpack.c.bf16 %v2031, %v2031
        %v2040 = vpack.c.bf16 %v1775, %v1775
        %v2041 = vpack.c.bf16 %v1777, %v1777
        %v2042 = vpack.c.bf16 %v1802, %v1802
        %v2043 = vpack.c.bf16 %v1804, %v1804
        %v2044 = vpack.c.bf16 %v1808, %v1808
        %v2045 = vpack.c.bf16 %v1810, %v1810
        %v2046 = vpack.c.bf16 %v1814, %v1814
        %v2047 = vpack.c.bf16 %v1816, %v1816
        %v2050 = vunpack.c.l.b16 %v2032
        %v2051 = vunpack.c.l.b16 %v2033
        %v2052 = vpack.c.b16 %v2051, %v2050
        %v2055 = vunpack.c.l.b16 %v2040
        %v2056 = vunpack.c.l.b16 %v2041
        %v2057 = vpack.c.b16 %v2056, %v2055
        %v2060 = vsel %vm1842, %v2052, 0
        %2062 = vmatpush.bf16.msra.mxu0 0
        %2063 = vmatpush.bf16.msra.mxu0 0
        %2064 = vmatpush.bf16.msra.mxu0 0
        %2065 = vmatpush.bf16.msra.mxu0 0
        %2066 = vmatpush.bf16.msra.mxu0 0
        %2067 = vmatpush.bf16.msra.mxu0 0
        %2068 = vmatpush.bf16.msra.mxu0 0
        %2069 = vmatpush.bf16.msra.mxu0 %v2057
        %2070 = vmatmul.bf16.gmra.mxu0 %v2060
        %v2071 = vpop.f32.mrf.mxu0
        %v2072 = vadd.f32 0.0, %v2071
        %v2073 = vpop.f32.mrf.mxu0
        %v2074 = vadd.f32 0.0, %v2073
        %2075 = vdwg.mxu0
        %v2078 = vunpack.c.l.b16 %v2034
        %v2079 = vunpack.c.l.b16 %v2035
        %v2080 = vpack.c.b16 %v2079, %v2078
        %v2083 = vunpack.c.l.b16 %v2042
        %v2084 = vunpack.c.l.b16 %v2043
        %v2085 = vpack.c.b16 %v2084, %v2083
        %v2088 = vsel %vm1842, %v2080, 0
        %2090 = vmatpush.bf16.msra.mxu0 0
        %2091 = vmatpush.bf16.msra.mxu0 0
        %2092 = vmatpush.bf16.msra.mxu0 0
        %2093 = vmatpush.bf16.msra.mxu0 0
        %2094 = vmatpush.bf16.msra.mxu0 0
        %2095 = vmatpush.bf16.msra.mxu0 0
        %2096 = vmatpush.bf16.msra.mxu0 0
        %2097 = vmatpush.bf16.msra.mxu0 %v2085
        %2098 = vmatmul.bf16.gmra.mxu0 %v2088
        %v2099 = vpop.f32.mrf.mxu0
        %v2100 = vadd.f32 0.0, %v2099
        %v2101 = vpop.f32.mrf.mxu0
        %v2102 = vadd.f32 0.0, %v2101
        %2103 = vdwg.mxu0
        %v2106 = vunpack.c.l.b16 %v2036
        %v2107 = vunpack.c.l.b16 %v2037
        %v2108 = vpack.c.b16 %v2107, %v2106
        %v2111 = vunpack.c.l.b16 %v2044
        %v2112 = vunpack.c.l.b16 %v2045
        %v2113 = vpack.c.b16 %v2112, %v2111
        %v2116 = vsel %vm1842, %v2108, 0
        %2118 = vmatpush.bf16.msra.mxu0 0
        %2119 = vmatpush.bf16.msra.mxu0 0
        %2120 = vmatpush.bf16.msra.mxu0 0
        %2121 = vmatpush.bf16.msra.mxu0 0
        %2122 = vmatpush.bf16.msra.mxu0 0
        %2123 = vmatpush.bf16.msra.mxu0 0
        %2124 = vmatpush.bf16.msra.mxu0 0
        %2125 = vmatpush.bf16.msra.mxu0 %v2113
        %2126 = vmatmul.bf16.gmra.mxu0 %v2116
        %v2127 = vpop.f32.mrf.mxu0
        %v2128 = vadd.f32 0.0, %v2127
        %v2129 = vpop.f32.mrf.mxu0
        %v2130 = vadd.f32 0.0, %v2129
        %2131 = vdwg.mxu0
        %v2134 = vunpack.c.l.b16 %v2038
        %v2135 = vunpack.c.l.b16 %v2039
        %v2136 = vpack.c.b16 %v2135, %v2134
        %v2139 = vunpack.c.l.b16 %v2046
        %v2140 = vunpack.c.l.b16 %v2047
        %v2141 = vpack.c.b16 %v2140, %v2139
        %v2144 = vsel %vm1842, %v2136, 0
        %2146 = vmatpush.bf16.msra.mxu0 0
        %2147 = vmatpush.bf16.msra.mxu0 0
        %2148 = vmatpush.bf16.msra.mxu0 0
        %2149 = vmatpush.bf16.msra.mxu0 0
        %2150 = vmatpush.bf16.msra.mxu0 0
        %2151 = vmatpush.bf16.msra.mxu0 0
        %2152 = vmatpush.bf16.msra.mxu0 0
        %2153 = vmatpush.bf16.msra.mxu0 %v2141
        %2154 = vmatmul.bf16.gmra.mxu0 %v2144
        %v2155 = vpop.f32.mrf.mxu0
        %v2156 = vadd.f32 0.0, %v2155
        %v2157 = vpop.f32.mrf.mxu0
        %v2158 = vadd.f32 0.0, %v2157
        %2159 = vdwg.mxu0
        %v2160 = vpack.c.bf16 %v2072, %v2072
        %v2161 = vpack.c.bf16 %v2074, %v2074
        %v2162 = vpack.c.bf16 %v2100, %v2100
        %v2163 = vpack.c.bf16 %v2102, %v2102
        %v2164 = vpack.c.bf16 %v2128, %v2128
        %v2165 = vpack.c.bf16 %v2130, %v2130
        %v2166 = vpack.c.bf16 %v2156, %v2156
        %v2167 = vpack.c.bf16 %v2158, %v2158
        %v2168 = vld [vmem:[%s21] sm:$0xf]
        %v2169 = vld [vmem:[%s21 + $0x4] sm:$0xf]
        %v2170 = vld [vmem:[%s21 + $0x8] sm:$0xf]
        %v2171 = vld [vmem:[%s21 + $0xc] sm:$0xf]
        %v2172 = vld [vmem:[%s21 + $0x10] sm:$0xf]
        %v2173 = vld [vmem:[%s21 + $0x14] sm:$0xf]
        %v2174 = vld [vmem:[%s21 + $0x18] sm:$0xf]
        %v2175 = vld [vmem:[%s21 + $0x1c] sm:$0xf]
        %v2178 = vunpack.c.l.b16 %v2160
        %v2179 = vunpack.c.l.b16 %v2161
        %v2180 = vpack.c.b16 %v2179, %v2178
        %v2183 = vunpack.c.l.b16 %v2168
        %v2184 = vunpack.c.l.b16 %v2169
        %v2185 = vpack.c.b16 %v2184, %v2183
        %v2188 = vsel %vm1842, %v2180, 0
        %2190 = vmatpush.bf16.msra.mxu0 0
        %2191 = vmatpush.bf16.msra.mxu0 0
        %2192 = vmatpush.bf16.msra.mxu0 0
        %2193 = vmatpush.bf16.msra.mxu0 0
        %2194 = vmatpush.bf16.msra.mxu0 0
        %2195 = vmatpush.bf16.msra.mxu0 0
        %2196 = vmatpush.bf16.msra.mxu0 0
        %2197 = vmatpush.bf16.msra.mxu0 %v2185
        %2198 = vmatmul.bf16.gmra.mxu0 %v2188
        %v2199 = vpop.f32.mrf.mxu0
        %v2200 = vadd.f32 0.0, %v2199
        %v2201 = vpop.f32.mrf.mxu0
        %v2202 = vadd.f32 0.0, %v2201
        %2203 = vdwg.mxu0
        %v2206 = vunpack.c.l.b16 %v2162
        %v2207 = vunpack.c.l.b16 %v2163
        %v2208 = vpack.c.b16 %v2207, %v2206
        %v2211 = vunpack.c.l.b16 %v2170
        %v2212 = vunpack.c.l.b16 %v2171
        %v2213 = vpack.c.b16 %v2212, %v2211
        %v2216 = vsel %vm1842, %v2208, 0
        %2218 = vmatpush.bf16.msra.mxu0 0
        %2219 = vmatpush.bf16.msra.mxu0 0
        %2220 = vmatpush.bf16.msra.mxu0 0
        %2221 = vmatpush.bf16.msra.mxu0 0
        %2222 = vmatpush.bf16.msra.mxu0 0
        %2223 = vmatpush.bf16.msra.mxu0 0
        %2224 = vmatpush.bf16.msra.mxu0 0
        %2225 = vmatpush.bf16.msra.mxu0 %v2213
        %2226 = vmatmul.bf16.gmra.mxu0 %v2216
        %v2227 = vpop.f32.mrf.mxu0
        %v2228 = vadd.f32 0.0, %v2227
        %v2229 = vpop.f32.mrf.mxu0
        %v2230 = vadd.f32 0.0, %v2229
        %2231 = vdwg.mxu0
        %v2234 = vunpack.c.l.b16 %v2164
        %v2235 = vunpack.c.l.b16 %v2165
        %v2236 = vpack.c.b16 %v2235, %v2234
        %v2239 = vunpack.c.l.b16 %v2172
        %v2240 = vunpack.c.l.b16 %v2173
        %v2241 = vpack.c.b16 %v2240, %v2239
        %v2244 = vsel %vm1842, %v2236, 0
        %2246 = vmatpush.bf16.msra.mxu0 0
        %2247 = vmatpush.bf16.msra.mxu0 0
        %2248 = vmatpush.bf16.msra.mxu0 0
        %2249 = vmatpush.bf16.msra.mxu0 0
        %2250 = vmatpush.bf16.msra.mxu0 0
        %2251 = vmatpush.bf16.msra.mxu0 0
        %2252 = vmatpush.bf16.msra.mxu0 0
        %2253 = vmatpush.bf16.msra.mxu0 %v2241
        %2254 = vmatmul.bf16.gmra.mxu0 %v2244
        %v2255 = vpop.f32.mrf.mxu0
        %v2256 = vadd.f32 0.0, %v2255
        %v2257 = vpop.f32.mrf.mxu0
        %v2258 = vadd.f32 0.0, %v2257
        %2259 = vdwg.mxu0
        %v2262 = vunpack.c.l.b16 %v2166
        %v2263 = vunpack.c.l.b16 %v2167
        %v2264 = vpack.c.b16 %v2263, %v2262
        %v2267 = vunpack.c.l.b16 %v2174
        %v2268 = vunpack.c.l.b16 %v2175
        %v2269 = vpack.c.b16 %v2268, %v2267
        %v2272 = vsel %vm1842, %v2264, 0
        %2274 = vmatpush.bf16.msra.mxu0 0
        %2275 = vmatpush.bf16.msra.mxu0 0
        %2276 = vmatpush.bf16.msra.mxu0 0
        %2277 = vmatpush.bf16.msra.mxu0 0
        %2278 = vmatpush.bf16.msra.mxu0 0
        %2279 = vmatpush.bf16.msra.mxu0 0
        %2280 = vmatpush.bf16.msra.mxu0 0
        %2281 = vmatpush.bf16.msra.mxu0 %v2269
        %2282 = vmatmul.bf16.gmra.mxu0 %v2272
        %v2283 = vpop.f32.mrf.mxu0
        %v2284 = vadd.f32 0.0, %v2283
        %v2285 = vpop.f32.mrf.mxu0
        %v2286 = vadd.f32 0.0, %v2285
        %2287 = vdwg.mxu0
        %v2288 = vsel %vm1244, %v2200, 0.0
        %v2289 = vsel %vm1244, %v2228, 0.0
        %v2290 = vadd.f32 %v2288, %v2289
        %v2291 = vsel %vm1244, %v2256, 0.0
        %v2292 = vadd.f32 %v2290, %v2291
        %v2293 = vsel %vm1244, %v2284, 0.0
        %v2294 = vadd.f32 %v2292, %v2293
        %v2295 = vsel %vm1244, %v2202, 0.0
        %v2296 = vsel %vm1244, %v2230, 0.0
        %v2297 = vadd.f32 %v2295, %v2296
        %v2298 = vsel %vm1244, %v2258, 0.0
        %v2299 = vadd.f32 %v2297, %v2298
        %v2300 = vsel %vm1244, %v2286, 0.0
        %v2301 = vadd.f32 %v2299, %v2300
        %v2302 = vadd.f32 %v1622, %v2294
        %v2303 = vadd.f32 %v1629, %v2301
        %v2304 = vld [vmem:[#allocation6] sm:$0x1]
        %v2306 = vperm.slane %v2304, 0
        %v2308 = vadd.f32 %v2302, %v2306
        %v2309 = vadd.f32 %v2303, %v2306
        %v2310 = vld [vmem:[#allocation7] sm:$0x1]
        %v2311 = vld [vmem:[#allocation9] sm:$0x1]
        %v2312 = vsel %vm1244, %v2308, 0.0
        %2313 = vadd.xlane.f32.xlu0 %v2312
        %v2314 = vpop.xlane.xlu0 %2313
        %v2315 = vsel %vm1244, %v2309, 0.0
        %2316 = vadd.xlane.f32.xlu0 %v2315
        %v2317 = vpop.xlane.xlu0 %2316
        %v2318 = vmul.f32 %v2314, %v1644
        %v2319 = vmul.f32 %v2317, %v1644
        %v2320 = vsub.f32 %v2308, %v2318
        %v2321 = vsub.f32 %v2309, %v2319
        %v2322 = vmul.f32 %v2320, %v2320
        %v2323 = vmul.f32 %v2321, %v2321
        %v2324 = vsel %vm1244, %v2322, 0.0
        %2325 = vadd.xlane.f32.xlu0 %v2324
        %v2326 = vpop.xlane.xlu0 %2325
        %v2327 = vsel %vm1244, %v2323, 0.0
        %2328 = vadd.xlane.f32.xlu0 %v2327
        %v2329 = vpop.xlane.xlu0 %2328
        %v2330 = vmul.f32 %v2326, %v1644
        %v2331 = vmul.f32 %v2329, %v1644
        %v2332 = vadd.f32 %v2330, 1e-05
        %v2333 = vadd.f32 %v2331, 1e-05
        %v2334 = vrsqrt.pop %v2332
        %v2335 = vmul.f32 %v2334, %v2332
        %v2336 = vmul.f32 %v2335, %v2334
        %v2337 = vmul.f32 0.5, %v2336
        %v2338 = vsub.f32 1.5, %v2337
        %v2339 = vmul.f32 %v2334, %v2338
        %vm2340 = vweird.f32 %v2332
        %vm2341 = vweird.f32 %v2334
        %vm2342 = vmor %vm2340, %vm2341
        %v2343 = vsel %vm2342, %v2334, %v2339
        %v2344 = vrsqrt.pop %v2333
        %v2345 = vmul.f32 %v2344, %v2333
        %v2346 = vmul.f32 %v2345, %v2344
        %v2347 = vmul.f32 0.5, %v2346
        %v2348 = vsub.f32 1.5, %v2347
        %v2349 = vmul.f32 %v2344, %v2348
        %vm2350 = vweird.f32 %v2333
        %vm2351 = vweird.f32 %v2344
        %vm2352 = vmor %vm2350, %vm2351
        %v2353 = vsel %vm2352, %v2344, %v2349
        %v2354 = vmul.f32 %v2320, %v2343
        %v2355 = vmul.f32 %v2321, %v2353
        %v2357 = vperm.slane %v2310, 0
        %v2359 = vmul.f32 %v2354, %v2357
        %v2360 = vmul.f32 %v2355, %v2357
        %v2362 = vperm.slane %v2311, 0
        %v2364 = vadd.f32 %v2359, %v2362
        %v2365 = vadd.f32 %v2360, %v2362
        %v2366 = vpack.c.bf16 %v2365, %v2364
        %v2367 = vld [vmem:[%s29] sm:$0xff]
        %v2368 = vld [vmem:[%s29 + $0x8] sm:$0xff]
        %v2369 = vld [vmem:[%s29 + $0x10] sm:$0xff]
        %v2370 = vld [vmem:[%s29 + $0x18] sm:$0xff]
        %v2371 = vld [vmem:[%s29 + $0x20] sm:$0xff]
        %v2372 = vld [vmem:[%s29 + $0x28] sm:$0xff]
        %v2373 = vld [vmem:[%s29 + $0x30] sm:$0xff]
        %v2374 = vld [vmem:[%s29 + $0x38] sm:$0xff]
        %v2375 = vld [vmem:[%s31] sm:$0x3]
        %v2377 = vperm.slane %v2375, 0
        %v2378 = vperm.slane %v2375, 1
        %v2389 = vunpack.c.l.b16 %v2367
        %v2390 = vunpack.c.h.b16 %v2367
        %v2391 = vunpack.c.l.b16 %v2368
        %v2392 = vunpack.c.h.b16 %v2368
        %v2393 = vunpack.c.l.b16 %v2369
        %v2394 = vunpack.c.h.b16 %v2369
        %v2395 = vunpack.c.l.b16 %v2370
        %v2396 = vunpack.c.h.b16 %v2370
        %v2397 = vunpack.c.l.b16 %v2371
        %v2398 = vunpack.c.h.b16 %v2371
        %v2399 = vunpack.c.l.b16 %v2372
        %v2400 = vunpack.c.h.b16 %v2372
        %v2401 = vunpack.c.l.b16 %v2373
        %v2402 = vunpack.c.h.b16 %v2373
        %v2403 = vunpack.c.l.b16 %v2374
        %v2404 = vunpack.c.h.b16 %v2374
        %v2405 = vpack.c.b16 %v2391, %v2389
        %v2406 = vpack.c.b16 %v2392, %v2390
        %v2407 = vpack.c.b16 %v2395, %v2393
        %v2408 = vpack.c.b16 %v2396, %v2394
        %v2409 = vpack.c.b16 %v2399, %v2397
        %v2410 = vpack.c.b16 %v2400, %v2398
        %v2411 = vpack.c.b16 %v2403, %v2401
        %v2412 = vpack.c.b16 %v2404, %v2402
        %v2422 = vsel %vm1244, %v2366, 0
        %2424 = vmatpush.bf16.msra.mxu0 0
        %2425 = vmatpush.bf16.msra.mxu0 0
        %2426 = vmatpush.bf16.msra.mxu0 0
        %2427 = vmatpush.bf16.msra.mxu0 0
        %2428 = vmatpush.bf16.msra.mxu0 %v2411
        %2429 = vmatpush.bf16.msra.mxu0 %v2409
        %2430 = vmatpush.bf16.msra.mxu0 %v2407
        %2431 = vmatpush.bf16.msra.mxu0 %v2405
        %2432 = vmatmul.bf16.gmra.mxu0 %v2422
        %v2433 = vpop.f32.mrf.mxu0
        %v2434 = vadd.f32 %v2377, %v2433
        %v2435 = vpop.f32.mrf.mxu0
        %v2436 = vadd.f32 %v2377, %v2435
        %2437 = vdwg.mxu0
        %2438 = vmatpush.bf16.msra.mxu0 0
        %2439 = vmatpush.bf16.msra.mxu0 0
        %2440 = vmatpush.bf16.msra.mxu0 0
        %2441 = vmatpush.bf16.msra.mxu0 0
        %2442 = vmatpush.bf16.msra.mxu0 %v2412
        %2443 = vmatpush.bf16.msra.mxu0 %v2410
        %2444 = vmatpush.bf16.msra.mxu0 %v2408
        %2445 = vmatpush.bf16.msra.mxu0 %v2406
        %2446 = vmatmul.bf16.gmra.mxu0 %v2422
        %v2447 = vpop.f32.mrf.mxu0
        %v2448 = vadd.f32 %v2378, %v2447
        %v2449 = vpop.f32.mrf.mxu0
        %v2450 = vadd.f32 %v2378, %v2449
        %2451 = vdwg.mxu0
        %v2452 = vmul.f32 %v2434, %v2434
        %v2453 = vmul.f32 %v2448, %v2448
        %v2454 = vmul.f32 %v2436, %v2436
        %v2455 = vmul.f32 %v2450, %v2450
        %v2456 = vmul.f32 %v2434, %v2452
        %v2457 = vmul.f32 %v2448, %v2453
        %v2458 = vmul.f32 %v2436, %v2454
        %v2459 = vmul.f32 %v2450, %v2455
        %v2460 = vmul.f32 %v2456, 0.044715
        %v2461 = vmul.f32 %v2457, 0.044715
        %v2462 = vmul.f32 %v2458, 0.044715
        %v2463 = vmul.f32 %v2459, 0.044715
        %v2464 = vadd.f32 %v2434, %v2460
        %v2465 = vadd.f32 %v2448, %v2461
        %v2466 = vadd.f32 %v2436, %v2462
        %v2467 = vadd.f32 %v2450, %v2463
        %v2468 = vmul.f32 %v2464, 0.7978846
        %v2469 = vmul.f32 %v2465, 0.7978846
        %v2470 = vmul.f32 %v2466, 0.7978846
        %v2471 = vmul.f32 %v2467, 0.7978846
        %v2472 = vtanh.pop %v2468
        %v2473 = vtanh.pop %v2469
        %v2474 = vtanh.pop %v2470
        %v2475 = vtanh.pop %v2471
        %v2476 = vadd.f32 %v2472, 1.0
        %v2477 = vadd.f32 %v2473, 1.0
        %v2478 = vadd.f32 %v2474, 1.0
        %v2479 = vadd.f32 %v2475, 1.0
        %v2480 = vmul.f32 %v2476, 0.5
        %v2481 = vmul.f32 %v2477, 0.5
        %v2482 = vmul.f32 %v2478, 0.5
        %v2483 = vmul.f32 %v2479, 0.5
        %v2484 = vmul.f32 %v2434, %v2480
        %v2485 = vmul.f32 %v2448, %v2481
        %v2486 = vmul.f32 %v2436, %v2482
        %v2487 = vmul.f32 %v2450, %v2483
        %v2488 = vpack.c.bf16 %v2486, %v2484
        %v2489 = vpack.c.bf16 %v2487, %v2485
        %v2490 = vld [vmem:[%s33] sm:$0xf]
        %v2491 = vld [vmem:[%s33 + $0x4] sm:$0xf]
        %v2492 = vld [vmem:[%s33 + $0x8] sm:$0xf]
        %v2493 = vld [vmem:[%s33 + $0xc] sm:$0xf]
        %v2494 = vld [vmem:[%s33 + $0x10] sm:$0xf]
        %v2495 = vld [vmem:[%s33 + $0x14] sm:$0xf]
        %v2496 = vld [vmem:[%s33 + $0x18] sm:$0xf]
        %v2497 = vld [vmem:[%s33 + $0x1c] sm:$0xf]
        %v2498 = vld [vmem:[%s33 + $0x20] sm:$0xf]
        %v2499 = vld [vmem:[%s33 + $0x24] sm:$0xf]
        %v2500 = vld [vmem:[%s33 + $0x28] sm:$0xf]
        %v2501 = vld [vmem:[%s33 + $0x2c] sm:$0xf]
        %v2502 = vld [vmem:[%s33 + $0x30] sm:$0xf]
        %v2503 = vld [vmem:[%s33 + $0x34] sm:$0xf]
        %v2504 = vld [vmem:[%s33 + $0x38] sm:$0xf]
        %v2505 = vld [vmem:[%s33 + $0x3c] sm:$0xf]
        %v2506 = vld [vmem:[%s33 + $0x40] sm:$0xf]
        %v2507 = vld [vmem:[%s33 + $0x44] sm:$0xf]
        %v2508 = vld [vmem:[%s33 + $0x48] sm:$0xf]
        %v2509 = vld [vmem:[%s33 + $0x4c] sm:$0xf]
        %v2510 = vld [vmem:[%s33 + $0x50] sm:$0xf]
        %v2511 = vld [vmem:[%s33 + $0x54] sm:$0xf]
        %v2512 = vld [vmem:[%s33 + $0x58] sm:$0xf]
        %v2513 = vld [vmem:[%s33 + $0x5c] sm:$0xf]
        %v2514 = vld [vmem:[%s33 + $0x60] sm:$0xf]
        %v2515 = vld [vmem:[%s33 + $0x64] sm:$0xf]
        %v2516 = vld [vmem:[%s33 + $0x68] sm:$0xf]
        %v2517 = vld [vmem:[%s33 + $0x6c] sm:$0xf]
        %v2518 = vld [vmem:[%s33 + $0x70] sm:$0xf]
        %v2519 = vld [vmem:[%s33 + $0x74] sm:$0xf]
        %v2520 = vld [vmem:[%s33 + $0x78] sm:$0xf]
        %v2521 = vld [vmem:[%s33 + $0x7c] sm:$0xf]
        %v2522 = vld [vmem:[#allocation10] sm:$0x1]
        %v2524 = vperm.slane %v2522, 0
        %v2558 = vunpack.c.l.b16 %v2490
        %v2559 = vunpack.c.l.b16 %v2491
        %v2560 = vunpack.c.l.b16 %v2492
        %v2561 = vunpack.c.l.b16 %v2493
        %v2562 = vunpack.c.l.b16 %v2494
        %v2563 = vunpack.c.l.b16 %v2495
        %v2564 = vunpack.c.l.b16 %v2496
        %v2565 = vunpack.c.l.b16 %v2497
        %v2566 = vunpack.c.l.b16 %v2498
        %v2567 = vunpack.c.l.b16 %v2499
        %v2568 = vunpack.c.l.b16 %v2500
        %v2569 = vunpack.c.l.b16 %v2501
        %v2570 = vunpack.c.l.b16 %v2502
        %v2571 = vunpack.c.l.b16 %v2503
        %v2572 = vunpack.c.l.b16 %v2504
        %v2573 = vunpack.c.l.b16 %v2505
        %v2574 = vunpack.c.l.b16 %v2506
        %v2575 = vunpack.c.l.b16 %v2507
        %v2576 = vunpack.c.l.b16 %v2508
        %v2577 = vunpack.c.l.b16 %v2509
        %v2578 = vunpack.c.l.b16 %v2510
        %v2579 = vunpack.c.l.b16 %v2511
        %v2580 = vunpack.c.l.b16 %v2512
        %v2581 = vunpack.c.l.b16 %v2513
        %v2582 = vunpack.c.l.b16 %v2514
        %v2583 = vunpack.c.l.b16 %v2515
        %v2584 = vunpack.c.l.b16 %v2516
        %v2585 = vunpack.c.l.b16 %v2517
        %v2586 = vunpack.c.l.b16 %v2518
        %v2587 = vunpack.c.l.b16 %v2519
        %v2588 = vunpack.c.l.b16 %v2520
        %v2589 = vunpack.c.l.b16 %v2521
        %v2590 = vpack.c.b16 %v2559, %v2558
        %v2591 = vpack.c.b16 %v2561, %v2560
        %v2592 = vpack.c.b16 %v2563, %v2562
        %v2593 = vpack.c.b16 %v2565, %v2564
        %v2594 = vpack.c.b16 %v2567, %v2566
        %v2595 = vpack.c.b16 %v2569, %v2568
        %v2596 = vpack.c.b16 %v2571, %v2570
        %v2597 = vpack.c.b16 %v2573, %v2572
        %v2598 = vpack.c.b16 %v2575, %v2574
        %v2599 = vpack.c.b16 %v2577, %v2576
        %v2600 = vpack.c.b16 %v2579, %v2578
        %v2601 = vpack.c.b16 %v2581, %v2580
        %v2602 = vpack.c.b16 %v2583, %v2582
        %v2603 = vpack.c.b16 %v2585, %v2584
        %v2604 = vpack.c.b16 %v2587, %v2586
        %v2605 = vpack.c.b16 %v2589, %v2588
        %2622 = vmatpush.bf16.msra.mxu0 %v2597
        %2623 = vmatpush.bf16.msra.mxu0 %v2596
        %2624 = vmatpush.bf16.msra.mxu0 %v2595
        %2625 = vmatpush.bf16.msra.mxu0 %v2594
        %2626 = vmatpush.bf16.msra.mxu0 %v2593
        %2627 = vmatpush.bf16.msra.mxu0 %v2592
        %2628 = vmatpush.bf16.msra.mxu0 %v2591
        %2629 = vmatpush.bf16.msra.mxu0 %v2590
        %2630 = vmatmul.bf16.gmra.mxu0 %v2488
        %v2631 = vpop.f32.mrf.mxu0
        %v2632 = vadd.f32 %v2524, %v2631
        %v2633 = vpop.f32.mrf.mxu0
        %v2634 = vadd.f32 %v2524, %v2633
        %2635 = vdwg.mxu0
        %2636 = vmatpush.bf16.msra.mxu0 %v2605
        %2637 = vmatpush.bf16.msra.mxu0 %v2604
        %2638 = vmatpush.bf16.msra.mxu0 %v2603
        %2639 = vmatpush.bf16.msra.mxu0 %v2602
        %2640 = vmatpush.bf16.msra.mxu0 %v2601
        %2641 = vmatpush.bf16.msra.mxu0 %v2600
        %2642 = vmatpush.bf16.msra.mxu0 %v2599
        %2643 = vmatpush.bf16.msra.mxu0 %v2598
        %2644 = vmatmul.bf16.gmra.mxu0 %v2489
        %v2645 = vpop.f32.mrf.mxu0
        %v2646 = vadd.f32 %v2632, %v2645
        %v2647 = vpop.f32.mrf.mxu0
        %v2648 = vadd.f32 %v2634, %v2647
        %2649 = vdwg.mxu0
        %v2650 = vadd.f32 %v2308, %v2646
        %v2651 = vadd.f32 %v2309, %v2648
        %v2652 = vld [vmem:[#allocation12] sm:$0x1]
        %v2653 = vld [vmem:[#allocation13] sm:$0x1]
        %v2654 = vsel %vm1244, %v2650, 0.0
        %2655 = vadd.xlane.f32.xlu0 %v2654
        %v2656 = vpop.xlane.xlu0 %2655
        %v2657 = vsel %vm1244, %v2651, 0.0
        %2658 = vadd.xlane.f32.xlu0 %v2657
        %v2659 = vpop.xlane.xlu0 %2658
        %v2660 = vmul.f32 %v2656, %v1644
        %v2661 = vmul.f32 %v2659, %v1644
        %v2662 = vsub.f32 %v2650, %v2660
        %v2663 = vsub.f32 %v2651, %v2661
        %v2664 = vmul.f32 %v2662, %v2662
        %v2665 = vmul.f32 %v2663, %v2663
        %v2666 = vsel %vm1244, %v2664, 0.0
        %2667 = vadd.xlane.f32.xlu0 %v2666
        %v2668 = vpop.xlane.xlu0 %2667
        %v2669 = vsel %vm1244, %v2665, 0.0
        %2670 = vadd.xlane.f32.xlu0 %v2669
        %v2671 = vpop.xlane.xlu0 %2670
        %v2672 = vmul.f32 %v2668, %v1644
        %v2673 = vmul.f32 %v2671, %v1644
        %v2674 = vadd.f32 %v2672, 1e-05
        %v2675 = vadd.f32 %v2673, 1e-05
        %v2676 = vrsqrt.pop %v2674
        %v2677 = vmul.f32 %v2676, %v2674
        %v2678 = vmul.f32 %v2677, %v2676
        %v2679 = vmul.f32 0.5, %v2678
        %v2680 = vsub.f32 1.5, %v2679
        %v2681 = vmul.f32 %v2676, %v2680
        %vm2682 = vweird.f32 %v2674
        %vm2683 = vweird.f32 %v2676
        %vm2684 = vmor %vm2682, %vm2683
        %v2685 = vsel %vm2684, %v2676, %v2681
        %v2686 = vrsqrt.pop %v2675
        %v2687 = vmul.f32 %v2686, %v2675
        %v2688 = vmul.f32 %v2687, %v2686
        %v2689 = vmul.f32 0.5, %v2688
        %v2690 = vsub.f32 1.5, %v2689
        %v2691 = vmul.f32 %v2686, %v2690
        %vm2692 = vweird.f32 %v2675
        %vm2693 = vweird.f32 %v2686
        %vm2694 = vmor %vm2692, %vm2693
        %v2695 = vsel %vm2694, %v2686, %v2691
        %v2696 = vmul.f32 %v2662, %v2685
        %v2697 = vmul.f32 %v2663, %v2695
        %v2699 = vperm.slane %v2652, 0
        %v2701 = vmul.f32 %v2696, %v2699
        %v2702 = vmul.f32 %v2697, %v2699
        %v2704 = vperm.slane %v2653, 0
        %v2706 = vadd.f32 %v2701, %v2704
        %v2707 = vadd.f32 %v2702, %v2704
        %v2708 = vpack.c.bf16 %v2707, %v2706
        %v2709 = vld [vmem:[%s41] sm:$0xff]
        %v2710 = vld [vmem:[%s41 + $0x8] sm:$0xff]
        %v2711 = vld [vmem:[%s41 + $0x10] sm:$0xff]
        %v2712 = vld [vmem:[%s41 + $0x18] sm:$0xff]
        %v2713 = vld [vmem:[%s41 + $0x20] sm:$0xff]
        %v2714 = vld [vmem:[%s41 + $0x28] sm:$0xff]
        %v2715 = vld [vmem:[%s41 + $0x30] sm:$0xff]
        %v2716 = vld [vmem:[%s41 + $0x38] sm:$0xff]
        %v2717 = vld [vmem:[%s43] sm:$0x3]
        %v2719 = vperm.slane %v2717, 0
        %v2720 = vperm.slane %v2717, 1
        %v2731 = vunpack.c.l.b16 %v2709
        %v2732 = vunpack.c.h.b16 %v2709
        %v2733 = vunpack.c.l.b16 %v2710
        %v2734 = vunpack.c.h.b16 %v2710
        %v2735 = vunpack.c.l.b16 %v2711
        %v2736 = vunpack.c.h.b16 %v2711
        %v2737 = vunpack.c.l.b16 %v2712
        %v2738 = vunpack.c.h.b16 %v2712
        %v2739 = vunpack.c.l.b16 %v2713
        %v2740 = vunpack.c.h.b16 %v2713
        %v2741 = vunpack.c.l.b16 %v2714
        %v2742 = vunpack.c.h.b16 %v2714
        %v2743 = vunpack.c.l.b16 %v2715
        %v2744 = vunpack.c.h.b16 %v2715
        %v2745 = vunpack.c.l.b16 %v2716
        %v2746 = vunpack.c.h.b16 %v2716
        %v2747 = vpack.c.b16 %v2733, %v2731
        %v2748 = vpack.c.b16 %v2734, %v2732
        %v2749 = vpack.c.b16 %v2737, %v2735
        %v2750 = vpack.c.b16 %v2738, %v2736
        %v2751 = vpack.c.b16 %v2741, %v2739
        %v2752 = vpack.c.b16 %v2742, %v2740
        %v2753 = vpack.c.b16 %v2745, %v2743
        %v2754 = vpack.c.b16 %v2746, %v2744
        %v2764 = vsel %vm1244, %v2708, 0
        %2766 = vmatpush.bf16.msra.mxu0 0
        %2767 = vmatpush.bf16.msra.mxu0 0
        %2768 = vmatpush.bf16.msra.mxu0 0
        %2769 = vmatpush.bf16.msra.mxu0 0
        %2770 = vmatpush.bf16.msra.mxu0 %v2753
        %2771 = vmatpush.bf16.msra.mxu0 %v2751
        %2772 = vmatpush.bf16.msra.mxu0 %v2749
        %2773 = vmatpush.bf16.msra.mxu0 %v2747
        %2774 = vmatmul.bf16.gmra.mxu0 %v2764
        %v2775 = vpop.f32.mrf.mxu0
        %v2776 = vadd.f32 %v2719, %v2775
        %v2777 = vpop.f32.mrf.mxu0
        %v2778 = vadd.f32 %v2719, %v2777
        %2779 = vdwg.mxu0
        %2780 = vmatpush.bf16.msra.mxu0 0
        %2781 = vmatpush.bf16.msra.mxu0 0
        %2782 = vmatpush.bf16.msra.mxu0 0
        %2783 = vmatpush.bf16.msra.mxu0 0
        %2784 = vmatpush.bf16.msra.mxu0 %v2754
        %2785 = vmatpush.bf16.msra.mxu0 %v2752
        %2786 = vmatpush.bf16.msra.mxu0 %v2750
        %2787 = vmatpush.bf16.msra.mxu0 %v2748
        %2788 = vmatmul.bf16.gmra.mxu0 %v2764
        %v2789 = vpop.f32.mrf.mxu0
        %v2790 = vadd.f32 %v2720, %v2789
        %v2791 = vpop.f32.mrf.mxu0
        %v2792 = vadd.f32 %v2720, %v2791
        %2793 = vdwg.mxu0
        %2796 = vrot.lane.b32.xlu0 %v2776, 112
        %v2797 = vpop.permute.xlu0 %2796
        %2798 = vrot.lane.b32.xlu0 %v2778, 112
        %v2799 = vpop.permute.xlu0 %2798
        %2802 = vrot.lane.b32.xlu0 %v2776, 96
        %v2803 = vpop.permute.xlu0 %2802
        %2804 = vrot.lane.b32.xlu0 %v2778, 96
        %v2805 = vpop.permute.xlu0 %2804
        %2808 = vrot.lane.b32.xlu0 %v2776, 80
        %v2809 = vpop.permute.xlu0 %2808
        %2810 = vrot.lane.b32.xlu0 %v2778, 80
        %v2811 = vpop.permute.xlu0 %2810
        %2816 = vrot.lane.b32.xlu0 %v2790, 112
        %v2817 = vpop.permute.xlu0 %2816
        %2818 = vrot.lane.b32.xlu0 %v2792, 112
        %v2819 = vpop.permute.xlu0 %2818
        %2822 = vrot.lane.b32.xlu0 %v2790, 96
        %v2823 = vpop.permute.xlu0 %2822
        %2824 = vrot.lane.b32.xlu0 %v2792, 96
        %v2825 = vpop.permute.xlu0 %2824
        %2828 = vrot.lane.b32.xlu0 %v2790, 80
        %v2829 = vpop.permute.xlu0 %2828
        %2830 = vrot.lane.b32.xlu0 %v2792, 80
        %v2831 = vpop.permute.xlu0 %2830
        %v2834 = vpack.c.bf16 %v2776, %v2776
        %v2835 = vpack.c.bf16 %v2778, %v2778
        %v2836 = vpack.c.bf16 %v2797, %v2797
        %v2837 = vpack.c.bf16 %v2799, %v2799
        %v2838 = vpack.c.bf16 %v2803, %v2803
        %v2839 = vpack.c.bf16 %v2805, %v2805
        %v2840 = vpack.c.bf16 %v2809, %v2809
        %v2841 = vpack.c.bf16 %v2811, %v2811
        %v2842 = vld [vmem:[%s45] sm:$0xff]
        %v2843 = vld [vmem:[%s45 + $0x8] sm:$0xff]
        %v2844 = vld [vmem:[%s45 + $0x10] sm:$0xff]
        %v2845 = vld [vmem:[%s45 + $0x18] sm:$0xff]
        %v2846 = vld [vmem:[%s45 + $0x20] sm:$0xff]
        %v2847 = vld [vmem:[%s45 + $0x28] sm:$0xff]
        %v2848 = vld [vmem:[%s45 + $0x30] sm:$0xff]
        %v2849 = vld [vmem:[%s45 + $0x38] sm:$0xff]
        %v2852 = vunpack.c.l.b16 %v2834
        %v2853 = vunpack.c.l.b16 %v2835
        %v2854 = vpack.c.b16 %v2853, %v2852
        %2855 = vrot.lane.b32.xlu0 %v2854, 64
        %v2856 = vpop.permute.xlu0 %2855
        %v2858 = vsel %vm1842, %v2854, 0
        %v2861 = vsel %vm1842, %v2856, 0
        %2863 = vmatpush.bf16.xpose.msra.mxu0 0
        %2864 = vmatpush.bf16.xpose.msra.mxu0 0
        %2865 = vmatpush.bf16.xpose.msra.mxu0 0
        %2866 = vmatpush.bf16.xpose.msra.mxu0 0
        %2867 = vmatpush.bf16.xpose.msra.mxu0 0
        %2868 = vmatpush.bf16.xpose.msra.mxu0 0
        %2869 = vmatpush.bf16.xpose.msra.mxu0 0
        %2870 = vmatpush.bf16.xpose.msra.mxu0 %v2861
        %2871 = vmatmul.bf16.gmra.mxu0 %v2858
        %v2872 = vpop.f32.mrf.mxu0
        %v2873 = vadd.f32 %v2842, %v2872
        %v2874 = vpop.f32.mrf.mxu0
        %v2875 = vadd.f32 %v2843, %v2874
        %2876 = vdwg.mxu0
        %v2879 = vunpack.c.l.b16 %v2836
        %v2880 = vunpack.c.l.b16 %v2837
        %v2881 = vpack.c.b16 %v2880, %v2879
        %2882 = vrot.lane.b32.xlu0 %v2881, 64
        %v2883 = vpop.permute.xlu0 %2882
        %v2885 = vsel %vm1842, %v2881, 0
        %v2888 = vsel %vm1842, %v2883, 0
        %2890 = vmatpush.bf16.xpose.msra.mxu0 0
        %2891 = vmatpush.bf16.xpose.msra.mxu0 0
        %2892 = vmatpush.bf16.xpose.msra.mxu0 0
        %2893 = vmatpush.bf16.xpose.msra.mxu0 0
        %2894 = vmatpush.bf16.xpose.msra.mxu0 0
        %2895 = vmatpush.bf16.xpose.msra.mxu0 0
        %2896 = vmatpush.bf16.xpose.msra.mxu0 0
        %2897 = vmatpush.bf16.xpose.msra.mxu0 %v2888
        %2898 = vmatmul.bf16.gmra.mxu0 %v2885
        %v2899 = vpop.f32.mrf.mxu0
        %v2900 = vadd.f32 %v2844, %v2899
        %v2901 = vpop.f32.mrf.mxu0
        %v2902 = vadd.f32 %v2845, %v2901
        %2903 = vdwg.mxu0
        %v2906 = vunpack.c.l.b16 %v2838
        %v2907 = vunpack.c.l.b16 %v2839
        %v2908 = vpack.c.b16 %v2907, %v2906
        %2909 = vrot.lane.b32.xlu0 %v2908, 64
        %v2910 = vpop.permute.xlu0 %2909
        %v2912 = vsel %vm1842, %v2908, 0
        %v2915 = vsel %vm1842, %v2910, 0
        %2917 = vmatpush.bf16.xpose.msra.mxu0 0
        %2918 = vmatpush.bf16.xpose.msra.mxu0 0
        %2919 = vmatpush.bf16.xpose.msra.mxu0 0
        %2920 = vmatpush.bf16.xpose.msra.mxu0 0
        %2921 = vmatpush.bf16.xpose.msra.mxu0 0
        %2922 = vmatpush.bf16.xpose.msra.mxu0 0
        %2923 = vmatpush.bf16.xpose.msra.mxu0 0
        %2924 = vmatpush.bf16.xpose.msra.mxu0 %v2915
        %2925 = vmatmul.bf16.gmra.mxu0 %v2912
        %v2926 = vpop.f32.mrf.mxu0
        %v2927 = vadd.f32 %v2846, %v2926
        %v2928 = vpop.f32.mrf.mxu0
        %v2929 = vadd.f32 %v2847, %v2928
        %2930 = vdwg.mxu0
        %v2933 = vunpack.c.l.b16 %v2840
        %v2934 = vunpack.c.l.b16 %v2841
        %v2935 = vpack.c.b16 %v2934, %v2933
        %2936 = vrot.lane.b32.xlu0 %v2935, 64
        %v2937 = vpop.permute.xlu0 %2936
        %v2939 = vsel %vm1842, %v2935, 0
        %v2942 = vsel %vm1842, %v2937, 0
        %2944 = vmatpush.bf16.xpose.msra.mxu0 0
        %2945 = vmatpush.bf16.xpose.msra.mxu0 0
        %2946 = vmatpush.bf16.xpose.msra.mxu0 0
        %2947 = vmatpush.bf16.xpose.msra.mxu0 0
        %2948 = vmatpush.bf16.xpose.msra.mxu0 0
        %2949 = vmatpush.bf16.xpose.msra.mxu0 0
        %2950 = vmatpush.bf16.xpose.msra.mxu0 0
        %2951 = vmatpush.bf16.xpose.msra.mxu0 %v2942
        %2952 = vmatmul.bf16.gmra.mxu0 %v2939
        %v2953 = vpop.f32.mrf.mxu0
        %v2954 = vadd.f32 %v2848, %v2953
        %v2955 = vpop.f32.mrf.mxu0
        %v2956 = vadd.f32 %v2849, %v2955
        %2957 = vdwg.mxu0
        %v2958 = vsel %vm1842, %v2873, -inf
        %2959 = vmax.xlane.f32.xlu0 %v2958
        %v2960 = vpop.xlane.xlu0 %2959
        %v2961 = vsel %vm1842, %v2875, -inf
        %2962 = vmax.xlane.f32.xlu0 %v2961
        %v2963 = vpop.xlane.xlu0 %2962
        %v2964 = vsel %vm1842, %v2900, -inf
        %2965 = vmax.xlane.f32.xlu0 %v2964
        %v2966 = vpop.xlane.xlu0 %2965
        %v2967 = vsel %vm1842, %v2902, -inf
        %2968 = vmax.xlane.f32.xlu0 %v2967
        %v2969 = vpop.xlane.xlu0 %2968
        %v2970 = vsel %vm1842, %v2927, -inf
        %2971 = vmax.xlane.f32.xlu0 %v2970
        %v2972 = vpop.xlane.xlu0 %2971
        %v2973 = vsel %vm1842, %v2929, -inf
        %2974 = vmax.xlane.f32.xlu0 %v2973
        %v2975 = vpop.xlane.xlu0 %2974
        %v2976 = vsel %vm1842, %v2954, -inf
        %2977 = vmax.xlane.f32.xlu0 %v2976
        %v2978 = vpop.xlane.xlu0 %2977
        %v2979 = vsel %vm1842, %v2956, -inf
        %2980 = vmax.xlane.f32.xlu0 %v2979
        %v2981 = vpop.xlane.xlu0 %2980
        %v2982 = vsub.f32 %v2873, %v2960
        %v2983 = vsub.f32 %v2875, %v2963
        %v2984 = vsub.f32 %v2900, %v2966
        %v2985 = vsub.f32 %v2902, %v2969
        %v2986 = vsub.f32 %v2927, %v2972
        %v2987 = vsub.f32 %v2929, %v2975
        %v2988 = vsub.f32 %v2954, %v2978
        %v2989 = vsub.f32 %v2956, %v2981
        %v2990 = vmul.f32 %v2982, 1.442695
        %v2991 = vpow.pop %v2990
        %v2992 = vmul.f32 %v2983, 1.442695
        %v2993 = vpow.pop %v2992
        %v2994 = vmul.f32 %v2984, 1.442695
        %v2995 = vpow.pop %v2994
        %v2996 = vmul.f32 %v2985, 1.442695
        %v2997 = vpow.pop %v2996
        %v2998 = vmul.f32 %v2986, 1.442695
        %v2999 = vpow.pop %v2998
        %v3000 = vmul.f32 %v2987, 1.442695
        %v3001 = vpow.pop %v3000
        %v3002 = vmul.f32 %v2988, 1.442695
        %v3003 = vpow.pop %v3002
        %v3004 = vmul.f32 %v2989, 1.442695
        %v3005 = vpow.pop %v3004
        %v3006 = vsel %vm1842, %v2991, 0.0
        %3007 = vadd.xlane.f32.xlu0 %v3006
        %v3008 = vpop.xlane.xlu0 %3007
        %v3009 = vsel %vm1842, %v2993, 0.0
        %3010 = vadd.xlane.f32.xlu0 %v3009
        %v3011 = vpop.xlane.xlu0 %3010
        %v3012 = vsel %vm1842, %v2995, 0.0
        %3013 = vadd.xlane.f32.xlu0 %v3012
        %v3014 = vpop.xlane.xlu0 %3013
        %v3015 = vsel %vm1842, %v2997, 0.0
        %3016 = vadd.xlane.f32.xlu0 %v3015
        %v3017 = vpop.xlane.xlu0 %3016
        %v3018 = vsel %vm1842, %v2999, 0.0
        %3019 = vadd.xlane.f32.xlu0 %v3018
        %v3020 = vpop.xlane.xlu0 %3019
        %v3021 = vsel %vm1842, %v3001, 0.0
        %3022 = vadd.xlane.f32.xlu0 %v3021
        %v3023 = vpop.xlane.xlu0 %3022
        %v3024 = vsel %vm1842, %v3003, 0.0
        %3025 = vadd.xlane.f32.xlu0 %v3024
        %v3026 = vpop.xlane.xlu0 %3025
        %v3027 = vsel %vm1842, %v3005, 0.0
        %3028 = vadd.xlane.f32.xlu0 %v3027
        %v3029 = vpop.xlane.xlu0 %3028
        %v3030 = vrcp.pop %v3008
        %v3031 = vrcp.pop %v3011
        %v3032 = vrcp.pop %v3014
        %v3033 = vrcp.pop %v3017
        %v3034 = vrcp.pop %v3020
        %v3035 = vrcp.pop %v3023
        %v3036 = vrcp.pop %v3026
        %v3037 = vrcp.pop %v3029
        %v3038 = vmul.f32 %v2991, %v3030
        %v3039 = vmul.f32 %v2993, %v3031
        %v3040 = vmul.f32 %v2995, %v3032
        %v3041 = vmul.f32 %v2997, %v3033
        %v3042 = vmul.f32 %v2999, %v3034
        %v3043 = vmul.f32 %v3001, %v3035
        %v3044 = vmul.f32 %v3003, %v3036
        %v3045 = vmul.f32 %v3005, %v3037
        %v3046 = vpack.c.bf16 %v3038, %v3038
        %v3047 = vpack.c.bf16 %v3039, %v3039
        %v3048 = vpack.c.bf16 %v3040, %v3040
        %v3049 = vpack.c.bf16 %v3041, %v3041
        %v3050 = vpack.c.bf16 %v3042, %v3042
        %v3051 = vpack.c.bf16 %v3043, %v3043
        %v3052 = vpack.c.bf16 %v3044, %v3044
        %v3053 = vpack.c.bf16 %v3045, %v3045
        %v3054 = vpack.c.bf16 %v2790, %v2790
        %v3055 = vpack.c.bf16 %v2792, %v2792
        %v3056 = vpack.c.bf16 %v2817, %v2817
        %v3057 = vpack.c.bf16 %v2819, %v2819
        %v3058 = vpack.c.bf16 %v2823, %v2823
        %v3059 = vpack.c.bf16 %v2825, %v2825
        %v3060 = vpack.c.bf16 %v2829, %v2829
        %v3061 = vpack.c.bf16 %v2831, %v2831
        %v3064 = vunpack.c.l.b16 %v3046
        %v3065 = vunpack.c.l.b16 %v3047
        %v3066 = vpack.c.b16 %v3065, %v3064
        %v3069 = vunpack.c.l.b16 %v3054
        %v3070 = vunpack.c.l.b16 %v3055
        %v3071 = vpack.c.b16 %v3070, %v3069
        %v3074 = vsel %vm1842, %v3066, 0
        %3076 = vmatpush.bf16.msra.mxu0 0
        %3077 = vmatpush.bf16.msra.mxu0 0
        %3078 = vmatpush.bf16.msra.mxu0 0
        %3079 = vmatpush.bf16.msra.mxu0 0
        %3080 = vmatpush.bf16.msra.mxu0 0
        %3081 = vmatpush.bf16.msra.mxu0 0
        %3082 = vmatpush.bf16.msra.mxu0 0
        %3083 = vmatpush.bf16.msra.mxu0 %v3071
        %3084 = vmatmul.bf16.gmra.mxu0 %v3074
        %v3085 = vpop.f32.mrf.mxu0
        %v3086 = vadd.f32 0.0, %v3085
        %v3087 = vpop.f32.mrf.mxu0
        %v3088 = vadd.f32 0.0, %v3087
        %3089 = vdwg.mxu0
        %v3092 = vunpack.c.l.b16 %v3048
        %v3093 = vunpack.c.l.b16 %v3049
        %v3094 = vpack.c.b16 %v3093, %v3092
        %v3097 = vunpack.c.l.b16 %v3056
        %v3098 = vunpack.c.l.b16 %v3057
        %v3099 = vpack.c.b16 %v3098, %v3097
        %v3102 = vsel %vm1842, %v3094, 0
        %3104 = vmatpush.bf16.msra.mxu0 0
        %3105 = vmatpush.bf16.msra.mxu0 0
        %3106 = vmatpush.bf16.msra.mxu0 0
        %3107 = vmatpush.bf16.msra.mxu0 0
        %3108 = vmatpush.bf16.msra.mxu0 0
        %3109 = vmatpush.bf16.msra.mxu0 0
        %3110 = vmatpush.bf16.msra.mxu0 0
        %3111 = vmatpush.bf16.msra.mxu0 %v3099
        %3112 = vmatmul.bf16.gmra.mxu0 %v3102
        %v3113 = vpop.f32.mrf.mxu0
        %v3114 = vadd.f32 0.0, %v3113
        %v3115 = vpop.f32.mrf.mxu0
        %v3116 = vadd.f32 0.0, %v3115
        %3117 = vdwg.mxu0
        %v3120 = vunpack.c.l.b16 %v3050
        %v3121 = vunpack.c.l.b16 %v3051
        %v3122 = vpack.c.b16 %v3121, %v3120
        %v3125 = vunpack.c.l.b16 %v3058
        %v3126 = vunpack.c.l.b16 %v3059
        %v3127 = vpack.c.b16 %v3126, %v3125
        %v3130 = vsel %vm1842, %v3122, 0
        %3132 = vmatpush.bf16.msra.mxu0 0
        %3133 = vmatpush.bf16.msra.mxu0 0
        %3134 = vmatpush.bf16.msra.mxu0 0
        %3135 = vmatpush.bf16.msra.mxu0 0
        %3136 = vmatpush.bf16.msra.mxu0 0
        %3137 = vmatpush.bf16.msra.mxu0 0
        %3138 = vmatpush.bf16.msra.mxu0 0
        %3139 = vmatpush.bf16.msra.mxu0 %v3127
        %3140 = vmatmul.bf16.gmra.mxu0 %v3130
        %v3141 = vpop.f32.mrf.mxu0
        %v3142 = vadd.f32 0.0, %v3141
        %v3143 = vpop.f32.mrf.mxu0
        %v3144 = vadd.f32 0.0, %v3143
        %3145 = vdwg.mxu0
        %v3148 = vunpack.c.l.b16 %v3052
        %v3149 = vunpack.c.l.b16 %v3053
        %v3150 = vpack.c.b16 %v3149, %v3148
        %v3153 = vunpack.c.l.b16 %v3060
        %v3154 = vunpack.c.l.b16 %v3061
        %v3155 = vpack.c.b16 %v3154, %v3153
        %v3158 = vsel %vm1842, %v3150, 0
        %3160 = vmatpush.bf16.msra.mxu0 0
        %3161 = vmatpush.bf16.msra.mxu0 0
        %3162 = vmatpush.bf16.msra.mxu0 0
        %3163 = vmatpush.bf16.msra.mxu0 0
        %3164 = vmatpush.bf16.msra.mxu0 0
        %3165 = vmatpush.bf16.msra.mxu0 0
        %3166 = vmatpush.bf16.msra.mxu0 0
        %3167 = vmatpush.bf16.msra.mxu0 %v3155
        %3168 = vmatmul.bf16.gmra.mxu0 %v3158
        %v3169 = vpop.f32.mrf.mxu0
        %v3170 = vadd.f32 0.0, %v3169
        %v3171 = vpop.f32.mrf.mxu0
        %v3172 = vadd.f32 0.0, %v3171
        %3173 = vdwg.mxu0
        %v3174 = vpack.c.bf16 %v3086, %v3086
        %v3175 = vpack.c.bf16 %v3088, %v3088
        %v3176 = vpack.c.bf16 %v3114, %v3114
        %v3177 = vpack.c.bf16 %v3116, %v3116
        %v3178 = vpack.c.bf16 %v3142, %v3142
        %v3179 = vpack.c.bf16 %v3144, %v3144
        %v3180 = vpack.c.bf16 %v3170, %v3170
        %v3181 = vpack.c.bf16 %v3172, %v3172
        %v3182 = vld [vmem:[%s47] sm:$0xf]
        %v3183 = vld [vmem:[%s47 + $0x4] sm:$0xf]
        %v3184 = vld [vmem:[%s47 + $0x8] sm:$0xf]
        %v3185 = vld [vmem:[%s47 + $0xc] sm:$0xf]
        %v3186 = vld [vmem:[%s47 + $0x10] sm:$0xf]
        %v3187 = vld [vmem:[%s47 + $0x14] sm:$0xf]
        %v3188 = vld [vmem:[%s47 + $0x18] sm:$0xf]
        %v3189 = vld [vmem:[%s47 + $0x1c] sm:$0xf]
        %v3192 = vunpack.c.l.b16 %v3174
        %v3193 = vunpack.c.l.b16 %v3175
        %v3194 = vpack.c.b16 %v3193, %v3192
        %v3197 = vunpack.c.l.b16 %v3182
        %v3198 = vunpack.c.l.b16 %v3183
        %v3199 = vpack.c.b16 %v3198, %v3197
        %v3202 = vsel %vm1842, %v3194, 0
        %3204 = vmatpush.bf16.msra.mxu0 0
        %3205 = vmatpush.bf16.msra.mxu0 0
        %3206 = vmatpush.bf16.msra.mxu0 0
        %3207 = vmatpush.bf16.msra.mxu0 0
        %3208 = vmatpush.bf16.msra.mxu0 0
        %3209 = vmatpush.bf16.msra.mxu0 0
        %3210 = vmatpush.bf16.msra.mxu0 0
        %3211 = vmatpush.bf16.msra.mxu0 %v3199
        %3212 = vmatmul.bf16.gmra.mxu0 %v3202
        %v3213 = vpop.f32.mrf.mxu0
        %v3214 = vadd.f32 0.0, %v3213
        %v3215 = vpop.f32.mrf.mxu0
        %v3216 = vadd.f32 0.0, %v3215
        %3217 = vdwg.mxu0
        %v3220 = vunpack.c.l.b16 %v3176
        %v3221 = vunpack.c.l.b16 %v3177
        %v3222 = vpack.c.b16 %v3221, %v3220
        %v3225 = vunpack.c.l.b16 %v3184
        %v3226 = vunpack.c.l.b16 %v3185
        %v3227 = vpack.c.b16 %v3226, %v3225
        %v3230 = vsel %vm1842, %v3222, 0
        %3232 = vmatpush.bf16.msra.mxu0 0
        %3233 = vmatpush.bf16.msra.mxu0 0
        %3234 = vmatpush.bf16.msra.mxu0 0
        %3235 = vmatpush.bf16.msra.mxu0 0
        %3236 = vmatpush.bf16.msra.mxu0 0
        %3237 = vmatpush.bf16.msra.mxu0 0
        %3238 = vmatpush.bf16.msra.mxu0 0
        %3239 = vmatpush.bf16.msra.mxu0 %v3227
        %3240 = vmatmul.bf16.gmra.mxu0 %v3230
        %v3241 = vpop.f32.mrf.mxu0
        %v3242 = vadd.f32 0.0, %v3241
        %v3243 = vpop.f32.mrf.mxu0
        %v3244 = vadd.f32 0.0, %v3243
        %3245 = vdwg.mxu0
        %v3248 = vunpack.c.l.b16 %v3178
        %v3249 = vunpack.c.l.b16 %v3179
        %v3250 = vpack.c.b16 %v3249, %v3248
        %v3253 = vunpack.c.l.b16 %v3186
        %v3254 = vunpack.c.l.b16 %v3187
        %v3255 = vpack.c.b16 %v3254, %v3253
        %v3258 = vsel %vm1842, %v3250, 0
        %3260 = vmatpush.bf16.msra.mxu0 0
        %3261 = vmatpush.bf16.msra.mxu0 0
        %3262 = vmatpush.bf16.msra.mxu0 0
        %3263 = vmatpush.bf16.msra.mxu0 0
        %3264 = vmatpush.bf16.msra.mxu0 0
        %3265 = vmatpush.bf16.msra.mxu0 0
        %3266 = vmatpush.bf16.msra.mxu0 0
        %3267 = vmatpush.bf16.msra.mxu0 %v3255
        %3268 = vmatmul.bf16.gmra.mxu0 %v3258
        %v3269 = vpop.f32.mrf.mxu0
        %v3270 = vadd.f32 0.0, %v3269
        %v3271 = vpop.f32.mrf.mxu0
        %v3272 = vadd.f32 0.0, %v3271
        %3273 = vdwg.mxu0
        %v3276 = vunpack.c.l.b16 %v3180
        %v3277 = vunpack.c.l.b16 %v3181
        %v3278 = vpack.c.b16 %v3277, %v3276
        %v3281 = vunpack.c.l.b16 %v3188
        %v3282 = vunpack.c.l.b16 %v3189
        %v3283 = vpack.c.b16 %v3282, %v3281
        %v3286 = vsel %vm1842, %v3278, 0
        %3288 = vmatpush.bf16.msra.mxu0 0
        %3289 = vmatpush.bf16.msra.mxu0 0
        %3290 = vmatpush.bf16.msra.mxu0 0
        %3291 = vmatpush.bf16.msra.mxu0 0
        %3292 = vmatpush.bf16.msra.mxu0 0
        %3293 = vmatpush.bf16.msra.mxu0 0
        %3294 = vmatpush.bf16.msra.mxu0 0
        %3295 = vmatpush.bf16.msra.mxu0 %v3283
        %3296 = vmatmul.bf16.gmra.mxu0 %v3286
        %v3297 = vpop.f32.mrf.mxu0
        %v3298 = vadd.f32 0.0, %v3297
        %v3299 = vpop.f32.mrf.mxu0
        %v3300 = vadd.f32 0.0, %v3299
        %3301 = vdwg.mxu0
        %v3302 = vsel %vm1244, %v3214, 0.0
        %v3303 = vsel %vm1244, %v3242, 0.0
        %v3304 = vadd.f32 %v3302, %v3303
        %v3305 = vsel %vm1244, %v3270, 0.0
        %v3306 = vadd.f32 %v3304, %v3305
        %v3307 = vsel %vm1244, %v3298, 0.0
        %v3308 = vadd.f32 %v3306, %v3307
        %v3309 = vsel %vm1244, %v3216, 0.0
        %v3310 = vsel %vm1244, %v3244, 0.0
        %v3311 = vadd.f32 %v3309, %v3310
        %v3312 = vsel %vm1244, %v3272, 0.0
        %v3313 = vadd.f32 %v3311, %v3312
        %v3314 = vsel %vm1244, %v3300, 0.0
        %v3315 = vadd.f32 %v3313, %v3314
        %v3316 = vadd.f32 %v2650, %v3308
        %v3317 = vadd.f32 %v2651, %v3315
        %v3318 = vld [vmem:[#allocation15] sm:$0x1]
        %v3320 = vperm.slane %v3318, 0
        %v3322 = vadd.f32 %v3316, %v3320
        %v3323 = vadd.f32 %v3317, %v3320
        %v3324 = vld [vmem:[#allocation16] sm:$0x1]
        %v3325 = vld [vmem:[#allocation18] sm:$0x1]
        %v3326 = vsel %vm1244, %v3322, 0.0
        %3327 = vadd.xlane.f32.xlu0 %v3326
        %v3328 = vpop.xlane.xlu0 %3327
        %v3329 = vsel %vm1244, %v3323, 0.0
        %3330 = vadd.xlane.f32.xlu0 %v3329
        %v3331 = vpop.xlane.xlu0 %3330
        %v3332 = vmul.f32 %v3328, %v1644
        %v3333 = vmul.f32 %v3331, %v1644
        %v3334 = vsub.f32 %v3322, %v3332
        %v3335 = vsub.f32 %v3323, %v3333
        %v3336 = vmul.f32 %v3334, %v3334
        %v3337 = vmul.f32 %v3335, %v3335
        %v3338 = vsel %vm1244, %v3336, 0.0
        %3339 = vadd.xlane.f32.xlu0 %v3338
        %v3340 = vpop.xlane.xlu0 %3339
        %v3341 = vsel %vm1244, %v3337, 0.0
        %3342 = vadd.xlane.f32.xlu0 %v3341
        %v3343 = vpop.xlane.xlu0 %3342
        %v3344 = vmul.f32 %v3340, %v1644
        %v3345 = vmul.f32 %v3343, %v1644
        %v3346 = vadd.f32 %v3344, 1e-05
        %v3347 = vadd.f32 %v3345, 1e-05
        %v3348 = vrsqrt.pop %v3346
        %v3349 = vmul.f32 %v3348, %v3346
        %v3350 = vmul.f32 %v3349, %v3348
        %v3351 = vmul.f32 0.5, %v3350
        %v3352 = vsub.f32 1.5, %v3351
        %v3353 = vmul.f32 %v3348, %v3352
        %vm3354 = vweird.f32 %v3346
        %vm3355 = vweird.f32 %v3348
        %vm3356 = vmor %vm3354, %vm3355
        %v3357 = vsel %vm3356, %v3348, %v3353
        %v3358 = vrsqrt.pop %v3347
        %v3359 = vmul.f32 %v3358, %v3347
        %v3360 = vmul.f32 %v3359, %v3358
        %v3361 = vmul.f32 0.5, %v3360
        %v3362 = vsub.f32 1.5, %v3361
        %v3363 = vmul.f32 %v3358, %v3362
        %vm3364 = vweird.f32 %v3347
        %vm3365 = vweird.f32 %v3358
        %vm3366 = vmor %vm3364, %vm3365
        %v3367 = vsel %vm3366, %v3358, %v3363
        %v3368 = vmul.f32 %v3334, %v3357
        %v3369 = vmul.f32 %v3335, %v3367
        %v3371 = vperm.slane %v3324, 0
        %v3373 = vmul.f32 %v3368, %v3371
        %v3374 = vmul.f32 %v3369, %v3371
        %v3376 = vperm.slane %v3325, 0
        %v3378 = vadd.f32 %v3373, %v3376
        %v3379 = vadd.f32 %v3374, %v3376
        %v3380 = vpack.c.bf16 %v3379, %v3378
        %v3381 = vld [vmem:[%s55] sm:$0xff]
        %v3382 = vld [vmem:[%s55 + $0x8] sm:$0xff]
        %v3383 = vld [vmem:[%s55 + $0x10] sm:$0xff]
        %v3384 = vld [vmem:[%s55 + $0x18] sm:$0xff]
        %v3385 = vld [vmem:[%s55 + $0x20] sm:$0xff]
        %v3386 = vld [vmem:[%s55 + $0x28] sm:$0xff]
        %v3387 = vld [vmem:[%s55 + $0x30] sm:$0xff]
        %v3388 = vld [vmem:[%s55 + $0x38] sm:$0xff]
        %v3389 = vld [vmem:[%s57] sm:$0x3]
        %v3391 = vperm.slane %v3389, 0
        %v3392 = vperm.slane %v3389, 1
        %v3403 = vunpack.c.l.b16 %v3381
        %v3404 = vunpack.c.h.b16 %v3381
        %v3405 = vunpack.c.l.b16 %v3382
        %v3406 = vunpack.c.h.b16 %v3382
        %v3407 = vunpack.c.l.b16 %v3383
        %v3408 = vunpack.c.h.b16 %v3383
        %v3409 = vunpack.c.l.b16 %v3384
        %v3410 = vunpack.c.h.b16 %v3384
        %v3411 = vunpack.c.l.b16 %v3385
        %v3412 = vunpack.c.h.b16 %v3385
        %v3413 = vunpack.c.l.b16 %v3386
        %v3414 = vunpack.c.h.b16 %v3386
        %v3415 = vunpack.c.l.b16 %v3387
        %v3416 = vunpack.c.h.b16 %v3387
        %v3417 = vunpack.c.l.b16 %v3388
        %v3418 = vunpack.c.h.b16 %v3388
        %v3419 = vpack.c.b16 %v3405, %v3403
        %v3420 = vpack.c.b16 %v3406, %v3404
        %v3421 = vpack.c.b16 %v3409, %v3407
        %v3422 = vpack.c.b16 %v3410, %v3408
        %v3423 = vpack.c.b16 %v3413, %v3411
        %v3424 = vpack.c.b16 %v3414, %v3412
        %v3425 = vpack.c.b16 %v3417, %v3415
        %v3426 = vpack.c.b16 %v3418, %v3416
        %v3436 = vsel %vm1244, %v3380, 0
        %3438 = vmatpush.bf16.msra.mxu0 0
        %3439 = vmatpush.bf16.msra.mxu0 0
        %3440 = vmatpush.bf16.msra.mxu0 0
        %3441 = vmatpush.bf16.msra.mxu0 0
        %3442 = vmatpush.bf16.msra.mxu0 %v3425
        %3443 = vmatpush.bf16.msra.mxu0 %v3423
        %3444 = vmatpush.bf16.msra.mxu0 %v3421
        %3445 = vmatpush.bf16.msra.mxu0 %v3419
        %3446 = vmatmul.bf16.gmra.mxu0 %v3436
        %v3447 = vpop.f32.mrf.mxu0
        %v3448 = vadd.f32 %v3391, %v3447
        %v3449 = vpop.f32.mrf.mxu0
        %v3450 = vadd.f32 %v3391, %v3449
        %3451 = vdwg.mxu0
        %3452 = vmatpush.bf16.msra.mxu0 0
        %3453 = vmatpush.bf16.msra.mxu0 0
        %3454 = vmatpush.bf16.msra.mxu0 0
        %3455 = vmatpush.bf16.msra.mxu0 0
        %3456 = vmatpush.bf16.msra.mxu0 %v3426
        %3457 = vmatpush.bf16.msra.mxu0 %v3424
        %3458 = vmatpush.bf16.msra.mxu0 %v3422
        %3459 = vmatpush.bf16.msra.mxu0 %v3420
        %3460 = vmatmul.bf16.gmra.mxu0 %v3436
        %v3461 = vpop.f32.mrf.mxu0
        %v3462 = vadd.f32 %v3392, %v3461
        %v3463 = vpop.f32.mrf.mxu0
        %v3464 = vadd.f32 %v3392, %v3463
        %3465 = vdwg.mxu0
        %v3466 = vmul.f32 %v3448, %v3448
        %v3467 = vmul.f32 %v3462, %v3462
        %v3468 = vmul.f32 %v3450, %v3450
        %v3469 = vmul.f32 %v3464, %v3464
        %v3470 = vmul.f32 %v3448, %v3466
        %v3471 = vmul.f32 %v3462, %v3467
        %v3472 = vmul.f32 %v3450, %v3468
        %v3473 = vmul.f32 %v3464, %v3469
        %v3474 = vmul.f32 %v3470, 0.044715
        %v3475 = vmul.f32 %v3471, 0.044715
        %v3476 = vmul.f32 %v3472, 0.044715
        %v3477 = vmul.f32 %v3473, 0.044715
        %v3478 = vadd.f32 %v3448, %v3474
        %v3479 = vadd.f32 %v3462, %v3475
        %v3480 = vadd.f32 %v3450, %v3476
        %v3481 = vadd.f32 %v3464, %v3477
        %v3482 = vmul.f32 %v3478, 0.7978846
        %v3483 = vmul.f32 %v3479, 0.7978846
        %v3484 = vmul.f32 %v3480, 0.7978846
        %v3485 = vmul.f32 %v3481, 0.7978846
        %v3486 = vtanh.pop %v3482
        %v3487 = vtanh.pop %v3483
        %v3488 = vtanh.pop %v3484
        %v3489 = vtanh.pop %v3485
        %v3490 = vadd.f32 %v3486, 1.0
        %v3491 = vadd.f32 %v3487, 1.0
        %v3492 = vadd.f32 %v3488, 1.0
        %v3493 = vadd.f32 %v3489, 1.0
        %v3494 = vmul.f32 %v3490, 0.5
        %v3495 = vmul.f32 %v3491, 0.5
        %v3496 = vmul.f32 %v3492, 0.5
        %v3497 = vmul.f32 %v3493, 0.5
        %v3498 = vmul.f32 %v3448, %v3494
        %v3499 = vmul.f32 %v3462, %v3495
        %v3500 = vmul.f32 %v3450, %v3496
        %v3501 = vmul.f32 %v3464, %v3497
        %v3502 = vpack.c.bf16 %v3500, %v3498
        %v3503 = vpack.c.bf16 %v3501, %v3499
        %v3504 = vld [vmem:[%s59] sm:$0xf]
        %v3505 = vld [vmem:[%s59 + $0x4] sm:$0xf]
        %v3506 = vld [vmem:[%s59 + $0x8] sm:$0xf]
        %v3507 = vld [vmem:[%s59 + $0xc] sm:$0xf]
        %v3508 = vld [vmem:[%s59 + $0x10] sm:$0xf]
        %v3509 = vld [vmem:[%s59 + $0x14] sm:$0xf]
        %v3510 = vld [vmem:[%s59 + $0x18] sm:$0xf]
        %v3511 = vld [vmem:[%s59 + $0x1c] sm:$0xf]
        %v3512 = vld [vmem:[%s59 + $0x20] sm:$0xf]
        %v3513 = vld [vmem:[%s59 + $0x24] sm:$0xf]
        %v3514 = vld [vmem:[%s59 + $0x28] sm:$0xf]
        %v3515 = vld [vmem:[%s59 + $0x2c] sm:$0xf]
        %v3516 = vld [vmem:[%s59 + $0x30] sm:$0xf]
        %v3517 = vld [vmem:[%s59 + $0x34] sm:$0xf]
        %v3518 = vld [vmem:[%s59 + $0x38] sm:$0xf]
        %v3519 = vld [vmem:[%s59 + $0x3c] sm:$0xf]
        %v3520 = vld [vmem:[%s59 + $0x40] sm:$0xf]
        %v3521 = vld [vmem:[%s59 + $0x44] sm:$0xf]
        %v3522 = vld [vmem:[%s59 + $0x48] sm:$0xf]
        %v3523 = vld [vmem:[%s59 + $0x4c] sm:$0xf]
        %v3524 = vld [vmem:[%s59 + $0x50] sm:$0xf]
        %v3525 = vld [vmem:[%s59 + $0x54] sm:$0xf]
        %v3526 = vld [vmem:[%s59 + $0x58] sm:$0xf]
        %v3527 = vld [vmem:[%s59 + $0x5c] sm:$0xf]
        %v3528 = vld [vmem:[%s59 + $0x60] sm:$0xf]
        %v3529 = vld [vmem:[%s59 + $0x64] sm:$0xf]
        %v3530 = vld [vmem:[%s59 + $0x68] sm:$0xf]
        %v3531 = vld [vmem:[%s59 + $0x6c] sm:$0xf]
        %v3532 = vld [vmem:[%s59 + $0x70] sm:$0xf]
        %v3533 = vld [vmem:[%s59 + $0x74] sm:$0xf]
        %v3534 = vld [vmem:[%s59 + $0x78] sm:$0xf]
        %v3535 = vld [vmem:[%s59 + $0x7c] sm:$0xf]
        %v3536 = vld [vmem:[#allocation19] sm:$0x1]
        %v3538 = vperm.slane %v3536, 0
        %v3572 = vunpack.c.l.b16 %v3504
        %v3573 = vunpack.c.l.b16 %v3505
        %v3574 = vunpack.c.l.b16 %v3506
        %v3575 = vunpack.c.l.b16 %v3507
        %v3576 = vunpack.c.l.b16 %v3508
        %v3577 = vunpack.c.l.b16 %v3509
        %v3578 = vunpack.c.l.b16 %v3510
        %v3579 = vunpack.c.l.b16 %v3511
        %v3580 = vunpack.c.l.b16 %v3512
        %v3581 = vunpack.c.l.b16 %v3513
        %v3582 = vunpack.c.l.b16 %v3514
        %v3583 = vunpack.c.l.b16 %v3515
        %v3584 = vunpack.c.l.b16 %v3516
        %v3585 = vunpack.c.l.b16 %v3517
        %v3586 = vunpack.c.l.b16 %v3518
        %v3587 = vunpack.c.l.b16 %v3519
        %v3588 = vunpack.c.l.b16 %v3520
        %v3589 = vunpack.c.l.b16 %v3521
        %v3590 = vunpack.c.l.b16 %v3522
        %v3591 = vunpack.c.l.b16 %v3523
        %v3592 = vunpack.c.l.b16 %v3524
        %v3593 = vunpack.c.l.b16 %v3525
        %v3594 = vunpack.c.l.b16 %v3526
        %v3595 = vunpack.c.l.b16 %v3527
        %v3596 = vunpack.c.l.b16 %v3528
        %v3597 = vunpack.c.l.b16 %v3529
        %v3598 = vunpack.c.l.b16 %v3530
        %v3599 = vunpack.c.l.b16 %v3531
        %v3600 = vunpack.c.l.b16 %v3532
        %v3601 = vunpack.c.l.b16 %v3533
        %v3602 = vunpack.c.l.b16 %v3534
        %v3603 = vunpack.c.l.b16 %v3535
        %v3604 = vpack.c.b16 %v3573, %v3572
        %v3605 = vpack.c.b16 %v3575, %v3574
        %v3606 = vpack.c.b16 %v3577, %v3576
        %v3607 = vpack.c.b16 %v3579, %v3578
        %v3608 = vpack.c.b16 %v3581, %v3580
        %v3609 = vpack.c.b16 %v3583, %v3582
        %v3610 = vpack.c.b16 %v3585, %v3584
        %v3611 = vpack.c.b16 %v3587, %v3586
        %v3612 = vpack.c.b16 %v3589, %v3588
        %v3613 = vpack.c.b16 %v3591, %v3590
        %v3614 = vpack.c.b16 %v3593, %v3592
        %v3615 = vpack.c.b16 %v3595, %v3594
        %v3616 = vpack.c.b16 %v3597, %v3596
        %v3617 = vpack.c.b16 %v3599, %v3598
        %v3618 = vpack.c.b16 %v3601, %v3600
        %v3619 = vpack.c.b16 %v3603, %v3602
        %3636 = vmatpush.bf16.msra.mxu0 %v3611
        %3637 = vmatpush.bf16.msra.mxu0 %v3610
        %3638 = vmatpush.bf16.msra.mxu0 %v3609
        %3639 = vmatpush.bf16.msra.mxu0 %v3608
        %3640 = vmatpush.bf16.msra.mxu0 %v3607
        %3641 = vmatpush.bf16.msra.mxu0 %v3606
        %3642 = vmatpush.bf16.msra.mxu0 %v3605
        %3643 = vmatpush.bf16.msra.mxu0 %v3604
        %3644 = vmatmul.bf16.gmra.mxu0 %v3502
        %v3645 = vpop.f32.mrf.mxu0
        %v3646 = vadd.f32 %v3538, %v3645
        %v3647 = vpop.f32.mrf.mxu0
        %v3648 = vadd.f32 %v3538, %v3647
        %3649 = vdwg.mxu0
        %3650 = vmatpush.bf16.msra.mxu0 %v3619
        %3651 = vmatpush.bf16.msra.mxu0 %v3618
        %3652 = vmatpush.bf16.msra.mxu0 %v3617
        %3653 = vmatpush.bf16.msra.mxu0 %v3616
        %3654 = vmatpush.bf16.msra.mxu0 %v3615
        %3655 = vmatpush.bf16.msra.mxu0 %v3614
        %3656 = vmatpush.bf16.msra.mxu0 %v3613
        %3657 = vmatpush.bf16.msra.mxu0 %v3612
        %3658 = vmatmul.bf16.gmra.mxu0 %v3503
        %v3659 = vpop.f32.mrf.mxu0
        %v3660 = vadd.f32 %v3646, %v3659
        %v3661 = vpop.f32.mrf.mxu0
        %v3662 = vadd.f32 %v3648, %v3661
        %3663 = vdwg.mxu0
        %v3664 = vadd.f32 %v3322, %v3660
        %v3665 = vadd.f32 %v3323, %v3662
        %v3666 = vld [vmem:[#allocation21] sm:$0x1]
        %v3667 = vld [vmem:[#allocation22] sm:$0x1]
        %v3668 = vsel %vm1244, %v3664, 0.0
        %3669 = vadd.xlane.f32.xlu0 %v3668
        %v3670 = vpop.xlane.xlu0 %3669
        %v3671 = vsel %vm1244, %v3665, 0.0
        %3672 = vadd.xlane.f32.xlu0 %v3671
        %v3673 = vpop.xlane.xlu0 %3672
        %v3674 = vmul.f32 %v3670, %v1644
        %v3675 = vmul.f32 %v3673, %v1644
        %v3676 = vsub.f32 %v3664, %v3674
        %v3677 = vsub.f32 %v3665, %v3675
        %v3678 = vmul.f32 %v3676, %v3676
        %v3679 = vmul.f32 %v3677, %v3677
        %v3680 = vsel %vm1244, %v3678, 0.0
        %3681 = vadd.xlane.f32.xlu0 %v3680
        %v3682 = vpop.xlane.xlu0 %3681
        %v3683 = vsel %vm1244, %v3679, 0.0
        %3684 = vadd.xlane.f32.xlu0 %v3683
        %v3685 = vpop.xlane.xlu0 %3684
        %v3686 = vmul.f32 %v3682, %v1644
        %v3687 = vmul.f32 %v3685, %v1644
        %v3688 = vadd.f32 %v3686, 1e-05
        %v3689 = vadd.f32 %v3687, 1e-05
        %v3690 = vrsqrt.pop %v3688
        %v3691 = vmul.f32 %v3690, %v3688
        %v3692 = vmul.f32 %v3691, %v3690
        %v3693 = vmul.f32 0.5, %v3692
        %v3694 = vsub.f32 1.5, %v3693
        %v3695 = vmul.f32 %v3690, %v3694
        %vm3696 = vweird.f32 %v3688
        %vm3697 = vweird.f32 %v3690
        %vm3698 = vmor %vm3696, %vm3697
        %v3699 = vsel %vm3698, %v3690, %v3695
        %v3700 = vrsqrt.pop %v3689
        %v3701 = vmul.f32 %v3700, %v3689
        %v3702 = vmul.f32 %v3701, %v3700
        %v3703 = vmul.f32 0.5, %v3702
        %v3704 = vsub.f32 1.5, %v3703
        %v3705 = vmul.f32 %v3700, %v3704
        %vm3706 = vweird.f32 %v3689
        %vm3707 = vweird.f32 %v3700
        %vm3708 = vmor %vm3706, %vm3707
        %v3709 = vsel %vm3708, %v3700, %v3705
        %v3710 = vmul.f32 %v3676, %v3699
        %v3711 = vmul.f32 %v3677, %v3709
        %v3713 = vperm.slane %v3666, 0
        %v3715 = vmul.f32 %v3710, %v3713
        %v3716 = vmul.f32 %v3711, %v3713
        %v3718 = vperm.slane %v3667, 0
        %v3720 = vadd.f32 %v3715, %v3718
        %v3721 = vadd.f32 %v3716, %v3718
        %v3722 = vpack.c.bf16 %v3720, %v3720
        %v3723 = vpack.c.bf16 %v3721, %v3721
        %vm3724 = vcmask 519168
        %3725 = vst.msk [vmem:[%s1218] sm:$0xf] %vm3724, %v3722
        %3726 = vst.msk [vmem:[%s1218 + $0x4] sm:$0xf] %vm3724, %v3723
        %p3727 = scmp.lt.s32.totalorder %s86, 1
        %s3728 = scalar_select %p3727, %s86, 1
        %s3729 = smul.addr %s3728, 2
        %s3730 = smul.addr %s3729, 4
        %s3731 = scalar_lea.vmem %s67, %s3730
        // Predicated region
        $region209: #{swin_m3sda_forward.4} parent=151 // pred_check
          %p3732 = pneg %p802
        $region210: #{swin_m3sda_forward.4} parent=151 // pred_check_branch
          %3734 = sbr.rel (%p3732) target = $region212
        $region211: #{swin_m3sda_forward.4} parent=151 // pred_region
          _
        $region212: #{swin_m3sda_forward.4} parent=151 // pred_fallthru
          _
      $region152: #{swin_m3sda_forward.4} parent=5 // pred_fallthru
        _
      %p3735 = scmp.le.s32.totalorder 2, %s81
      // Predicated region
      $region213: #{swin_m3sda_forward.4} parent=5 // pred_check
        %p3736 = pneg %p3735
      $region214: #{swin_m3sda_forward.4} parent=5 // pred_check_branch
        %3738 = sbr.rel (%p3736) target = $region216
      $region215: #{swin_m3sda_forward.4} parent=5 // pred_region
        %s3739 = ssub.s32 %s81, 2
        // Predicated region
        $region217: #{swin_m3sda_forward.4} parent=215 // pred_check
          %p3740 = pneg %p808
        $region218: #{swin_m3sda_forward.4} parent=215 // pred_check_branch
          %3742 = sbr.rel (%p3740) target = $region220
        $region219: #{swin_m3sda_forward.4} parent=215 // pred_region
          %p3743 = scmp.lt.s32.totalorder %s87, 1
          %s3744 = scalar_select %p3743, %s87, 1
          %s3745 = smul.addr %s3744, 2
          %s3746 = smul.addr %s3745, 4
          %s3747 = scalar_lea.vmem %s67, %s3746
        $region220: #{swin_m3sda_forward.4} parent=215 // pred_fallthru
          _
      $region216: #{swin_m3sda_forward.4} parent=5 // pred_fallthru
        _
    $region6: #{swin_m3sda_forward.4} parent=1 // loop_footer
      %s85 = sadd.s32 1, %s81
    $region7: #{swin_m3sda_forward.4} parent=1 // loop_footer_branch
      %80 = sbr.rel target = $region3
    $region8: #{swin_m3sda_forward.4} parent=1 // loop_exit
      _
    %3748 = vsyncpa [#allocation3], 1
    %s3749 = scalar_lea.sflag [#allocation3], 1
    %3750 = vsyncpa %s3749, 1
    %3751 = vsyncpa [#allocation5], 1
    %3752 = vsyncpa [#allocation8], 1
    %3753 = vsyncpa [#allocation11], 1
    %3754 = vsyncpa [#allocation14], 1
    %3755 = vsyncpa [#allocation17], 1
    %3756 = vsyncpa [#allocation20], 1
    %3757 = vsyncpa [#allocation23], 1

// kernel: swin_m3sda_forward.3
$region0: #{swin_m3sda_forward.3}
  #allocation0 [shape = 'u32[]', space=smem, size = 0x4, offset = 0x4, fixed_abs, tag = 'smem constant byte address 0x4 - core index']
  #allocation1 [shape = 'u32[72,128]{1,0:T(1,128)}', space=vmem, size = 0x9000, scoped, tag = 'internal scratch']
  %s0 = inlined_call_operand.smem [shape: u32[35], index: -1, kind: input, shape index: {}]
  %s1 = sld [smem:[%s0]]
  %s2 = scalar_lea.smem %s0, 1
  %s3 = sld [smem:[%s2]]
  %s4 = scalar_lea.smem %s0, 2
  %s5 = sld [smem:[%s4]]
  %s6 = scalar_lea.smem %s0, 3
  %s7 = sld [smem:[%s6]]
  %s8 = scalar_lea.smem %s0, 4
  %s9 = sld [smem:[%s8]]
  %s10 = scalar_lea.smem %s0, 5
  %s11 = sld [smem:[%s10]]
  %s12 = scalar_lea.smem %s0, 6
  %s13 = sld [smem:[%s12]]
  %s14 = scalar_lea.smem %s0, 7
  %s15 = sld [smem:[%s14]]
  %s16 = scalar_lea.smem %s0, 8
  %s17 = sld [smem:[%s16]]
  %s18 = scalar_lea.smem %s0, 9
  %s19 = sld [smem:[%s18]]
  %s20 = scalar_lea.smem %s0, 10
  %s21 = sld [smem:[%s20]]
  %s22 = scalar_lea.smem %s0, 11
  %s23 = sld [smem:[%s22]]
  %s24 = scalar_lea.smem %s0, 12
  %s25 = sld [smem:[%s24]]
  %s26 = scalar_lea.smem %s0, 13
  %s27 = sld [smem:[%s26]]
  %s28 = scalar_lea.smem %s0, 14
  %s29 = sld [smem:[%s28]]
  %s30 = scalar_lea.smem %s0, 15
  %s31 = sld [smem:[%s30]]
  %s32 = scalar_lea.smem %s0, 16
  %s33 = sld [smem:[%s32]]
  %s34 = scalar_lea.smem %s0, 17
  %s35 = sld [smem:[%s34]]
  %s36 = scalar_lea.smem %s0, 18
  %s37 = sld [smem:[%s36]]
  %s38 = scalar_lea.smem %s0, 19
  %s39 = sld [smem:[%s38]]
  %s40 = scalar_lea.smem %s0, 20
  %s41 = sld [smem:[%s40]]
  %s42 = scalar_lea.smem %s0, 21
  %s43 = sld [smem:[%s42]]
  %s44 = scalar_lea.smem %s0, 22
  %s45 = sld [smem:[%s44]]
  %s46 = scalar_lea.smem %s0, 23
  %s47 = sld [smem:[%s46]]
  %s48 = scalar_lea.smem %s0, 24
  %s49 = sld [smem:[%s48]]
  %s50 = scalar_lea.smem %s0, 25
  %s51 = sld [smem:[%s50]]
  %s52 = scalar_lea.smem %s0, 26
  %s53 = sld [smem:[%s52]]
  %s54 = scalar_lea.smem %s0, 27
  %s55 = sld [smem:[%s54]]
  %s56 = scalar_lea.smem %s0, 28
  %s57 = sld [smem:[%s56]]
  %s58 = scalar_lea.smem %s0, 29
  %s59 = sld [smem:[%s58]]
  %s60 = scalar_lea.smem %s0, 30
  %s61 = sld [smem:[%s60]]
  %s62 = scalar_lea.smem %s0, 31
  %s63 = sld [smem:[%s62]]
  %s64 = scalar_lea.smem %s0, 32
  %s65 = sld [smem:[%s64]]
  %s66 = scalar_lea.smem %s0, 33
  %s67 = sld [smem:[%s66]]
  %s68 = scalar_lea.smem %s0, 34
  %s69 = sld [smem:[%s68]]
  %s70 = sld [smem:[#allocation0]]
  $region197: #{swin_m3sda_forward.3} parent=0
    _
  %s72 = ssub.s32 1, %s70
  %s73 = scalar_select 0, %s72, %s70
  $region1: #{swin_m3sda_forward.3} parent=0
    #allocation2 [shape = 'u8[512]{0}', space=vmem, size = 0x400, scoped, tag = 'input window, operand 22, single buffered']
    #allocation3 [shape = 's32[2]{0}', space=sflag, size = 0x8, scoped, tag = 'scoped memory for swin_m3sda_forward.3']
    #allocation4 [shape = 'u8[512]{0}', space=vmem, size = 0x400, scoped, tag = 'input window, operand 24, single buffered']
    #allocation5 [shape = 's32[1]{0}', space=sflag, size = 0x4, scoped, tag = 'scoped memory for swin_m3sda_forward.3']
    #allocation6 [shape = 'u8[512]{0}', space=vmem, size = 0x400, scoped, tag = 'input window, operand 27, single buffered']
    #allocation7 [shape = 'u8[512]{0}', space=vmem, size = 0x400, scoped, tag = 'input window, operand 28, single buffered']
    #allocation8 [shape = 's32[1]{0}', space=sflag, size = 0x4, scoped, tag = 'scoped memory for swin_m3sda_forward.3']
    #allocation9 [shape = 'u8[512]{0}', space=vmem, size = 0x400, scoped, tag = 'input window, operand 29, single buffered']
    #allocation10 [shape = 'u8[512]{0}', space=vmem, size = 0x400, scoped, tag = 'input window, operand 31, single buffered']
    #allocation11 [shape = 's32[1]{0}', space=sflag, size = 0x4, scoped, tag = 'scoped memory for swin_m3sda_forward.3']
    #allocation12 [shape = 'u8[512]{0}', space=vmem, size = 0x400, scoped, tag = 'input window, operand 33, single buffered']
    %74 = vsyncpa [#allocation3], 0
    %75 = vsyncpa [#allocation5], 0
    %76 = vsyncpa [#allocation8], 0
    %77 = vsyncpa [#allocation11], 0
    loop: start=0, step=1, limit=4
    $region2: #{swin_m3sda_forward.3} parent=1 // loop_pre_header
      _
    $region3: #{swin_m3sda_forward.3} parent=1 // loop_header
      %s79 = sphi 0, %s83
      %p80 = scmp.ge.s32.totalorder %s79, 4
      %s89 = sphi 0, %s91
      %s92 = sphi 0, %s89
      %s93 = sphi 0, %s92
      %s109 = sphi 0, %s93
      %s113 = sphi 0, %s113
      %s115 = sphi 0, %s113
      %s116 = sphi 0, %s115
      %s130 = sphi 0, %s116
      %s134 = sphi 0, %s134
      %s136 = sphi 0, %s134
      %s137 = sphi 0, %s136
      %s151 = sphi 0, %s137
      %s155 = sphi 0, %s155
      %s157 = sphi 0, %s155
      %s158 = sphi 0, %s157
      %s172 = sphi 0, %s158
      %s176 = sphi 0, %s176
      %s178 = sphi 0, %s176
      %s179 = sphi 0, %s178
      %s193 = sphi 0, %s179
      %s197 = sphi 0, %s197
      %s199 = sphi 0, %s197
      %s200 = sphi 0, %s199
      %s214 = sphi 0, %s200
      %s218 = sphi 0, %s218
      %s220 = sphi 0, %s218
      %s221 = sphi 0, %s220
      %s235 = sphi 0, %s221
      %s239 = sphi 0, %s239
      %s241 = sphi 0, %s239
      %s242 = sphi 0, %s241
      %s256 = sphi 0, %s242
      %s260 = sphi 0, %s260
      %s262 = sphi 0, %s260
      %s263 = sphi 0, %s262
      %s277 = sphi 0, %s263
      %s281 = sphi 0, %s281
      %s283 = sphi 0, %s281
      %s284 = sphi 0, %s283
      %s298 = sphi 0, %s284
      %s302 = sphi 0, %s302
      %s304 = sphi 0, %s302
      %s305 = sphi 0, %s304
      %s319 = sphi 0, %s305
      %s323 = sphi 0, %s323
      %s325 = sphi 0, %s323
      %s326 = sphi 0, %s325
      %s340 = sphi 0, %s326
      %s344 = sphi 0, %s344
      %s346 = sphi 0, %s344
      %s347 = sphi 0, %s346
      %s361 = sphi 0, %s347
      %s365 = sphi 0, %s365
      %s367 = sphi 0, %s365
      %s368 = sphi 0, %s367
      %s382 = sphi 0, %s368
      %s386 = sphi 0, %s386
      %s388 = sphi 0, %s386
      %s389 = sphi 0, %s388
      %s403 = sphi 0, %s389
      %s407 = sphi 0, %s407
      %s409 = sphi 0, %s407
      %s410 = sphi 0, %s409
      %s424 = sphi 0, %s410
      %s428 = sphi 0, %s428
      %s430 = sphi 0, %s428
      %s431 = sphi 0, %s430
      %s445 = sphi 0, %s431
      %s449 = sphi 0, %s449
      %s451 = sphi 0, %s449
      %s452 = sphi 0, %s451
      %s466 = sphi 0, %s452
      %s470 = sphi 0, %s470
      %s472 = sphi 0, %s470
      %s473 = sphi 0, %s472
      %s487 = sphi 0, %s473
      %s491 = sphi 0, %s491
      %s493 = sphi 0, %s491
      %s494 = sphi 0, %s493
      %s508 = sphi 0, %s494
      %s512 = sphi 0, %s512
      %s514 = sphi 0, %s512
      %s515 = sphi 0, %s514
      %s529 = sphi 0, %s515
      %s533 = sphi 0, %s533
      %s535 = sphi 0, %s533
      %s536 = sphi 0, %s535
      %s550 = sphi 0, %s536
      %s554 = sphi 0, %s554
      %s556 = sphi 0, %s554
      %s557 = sphi 0, %s556
      %s571 = sphi 0, %s557
      %s575 = sphi 0, %s575
      %s577 = sphi 0, %s575
      %s578 = sphi 0, %s577
      %s592 = sphi 0, %s578
      %s596 = sphi 0, %s596
      %s598 = sphi 0, %s596
      %s599 = sphi 0, %s598
      %s613 = sphi 0, %s599
      %s617 = sphi 0, %s617
      %s619 = sphi 0, %s617
      %s620 = sphi 0, %s619
      %s634 = sphi 0, %s620
      %s638 = sphi 0, %s638
      %s640 = sphi 0, %s638
      %s641 = sphi 0, %s640
      %s655 = sphi 0, %s641
      %s659 = sphi 0, %s659
      %s661 = sphi 0, %s659
      %s662 = sphi 0, %s661
      %s676 = sphi 0, %s662
      %s680 = sphi 0, %s680
      %s682 = sphi 0, %s680
      %s683 = sphi 0, %s682
      %s697 = sphi 0, %s683
      %s701 = sphi 0, %s701
      %s703 = sphi 0, %s701
      %s704 = sphi 0, %s703
      %s718 = sphi 0, %s704
      %s722 = sphi 0, %s722
      %s724 = sphi 0, %s722
      %s725 = sphi 0, %s724
      %s739 = sphi 0, %s725
      %s743 = sphi 0, %s743
      %s745 = sphi 0, %s743
      %s746 = sphi 0, %s745
      %s760 = sphi 0, %s746
      %s764 = sphi 0, %s764
      %s766 = sphi 0, %s764
      %s767 = sphi 0, %s766
      %s781 = sphi 0, %s767
      %s785 = sphi 0, %s785
      %s787 = sphi 0, %s785
      %s788 = sphi 0, %s787
      %s802 = sphi 0, %s788
      %s808 = sphi 0, %s810
      %s811 = sphi 0, %s808
      %s812 = sphi 0, %s811
      %s828 = sphi 0, %s812
    $region4: #{swin_m3sda_forward.3} parent=1 // loop_header_branch
      %82 = sbr.rel (%p80) target = $region8
    $region5: #{swin_m3sda_forward.3} parent=1 // loop_body
      %s84 = ssub.s32 %s79, 1
      %s85 = ssub.s32 %s79, 2
      %s86 = sadd.s32 %s79, 1
      %s87 = ssub.s32 %s79, %s86
      %p88 = scmp.eq.s32.totalorder %s87, 0
      %s90 = sadd.s32 %s89, 1
      %s91 = scalar_select %p88, %s89, %s90
      %p94 = pneg %p88
      %p95 = scmp.eq.s32.totalorder %s79, 1
      %p96 = por %p94, %p95
      %p97 = scmp.ne.s32.totalorder %s89, %s92
      %p98 = scmp.eq.s32.totalorder %s79, 0
      %p99 = por %p97, %p98
      %p100 = scmp.ne.s32.totalorder %s89, %s92
      %p101 = scmp.eq.s32.totalorder %s84, 1
      %p102 = por %p100, %p101
      %p103 = scmp.ne.s32.totalorder %s92, %s93
      %p104 = scmp.eq.s32.totalorder %s84, 0
      %p105 = por %p103, %p104
      %p106 = scmp.ne.s32.totalorder %s92, %s93
      %p107 = scmp.eq.s32.totalorder %s85, 1
      %p108 = por %p106, %p107
      %p110 = scmp.ne.s32.totalorder %s93, %s109
      %p111 = scmp.eq.s32.totalorder %s85, 0
      %p112 = por %p110, %p111
      %s114 = sadd.s32 %s113, 1
      %p117 = scmp.eq.s32.totalorder %s79, 1
      %p118 = scmp.ne.s32.totalorder %s113, %s115
      %p119 = scmp.eq.s32.totalorder %s79, 0
      %p120 = por %p118, %p119
      %p121 = scmp.ne.s32.totalorder %s113, %s115
      %p122 = scmp.eq.s32.totalorder %s84, 1
      %p123 = por %p121, %p122
      %p124 = scmp.ne.s32.totalorder %s115, %s116
      %p125 = scmp.eq.s32.totalorder %s84, 0
      %p126 = por %p124, %p125
      %p127 = scmp.ne.s32.totalorder %s115, %s116
      %p128 = scmp.eq.s32.totalorder %s85, 1
      %p129 = por %p127, %p128
      %p131 = scmp.ne.s32.totalorder %s116, %s130
      %p132 = scmp.eq.s32.totalorder %s85, 0
      %p133 = por %p131, %p132
      %s135 = sadd.s32 %s134, 1
      %p138 = scmp.eq.s32.totalorder %s79, 1
      %p139 = scmp.ne.s32.totalorder %s134, %s136
      %p140 = scmp.eq.s32.totalorder %s79, 0
      %p141 = por %p139, %p140
      %p142 = scmp.ne.s32.totalorder %s134, %s136
      %p143 = scmp.eq.s32.totalorder %s84, 1
      %p144 = por %p142, %p143
      %p145 = scmp.ne.s32.totalorder %s136, %s137
      %p146 = scmp.eq.s32.totalorder %s84, 0
      %p147 = por %p145, %p146
      %p148 = scmp.ne.s32.totalorder %s136, %s137
      %p149 = scmp.eq.s32.totalorder %s85, 1
      %p150 = por %p148, %p149
      %p152 = scmp.ne.s32.totalorder %s137, %s151
      %p153 = scmp.eq.s32.totalorder %s85, 0
      %p154 = por %p152, %p153
      %s156 = sadd.s32 %s155, 1
      %p159 = scmp.eq.s32.totalorder %s79, 1
      %p160 = scmp.ne.s32.totalorder %s155, %s157
      %p161 = scmp.eq.s32.totalorder %s79, 0
      %p162 = por %p160, %p161
      %p163 = scmp.ne.s32.totalorder %s155, %s157
      %p164 = scmp.eq.s32.totalorder %s84, 1
      %p165 = por %p163, %p164
      %p166 = scmp.ne.s32.totalorder %s157, %s158
      %p167 = scmp.eq.s32.totalorder %s84, 0
      %p168 = por %p166, %p167
      %p169 = scmp.ne.s32.totalorder %s157, %s158
      %p170 = scmp.eq.s32.totalorder %s85, 1
      %p171 = por %p169, %p170
      %p173 = scmp.ne.s32.totalorder %s158, %s172
      %p174 = scmp.eq.s32.totalorder %s85, 0
      %p175 = por %p173, %p174
      %s177 = sadd.s32 %s176, 1
      %p180 = scmp.eq.s32.totalorder %s79, 1
      %p181 = scmp.ne.s32.totalorder %s176, %s178
      %p182 = scmp.eq.s32.totalorder %s79, 0
      %p183 = por %p181, %p182
      %p184 = scmp.ne.s32.totalorder %s176, %s178
      %p185 = scmp.eq.s32.totalorder %s84, 1
      %p186 = por %p184, %p185
      %p187 = scmp.ne.s32.totalorder %s178, %s179
      %p188 = scmp.eq.s32.totalorder %s84, 0
      %p189 = por %p187, %p188
      %p190 = scmp.ne.s32.totalorder %s178, %s179
      %p191 = scmp.eq.s32.totalorder %s85, 1
      %p192 = por %p190, %p191
      %p194 = scmp.ne.s32.totalorder %s179, %s193
      %p195 = scmp.eq.s32.totalorder %s85, 0
      %p196 = por %p194, %p195
      %s198 = sadd.s32 %s197, 1
      %p201 = scmp.eq.s32.totalorder %s79, 1
      %p202 = scmp.ne.s32.totalorder %s197, %s199
      %p203 = scmp.eq.s32.totalorder %s79, 0
      %p204 = por %p202, %p203
      %p205 = scmp.ne.s32.totalorder %s197, %s199
      %p206 = scmp.eq.s32.totalorder %s84, 1
      %p207 = por %p205, %p206
      %p208 = scmp.ne.s32.totalorder %s199, %s200
      %p209 = scmp.eq.s32.totalorder %s84, 0
      %p210 = por %p208, %p209
      %p211 = scmp.ne.s32.totalorder %s199, %s200
      %p212 = scmp.eq.s32.totalorder %s85, 1
      %p213 = por %p211, %p212
      %p215 = scmp.ne.s32.totalorder %s200, %s214
      %p216 = scmp.eq.s32.totalorder %s85, 0
      %p217 = por %p215, %p216
      %s219 = sadd.s32 %s218, 1
      %p222 = scmp.eq.s32.totalorder %s79, 1
      %p223 = scmp.ne.s32.totalorder %s218, %s220
      %p224 = scmp.eq.s32.totalorder %s79, 0
      %p225 = por %p223, %p224
      %p226 = scmp.ne.s32.totalorder %s218, %s220
      %p227 = scmp.eq.s32.totalorder %s84, 1
      %p228 = por %p226, %p227
      %p229 = scmp.ne.s32.totalorder %s220, %s221
      %p230 = scmp.eq.s32.totalorder %s84, 0
      %p231 = por %p229, %p230
      %p232 = scmp.ne.s32.totalorder %s220, %s221
      %p233 = scmp.eq.s32.totalorder %s85, 1
      %p234 = por %p232, %p233
      %p236 = scmp.ne.s32.totalorder %s221, %s235
      %p237 = scmp.eq.s32.totalorder %s85, 0
      %p238 = por %p236, %p237
      %s240 = sadd.s32 %s239, 1
      %p243 = scmp.eq.s32.totalorder %s79, 1
      %p244 = scmp.ne.s32.totalorder %s239, %s241
      %p245 = scmp.eq.s32.totalorder %s79, 0
      %p246 = por %p244, %p245
      %p247 = scmp.ne.s32.totalorder %s239, %s241
      %p248 = scmp.eq.s32.totalorder %s84, 1
      %p249 = por %p247, %p248
      %p250 = scmp.ne.s32.totalorder %s241, %s242
      %p251 = scmp.eq.s32.totalorder %s84, 0
      %p252 = por %p250, %p251
      %p253 = scmp.ne.s32.totalorder %s241, %s242
      %p254 = scmp.eq.s32.totalorder %s85, 1
      %p255 = por %p253, %p254
      %p257 = scmp.ne.s32.totalorder %s242, %s256
      %p258 = scmp.eq.s32.totalorder %s85, 0
      %p259 = por %p257, %p258
      %s261 = sadd.s32 %s260, 1
      %p264 = scmp.eq.s32.totalorder %s79, 1
      %p265 = scmp.ne.s32.totalorder %s260, %s262
      %p266 = scmp.eq.s32.totalorder %s79, 0
      %p267 = por %p265, %p266
      %p268 = scmp.ne.s32.totalorder %s260, %s262
      %p269 = scmp.eq.s32.totalorder %s84, 1
      %p270 = por %p268, %p269
      %p271 = scmp.ne.s32.totalorder %s262, %s263
      %p272 = scmp.eq.s32.totalorder %s84, 0
      %p273 = por %p271, %p272
      %p274 = scmp.ne.s32.totalorder %s262, %s263
      %p275 = scmp.eq.s32.totalorder %s85, 1
      %p276 = por %p274, %p275
      %p278 = scmp.ne.s32.totalorder %s263, %s277
      %p279 = scmp.eq.s32.totalorder %s85, 0
      %p280 = por %p278, %p279
      %s282 = sadd.s32 %s281, 1
      %p285 = scmp.eq.s32.totalorder %s79, 1
      %p286 = scmp.ne.s32.totalorder %s281, %s283
      %p287 = scmp.eq.s32.totalorder %s79, 0
      %p288 = por %p286, %p287
      %p289 = scmp.ne.s32.totalorder %s281, %s283
      %p290 = scmp.eq.s32.totalorder %s84, 1
      %p291 = por %p289, %p290
      %p292 = scmp.ne.s32.totalorder %s283, %s284
      %p293 = scmp.eq.s32.totalorder %s84, 0
      %p294 = por %p292, %p293
      %p295 = scmp.ne.s32.totalorder %s283, %s284
      %p296 = scmp.eq.s32.totalorder %s85, 1
      %p297 = por %p295, %p296
      %p299 = scmp.ne.s32.totalorder %s284, %s298
      %p300 = scmp.eq.s32.totalorder %s85, 0
      %p301 = por %p299, %p300
      %s303 = sadd.s32 %s302, 1
      %p306 = scmp.eq.s32.totalorder %s79, 1
      %p307 = scmp.ne.s32.totalorder %s302, %s304
      %p308 = scmp.eq.s32.totalorder %s79, 0
      %p309 = por %p307, %p308
      %p310 = scmp.ne.s32.totalorder %s302, %s304
      %p311 = scmp.eq.s32.totalorder %s84, 1
      %p312 = por %p310, %p311
      %p313 = scmp.ne.s32.totalorder %s304, %s305
      %p314 = scmp.eq.s32.totalorder %s84, 0
      %p315 = por %p313, %p314
      %p316 = scmp.ne.s32.totalorder %s304, %s305
      %p317 = scmp.eq.s32.totalorder %s85, 1
      %p318 = por %p316, %p317
      %p320 = scmp.ne.s32.totalorder %s305, %s319
      %p321 = scmp.eq.s32.totalorder %s85, 0
      %p322 = por %p320, %p321
      %s324 = sadd.s32 %s323, 1
      %p327 = scmp.eq.s32.totalorder %s79, 1
      %p328 = scmp.ne.s32.totalorder %s323, %s325
      %p329 = scmp.eq.s32.totalorder %s79, 0
      %p330 = por %p328, %p329
      %p331 = scmp.ne.s32.totalorder %s323, %s325
      %p332 = scmp.eq.s32.totalorder %s84, 1
      %p333 = por %p331, %p332
      %p334 = scmp.ne.s32.totalorder %s325, %s326
      %p335 = scmp.eq.s32.totalorder %s84, 0
      %p336 = por %p334, %p335
      %p337 = scmp.ne.s32.totalorder %s325, %s326
      %p338 = scmp.eq.s32.totalorder %s85, 1
      %p339 = por %p337, %p338
      %p341 = scmp.ne.s32.totalorder %s326, %s340
      %p342 = scmp.eq.s32.totalorder %s85, 0
      %p343 = por %p341, %p342
      %s345 = sadd.s32 %s344, 1
      %p348 = scmp.eq.s32.totalorder %s79, 1
      %p349 = scmp.ne.s32.totalorder %s344, %s346
      %p350 = scmp.eq.s32.totalorder %s79, 0
      %p351 = por %p349, %p350
      %p352 = scmp.ne.s32.totalorder %s344, %s346
      %p353 = scmp.eq.s32.totalorder %s84, 1
      %p354 = por %p352, %p353
      %p355 = scmp.ne.s32.totalorder %s346, %s347
      %p356 = scmp.eq.s32.totalorder %s84, 0
      %p357 = por %p355, %p356
      %p358 = scmp.ne.s32.totalorder %s346, %s347
      %p359 = scmp.eq.s32.totalorder %s85, 1
      %p360 = por %p358, %p359
      %p362 = scmp.ne.s32.totalorder %s347, %s361
      %p363 = scmp.eq.s32.totalorder %s85, 0
      %p364 = por %p362, %p363
      %s366 = sadd.s32 %s365, 1
      %p369 = scmp.eq.s32.totalorder %s79, 1
      %p370 = scmp.ne.s32.totalorder %s365, %s367
      %p371 = scmp.eq.s32.totalorder %s79, 0
      %p372 = por %p370, %p371
      %p373 = scmp.ne.s32.totalorder %s365, %s367
      %p374 = scmp.eq.s32.totalorder %s84, 1
      %p375 = por %p373, %p374
      %p376 = scmp.ne.s32.totalorder %s367, %s368
      %p377 = scmp.eq.s32.totalorder %s84, 0
      %p378 = por %p376, %p377
      %p379 = scmp.ne.s32.totalorder %s367, %s368
      %p380 = scmp.eq.s32.totalorder %s85, 1
      %p381 = por %p379, %p380
      %p383 = scmp.ne.s32.totalorder %s368, %s382
      %p384 = scmp.eq.s32.totalorder %s85, 0
      %p385 = por %p383, %p384
      %s387 = sadd.s32 %s386, 1
      %p390 = scmp.eq.s32.totalorder %s79, 1
      %p391 = scmp.ne.s32.totalorder %s386, %s388
      %p392 = scmp.eq.s32.totalorder %s79, 0
      %p393 = por %p391, %p392
      %p394 = scmp.ne.s32.totalorder %s386, %s388
      %p395 = scmp.eq.s32.totalorder %s84, 1
      %p396 = por %p394, %p395
      %p397 = scmp.ne.s32.totalorder %s388, %s389
      %p398 = scmp.eq.s32.totalorder %s84, 0
      %p399 = por %p397, %p398
      %p400 = scmp.ne.s32.totalorder %s388, %s389
      %p401 = scmp.eq.s32.totalorder %s85, 1
      %p402 = por %p400, %p401
      %p404 = scmp.ne.s32.totalorder %s389, %s403
      %p405 = scmp.eq.s32.totalorder %s85, 0
      %p406 = por %p404, %p405
      %s408 = sadd.s32 %s407, 1
      %p411 = scmp.eq.s32.totalorder %s79, 1
      %p412 = scmp.ne.s32.totalorder %s407, %s409
      %p413 = scmp.eq.s32.totalorder %s79, 0
      %p414 = por %p412, %p413
      %p415 = scmp.ne.s32.totalorder %s407, %s409
      %p416 = scmp.eq.s32.totalorder %s84, 1
      %p417 = por %p415, %p416
      %p418 = scmp.ne.s32.totalorder %s409, %s410
      %p419 = scmp.eq.s32.totalorder %s84, 0
      %p420 = por %p418, %p419
      %p421 = scmp.ne.s32.totalorder %s409, %s410
      %p422 = scmp.eq.s32.totalorder %s85, 1
      %p423 = por %p421, %p422
      %p425 = scmp.ne.s32.totalorder %s410, %s424
      %p426 = scmp.eq.s32.totalorder %s85, 0
      %p427 = por %p425, %p426
      %s429 = sadd.s32 %s428, 1
      %p432 = scmp.eq.s32.totalorder %s79, 1
      %p433 = scmp.ne.s32.totalorder %s428, %s430
      %p434 = scmp.eq.s32.totalorder %s79, 0
      %p435 = por %p433, %p434
      %p436 = scmp.ne.s32.totalorder %s428, %s430
      %p437 = scmp.eq.s32.totalorder %s84, 1
      %p438 = por %p436, %p437
      %p439 = scmp.ne.s32.totalorder %s430, %s431
      %p440 = scmp.eq.s32.totalorder %s84, 0
      %p441 = por %p439, %p440
      %p442 = scmp.ne.s32.totalorder %s430, %s431
      %p443 = scmp.eq.s32.totalorder %s85, 1
      %p444 = por %p442, %p443
      %p446 = scmp.ne.s32.totalorder %s431, %s445
      %p447 = scmp.eq.s32.totalorder %s85, 0
      %p448 = por %p446, %p447
      %s450 = sadd.s32 %s449, 1
      %p453 = scmp.eq.s32.totalorder %s79, 1
      %p454 = scmp.ne.s32.totalorder %s449, %s451
      %p455 = scmp.eq.s32.totalorder %s79, 0
      %p456 = por %p454, %p455
      %p457 = scmp.ne.s32.totalorder %s449, %s451
      %p458 = scmp.eq.s32.totalorder %s84, 1
      %p459 = por %p457, %p458
      %p460 = scmp.ne.s32.totalorder %s451, %s452
      %p461 = scmp.eq.s32.totalorder %s84, 0
      %p462 = por %p460, %p461
      %p463 = scmp.ne.s32.totalorder %s451, %s452
      %p464 = scmp.eq.s32.totalorder %s85, 1
      %p465 = por %p463, %p464
      %p467 = scmp.ne.s32.totalorder %s452, %s466
      %p468 = scmp.eq.s32.totalorder %s85, 0
      %p469 = por %p467, %p468
      %s471 = sadd.s32 %s470, 1
      %p474 = scmp.eq.s32.totalorder %s79, 1
      %p475 = scmp.ne.s32.totalorder %s470, %s472
      %p476 = scmp.eq.s32.totalorder %s79, 0
      %p477 = por %p475, %p476
      %p478 = scmp.ne.s32.totalorder %s470, %s472
      %p479 = scmp.eq.s32.totalorder %s84, 1
      %p480 = por %p478, %p479
      %p481 = scmp.ne.s32.totalorder %s472, %s473
      %p482 = scmp.eq.s32.totalorder %s84, 0
      %p483 = por %p481, %p482
      %p484 = scmp.ne.s32.totalorder %s472, %s473
      %p485 = scmp.eq.s32.totalorder %s85, 1
      %p486 = por %p484, %p485
      %p488 = scmp.ne.s32.totalorder %s473, %s487
      %p489 = scmp.eq.s32.totalorder %s85, 0
      %p490 = por %p488, %p489
      %s492 = sadd.s32 %s491, 1
      %p495 = scmp.eq.s32.totalorder %s79, 1
      %p496 = scmp.ne.s32.totalorder %s491, %s493
      %p497 = scmp.eq.s32.totalorder %s79, 0
      %p498 = por %p496, %p497
      %p499 = scmp.ne.s32.totalorder %s491, %s493
      %p500 = scmp.eq.s32.totalorder %s84, 1
      %p501 = por %p499, %p500
      %p502 = scmp.ne.s32.totalorder %s493, %s494
      %p503 = scmp.eq.s32.totalorder %s84, 0
      %p504 = por %p502, %p503
      %p505 = scmp.ne.s32.totalorder %s493, %s494
      %p506 = scmp.eq.s32.totalorder %s85, 1
      %p507 = por %p505, %p506
      %p509 = scmp.ne.s32.totalorder %s494, %s508
      %p510 = scmp.eq.s32.totalorder %s85, 0
      %p511 = por %p509, %p510
      %s513 = sadd.s32 %s512, 1
      %p516 = scmp.eq.s32.totalorder %s79, 1
      %p517 = scmp.ne.s32.totalorder %s512, %s514
      %p518 = scmp.eq.s32.totalorder %s79, 0
      %p519 = por %p517, %p518
      %p520 = scmp.ne.s32.totalorder %s512, %s514
      %p521 = scmp.eq.s32.totalorder %s84, 1
      %p522 = por %p520, %p521
      %p523 = scmp.ne.s32.totalorder %s514, %s515
      %p524 = scmp.eq.s32.totalorder %s84, 0
      %p525 = por %p523, %p524
      %p526 = scmp.ne.s32.totalorder %s514, %s515
      %p527 = scmp.eq.s32.totalorder %s85, 1
      %p528 = por %p526, %p527
      %p530 = scmp.ne.s32.totalorder %s515, %s529
      %p531 = scmp.eq.s32.totalorder %s85, 0
      %p532 = por %p530, %p531
      %s534 = sadd.s32 %s533, 1
      %p537 = scmp.eq.s32.totalorder %s79, 1
      %p538 = scmp.ne.s32.totalorder %s533, %s535
      %p539 = scmp.eq.s32.totalorder %s79, 0
      %p540 = por %p538, %p539
      %p541 = scmp.ne.s32.totalorder %s533, %s535
      %p542 = scmp.eq.s32.totalorder %s84, 1
      %p543 = por %p541, %p542
      %p544 = scmp.ne.s32.totalorder %s535, %s536
      %p545 = scmp.eq.s32.totalorder %s84, 0
      %p546 = por %p544, %p545
      %p547 = scmp.ne.s32.totalorder %s535, %s536
      %p548 = scmp.eq.s32.totalorder %s85, 1
      %p549 = por %p547, %p548
      %p551 = scmp.ne.s32.totalorder %s536, %s550
      %p552 = scmp.eq.s32.totalorder %s85, 0
      %p553 = por %p551, %p552
      %s555 = sadd.s32 %s554, 1
      %p558 = scmp.eq.s32.totalorder %s79, 1
      %p559 = scmp.ne.s32.totalorder %s554, %s556
      %p560 = scmp.eq.s32.totalorder %s79, 0
      %p561 = por %p559, %p560
      %p562 = scmp.ne.s32.totalorder %s554, %s556
      %p563 = scmp.eq.s32.totalorder %s84, 1
      %p564 = por %p562, %p563
      %p565 = scmp.ne.s32.totalorder %s556, %s557
      %p566 = scmp.eq.s32.totalorder %s84, 0
      %p567 = por %p565, %p566
      %p568 = scmp.ne.s32.totalorder %s556, %s557
      %p569 = scmp.eq.s32.totalorder %s85, 1
      %p570 = por %p568, %p569
      %p572 = scmp.ne.s32.totalorder %s557, %s571
      %p573 = scmp.eq.s32.totalorder %s85, 0
      %p574 = por %p572, %p573
      %s576 = sadd.s32 %s575, 1
      %p579 = scmp.eq.s32.totalorder %s79, 1
      %p580 = scmp.ne.s32.totalorder %s575, %s577
      %p581 = scmp.eq.s32.totalorder %s79, 0
      %p582 = por %p580, %p581
      %p583 = scmp.ne.s32.totalorder %s575, %s577
      %p584 = scmp.eq.s32.totalorder %s84, 1
      %p585 = por %p583, %p584
      %p586 = scmp.ne.s32.totalorder %s577, %s578
      %p587 = scmp.eq.s32.totalorder %s84, 0
      %p588 = por %p586, %p587
      %p589 = scmp.ne.s32.totalorder %s577, %s578
      %p590 = scmp.eq.s32.totalorder %s85, 1
      %p591 = por %p589, %p590
      %p593 = scmp.ne.s32.totalorder %s578, %s592
      %p594 = scmp.eq.s32.totalorder %s85, 0
      %p595 = por %p593, %p594
      %s597 = sadd.s32 %s596, 1
      %p600 = scmp.eq.s32.totalorder %s79, 1
      %p601 = scmp.ne.s32.totalorder %s596, %s598
      %p602 = scmp.eq.s32.totalorder %s79, 0
      %p603 = por %p601, %p602
      %p604 = scmp.ne.s32.totalorder %s596, %s598
      %p605 = scmp.eq.s32.totalorder %s84, 1
      %p606 = por %p604, %p605
      %p607 = scmp.ne.s32.totalorder %s598, %s599
      %p608 = scmp.eq.s32.totalorder %s84, 0
      %p609 = por %p607, %p608
      %p610 = scmp.ne.s32.totalorder %s598, %s599
      %p611 = scmp.eq.s32.totalorder %s85, 1
      %p612 = por %p610, %p611
      %p614 = scmp.ne.s32.totalorder %s599, %s613
      %p615 = scmp.eq.s32.totalorder %s85, 0
      %p616 = por %p614, %p615
      %s618 = sadd.s32 %s617, 1
      %p621 = scmp.eq.s32.totalorder %s79, 1
      %p622 = scmp.ne.s32.totalorder %s617, %s619
      %p623 = scmp.eq.s32.totalorder %s79, 0
      %p624 = por %p622, %p623
      %p625 = scmp.ne.s32.totalorder %s617, %s619
      %p626 = scmp.eq.s32.totalorder %s84, 1
      %p627 = por %p625, %p626
      %p628 = scmp.ne.s32.totalorder %s619, %s620
      %p629 = scmp.eq.s32.totalorder %s84, 0
      %p630 = por %p628, %p629
      %p631 = scmp.ne.s32.totalorder %s619, %s620
      %p632 = scmp.eq.s32.totalorder %s85, 1
      %p633 = por %p631, %p632
      %p635 = scmp.ne.s32.totalorder %s620, %s634
      %p636 = scmp.eq.s32.totalorder %s85, 0
      %p637 = por %p635, %p636
      %s639 = sadd.s32 %s638, 1
      %p642 = scmp.eq.s32.totalorder %s79, 1
      %p643 = scmp.ne.s32.totalorder %s638, %s640
      %p644 = scmp.eq.s32.totalorder %s79, 0
      %p645 = por %p643, %p644
      %p646 = scmp.ne.s32.totalorder %s638, %s640
      %p647 = scmp.eq.s32.totalorder %s84, 1
      %p648 = por %p646, %p647
      %p649 = scmp.ne.s32.totalorder %s640, %s641
      %p650 = scmp.eq.s32.totalorder %s84, 0
      %p651 = por %p649, %p650
      %p652 = scmp.ne.s32.totalorder %s640, %s641
      %p653 = scmp.eq.s32.totalorder %s85, 1
      %p654 = por %p652, %p653
      %p656 = scmp.ne.s32.totalorder %s641, %s655
      %p657 = scmp.eq.s32.totalorder %s85, 0
      %p658 = por %p656, %p657
      %s660 = sadd.s32 %s659, 1
      %p663 = scmp.eq.s32.totalorder %s79, 1
      %p664 = scmp.ne.s32.totalorder %s659, %s661
      %p665 = scmp.eq.s32.totalorder %s79, 0
      %p666 = por %p664, %p665
      %p667 = scmp.ne.s32.totalorder %s659, %s661
      %p668 = scmp.eq.s32.totalorder %s84, 1
      %p669 = por %p667, %p668
      %p670 = scmp.ne.s32.totalorder %s661, %s662
      %p671 = scmp.eq.s32.totalorder %s84, 0
      %p672 = por %p670, %p671
      %p673 = scmp.ne.s32.totalorder %s661, %s662
      %p674 = scmp.eq.s32.totalorder %s85, 1
      %p675 = por %p673, %p674
      %p677 = scmp.ne.s32.totalorder %s662, %s676
      %p678 = scmp.eq.s32.totalorder %s85, 0
      %p679 = por %p677, %p678
      %s681 = sadd.s32 %s680, 1
      %p684 = scmp.eq.s32.totalorder %s79, 1
      %p685 = scmp.ne.s32.totalorder %s680, %s682
      %p686 = scmp.eq.s32.totalorder %s79, 0
      %p687 = por %p685, %p686
      %p688 = scmp.ne.s32.totalorder %s680, %s682
      %p689 = scmp.eq.s32.totalorder %s84, 1
      %p690 = por %p688, %p689
      %p691 = scmp.ne.s32.totalorder %s682, %s683
      %p692 = scmp.eq.s32.totalorder %s84, 0
      %p693 = por %p691, %p692
      %p694 = scmp.ne.s32.totalorder %s682, %s683
      %p695 = scmp.eq.s32.totalorder %s85, 1
      %p696 = por %p694, %p695
      %p698 = scmp.ne.s32.totalorder %s683, %s697
      %p699 = scmp.eq.s32.totalorder %s85, 0
      %p700 = por %p698, %p699
      %s702 = sadd.s32 %s701, 1
      %p705 = scmp.eq.s32.totalorder %s79, 1
      %p706 = scmp.ne.s32.totalorder %s701, %s703
      %p707 = scmp.eq.s32.totalorder %s79, 0
      %p708 = por %p706, %p707
      %p709 = scmp.ne.s32.totalorder %s701, %s703
      %p710 = scmp.eq.s32.totalorder %s84, 1
      %p711 = por %p709, %p710
      %p712 = scmp.ne.s32.totalorder %s703, %s704
      %p713 = scmp.eq.s32.totalorder %s84, 0
      %p714 = por %p712, %p713
      %p715 = scmp.ne.s32.totalorder %s703, %s704
      %p716 = scmp.eq.s32.totalorder %s85, 1
      %p717 = por %p715, %p716
      %p719 = scmp.ne.s32.totalorder %s704, %s718
      %p720 = scmp.eq.s32.totalorder %s85, 0
      %p721 = por %p719, %p720
      %s723 = sadd.s32 %s722, 1
      %p726 = scmp.eq.s32.totalorder %s79, 1
      %p727 = scmp.ne.s32.totalorder %s722, %s724
      %p728 = scmp.eq.s32.totalorder %s79, 0
      %p729 = por %p727, %p728
      %p730 = scmp.ne.s32.totalorder %s722, %s724
      %p731 = scmp.eq.s32.totalorder %s84, 1
      %p732 = por %p730, %p731
      %p733 = scmp.ne.s32.totalorder %s724, %s725
      %p734 = scmp.eq.s32.totalorder %s84, 0
      %p735 = por %p733, %p734
      %p736 = scmp.ne.s32.totalorder %s724, %s725
      %p737 = scmp.eq.s32.totalorder %s85, 1
      %p738 = por %p736, %p737
      %p740 = scmp.ne.s32.totalorder %s725, %s739
      %p741 = scmp.eq.s32.totalorder %s85, 0
      %p742 = por %p740, %p741
      %s744 = sadd.s32 %s743, 1
      %p747 = scmp.eq.s32.totalorder %s79, 1
      %p748 = scmp.ne.s32.totalorder %s743, %s745
      %p749 = scmp.eq.s32.totalorder %s79, 0
      %p750 = por %p748, %p749
      %p751 = scmp.ne.s32.totalorder %s743, %s745
      %p752 = scmp.eq.s32.totalorder %s84, 1
      %p753 = por %p751, %p752
      %p754 = scmp.ne.s32.totalorder %s745, %s746
      %p755 = scmp.eq.s32.totalorder %s84, 0
      %p756 = por %p754, %p755
      %p757 = scmp.ne.s32.totalorder %s745, %s746
      %p758 = scmp.eq.s32.totalorder %s85, 1
      %p759 = por %p757, %p758
      %p761 = scmp.ne.s32.totalorder %s746, %s760
      %p762 = scmp.eq.s32.totalorder %s85, 0
      %p763 = por %p761, %p762
      %s765 = sadd.s32 %s764, 1
      %p768 = scmp.eq.s32.totalorder %s79, 1
      %p769 = scmp.ne.s32.totalorder %s764, %s766
      %p770 = scmp.eq.s32.totalorder %s79, 0
      %p771 = por %p769, %p770
      %p772 = scmp.ne.s32.totalorder %s764, %s766
      %p773 = scmp.eq.s32.totalorder %s84, 1
      %p774 = por %p772, %p773
      %p775 = scmp.ne.s32.totalorder %s766, %s767
      %p776 = scmp.eq.s32.totalorder %s84, 0
      %p777 = por %p775, %p776
      %p778 = scmp.ne.s32.totalorder %s766, %s767
      %p779 = scmp.eq.s32.totalorder %s85, 1
      %p780 = por %p778, %p779
      %p782 = scmp.ne.s32.totalorder %s767, %s781
      %p783 = scmp.eq.s32.totalorder %s85, 0
      %p784 = por %p782, %p783
      %s786 = sadd.s32 %s785, 1
      %p789 = scmp.eq.s32.totalorder %s79, 1
      %p790 = scmp.ne.s32.totalorder %s785, %s787
      %p791 = scmp.eq.s32.totalorder %s79, 0
      %p792 = por %p790, %p791
      %p793 = scmp.ne.s32.totalorder %s785, %s787
      %p794 = scmp.eq.s32.totalorder %s84, 1
      %p795 = por %p793, %p794
      %p796 = scmp.ne.s32.totalorder %s787, %s788
      %p797 = scmp.eq.s32.totalorder %s84, 0
      %p798 = por %p796, %p797
      %p799 = scmp.ne.s32.totalorder %s787, %s788
      %p800 = scmp.eq.s32.totalorder %s85, 1
      %p801 = por %p799, %p800
      %p803 = scmp.ne.s32.totalorder %s788, %s802
      %p804 = scmp.eq.s32.totalorder %s85, 0
      %p805 = por %p803, %p804
      %s806 = ssub.s32 %s79, %s86
      %p807 = scmp.eq.s32.totalorder %s806, 0
      %s809 = sadd.s32 %s808, 1
      %s810 = scalar_select %p807, %s808, %s809
      %p813 = pneg %p807
      %p814 = scmp.eq.s32.totalorder %s79, 1
      %p815 = por %p813, %p814
      %p816 = scmp.ne.s32.totalorder %s808, %s811
      %p817 = scmp.eq.s32.totalorder %s79, 0
      %p818 = por %p816, %p817
      %p819 = scmp.ne.s32.totalorder %s808, %s811
      %p820 = scmp.eq.s32.totalorder %s84, 1
      %p821 = por %p819, %p820
      %p822 = scmp.ne.s32.totalorder %s811, %s812
      %p823 = scmp.eq.s32.totalorder %s84, 0
      %p824 = por %p822, %p823
      %p825 = scmp.ne.s32.totalorder %s811, %s812
      %p826 = scmp.eq.s32.totalorder %s85, 1
      %p827 = por %p825, %p826
      %p829 = scmp.ne.s32.totalorder %s812, %s828
      %p830 = scmp.eq.s32.totalorder %s85, 0
      %p831 = por %p829, %p830
      %p832 = scmp.le.s32.totalorder 1, %s79
      %p833 = scmp.lt.s32.totalorder %s79, 3
      %p834 = pnand %p832, %p833
      %p835 = pneg %p834
      // Predicated region
      $region9: #{swin_m3sda_forward.3} parent=5 // pred_check
        _
      $region10: #{swin_m3sda_forward.3} parent=5 // pred_check_branch
        %837 = sbr.rel (%p834) target = $region12
      $region11: #{swin_m3sda_forward.3} parent=5 // pred_region
        %s838 = ssub.s32 %s79, 1
        // Predicated region
        $region13: #{swin_m3sda_forward.3} parent=11 // pred_check
          %p839 = pneg %p126
        $region14: #{swin_m3sda_forward.3} parent=11 // pred_check_branch
          %841 = sbr.rel (%p839) target = $region16
        $region15: #{swin_m3sda_forward.3} parent=11 // pred_region
          _
        $region16: #{swin_m3sda_forward.3} parent=11 // pred_fallthru
          _
        // Predicated region
        $region17: #{swin_m3sda_forward.3} parent=11 // pred_check
          %p842 = pneg %p147
        $region18: #{swin_m3sda_forward.3} parent=11 // pred_check_branch
          %844 = sbr.rel (%p842) target = $region20
        $region19: #{swin_m3sda_forward.3} parent=11 // pred_region
          _
        $region20: #{swin_m3sda_forward.3} parent=11 // pred_fallthru
          _
        // Predicated region
        $region21: #{swin_m3sda_forward.3} parent=11 // pred_check
          %p845 = pneg %p168
        $region22: #{swin_m3sda_forward.3} parent=11 // pred_check_branch
          %847 = sbr.rel (%p845) target = $region24
        $region23: #{swin_m3sda_forward.3} parent=11 // pred_region
          _
        $region24: #{swin_m3sda_forward.3} parent=11 // pred_fallthru
          _
        // Predicated region
        $region25: #{swin_m3sda_forward.3} parent=11 // pred_check
          %p848 = pneg %p189
        $region26: #{swin_m3sda_forward.3} parent=11 // pred_check_branch
          %850 = sbr.rel (%p848) target = $region28
        $region27: #{swin_m3sda_forward.3} parent=11 // pred_region
          _
        $region28: #{swin_m3sda_forward.3} parent=11 // pred_fallthru
          _
        // Predicated region
        $region29: #{swin_m3sda_forward.3} parent=11 // pred_check
          %p851 = pneg %p210
        $region30: #{swin_m3sda_forward.3} parent=11 // pred_check_branch
          %853 = sbr.rel (%p851) target = $region32
        $region31: #{swin_m3sda_forward.3} parent=11 // pred_region
          _
        $region32: #{swin_m3sda_forward.3} parent=11 // pred_fallthru
          _
        // Predicated region
        $region33: #{swin_m3sda_forward.3} parent=11 // pred_check
          %p854 = pneg %p231
        $region34: #{swin_m3sda_forward.3} parent=11 // pred_check_branch
          %856 = sbr.rel (%p854) target = $region36
        $region35: #{swin_m3sda_forward.3} parent=11 // pred_region
          _
        $region36: #{swin_m3sda_forward.3} parent=11 // pred_fallthru
          _
        // Predicated region
        $region37: #{swin_m3sda_forward.3} parent=11 // pred_check
          %p857 = pneg %p252
        $region38: #{swin_m3sda_forward.3} parent=11 // pred_check_branch
          %859 = sbr.rel (%p857) target = $region40
        $region39: #{swin_m3sda_forward.3} parent=11 // pred_region
          _
        $region40: #{swin_m3sda_forward.3} parent=11 // pred_fallthru
          _
        // Predicated region
        $region41: #{swin_m3sda_forward.3} parent=11 // pred_check
          %p860 = pneg %p273
        $region42: #{swin_m3sda_forward.3} parent=11 // pred_check_branch
          %862 = sbr.rel (%p860) target = $region44
        $region43: #{swin_m3sda_forward.3} parent=11 // pred_region
          _
        $region44: #{swin_m3sda_forward.3} parent=11 // pred_fallthru
          _
        // Predicated region
        $region45: #{swin_m3sda_forward.3} parent=11 // pred_check
          %p863 = pneg %p294
        $region46: #{swin_m3sda_forward.3} parent=11 // pred_check_branch
          %865 = sbr.rel (%p863) target = $region48
        $region47: #{swin_m3sda_forward.3} parent=11 // pred_region
          _
        $region48: #{swin_m3sda_forward.3} parent=11 // pred_fallthru
          _
        // Predicated region
        $region49: #{swin_m3sda_forward.3} parent=11 // pred_check
          %p866 = pneg %p315
        $region50: #{swin_m3sda_forward.3} parent=11 // pred_check_branch
          %868 = sbr.rel (%p866) target = $region52
        $region51: #{swin_m3sda_forward.3} parent=11 // pred_region
          _
        $region52: #{swin_m3sda_forward.3} parent=11 // pred_fallthru
          _
        // Predicated region
        $region53: #{swin_m3sda_forward.3} parent=11 // pred_check
          %p869 = pneg %p336
        $region54: #{swin_m3sda_forward.3} parent=11 // pred_check_branch
          %871 = sbr.rel (%p869) target = $region56
        $region55: #{swin_m3sda_forward.3} parent=11 // pred_region
          _
        $region56: #{swin_m3sda_forward.3} parent=11 // pred_fallthru
          _
        // Predicated region
        $region57: #{swin_m3sda_forward.3} parent=11 // pred_check
          %p872 = pneg %p357
        $region58: #{swin_m3sda_forward.3} parent=11 // pred_check_branch
          %874 = sbr.rel (%p872) target = $region60
        $region59: #{swin_m3sda_forward.3} parent=11 // pred_region
          _
        $region60: #{swin_m3sda_forward.3} parent=11 // pred_fallthru
          _
        // Predicated region
        $region61: #{swin_m3sda_forward.3} parent=11 // pred_check
          %p875 = pneg %p378
        $region62: #{swin_m3sda_forward.3} parent=11 // pred_check_branch
          %877 = sbr.rel (%p875) target = $region64
        $region63: #{swin_m3sda_forward.3} parent=11 // pred_region
          _
        $region64: #{swin_m3sda_forward.3} parent=11 // pred_fallthru
          _
        // Predicated region
        $region65: #{swin_m3sda_forward.3} parent=11 // pred_check
          %p878 = pneg %p399
        $region66: #{swin_m3sda_forward.3} parent=11 // pred_check_branch
          %880 = sbr.rel (%p878) target = $region68
        $region67: #{swin_m3sda_forward.3} parent=11 // pred_region
          _
        $region68: #{swin_m3sda_forward.3} parent=11 // pred_fallthru
          _
        // Predicated region
        $region69: #{swin_m3sda_forward.3} parent=11 // pred_check
          %p881 = pneg %p420
        $region70: #{swin_m3sda_forward.3} parent=11 // pred_check_branch
          %883 = sbr.rel (%p881) target = $region72
        $region71: #{swin_m3sda_forward.3} parent=11 // pred_region
          _
        $region72: #{swin_m3sda_forward.3} parent=11 // pred_fallthru
          _
        // Predicated region
        $region73: #{swin_m3sda_forward.3} parent=11 // pred_check
          %p884 = pneg %p441
        $region74: #{swin_m3sda_forward.3} parent=11 // pred_check_branch
          %886 = sbr.rel (%p884) target = $region76
        $region75: #{swin_m3sda_forward.3} parent=11 // pred_region
          _
        $region76: #{swin_m3sda_forward.3} parent=11 // pred_fallthru
          _
        // Predicated region
        $region77: #{swin_m3sda_forward.3} parent=11 // pred_check
          %p887 = pneg %p462
        $region78: #{swin_m3sda_forward.3} parent=11 // pred_check_branch
          %889 = sbr.rel (%p887) target = $region80
        $region79: #{swin_m3sda_forward.3} parent=11 // pred_region
          _
        $region80: #{swin_m3sda_forward.3} parent=11 // pred_fallthru
          _
        // Predicated region
        $region81: #{swin_m3sda_forward.3} parent=11 // pred_check
          %p890 = pneg %p483
        $region82: #{swin_m3sda_forward.3} parent=11 // pred_check_branch
          %892 = sbr.rel (%p890) target = $region84
        $region83: #{swin_m3sda_forward.3} parent=11 // pred_region
          _
        $region84: #{swin_m3sda_forward.3} parent=11 // pred_fallthru
          _
        // Predicated region
        $region85: #{swin_m3sda_forward.3} parent=11 // pred_check
          %p893 = pneg %p504
        $region86: #{swin_m3sda_forward.3} parent=11 // pred_check_branch
          %895 = sbr.rel (%p893) target = $region88
        $region87: #{swin_m3sda_forward.3} parent=11 // pred_region
          _
        $region88: #{swin_m3sda_forward.3} parent=11 // pred_fallthru
          _
        // Predicated region
        $region89: #{swin_m3sda_forward.3} parent=11 // pred_check
          %p896 = pneg %p525
        $region90: #{swin_m3sda_forward.3} parent=11 // pred_check_branch
          %898 = sbr.rel (%p896) target = $region92
        $region91: #{swin_m3sda_forward.3} parent=11 // pred_region
          _
        $region92: #{swin_m3sda_forward.3} parent=11 // pred_fallthru
          _
        // Predicated region
        $region93: #{swin_m3sda_forward.3} parent=11 // pred_check
          %p899 = pneg %p546
        $region94: #{swin_m3sda_forward.3} parent=11 // pred_check_branch
          %901 = sbr.rel (%p899) target = $region96
        $region95: #{swin_m3sda_forward.3} parent=11 // pred_region
          _
        $region96: #{swin_m3sda_forward.3} parent=11 // pred_fallthru
          _
        // Predicated region
        $region97: #{swin_m3sda_forward.3} parent=11 // pred_check
          %p902 = pneg %p567
        $region98: #{swin_m3sda_forward.3} parent=11 // pred_check_branch
          %904 = sbr.rel (%p902) target = $region100
        $region99: #{swin_m3sda_forward.3} parent=11 // pred_region
          %906 = vsyncadd [#allocation3], 0
          %s908 = sshll.u32 %s45, 4
          %s909 = int_to_ptr.hbm [resolvable:$true] %s908
          %s910 = sshll.u32 [#allocation2], 4
          %s911 = int_to_ptr.vmem [resolvable:$true] %s910
          %913 = dma.hbm_to_vmem [thread:$0]  %s909, 16, %s911, [#allocation3]
        $region100: #{swin_m3sda_forward.3} parent=11 // pred_fallthru
          _
        // Predicated region
        $region101: #{swin_m3sda_forward.3} parent=11 // pred_check
          %p914 = pneg %p588
        $region102: #{swin_m3sda_forward.3} parent=11 // pred_check_branch
          %916 = sbr.rel (%p914) target = $region104
        $region103: #{swin_m3sda_forward.3} parent=11 // pred_region
          _
        $region104: #{swin_m3sda_forward.3} parent=11 // pred_fallthru
          _
        // Predicated region
        $region105: #{swin_m3sda_forward.3} parent=11 // pred_check
          %p917 = pneg %p609
        $region106: #{swin_m3sda_forward.3} parent=11 // pred_check_branch
          %919 = sbr.rel (%p917) target = $region108
        $region107: #{swin_m3sda_forward.3} parent=11 // pred_region
          %921 = vsyncadd [#allocation5], 0
          %s923 = sshll.u32 %s49, 4
          %s924 = int_to_ptr.hbm [resolvable:$true] %s923
          %s925 = sshll.u32 [#allocation4], 4
          %s926 = int_to_ptr.vmem [resolvable:$true] %s925
          %928 = dma.hbm_to_vmem [thread:$0]  %s924, 16, %s926, [#allocation5]
        $region108: #{swin_m3sda_forward.3} parent=11 // pred_fallthru
          _
        // Predicated region
        $region109: #{swin_m3sda_forward.3} parent=11 // pred_check
          %p929 = pneg %p630
        $region110: #{swin_m3sda_forward.3} parent=11 // pred_check_branch
          %931 = sbr.rel (%p929) target = $region112
        $region111: #{swin_m3sda_forward.3} parent=11 // pred_region
          _
        $region112: #{swin_m3sda_forward.3} parent=11 // pred_fallthru
          _
        // Predicated region
        $region113: #{swin_m3sda_forward.3} parent=11 // pred_check
          %p932 = pneg %p651
        $region114: #{swin_m3sda_forward.3} parent=11 // pred_check_branch
          %934 = sbr.rel (%p932) target = $region116
        $region115: #{swin_m3sda_forward.3} parent=11 // pred_region
          _
        $region116: #{swin_m3sda_forward.3} parent=11 // pred_fallthru
          _
        // Predicated region
        $region117: #{swin_m3sda_forward.3} parent=11 // pred_check
          %p935 = pneg %p672
        $region118: #{swin_m3sda_forward.3} parent=11 // pred_check_branch
          %937 = sbr.rel (%p935) target = $region120
        $region119: #{swin_m3sda_forward.3} parent=11 // pred_region
          %939 = vsyncadd [#allocation5], 0
          %s941 = sshll.u32 %s55, 4
          %s942 = int_to_ptr.hbm [resolvable:$true] %s941
          %s943 = sshll.u32 [#allocation6], 4
          %s944 = int_to_ptr.vmem [resolvable:$true] %s943
          %946 = dma.hbm_to_vmem [thread:$0]  %s942, 16, %s944, [#allocation5]
        $region120: #{swin_m3sda_forward.3} parent=11 // pred_fallthru
          _
        // Predicated region
        $region121: #{swin_m3sda_forward.3} parent=11 // pred_check
          %p947 = pneg %p693
        $region122: #{swin_m3sda_forward.3} parent=11 // pred_check_branch
          %949 = sbr.rel (%p947) target = $region124
        $region123: #{swin_m3sda_forward.3} parent=11 // pred_region
          %951 = vsyncadd [#allocation8], 0
          %s953 = sshll.u32 %s57, 4
          %s954 = int_to_ptr.hbm [resolvable:$true] %s953
          %s955 = sshll.u32 [#allocation7], 4
          %s956 = int_to_ptr.vmem [resolvable:$true] %s955
          %958 = dma.hbm_to_vmem [thread:$0]  %s954, 16, %s956, [#allocation8]
        $region124: #{swin_m3sda_forward.3} parent=11 // pred_fallthru
          _
        // Predicated region
        $region125: #{swin_m3sda_forward.3} parent=11 // pred_check
          %p959 = pneg %p714
        $region126: #{swin_m3sda_forward.3} parent=11 // pred_check_branch
          %961 = sbr.rel (%p959) target = $region128
        $region127: #{swin_m3sda_forward.3} parent=11 // pred_region
          %963 = vsyncadd [#allocation8], 0
          %s965 = sshll.u32 %s59, 4
          %s966 = int_to_ptr.hbm [resolvable:$true] %s965
          %s967 = sshll.u32 [#allocation9], 4
          %s968 = int_to_ptr.vmem [resolvable:$true] %s967
          %970 = dma.hbm_to_vmem [thread:$0]  %s966, 16, %s968, [#allocation8]
        $region128: #{swin_m3sda_forward.3} parent=11 // pred_fallthru
          _
        // Predicated region
        $region129: #{swin_m3sda_forward.3} parent=11 // pred_check
          %p971 = pneg %p735
        $region130: #{swin_m3sda_forward.3} parent=11 // pred_check_branch
          %973 = sbr.rel (%p971) target = $region132
        $region131: #{swin_m3sda_forward.3} parent=11 // pred_region
          _
        $region132: #{swin_m3sda_forward.3} parent=11 // pred_fallthru
          _
        // Predicated region
        $region133: #{swin_m3sda_forward.3} parent=11 // pred_check
          %p974 = pneg %p756
        $region134: #{swin_m3sda_forward.3} parent=11 // pred_check_branch
          %976 = sbr.rel (%p974) target = $region136
        $region135: #{swin_m3sda_forward.3} parent=11 // pred_region
          %978 = vsyncadd [#allocation11], 0
          %s980 = sshll.u32 %s63, 4
          %s981 = int_to_ptr.hbm [resolvable:$true] %s980
          %s982 = sshll.u32 [#allocation10], 4
          %s983 = int_to_ptr.vmem [resolvable:$true] %s982
          %985 = dma.hbm_to_vmem [thread:$0]  %s981, 16, %s983, [#allocation11]
        $region136: #{swin_m3sda_forward.3} parent=11 // pred_fallthru
          _
        // Predicated region
        $region137: #{swin_m3sda_forward.3} parent=11 // pred_check
          %p986 = pneg %p777
        $region138: #{swin_m3sda_forward.3} parent=11 // pred_check_branch
          %988 = sbr.rel (%p986) target = $region140
        $region139: #{swin_m3sda_forward.3} parent=11 // pred_region
          _
        $region140: #{swin_m3sda_forward.3} parent=11 // pred_fallthru
          _
        // Predicated region
        $region141: #{swin_m3sda_forward.3} parent=11 // pred_check
          %p989 = pneg %p798
        $region142: #{swin_m3sda_forward.3} parent=11 // pred_check_branch
          %991 = sbr.rel (%p989) target = $region144
        $region143: #{swin_m3sda_forward.3} parent=11 // pred_region
          %993 = vsyncadd [#allocation11], 0
          %s995 = sshll.u32 %s67, 4
          %s996 = int_to_ptr.hbm [resolvable:$true] %s995
          %s997 = sshll.u32 [#allocation12], 4
          %s998 = int_to_ptr.vmem [resolvable:$true] %s997
          %1000 = dma.hbm_to_vmem [thread:$0]  %s996, 16, %s998, [#allocation11]
        $region144: #{swin_m3sda_forward.3} parent=11 // pred_fallthru
          _
      $region12: #{swin_m3sda_forward.3} parent=5 // pred_fallthru
        _
      %p1001 = scmp.lt.s32.totalorder %s79, 2
      // Predicated region
      $region145: #{swin_m3sda_forward.3} parent=5 // pred_check
        %p1002 = pneg %p1001
      $region146: #{swin_m3sda_forward.3} parent=5 // pred_check_branch
        %1004 = sbr.rel (%p1002) target = $region148
      $region147: #{swin_m3sda_forward.3} parent=5 // pred_region
        // Predicated region
        $region149: #{swin_m3sda_forward.3} parent=147 // pred_check
          %p1005 = pneg %p99
        $region150: #{swin_m3sda_forward.3} parent=147 // pred_check_branch
          %1007 = sbr.rel (%p1005) target = $region152
        $region151: #{swin_m3sda_forward.3} parent=147 // pred_region
          %p1008 = scmp.lt.s32.totalorder %s79, 1
          %s1009 = scalar_select %p1008, %s79, 1
          %s1010 = smul.addr %s1009, 8
          %s1011 = smul.addr %s1010, 4
          %s1012 = scalar_lea.vmem %s1, %s1011
        $region152: #{swin_m3sda_forward.3} parent=147 // pred_fallthru
          _
      $region148: #{swin_m3sda_forward.3} parent=5 // pred_fallthru
        _
      %p1013 = scmp.le.s32.totalorder 1, %s79
      %p1014 = scmp.lt.s32.totalorder %s79, 3
      %p1015 = pnand %p1013, %p1014
      %p1016 = pneg %p1015
      // Predicated region
      $region153: #{swin_m3sda_forward.3} parent=5 // pred_check
        _
      $region154: #{swin_m3sda_forward.3} parent=5 // pred_check_branch
        %1018 = sbr.rel (%p1015) target = $region156
      $region155: #{swin_m3sda_forward.3} parent=5 // pred_region
        %s1019 = ssub.s32 %s79, 1
        // Predicated region
        $region157: #{swin_m3sda_forward.3} parent=155 // pred_check
          %p1020 = pneg %p567
        $region158: #{swin_m3sda_forward.3} parent=155 // pred_check_branch
          %1022 = sbr.rel (%p1020) target = $region160
        $region159: #{swin_m3sda_forward.3} parent=155 // pred_region
          %1024 = dma.done [#allocation3], 16
        $region160: #{swin_m3sda_forward.3} parent=155 // pred_fallthru
          _
        // Predicated region
        $region161: #{swin_m3sda_forward.3} parent=155 // pred_check
          %p1025 = pneg %p609
        $region162: #{swin_m3sda_forward.3} parent=155 // pred_check_branch
          %1027 = sbr.rel (%p1025) target = $region164
        $region163: #{swin_m3sda_forward.3} parent=155 // pred_region
          %1029 = dma.done [#allocation5], 16
        $region164: #{swin_m3sda_forward.3} parent=155 // pred_fallthru
          _
        // Predicated region
        $region165: #{swin_m3sda_forward.3} parent=155 // pred_check
          %p1030 = pneg %p672
        $region166: #{swin_m3sda_forward.3} parent=155 // pred_check_branch
          %1032 = sbr.rel (%p1030) target = $region168
        $region167: #{swin_m3sda_forward.3} parent=155 // pred_region
          %1034 = dma.done [#allocation5], 16
        $region168: #{swin_m3sda_forward.3} parent=155 // pred_fallthru
          _
        // Predicated region
        $region169: #{swin_m3sda_forward.3} parent=155 // pred_check
          %p1035 = pneg %p693
        $region170: #{swin_m3sda_forward.3} parent=155 // pred_check_branch
          %1037 = sbr.rel (%p1035) target = $region172
        $region171: #{swin_m3sda_forward.3} parent=155 // pred_region
          %1039 = dma.done [#allocation8], 16
        $region172: #{swin_m3sda_forward.3} parent=155 // pred_fallthru
          _
        // Predicated region
        $region173: #{swin_m3sda_forward.3} parent=155 // pred_check
          %p1040 = pneg %p714
        $region174: #{swin_m3sda_forward.3} parent=155 // pred_check_branch
          %1042 = sbr.rel (%p1040) target = $region176
        $region175: #{swin_m3sda_forward.3} parent=155 // pred_region
          %1044 = dma.done [#allocation8], 16
        $region176: #{swin_m3sda_forward.3} parent=155 // pred_fallthru
          _
        // Predicated region
        $region177: #{swin_m3sda_forward.3} parent=155 // pred_check
          %p1045 = pneg %p756
        $region178: #{swin_m3sda_forward.3} parent=155 // pred_check_branch
          %1047 = sbr.rel (%p1045) target = $region180
        $region179: #{swin_m3sda_forward.3} parent=155 // pred_region
          %1049 = dma.done [#allocation11], 16
        $region180: #{swin_m3sda_forward.3} parent=155 // pred_fallthru
          _
        // Predicated region
        $region181: #{swin_m3sda_forward.3} parent=155 // pred_check
          %p1050 = pneg %p798
        $region182: #{swin_m3sda_forward.3} parent=155 // pred_check_branch
          %1052 = sbr.rel (%p1050) target = $region184
        $region183: #{swin_m3sda_forward.3} parent=155 // pred_region
          %1054 = dma.done [#allocation11], 16
        $region184: #{swin_m3sda_forward.3} parent=155 // pred_fallthru
          _
        %p1055 = scmp.lt.s32.totalorder %s84, 1
        %s1056 = scalar_select %p1055, %s84, 1
        %s1057 = smul.addr %s1056, 8
        %s1058 = smul.addr %s1057, 4
        %s1059 = scalar_lea.vmem %s1, %s1058
        %p1060 = pneg %p105
        %p1061 = pneg %p102
        %p1062 = pneg %p126
        %p1063 = pneg %p123
        %p1064 = pneg %p147
        %p1065 = pneg %p144
        %p1066 = pneg %p168
        %p1067 = pneg %p165
        %p1068 = pneg %p189
        %p1069 = pneg %p186
        %p1070 = pneg %p210
        %p1071 = pneg %p207
        %p1072 = pneg %p231
        %p1073 = pneg %p228
        %p1074 = pneg %p252
        %p1075 = pneg %p249
        %p1076 = pneg %p273
        %p1077 = pneg %p270
        %p1078 = pneg %p294
        %p1079 = pneg %p291
        %p1080 = pneg %p315
        %p1081 = pneg %p312
        %p1082 = pneg %p336
        %p1083 = pneg %p333
        %p1084 = pneg %p357
        %p1085 = pneg %p354
        %p1086 = pneg %p378
        %p1087 = pneg %p375
        %p1088 = pneg %p399
        %p1089 = pneg %p396
        %p1090 = pneg %p420
        %p1091 = pneg %p417
        %p1092 = pneg %p441
        %p1093 = pneg %p438
        %p1094 = pneg %p462
        %p1095 = pneg %p459
        %p1096 = pneg %p483
        %p1097 = pneg %p480
        %p1098 = pneg %p504
        %p1099 = pneg %p501
        %p1100 = pneg %p525
        %p1101 = pneg %p522
        %p1102 = pneg %p546
        %p1103 = pneg %p543
        %p1104 = pneg %p567
        %p1105 = pneg %p564
        %p1106 = pneg %p588
        %p1107 = pneg %p585
        %p1108 = pneg %p609
        %p1109 = pneg %p606
        %p1110 = pneg %p630
        %p1111 = pneg %p627
        %p1112 = pneg %p651
        %p1113 = pneg %p648
        %p1114 = pneg %p672
        %p1115 = pneg %p669
        %p1116 = pneg %p693
        %p1117 = pneg %p690
        %p1118 = pneg %p714
        %p1119 = pneg %p711
        %p1120 = pneg %p735
        %p1121 = pneg %p732
        %p1122 = pneg %p756
        %p1123 = pneg %p753
        %p1124 = pneg %p777
        %p1125 = pneg %p774
        %p1126 = pneg %p798
        %p1127 = pneg %p795
        %p1128 = pneg %p824
        %p1129 = pneg %p821
        %p1130 = scmp.lt.s32.totalorder %s84, 1
        %s1131 = scalar_select %p1130, %s84, 1
        %s1132 = smul.addr %s1131, 8
        %s1133 = smul.addr %s1132, 4
        %s1134 = scalar_lea.vmem %s69, %s1133
        %p1135 = scmp.lt.s32.totalorder %s84, 1
        %s1136 = scalar_select %p1135, %s84, 1
        %s1137 = smul.addr %s1136, 8
        %s1138 = smul.addr %s1137, 4
        %s1139 = scalar_lea.vmem %s1, %s1138
        %p1140 = scmp.lt.s32.totalorder %s84, 1
        %s1141 = scalar_select %p1140, %s84, 1
        %s1142 = smul.addr %s1141, 8
        %s1143 = smul.addr %s1142, 4
        %s1144 = scalar_lea.vmem %s69, %s1143
        %v1146 = vld [vmem:[%s1139] sm:$0xf]
        %v1147 = vld [vmem:[%s1139 + $0x4] sm:$0xf]
        %v1148 = vld [vmem:[%s1139 + $0x8] sm:$0xf]
        %v1149 = vld [vmem:[%s1139 + $0xc] sm:$0xf]
        %v1150 = vld [vmem:[%s1139 + $0x10] sm:$0xf]
        %v1151 = vld [vmem:[%s1139 + $0x14] sm:$0xf]
        %v1152 = vld [vmem:[%s1139 + $0x18] sm:$0xf]
        %v1153 = vld [vmem:[%s1139 + $0x1c] sm:$0xf]
        %v1154 = vld [vmem:[%s3] sm:$0xf]
        %v1155 = vld [vmem:[%s3 + $0x4] sm:$0xf]
        %v1156 = vld [vmem:[%s3 + $0x8] sm:$0xf]
        %v1157 = vld [vmem:[%s3 + $0xc] sm:$0xf]
        %v1158 = vld [vmem:[%s3 + $0x10] sm:$0xf]
        %v1159 = vld [vmem:[%s3 + $0x14] sm:$0xf]
        %v1160 = vld [vmem:[%s5] sm:$0x1]
        %v1162 = vperm.slane %v1160, 0
        %v1172 = vunpack.c.l.b16 %v1146
        %v1173 = vunpack.c.l.b16 %v1147
        %v1174 = vunpack.c.l.b16 %v1148
        %v1175 = vunpack.c.l.b16 %v1149
        %v1176 = vunpack.c.l.b16 %v1150
        %v1177 = vunpack.c.l.b16 %v1151
        %v1178 = vunpack.c.l.b16 %v1152
        %v1179 = vunpack.c.l.b16 %v1153
        %v1180 = vpack.c.b16 %v1173, %v1172
        %v1181 = vpack.c.b16 %v1175, %v1174
        %v1182 = vpack.c.b16 %v1177, %v1176
        %v1183 = vpack.c.b16 %v1179, %v1178
        %v1190 = vunpack.c.l.b16 %v1154
        %v1191 = vunpack.c.l.b16 %v1155
        %v1192 = vunpack.c.l.b16 %v1156
        %v1193 = vunpack.c.l.b16 %v1157
        %v1194 = vunpack.c.l.b16 %v1158
        %v1195 = vunpack.c.l.b16 %v1159
        %v1196 = vpack.c.b16 %v1191, %v1190
        %v1197 = vpack.c.b16 %v1193, %v1192
        %v1198 = vpack.c.b16 %v1195, %v1194
        %vm1202 = vcmask 392192
        %v1204 = vsel %vm1202, %v1180, 0
        %v1207 = vsel %vm1202, %v1181, 0
        %v1210 = vsel %vm1202, %v1182, 0
        %v1213 = vsel %vm1202, %v1183, 0
        %1215 = vmatpush.bf16.msra.mxu0 0
        %1216 = vmatpush.bf16.msra.mxu0 0
        %1217 = vmatpush.bf16.msra.mxu0 0
        %1218 = vmatpush.bf16.msra.mxu0 0
        %1219 = vmatpush.bf16.msra.mxu0 0
        %1220 = vmatpush.bf16.msra.mxu0 %v1198
        %1221 = vmatpush.bf16.msra.mxu0 %v1197
        %1222 = vmatpush.bf16.msra.mxu0 %v1196
        %1223 = vmatmul.bf16.gmra.mxu0 %v1204
        %v1224 = vpop.f32.mrf.mxu0
        %v1225 = vadd.f32 %v1162, %v1224
        %v1226 = vpop.f32.mrf.mxu0
        %v1227 = vadd.f32 %v1162, %v1226
        %1228 = vmatmul.bf16.gmra.mxu0 %v1207
        %v1229 = vpop.f32.mrf.mxu0
        %v1230 = vadd.f32 %v1162, %v1229
        %v1231 = vpop.f32.mrf.mxu0
        %v1232 = vadd.f32 %v1162, %v1231
        %1233 = vmatmul.bf16.gmra.mxu0 %v1210
        %v1234 = vpop.f32.mrf.mxu0
        %v1235 = vadd.f32 %v1162, %v1234
        %v1236 = vpop.f32.mrf.mxu0
        %v1237 = vadd.f32 %v1162, %v1236
        %1238 = vmatmul.bf16.gmra.mxu0 %v1213
        %v1239 = vpop.f32.mrf.mxu0
        %v1240 = vadd.f32 %v1162, %v1239
        %v1241 = vpop.f32.mrf.mxu0
        %v1242 = vadd.f32 %v1162, %v1241
        %1243 = vdwg.mxu0
        %v1244 = vld [vmem:[%s7] sm:$0x1]
        %v1245 = vld [vmem:[%s9] sm:$0x1]
        %vm1246 = vcmask 261120
        %v1247 = vsel %vm1246, %v1225, 0.0
        %1248 = vadd.xlane.f32.xlu0 %v1247
        %v1249 = vpop.xlane.xlu0 %1248
        %v1250 = vsel %vm1246, %v1227, 0.0
        %1251 = vadd.xlane.f32.xlu0 %v1250
        %v1252 = vpop.xlane.xlu0 %1251
        %v1253 = vsel %vm1246, %v1230, 0.0
        %1254 = vadd.xlane.f32.xlu0 %v1253
        %v1255 = vpop.xlane.xlu0 %1254
        %v1256 = vsel %vm1246, %v1232, 0.0
        %1257 = vadd.xlane.f32.xlu0 %v1256
        %v1258 = vpop.xlane.xlu0 %1257
        %v1259 = vsel %vm1246, %v1235, 0.0
        %1260 = vadd.xlane.f32.xlu0 %v1259
        %v1261 = vpop.xlane.xlu0 %1260
        %v1262 = vsel %vm1246, %v1237, 0.0
        %1263 = vadd.xlane.f32.xlu0 %v1262
        %v1264 = vpop.xlane.xlu0 %1263
        %v1265 = vsel %vm1246, %v1240, 0.0
        %1266 = vadd.xlane.f32.xlu0 %v1265
        %v1267 = vpop.xlane.xlu0 %1266
        %v1268 = vsel %vm1246, %v1242, 0.0
        %1269 = vadd.xlane.f32.xlu0 %v1268
        %v1270 = vpop.xlane.xlu0 %1269
        %v1271 = vrcp.pop 32.0
        %v1272 = vmul.f32 32.0, %v1271
        %v1273 = vsub.f32 1.0, %v1272
        %v1274 = vmul.f32 %v1271, %v1273
        %v1275 = vadd.f32 %v1271, %v1274
        %vm1276 = vweird.f32 %v1271
        %v1277 = vsel %vm1276, %v1271, %v1275
        %v1278 = vmul.f32 %v1249, %v1277
        %v1279 = vmul.f32 %v1252, %v1277
        %v1280 = vmul.f32 %v1255, %v1277
        %v1281 = vmul.f32 %v1258, %v1277
        %v1282 = vmul.f32 %v1261, %v1277
        %v1283 = vmul.f32 %v1264, %v1277
        %v1284 = vmul.f32 %v1267, %v1277
        %v1285 = vmul.f32 %v1270, %v1277
        %v1286 = vsub.f32 %v1225, %v1278
        %v1287 = vsub.f32 %v1227, %v1279
        %v1288 = vsub.f32 %v1230, %v1280
        %v1289 = vsub.f32 %v1232, %v1281
        %v1290 = vsub.f32 %v1235, %v1282
        %v1291 = vsub.f32 %v1237, %v1283
        %v1292 = vsub.f32 %v1240, %v1284
        %v1293 = vsub.f32 %v1242, %v1285
        %v1294 = vmul.f32 %v1286, %v1286
        %v1295 = vmul.f32 %v1287, %v1287
        %v1296 = vmul.f32 %v1288, %v1288
        %v1297 = vmul.f32 %v1289, %v1289
        %v1298 = vmul.f32 %v1290, %v1290
        %v1299 = vmul.f32 %v1291, %v1291
        %v1300 = vmul.f32 %v1292, %v1292
        %v1301 = vmul.f32 %v1293, %v1293
        %v1302 = vsel %vm1246, %v1294, 0.0
        %1303 = vadd.xlane.f32.xlu0 %v1302
        %v1304 = vpop.xlane.xlu0 %1303
        %v1305 = vsel %vm1246, %v1295, 0.0
        %1306 = vadd.xlane.f32.xlu0 %v1305
        %v1307 = vpop.xlane.xlu0 %1306
        %v1308 = vsel %vm1246, %v1296, 0.0
        %1309 = vadd.xlane.f32.xlu0 %v1308
        %v1310 = vpop.xlane.xlu0 %1309
        %v1311 = vsel %vm1246, %v1297, 0.0
        %1312 = vadd.xlane.f32.xlu0 %v1311
        %v1313 = vpop.xlane.xlu0 %1312
        %v1314 = vsel %vm1246, %v1298, 0.0
        %1315 = vadd.xlane.f32.xlu0 %v1314
        %v1316 = vpop.xlane.xlu0 %1315
        %v1317 = vsel %vm1246, %v1299, 0.0
        %1318 = vadd.xlane.f32.xlu0 %v1317
        %v1319 = vpop.xlane.xlu0 %1318
        %v1320 = vsel %vm1246, %v1300, 0.0
        %1321 = vadd.xlane.f32.xlu0 %v1320
        %v1322 = vpop.xlane.xlu0 %1321
        %v1323 = vsel %vm1246, %v1301, 0.0
        %1324 = vadd.xlane.f32.xlu0 %v1323
        %v1325 = vpop.xlane.xlu0 %1324
        %v1326 = vmul.f32 %v1304, %v1277
        %v1327 = vmul.f32 %v1307, %v1277
        %v1328 = vmul.f32 %v1310, %v1277
        %v1329 = vmul.f32 %v1313, %v1277
        %v1330 = vmul.f32 %v1316, %v1277
        %v1331 = vmul.f32 %v1319, %v1277
        %v1332 = vmul.f32 %v1322, %v1277
        %v1333 = vmul.f32 %v1325, %v1277
        %v1334 = vadd.f32 %v1326, 1e-05
        %v1335 = vadd.f32 %v1327, 1e-05
        %v1336 = vadd.f32 %v1328, 1e-05
        %v1337 = vadd.f32 %v1329, 1e-05
        %v1338 = vadd.f32 %v1330, 1e-05
        %v1339 = vadd.f32 %v1331, 1e-05
        %v1340 = vadd.f32 %v1332, 1e-05
        %v1341 = vadd.f32 %v1333, 1e-05
        %v1342 = vrsqrt.pop %v1334
        %v1343 = vmul.f32 %v1342, %v1334
        %v1344 = vmul.f32 %v1343, %v1342
        %v1345 = vmul.f32 0.5, %v1344
        %v1346 = vsub.f32 1.5, %v1345
        %v1347 = vmul.f32 %v1342, %v1346
        %vm1348 = vweird.f32 %v1334
        %vm1349 = vweird.f32 %v1342
        %vm1350 = vmor %vm1348, %vm1349
        %v1351 = vsel %vm1350, %v1342, %v1347
        %v1352 = vrsqrt.pop %v1335
        %v1353 = vmul.f32 %v1352, %v1335
        %v1354 = vmul.f32 %v1353, %v1352
        %v1355 = vmul.f32 0.5, %v1354
        %v1356 = vsub.f32 1.5, %v1355
        %v1357 = vmul.f32 %v1352, %v1356
        %vm1358 = vweird.f32 %v1335
        %vm1359 = vweird.f32 %v1352
        %vm1360 = vmor %vm1358, %vm1359
        %v1361 = vsel %vm1360, %v1352, %v1357
        %v1362 = vrsqrt.pop %v1336
        %v1363 = vmul.f32 %v1362, %v1336
        %v1364 = vmul.f32 %v1363, %v1362
        %v1365 = vmul.f32 0.5, %v1364
        %v1366 = vsub.f32 1.5, %v1365
        %v1367 = vmul.f32 %v1362, %v1366
        %vm1368 = vweird.f32 %v1336
        %vm1369 = vweird.f32 %v1362
        %vm1370 = vmor %vm1368, %vm1369
        %v1371 = vsel %vm1370, %v1362, %v1367
        %v1372 = vrsqrt.pop %v1337
        %v1373 = vmul.f32 %v1372, %v1337
        %v1374 = vmul.f32 %v1373, %v1372
        %v1375 = vmul.f32 0.5, %v1374
        %v1376 = vsub.f32 1.5, %v1375
        %v1377 = vmul.f32 %v1372, %v1376
        %vm1378 = vweird.f32 %v1337
        %vm1379 = vweird.f32 %v1372
        %vm1380 = vmor %vm1378, %vm1379
        %v1381 = vsel %vm1380, %v1372, %v1377
        %v1382 = vrsqrt.pop %v1338
        %v1383 = vmul.f32 %v1382, %v1338
        %v1384 = vmul.f32 %v1383, %v1382
        %v1385 = vmul.f32 0.5, %v1384
        %v1386 = vsub.f32 1.5, %v1385
        %v1387 = vmul.f32 %v1382, %v1386
        %vm1388 = vweird.f32 %v1338
        %vm1389 = vweird.f32 %v1382
        %vm1390 = vmor %vm1388, %vm1389
        %v1391 = vsel %vm1390, %v1382, %v1387
        %v1392 = vrsqrt.pop %v1339
        %v1393 = vmul.f32 %v1392, %v1339
        %v1394 = vmul.f32 %v1393, %v1392
        %v1395 = vmul.f32 0.5, %v1394
        %v1396 = vsub.f32 1.5, %v1395
        %v1397 = vmul.f32 %v1392, %v1396
        %vm1398 = vweird.f32 %v1339
        %vm1399 = vweird.f32 %v1392
        %vm1400 = vmor %vm1398, %vm1399
        %v1401 = vsel %vm1400, %v1392, %v1397
        %v1402 = vrsqrt.pop %v1340
        %v1403 = vmul.f32 %v1402, %v1340
        %v1404 = vmul.f32 %v1403, %v1402
        %v1405 = vmul.f32 0.5, %v1404
        %v1406 = vsub.f32 1.5, %v1405
        %v1407 = vmul.f32 %v1402, %v1406
        %vm1408 = vweird.f32 %v1340
        %vm1409 = vweird.f32 %v1402
        %vm1410 = vmor %vm1408, %vm1409
        %v1411 = vsel %vm1410, %v1402, %v1407
        %v1412 = vrsqrt.pop %v1341
        %v1413 = vmul.f32 %v1412, %v1341
        %v1414 = vmul.f32 %v1413, %v1412
        %v1415 = vmul.f32 0.5, %v1414
        %v1416 = vsub.f32 1.5, %v1415
        %v1417 = vmul.f32 %v1412, %v1416
        %vm1418 = vweird.f32 %v1341
        %vm1419 = vweird.f32 %v1412
        %vm1420 = vmor %vm1418, %vm1419
        %v1421 = vsel %vm1420, %v1412, %v1417
        %v1422 = vmul.f32 %v1286, %v1351
        %v1423 = vmul.f32 %v1287, %v1361
        %v1424 = vmul.f32 %v1288, %v1371
        %v1425 = vmul.f32 %v1289, %v1381
        %v1426 = vmul.f32 %v1290, %v1391
        %v1427 = vmul.f32 %v1291, %v1401
        %v1428 = vmul.f32 %v1292, %v1411
        %v1429 = vmul.f32 %v1293, %v1421
        %v1431 = vperm.slane %v1244, 0
        %v1433 = vmul.f32 %v1422, %v1431
        %v1434 = vmul.f32 %v1423, %v1431
        %v1435 = vmul.f32 %v1424, %v1431
        %v1436 = vmul.f32 %v1425, %v1431
        %v1437 = vmul.f32 %v1426, %v1431
        %v1438 = vmul.f32 %v1427, %v1431
        %v1439 = vmul.f32 %v1428, %v1431
        %v1440 = vmul.f32 %v1429, %v1431
        %v1442 = vperm.slane %v1245, 0
        %v1444 = vadd.f32 %v1433, %v1442
        %v1445 = vadd.f32 %v1434, %v1442
        %v1446 = vadd.f32 %v1435, %v1442
        %v1447 = vadd.f32 %v1436, %v1442
        %v1448 = vadd.f32 %v1437, %v1442
        %v1449 = vadd.f32 %v1438, %v1442
        %v1450 = vadd.f32 %v1439, %v1442
        %v1451 = vadd.f32 %v1440, %v1442
        %v1452 = vld [vmem:[%s11] sm:$0xff]
        %v1453 = vld [vmem:[%s11 + $0x8] sm:$0xff]
        %v1454 = vld [vmem:[%s11 + $0x10] sm:$0xff]
        %v1455 = vld [vmem:[%s11 + $0x18] sm:$0xff]
        %v1456 = vld [vmem:[%s11 + $0x20] sm:$0xff]
        %v1457 = vld [vmem:[%s11 + $0x28] sm:$0xff]
        %v1458 = vld [vmem:[%s11 + $0x30] sm:$0xff]
        %v1459 = vld [vmem:[%s11 + $0x38] sm:$0xff]
        %vm1460 = vcmask 523264
        %v1462 = vsel %vm1460, %v1452, 0
        %v1465 = vsel %vm1460, %v1453, 0
        %v1468 = vsel %vm1460, %v1454, 0
        %v1471 = vsel %vm1460, %v1455, 0
        %v1474 = vsel %vm1460, %v1456, 0
        %v1477 = vsel %vm1460, %v1457, 0
        %v1480 = vsel %vm1460, %v1458, 0
        %v1483 = vsel %vm1460, %v1459, 0
        %1485 = vmatpush.msra.mxu0 0.0
        %1486 = vmatpush.msra.mxu0 0.0
        %1487 = vmatpush.msra.mxu0 0.0
        %1488 = vmatpush.msra.mxu0 0.0
        %1489 = vmatpush.msra.mxu0 0.0
        %1490 = vmatpush.msra.mxu0 0.0
        %1491 = vmatpush.msra.mxu0 0.0
        %1492 = vmatpush.msra.mxu0 0.0
        %1493 = vmatpush.msra.mxu0 %v1451
        %1494 = vmatpush.msra.mxu0 %v1450
        %1495 = vmatpush.msra.mxu0 %v1449
        %1496 = vmatpush.msra.mxu0 %v1448
        %1497 = vmatpush.msra.mxu0 %v1447
        %1498 = vmatpush.msra.mxu0 %v1446
        %1499 = vmatpush.msra.mxu0 %v1445
        %1500 = vmatpush.msra.mxu0 %v1444
        %1501 = vmatmul.f32.gmra.mxu0 %v1462
        %v1502 = vpop.f32.mrf.mxu0
        %v1503 = vadd.f32 0.0, %v1502
        %1504 = vmatmul.f32.gmra.mxu0 %v1465
        %v1505 = vpop.f32.mrf.mxu0
        %v1506 = vadd.f32 0.0, %v1505
        %1507 = vmatmul.f32.gmra.mxu0 %v1468
        %v1508 = vpop.f32.mrf.mxu0
        %v1509 = vadd.f32 0.0, %v1508
        %1510 = vmatmul.f32.gmra.mxu0 %v1471
        %v1511 = vpop.f32.mrf.mxu0
        %v1512 = vadd.f32 0.0, %v1511
        %1513 = vmatmul.f32.gmra.mxu0 %v1474
        %v1514 = vpop.f32.mrf.mxu0
        %v1515 = vadd.f32 0.0, %v1514
        %1516 = vmatmul.f32.gmra.mxu0 %v1477
        %v1517 = vpop.f32.mrf.mxu0
        %v1518 = vadd.f32 0.0, %v1517
        %1519 = vmatmul.f32.gmra.mxu0 %v1480
        %v1520 = vpop.f32.mrf.mxu0
        %v1521 = vadd.f32 0.0, %v1520
        %1522 = vmatmul.f32.gmra.mxu0 %v1483
        %v1523 = vpop.f32.mrf.mxu0
        %v1524 = vadd.f32 0.0, %v1523
        %1525 = vdwg.mxu0
        %v1526 = vld [vmem:[%s17] sm:$0x1]
        %v1527 = vld [vmem:[%s19] sm:$0x1]
        %v1528 = vsel %vm1246, %v1503, 0.0
        %1529 = vadd.xlane.f32.xlu0 %v1528
        %v1530 = vpop.xlane.xlu0 %1529
        %v1531 = vsel %vm1246, %v1506, 0.0
        %1532 = vadd.xlane.f32.xlu0 %v1531
        %v1533 = vpop.xlane.xlu0 %1532
        %v1534 = vsel %vm1246, %v1509, 0.0
        %1535 = vadd.xlane.f32.xlu0 %v1534
        %v1536 = vpop.xlane.xlu0 %1535
        %v1537 = vsel %vm1246, %v1512, 0.0
        %1538 = vadd.xlane.f32.xlu0 %v1537
        %v1539 = vpop.xlane.xlu0 %1538
        %v1540 = vsel %vm1246, %v1515, 0.0
        %1541 = vadd.xlane.f32.xlu0 %v1540
        %v1542 = vpop.xlane.xlu0 %1541
        %v1543 = vsel %vm1246, %v1518, 0.0
        %1544 = vadd.xlane.f32.xlu0 %v1543
        %v1545 = vpop.xlane.xlu0 %1544
        %v1546 = vsel %vm1246, %v1521, 0.0
        %1547 = vadd.xlane.f32.xlu0 %v1546
        %v1548 = vpop.xlane.xlu0 %1547
        %v1549 = vsel %vm1246, %v1524, 0.0
        %1550 = vadd.xlane.f32.xlu0 %v1549
        %v1551 = vpop.xlane.xlu0 %1550
        %v1552 = vmul.f32 %v1530, %v1277
        %v1553 = vmul.f32 %v1533, %v1277
        %v1554 = vmul.f32 %v1536, %v1277
        %v1555 = vmul.f32 %v1539, %v1277
        %v1556 = vmul.f32 %v1542, %v1277
        %v1557 = vmul.f32 %v1545, %v1277
        %v1558 = vmul.f32 %v1548, %v1277
        %v1559 = vmul.f32 %v1551, %v1277
        %v1560 = vsub.f32 %v1503, %v1552
        %v1561 = vsub.f32 %v1506, %v1553
        %v1562 = vsub.f32 %v1509, %v1554
        %v1563 = vsub.f32 %v1512, %v1555
        %v1564 = vsub.f32 %v1515, %v1556
        %v1565 = vsub.f32 %v1518, %v1557
        %v1566 = vsub.f32 %v1521, %v1558
        %v1567 = vsub.f32 %v1524, %v1559
        %v1568 = vmul.f32 %v1560, %v1560
        %v1569 = vmul.f32 %v1561, %v1561
        %v1570 = vmul.f32 %v1562, %v1562
        %v1571 = vmul.f32 %v1563, %v1563
        %v1572 = vmul.f32 %v1564, %v1564
        %v1573 = vmul.f32 %v1565, %v1565
        %v1574 = vmul.f32 %v1566, %v1566
        %v1575 = vmul.f32 %v1567, %v1567
        %v1576 = vsel %vm1246, %v1568, 0.0
        %1577 = vadd.xlane.f32.xlu0 %v1576
        %v1578 = vpop.xlane.xlu0 %1577
        %v1579 = vsel %vm1246, %v1569, 0.0
        %1580 = vadd.xlane.f32.xlu0 %v1579
        %v1581 = vpop.xlane.xlu0 %1580
        %v1582 = vsel %vm1246, %v1570, 0.0
        %1583 = vadd.xlane.f32.xlu0 %v1582
        %v1584 = vpop.xlane.xlu0 %1583
        %v1585 = vsel %vm1246, %v1571, 0.0
        %1586 = vadd.xlane.f32.xlu0 %v1585
        %v1587 = vpop.xlane.xlu0 %1586
        %v1588 = vsel %vm1246, %v1572, 0.0
        %1589 = vadd.xlane.f32.xlu0 %v1588
        %v1590 = vpop.xlane.xlu0 %1589
        %v1591 = vsel %vm1246, %v1573, 0.0
        %1592 = vadd.xlane.f32.xlu0 %v1591
        %v1593 = vpop.xlane.xlu0 %1592
        %v1594 = vsel %vm1246, %v1574, 0.0
        %1595 = vadd.xlane.f32.xlu0 %v1594
        %v1596 = vpop.xlane.xlu0 %1595
        %v1597 = vsel %vm1246, %v1575, 0.0
        %1598 = vadd.xlane.f32.xlu0 %v1597
        %v1599 = vpop.xlane.xlu0 %1598
        %v1600 = vmul.f32 %v1578, %v1277
        %v1601 = vmul.f32 %v1581, %v1277
        %v1602 = vmul.f32 %v1584, %v1277
        %v1603 = vmul.f32 %v1587, %v1277
        %v1604 = vmul.f32 %v1590, %v1277
        %v1605 = vmul.f32 %v1593, %v1277
        %v1606 = vmul.f32 %v1596, %v1277
        %v1607 = vmul.f32 %v1599, %v1277
        %v1608 = vadd.f32 %v1600, 1e-05
        %v1609 = vadd.f32 %v1601, 1e-05
        %v1610 = vadd.f32 %v1602, 1e-05
        %v1611 = vadd.f32 %v1603, 1e-05
        %v1612 = vadd.f32 %v1604, 1e-05
        %v1613 = vadd.f32 %v1605, 1e-05
        %v1614 = vadd.f32 %v1606, 1e-05
        %v1615 = vadd.f32 %v1607, 1e-05
        %v1616 = vrsqrt.pop %v1608
        %v1617 = vmul.f32 %v1616, %v1608
        %v1618 = vmul.f32 %v1617, %v1616
        %v1619 = vmul.f32 0.5, %v1618
        %v1620 = vsub.f32 1.5, %v1619
        %v1621 = vmul.f32 %v1616, %v1620
        %vm1622 = vweird.f32 %v1608
        %vm1623 = vweird.f32 %v1616
        %vm1624 = vmor %vm1622, %vm1623
        %v1625 = vsel %vm1624, %v1616, %v1621
        %v1626 = vrsqrt.pop %v1609
        %v1627 = vmul.f32 %v1626, %v1609
        %v1628 = vmul.f32 %v1627, %v1626
        %v1629 = vmul.f32 0.5, %v1628
        %v1630 = vsub.f32 1.5, %v1629
        %v1631 = vmul.f32 %v1626, %v1630
        %vm1632 = vweird.f32 %v1609
        %vm1633 = vweird.f32 %v1626
        %vm1634 = vmor %vm1632, %vm1633
        %v1635 = vsel %vm1634, %v1626, %v1631
        %v1636 = vrsqrt.pop %v1610
        %v1637 = vmul.f32 %v1636, %v1610
        %v1638 = vmul.f32 %v1637, %v1636
        %v1639 = vmul.f32 0.5, %v1638
        %v1640 = vsub.f32 1.5, %v1639
        %v1641 = vmul.f32 %v1636, %v1640
        %vm1642 = vweird.f32 %v1610
        %vm1643 = vweird.f32 %v1636
        %vm1644 = vmor %vm1642, %vm1643
        %v1645 = vsel %vm1644, %v1636, %v1641
        %v1646 = vrsqrt.pop %v1611
        %v1647 = vmul.f32 %v1646, %v1611
        %v1648 = vmul.f32 %v1647, %v1646
        %v1649 = vmul.f32 0.5, %v1648
        %v1650 = vsub.f32 1.5, %v1649
        %v1651 = vmul.f32 %v1646, %v1650
        %vm1652 = vweird.f32 %v1611
        %vm1653 = vweird.f32 %v1646
        %vm1654 = vmor %vm1652, %vm1653
        %v1655 = vsel %vm1654, %v1646, %v1651
        %v1656 = vrsqrt.pop %v1612
        %v1657 = vmul.f32 %v1656, %v1612
        %v1658 = vmul.f32 %v1657, %v1656
        %v1659 = vmul.f32 0.5, %v1658
        %v1660 = vsub.f32 1.5, %v1659
        %v1661 = vmul.f32 %v1656, %v1660
        %vm1662 = vweird.f32 %v1612
        %vm1663 = vweird.f32 %v1656
        %vm1664 = vmor %vm1662, %vm1663
        %v1665 = vsel %vm1664, %v1656, %v1661
        %v1666 = vrsqrt.pop %v1613
        %v1667 = vmul.f32 %v1666, %v1613
        %v1668 = vmul.f32 %v1667, %v1666
        %v1669 = vmul.f32 0.5, %v1668
        %v1670 = vsub.f32 1.5, %v1669
        %v1671 = vmul.f32 %v1666, %v1670
        %vm1672 = vweird.f32 %v1613
        %vm1673 = vweird.f32 %v1666
        %vm1674 = vmor %vm1672, %vm1673
        %v1675 = vsel %vm1674, %v1666, %v1671
        %v1676 = vrsqrt.pop %v1614
        %v1677 = vmul.f32 %v1676, %v1614
        %v1678 = vmul.f32 %v1677, %v1676
        %v1679 = vmul.f32 0.5, %v1678
        %v1680 = vsub.f32 1.5, %v1679
        %v1681 = vmul.f32 %v1676, %v1680
        %vm1682 = vweird.f32 %v1614
        %vm1683 = vweird.f32 %v1676
        %vm1684 = vmor %vm1682, %vm1683
        %v1685 = vsel %vm1684, %v1676, %v1681
        %v1686 = vrsqrt.pop %v1615
        %v1687 = vmul.f32 %v1686, %v1615
        %v1688 = vmul.f32 %v1687, %v1686
        %v1689 = vmul.f32 0.5, %v1688
        %v1690 = vsub.f32 1.5, %v1689
        %v1691 = vmul.f32 %v1686, %v1690
        %vm1692 = vweird.f32 %v1615
        %vm1693 = vweird.f32 %v1686
        %vm1694 = vmor %vm1692, %vm1693
        %v1695 = vsel %vm1694, %v1686, %v1691
        %v1696 = vmul.f32 %v1560, %v1625
        %v1697 = vmul.f32 %v1561, %v1635
        %v1698 = vmul.f32 %v1562, %v1645
        %v1699 = vmul.f32 %v1563, %v1655
        %v1700 = vmul.f32 %v1564, %v1665
        %v1701 = vmul.f32 %v1565, %v1675
        %v1702 = vmul.f32 %v1566, %v1685
        %v1703 = vmul.f32 %v1567, %v1695
        %v1705 = vperm.slane %v1526, 0
        %v1707 = vmul.f32 %v1696, %v1705
        %v1708 = vmul.f32 %v1697, %v1705
        %v1709 = vmul.f32 %v1698, %v1705
        %v1710 = vmul.f32 %v1699, %v1705
        %v1711 = vmul.f32 %v1700, %v1705
        %v1712 = vmul.f32 %v1701, %v1705
        %v1713 = vmul.f32 %v1702, %v1705
        %v1714 = vmul.f32 %v1703, %v1705
        %v1716 = vperm.slane %v1527, 0
        %v1718 = vadd.f32 %v1707, %v1716
        %v1719 = vadd.f32 %v1708, %v1716
        %v1720 = vadd.f32 %v1709, %v1716
        %v1721 = vadd.f32 %v1710, %v1716
        %v1722 = vadd.f32 %v1711, %v1716
        %v1723 = vadd.f32 %v1712, %v1716
        %v1724 = vadd.f32 %v1713, %v1716
        %v1725 = vadd.f32 %v1714, %v1716
        %v1726 = vpack.c.bf16 %v1719, %v1718
        %v1727 = vpack.c.bf16 %v1721, %v1720
        %v1728 = vpack.c.bf16 %v1723, %v1722
        %v1729 = vpack.c.bf16 %v1725, %v1724
        %v1730 = vld [vmem:[%s21] sm:$0xf]
        %v1731 = vld [vmem:[%s21 + $0x4] sm:$0xf]
        %v1732 = vld [vmem:[%s21 + $0x8] sm:$0xf]
        %v1733 = vld [vmem:[%s21 + $0xc] sm:$0xf]
        %v1734 = vld [vmem:[%s23] sm:$0x1]
        %v1736 = vperm.slane %v1734, 0
        %v1742 = vunpack.c.l.b16 %v1730
        %v1743 = vunpack.c.l.b16 %v1731
        %v1744 = vunpack.c.l.b16 %v1732
        %v1745 = vunpack.c.l.b16 %v1733
        %v1746 = vpack.c.b16 %v1743, %v1742
        %v1747 = vpack.c.b16 %v1745, %v1744
        %v1751 = vsel %vm1246, %v1726, 0
        %v1754 = vsel %vm1246, %v1727, 0
        %v1757 = vsel %vm1246, %v1728, 0
        %v1760 = vsel %vm1246, %v1729, 0
        %1762 = vmatpush.bf16.msra.mxu0 0
        %1763 = vmatpush.bf16.msra.mxu0 0
        %1764 = vmatpush.bf16.msra.mxu0 0
        %1765 = vmatpush.bf16.msra.mxu0 0
        %1766 = vmatpush.bf16.msra.mxu0 0
        %1767 = vmatpush.bf16.msra.mxu0 0
        %1768 = vmatpush.bf16.msra.mxu0 %v1747
        %1769 = vmatpush.bf16.msra.mxu0 %v1746
        %1770 = vmatmul.bf16.gmra.mxu0 %v1751
        %v1771 = vpop.f32.mrf.mxu0
        %v1772 = vadd.f32 %v1736, %v1771
        %v1773 = vpop.f32.mrf.mxu0
        %v1774 = vadd.f32 %v1736, %v1773
        %1775 = vmatmul.bf16.gmra.mxu0 %v1754
        %v1776 = vpop.f32.mrf.mxu0
        %v1777 = vadd.f32 %v1736, %v1776
        %v1778 = vpop.f32.mrf.mxu0
        %v1779 = vadd.f32 %v1736, %v1778
        %1780 = vmatmul.bf16.gmra.mxu0 %v1757
        %v1781 = vpop.f32.mrf.mxu0
        %v1782 = vadd.f32 %v1736, %v1781
        %v1783 = vpop.f32.mrf.mxu0
        %v1784 = vadd.f32 %v1736, %v1783
        %1785 = vmatmul.bf16.gmra.mxu0 %v1760
        %v1786 = vpop.f32.mrf.mxu0
        %v1787 = vadd.f32 %v1736, %v1786
        %v1788 = vpop.f32.mrf.mxu0
        %v1789 = vadd.f32 %v1736, %v1788
        %1790 = vdwg.mxu0
        %1799 = vrot.lane.b32.xlu0 %v1772, 112
        %v1800 = vpop.permute.xlu0 %1799
        %1801 = vrot.lane.b32.xlu0 %v1774, 112
        %v1802 = vpop.permute.xlu0 %1801
        %1803 = vrot.lane.b32.xlu0 %v1777, 112
        %v1804 = vpop.permute.xlu0 %1803
        %1805 = vrot.lane.b32.xlu0 %v1779, 112
        %v1806 = vpop.permute.xlu0 %1805
        %1807 = vrot.lane.b32.xlu0 %v1782, 112
        %v1808 = vpop.permute.xlu0 %1807
        %1809 = vrot.lane.b32.xlu0 %v1784, 112
        %v1810 = vpop.permute.xlu0 %1809
        %1811 = vrot.lane.b32.xlu0 %v1787, 112
        %v1812 = vpop.permute.xlu0 %1811
        %1813 = vrot.lane.b32.xlu0 %v1789, 112
        %v1814 = vpop.permute.xlu0 %1813
        %v1823 = vpack.c.bf16 %v1772, %v1772
        %v1824 = vpack.c.bf16 %v1774, %v1774
        %v1825 = vpack.c.bf16 %v1777, %v1777
        %v1826 = vpack.c.bf16 %v1779, %v1779
        %v1827 = vpack.c.bf16 %v1782, %v1782
        %v1828 = vpack.c.bf16 %v1784, %v1784
        %v1829 = vpack.c.bf16 %v1787, %v1787
        %v1830 = vpack.c.bf16 %v1789, %v1789
        %v1831 = vpack.c.bf16 %v1800, %v1800
        %v1832 = vpack.c.bf16 %v1802, %v1802
        %v1833 = vpack.c.bf16 %v1804, %v1804
        %v1834 = vpack.c.bf16 %v1806, %v1806
        %v1835 = vpack.c.bf16 %v1808, %v1808
        %v1836 = vpack.c.bf16 %v1810, %v1810
        %v1837 = vpack.c.bf16 %v1812, %v1812
        %v1838 = vpack.c.bf16 %v1814, %v1814
        %v1839 = vld [vmem:[%s25] sm:$0xff]
        %v1840 = vld [vmem:[%s25 + $0x8] sm:$0xff]
        %v1841 = vld [vmem:[%s25 + $0x10] sm:$0xff]
        %v1842 = vld [vmem:[%s25 + $0x18] sm:$0xff]
        %v1843 = vld [vmem:[%s25 + $0x20] sm:$0xff]
        %v1844 = vld [vmem:[%s25 + $0x28] sm:$0xff]
        %v1845 = vld [vmem:[%s25 + $0x30] sm:$0xff]
        %v1846 = vld [vmem:[%s25 + $0x38] sm:$0xff]
        %v1847 = vld [vmem:[%s25 + $0x40] sm:$0xff]
        %v1848 = vld [vmem:[%s25 + $0x48] sm:$0xff]
        %v1849 = vld [vmem:[%s25 + $0x50] sm:$0xff]
        %v1850 = vld [vmem:[%s25 + $0x58] sm:$0xff]
        %v1851 = vld [vmem:[%s25 + $0x60] sm:$0xff]
        %v1852 = vld [vmem:[%s25 + $0x68] sm:$0xff]
        %v1853 = vld [vmem:[%s25 + $0x70] sm:$0xff]
        %v1854 = vld [vmem:[%s25 + $0x78] sm:$0xff]
        %v1857 = vunpack.c.l.b16 %v1823
        %v1858 = vunpack.c.l.b16 %v1824
        %v1859 = vpack.c.b16 %v1858, %v1857
        %1860 = vrot.lane.b32.xlu0 %v1859, 96
        %v1861 = vpop.permute.xlu0 %1860
        %vm1862 = vcmask 130048
        %v1864 = vsel %vm1862, %v1859, 0
        %v1867 = vsel %vm1862, %v1861, 0
        %1869 = vmatpush.bf16.xpose.msra.mxu0 0
        %1870 = vmatpush.bf16.xpose.msra.mxu0 0
        %1871 = vmatpush.bf16.xpose.msra.mxu0 0
        %1872 = vmatpush.bf16.xpose.msra.mxu0 0
        %1873 = vmatpush.bf16.xpose.msra.mxu0 0
        %1874 = vmatpush.bf16.xpose.msra.mxu0 0
        %1875 = vmatpush.bf16.xpose.msra.mxu0 0
        %1876 = vmatpush.bf16.xpose.msra.mxu0 %v1867
        %1877 = vmatmul.bf16.gmra.mxu0 %v1864
        %v1878 = vpop.f32.mrf.mxu0
        %v1879 = vadd.f32 %v1839, %v1878
        %v1880 = vpop.f32.mrf.mxu0
        %v1881 = vadd.f32 %v1840, %v1880
        %1882 = vdwg.mxu0
        %v1885 = vunpack.c.l.b16 %v1825
        %v1886 = vunpack.c.l.b16 %v1826
        %v1887 = vpack.c.b16 %v1886, %v1885
        %1888 = vrot.lane.b32.xlu0 %v1887, 96
        %v1889 = vpop.permute.xlu0 %1888
        %v1891 = vsel %vm1862, %v1887, 0
        %v1894 = vsel %vm1862, %v1889, 0
        %1896 = vmatpush.bf16.xpose.msra.mxu0 0
        %1897 = vmatpush.bf16.xpose.msra.mxu0 0
        %1898 = vmatpush.bf16.xpose.msra.mxu0 0
        %1899 = vmatpush.bf16.xpose.msra.mxu0 0
        %1900 = vmatpush.bf16.xpose.msra.mxu0 0
        %1901 = vmatpush.bf16.xpose.msra.mxu0 0
        %1902 = vmatpush.bf16.xpose.msra.mxu0 0
        %1903 = vmatpush.bf16.xpose.msra.mxu0 %v1894
        %1904 = vmatmul.bf16.gmra.mxu0 %v1891
        %v1905 = vpop.f32.mrf.mxu0
        %v1906 = vadd.f32 %v1841, %v1905
        %v1907 = vpop.f32.mrf.mxu0
        %v1908 = vadd.f32 %v1842, %v1907
        %1909 = vdwg.mxu0
        %v1912 = vunpack.c.l.b16 %v1827
        %v1913 = vunpack.c.l.b16 %v1828
        %v1914 = vpack.c.b16 %v1913, %v1912
        %1915 = vrot.lane.b32.xlu0 %v1914, 96
        %v1916 = vpop.permute.xlu0 %1915
        %v1918 = vsel %vm1862, %v1914, 0
        %v1921 = vsel %vm1862, %v1916, 0
        %1923 = vmatpush.bf16.xpose.msra.mxu0 0
        %1924 = vmatpush.bf16.xpose.msra.mxu0 0
        %1925 = vmatpush.bf16.xpose.msra.mxu0 0
        %1926 = vmatpush.bf16.xpose.msra.mxu0 0
        %1927 = vmatpush.bf16.xpose.msra.mxu0 0
        %1928 = vmatpush.bf16.xpose.msra.mxu0 0
        %1929 = vmatpush.bf16.xpose.msra.mxu0 0
        %1930 = vmatpush.bf16.xpose.msra.mxu0 %v1921
        %1931 = vmatmul.bf16.gmra.mxu0 %v1918
        %v1932 = vpop.f32.mrf.mxu0
        %v1933 = vadd.f32 %v1843, %v1932
        %v1934 = vpop.f32.mrf.mxu0
        %v1935 = vadd.f32 %v1844, %v1934
        %1936 = vdwg.mxu0
        %v1939 = vunpack.c.l.b16 %v1829
        %v1940 = vunpack.c.l.b16 %v1830
        %v1941 = vpack.c.b16 %v1940, %v1939
        %1942 = vrot.lane.b32.xlu0 %v1941, 96
        %v1943 = vpop.permute.xlu0 %1942
        %v1945 = vsel %vm1862, %v1941, 0
        %v1948 = vsel %vm1862, %v1943, 0
        %1950 = vmatpush.bf16.xpose.msra.mxu0 0
        %1951 = vmatpush.bf16.xpose.msra.mxu0 0
        %1952 = vmatpush.bf16.xpose.msra.mxu0 0
        %1953 = vmatpush.bf16.xpose.msra.mxu0 0
        %1954 = vmatpush.bf16.xpose.msra.mxu0 0
        %1955 = vmatpush.bf16.xpose.msra.mxu0 0
        %1956 = vmatpush.bf16.xpose.msra.mxu0 0
        %1957 = vmatpush.bf16.xpose.msra.mxu0 %v1948
        %1958 = vmatmul.bf16.gmra.mxu0 %v1945
        %v1959 = vpop.f32.mrf.mxu0
        %v1960 = vadd.f32 %v1845, %v1959
        %v1961 = vpop.f32.mrf.mxu0
        %v1962 = vadd.f32 %v1846, %v1961
        %1963 = vdwg.mxu0
        %v1966 = vunpack.c.l.b16 %v1831
        %v1967 = vunpack.c.l.b16 %v1832
        %v1968 = vpack.c.b16 %v1967, %v1966
        %1969 = vrot.lane.b32.xlu0 %v1968, 96
        %v1970 = vpop.permute.xlu0 %1969
        %v1972 = vsel %vm1862, %v1968, 0
        %v1975 = vsel %vm1862, %v1970, 0
        %1977 = vmatpush.bf16.xpose.msra.mxu0 0
        %1978 = vmatpush.bf16.xpose.msra.mxu0 0
        %1979 = vmatpush.bf16.xpose.msra.mxu0 0
        %1980 = vmatpush.bf16.xpose.msra.mxu0 0
        %1981 = vmatpush.bf16.xpose.msra.mxu0 0
        %1982 = vmatpush.bf16.xpose.msra.mxu0 0
        %1983 = vmatpush.bf16.xpose.msra.mxu0 0
        %1984 = vmatpush.bf16.xpose.msra.mxu0 %v1975
        %1985 = vmatmul.bf16.gmra.mxu0 %v1972
        %v1986 = vpop.f32.mrf.mxu0
        %v1987 = vadd.f32 %v1847, %v1986
        %v1988 = vpop.f32.mrf.mxu0
        %v1989 = vadd.f32 %v1848, %v1988
        %1990 = vdwg.mxu0
        %v1993 = vunpack.c.l.b16 %v1833
        %v1994 = vunpack.c.l.b16 %v1834
        %v1995 = vpack.c.b16 %v1994, %v1993
        %1996 = vrot.lane.b32.xlu0 %v1995, 96
        %v1997 = vpop.permute.xlu0 %1996
        %v1999 = vsel %vm1862, %v1995, 0
        %v2002 = vsel %vm1862, %v1997, 0
        %2004 = vmatpush.bf16.xpose.msra.mxu0 0
        %2005 = vmatpush.bf16.xpose.msra.mxu0 0
        %2006 = vmatpush.bf16.xpose.msra.mxu0 0
        %2007 = vmatpush.bf16.xpose.msra.mxu0 0
        %2008 = vmatpush.bf16.xpose.msra.mxu0 0
        %2009 = vmatpush.bf16.xpose.msra.mxu0 0
        %2010 = vmatpush.bf16.xpose.msra.mxu0 0
        %2011 = vmatpush.bf16.xpose.msra.mxu0 %v2002
        %2012 = vmatmul.bf16.gmra.mxu0 %v1999
        %v2013 = vpop.f32.mrf.mxu0
        %v2014 = vadd.f32 %v1849, %v2013
        %v2015 = vpop.f32.mrf.mxu0
        %v2016 = vadd.f32 %v1850, %v2015
        %2017 = vdwg.mxu0
        %v2020 = vunpack.c.l.b16 %v1835
        %v2021 = vunpack.c.l.b16 %v1836
        %v2022 = vpack.c.b16 %v2021, %v2020
        %2023 = vrot.lane.b32.xlu0 %v2022, 96
        %v2024 = vpop.permute.xlu0 %2023
        %v2026 = vsel %vm1862, %v2022, 0
        %v2029 = vsel %vm1862, %v2024, 0
        %2031 = vmatpush.bf16.xpose.msra.mxu0 0
        %2032 = vmatpush.bf16.xpose.msra.mxu0 0
        %2033 = vmatpush.bf16.xpose.msra.mxu0 0
        %2034 = vmatpush.bf16.xpose.msra.mxu0 0
        %2035 = vmatpush.bf16.xpose.msra.mxu0 0
        %2036 = vmatpush.bf16.xpose.msra.mxu0 0
        %2037 = vmatpush.bf16.xpose.msra.mxu0 0
        %2038 = vmatpush.bf16.xpose.msra.mxu0 %v2029
        %2039 = vmatmul.bf16.gmra.mxu0 %v2026
        %v2040 = vpop.f32.mrf.mxu0
        %v2041 = vadd.f32 %v1851, %v2040
        %v2042 = vpop.f32.mrf.mxu0
        %v2043 = vadd.f32 %v1852, %v2042
        %2044 = vdwg.mxu0
        %v2047 = vunpack.c.l.b16 %v1837
        %v2048 = vunpack.c.l.b16 %v1838
        %v2049 = vpack.c.b16 %v2048, %v2047
        %2050 = vrot.lane.b32.xlu0 %v2049, 96
        %v2051 = vpop.permute.xlu0 %2050
        %v2053 = vsel %vm1862, %v2049, 0
        %v2056 = vsel %vm1862, %v2051, 0
        %2058 = vmatpush.bf16.xpose.msra.mxu0 0
        %2059 = vmatpush.bf16.xpose.msra.mxu0 0
        %2060 = vmatpush.bf16.xpose.msra.mxu0 0
        %2061 = vmatpush.bf16.xpose.msra.mxu0 0
        %2062 = vmatpush.bf16.xpose.msra.mxu0 0
        %2063 = vmatpush.bf16.xpose.msra.mxu0 0
        %2064 = vmatpush.bf16.xpose.msra.mxu0 0
        %2065 = vmatpush.bf16.xpose.msra.mxu0 %v2056
        %2066 = vmatmul.bf16.gmra.mxu0 %v2053
        %v2067 = vpop.f32.mrf.mxu0
        %v2068 = vadd.f32 %v1853, %v2067
        %v2069 = vpop.f32.mrf.mxu0
        %v2070 = vadd.f32 %v1854, %v2069
        %2071 = vdwg.mxu0
        %v2072 = vsel %vm1862, %v1879, -inf
        %2073 = vmax.xlane.f32.xlu0 %v2072
        %v2074 = vpop.xlane.xlu0 %2073
        %v2075 = vsel %vm1862, %v1881, -inf
        %2076 = vmax.xlane.f32.xlu0 %v2075
        %v2077 = vpop.xlane.xlu0 %2076
        %v2078 = vsel %vm1862, %v1906, -inf
        %2079 = vmax.xlane.f32.xlu0 %v2078
        %v2080 = vpop.xlane.xlu0 %2079
        %v2081 = vsel %vm1862, %v1908, -inf
        %2082 = vmax.xlane.f32.xlu0 %v2081
        %v2083 = vpop.xlane.xlu0 %2082
        %v2084 = vsel %vm1862, %v1933, -inf
        %2085 = vmax.xlane.f32.xlu0 %v2084
        %v2086 = vpop.xlane.xlu0 %2085
        %v2087 = vsel %vm1862, %v1935, -inf
        %2088 = vmax.xlane.f32.xlu0 %v2087
        %v2089 = vpop.xlane.xlu0 %2088
        %v2090 = vsel %vm1862, %v1960, -inf
        %2091 = vmax.xlane.f32.xlu0 %v2090
        %v2092 = vpop.xlane.xlu0 %2091
        %v2093 = vsel %vm1862, %v1962, -inf
        %2094 = vmax.xlane.f32.xlu0 %v2093
        %v2095 = vpop.xlane.xlu0 %2094
        %v2096 = vsel %vm1862, %v1987, -inf
        %2097 = vmax.xlane.f32.xlu0 %v2096
        %v2098 = vpop.xlane.xlu0 %2097
        %v2099 = vsel %vm1862, %v1989, -inf
        %2100 = vmax.xlane.f32.xlu0 %v2099
        %v2101 = vpop.xlane.xlu0 %2100
        %v2102 = vsel %vm1862, %v2014, -inf
        %2103 = vmax.xlane.f32.xlu0 %v2102
        %v2104 = vpop.xlane.xlu0 %2103
        %v2105 = vsel %vm1862, %v2016, -inf
        %2106 = vmax.xlane.f32.xlu0 %v2105
        %v2107 = vpop.xlane.xlu0 %2106
        %v2108 = vsel %vm1862, %v2041, -inf
        %2109 = vmax.xlane.f32.xlu0 %v2108
        %v2110 = vpop.xlane.xlu0 %2109
        %v2111 = vsel %vm1862, %v2043, -inf
        %2112 = vmax.xlane.f32.xlu0 %v2111
        %v2113 = vpop.xlane.xlu0 %2112
        %v2114 = vsel %vm1862, %v2068, -inf
        %2115 = vmax.xlane.f32.xlu0 %v2114
        %v2116 = vpop.xlane.xlu0 %2115
        %v2117 = vsel %vm1862, %v2070, -inf
        %2118 = vmax.xlane.f32.xlu0 %v2117
        %v2119 = vpop.xlane.xlu0 %2118
        %v2120 = vsub.f32 %v1879, %v2074
        %v2121 = vsub.f32 %v1881, %v2077
        %v2122 = vsub.f32 %v1906, %v2080
        %v2123 = vsub.f32 %v1908, %v2083
        %v2124 = vsub.f32 %v1933, %v2086
        %v2125 = vsub.f32 %v1935, %v2089
        %v2126 = vsub.f32 %v1960, %v2092
        %v2127 = vsub.f32 %v1962, %v2095
        %v2128 = vsub.f32 %v1987, %v2098
        %v2129 = vsub.f32 %v1989, %v2101
        %v2130 = vsub.f32 %v2014, %v2104
        %v2131 = vsub.f32 %v2016, %v2107
        %v2132 = vsub.f32 %v2041, %v2110
        %v2133 = vsub.f32 %v2043, %v2113
        %v2134 = vsub.f32 %v2068, %v2116
        %v2135 = vsub.f32 %v2070, %v2119
        %v2136 = vmul.f32 %v2120, 1.442695
        %v2137 = vpow.pop %v2136
        %v2138 = vmul.f32 %v2121, 1.442695
        %v2139 = vpow.pop %v2138
        %v2140 = vmul.f32 %v2122, 1.442695
        %v2141 = vpow.pop %v2140
        %v2142 = vmul.f32 %v2123, 1.442695
        %v2143 = vpow.pop %v2142
        %v2144 = vmul.f32 %v2124, 1.442695
        %v2145 = vpow.pop %v2144
        %v2146 = vmul.f32 %v2125, 1.442695
        %v2147 = vpow.pop %v2146
        %v2148 = vmul.f32 %v2126, 1.442695
        %v2149 = vpow.pop %v2148
        %v2150 = vmul.f32 %v2127, 1.442695
        %v2151 = vpow.pop %v2150
        %v2152 = vmul.f32 %v2128, 1.442695
        %v2153 = vpow.pop %v2152
        %v2154 = vmul.f32 %v2129, 1.442695
        %v2155 = vpow.pop %v2154
        %v2156 = vmul.f32 %v2130, 1.442695
        %v2157 = vpow.pop %v2156
        %v2158 = vmul.f32 %v2131, 1.442695
        %v2159 = vpow.pop %v2158
        %v2160 = vmul.f32 %v2132, 1.442695
        %v2161 = vpow.pop %v2160
        %v2162 = vmul.f32 %v2133, 1.442695
        %v2163 = vpow.pop %v2162
        %v2164 = vmul.f32 %v2134, 1.442695
        %v2165 = vpow.pop %v2164
        %v2166 = vmul.f32 %v2135, 1.442695
        %v2167 = vpow.pop %v2166
        %v2168 = vsel %vm1862, %v2137, 0.0
        %2169 = vadd.xlane.f32.xlu0 %v2168
        %v2170 = vpop.xlane.xlu0 %2169
        %v2171 = vsel %vm1862, %v2139, 0.0
        %2172 = vadd.xlane.f32.xlu0 %v2171
        %v2173 = vpop.xlane.xlu0 %2172
        %v2174 = vsel %vm1862, %v2141, 0.0
        %2175 = vadd.xlane.f32.xlu0 %v2174
        %v2176 = vpop.xlane.xlu0 %2175
        %v2177 = vsel %vm1862, %v2143, 0.0
        %2178 = vadd.xlane.f32.xlu0 %v2177
        %v2179 = vpop.xlane.xlu0 %2178
        %v2180 = vsel %vm1862, %v2145, 0.0
        %2181 = vadd.xlane.f32.xlu0 %v2180
        %v2182 = vpop.xlane.xlu0 %2181
        %v2183 = vsel %vm1862, %v2147, 0.0
        %2184 = vadd.xlane.f32.xlu0 %v2183
        %v2185 = vpop.xlane.xlu0 %2184
        %v2186 = vsel %vm1862, %v2149, 0.0
        %2187 = vadd.xlane.f32.xlu0 %v2186
        %v2188 = vpop.xlane.xlu0 %2187
        %v2189 = vsel %vm1862, %v2151, 0.0
        %2190 = vadd.xlane.f32.xlu0 %v2189
        %v2191 = vpop.xlane.xlu0 %2190
        %v2192 = vsel %vm1862, %v2153, 0.0
        %2193 = vadd.xlane.f32.xlu0 %v2192
        %v2194 = vpop.xlane.xlu0 %2193
        %v2195 = vsel %vm1862, %v2155, 0.0
        %2196 = vadd.xlane.f32.xlu0 %v2195
        %v2197 = vpop.xlane.xlu0 %2196
        %v2198 = vsel %vm1862, %v2157, 0.0
        %2199 = vadd.xlane.f32.xlu0 %v2198
        %v2200 = vpop.xlane.xlu0 %2199
        %v2201 = vsel %vm1862, %v2159, 0.0
        %2202 = vadd.xlane.f32.xlu0 %v2201
        %v2203 = vpop.xlane.xlu0 %2202
        %v2204 = vsel %vm1862, %v2161, 0.0
        %2205 = vadd.xlane.f32.xlu0 %v2204
        %v2206 = vpop.xlane.xlu0 %2205
        %v2207 = vsel %vm1862, %v2163, 0.0
        %2208 = vadd.xlane.f32.xlu0 %v2207
        %v2209 = vpop.xlane.xlu0 %2208
        %v2210 = vsel %vm1862, %v2165, 0.0
        %2211 = vadd.xlane.f32.xlu0 %v2210
        %v2212 = vpop.xlane.xlu0 %2211
        %v2213 = vsel %vm1862, %v2167, 0.0
        %2214 = vadd.xlane.f32.xlu0 %v2213
        %v2215 = vpop.xlane.xlu0 %2214
        %v2216 = vrcp.pop %v2170
        %v2217 = vrcp.pop %v2173
        %v2218 = vrcp.pop %v2176
        %v2219 = vrcp.pop %v2179
        %v2220 = vrcp.pop %v2182
        %v2221 = vrcp.pop %v2185
        %v2222 = vrcp.pop %v2188
        %v2223 = vrcp.pop %v2191
        %v2224 = vrcp.pop %v2194
        %v2225 = vrcp.pop %v2197
        %v2226 = vrcp.pop %v2200
        %v2227 = vrcp.pop %v2203
        %v2228 = vrcp.pop %v2206
        %v2229 = vrcp.pop %v2209
        %v2230 = vrcp.pop %v2212
        %v2231 = vrcp.pop %v2215
        %v2232 = vmul.f32 %v2137, %v2216
        %v2233 = vmul.f32 %v2139, %v2217
        %v2234 = vmul.f32 %v2141, %v2218
        %v2235 = vmul.f32 %v2143, %v2219
        %v2236 = vmul.f32 %v2145, %v2220
        %v2237 = vmul.f32 %v2147, %v2221
        %v2238 = vmul.f32 %v2149, %v2222
        %v2239 = vmul.f32 %v2151, %v2223
        %v2240 = vmul.f32 %v2153, %v2224
        %v2241 = vmul.f32 %v2155, %v2225
        %v2242 = vmul.f32 %v2157, %v2226
        %v2243 = vmul.f32 %v2159, %v2227
        %v2244 = vmul.f32 %v2161, %v2228
        %v2245 = vmul.f32 %v2163, %v2229
        %v2246 = vmul.f32 %v2165, %v2230
        %v2247 = vmul.f32 %v2167, %v2231
        %v2248 = vpack.c.bf16 %v2232, %v2232
        %v2249 = vpack.c.bf16 %v2233, %v2233
        %v2250 = vpack.c.bf16 %v2234, %v2234
        %v2251 = vpack.c.bf16 %v2235, %v2235
        %v2252 = vpack.c.bf16 %v2236, %v2236
        %v2253 = vpack.c.bf16 %v2237, %v2237
        %v2254 = vpack.c.bf16 %v2238, %v2238
        %v2255 = vpack.c.bf16 %v2239, %v2239
        %v2256 = vpack.c.bf16 %v2240, %v2240
        %v2257 = vpack.c.bf16 %v2241, %v2241
        %v2258 = vpack.c.bf16 %v2242, %v2242
        %v2259 = vpack.c.bf16 %v2243, %v2243
        %v2260 = vpack.c.bf16 %v2244, %v2244
        %v2261 = vpack.c.bf16 %v2245, %v2245
        %v2262 = vpack.c.bf16 %v2246, %v2246
        %v2263 = vpack.c.bf16 %v2247, %v2247
        %v2266 = vunpack.c.l.b16 %v2248
        %v2267 = vunpack.c.l.b16 %v2249
        %v2268 = vpack.c.b16 %v2267, %v2266
        %2269 = vrot.lane.b32.xlu0 %v1859, 64
        %v2270 = vpop.permute.xlu0 %2269
        %v2273 = vsel %vm1862, %v2268, 0
        %2275 = vmatpush.bf16.msra.mxu0 0
        %2276 = vmatpush.bf16.msra.mxu0 0
        %2277 = vmatpush.bf16.msra.mxu0 0
        %2278 = vmatpush.bf16.msra.mxu0 0
        %2279 = vmatpush.bf16.msra.mxu0 0
        %2280 = vmatpush.bf16.msra.mxu0 0
        %2281 = vmatpush.bf16.msra.mxu0 0
        %2282 = vmatpush.bf16.msra.mxu0 %v2270
        %2283 = vmatmul.bf16.gmra.mxu0 %v2273
        %v2284 = vpop.f32.mrf.mxu0
        %v2285 = vadd.f32 0.0, %v2284
        %v2286 = vpop.f32.mrf.mxu0
        %v2287 = vadd.f32 0.0, %v2286
        %2288 = vdwg.mxu0
        %v2291 = vunpack.c.l.b16 %v2250
        %v2292 = vunpack.c.l.b16 %v2251
        %v2293 = vpack.c.b16 %v2292, %v2291
        %2294 = vrot.lane.b32.xlu0 %v1887, 64
        %v2295 = vpop.permute.xlu0 %2294
        %v2298 = vsel %vm1862, %v2293, 0
        %2300 = vmatpush.bf16.msra.mxu0 0
        %2301 = vmatpush.bf16.msra.mxu0 0
        %2302 = vmatpush.bf16.msra.mxu0 0
        %2303 = vmatpush.bf16.msra.mxu0 0
        %2304 = vmatpush.bf16.msra.mxu0 0
        %2305 = vmatpush.bf16.msra.mxu0 0
        %2306 = vmatpush.bf16.msra.mxu0 0
        %2307 = vmatpush.bf16.msra.mxu0 %v2295
        %2308 = vmatmul.bf16.gmra.mxu0 %v2298
        %v2309 = vpop.f32.mrf.mxu0
        %v2310 = vadd.f32 0.0, %v2309
        %v2311 = vpop.f32.mrf.mxu0
        %v2312 = vadd.f32 0.0, %v2311
        %2313 = vdwg.mxu0
        %v2316 = vunpack.c.l.b16 %v2252
        %v2317 = vunpack.c.l.b16 %v2253
        %v2318 = vpack.c.b16 %v2317, %v2316
        %2319 = vrot.lane.b32.xlu0 %v1914, 64
        %v2320 = vpop.permute.xlu0 %2319
        %v2323 = vsel %vm1862, %v2318, 0
        %2325 = vmatpush.bf16.msra.mxu0 0
        %2326 = vmatpush.bf16.msra.mxu0 0
        %2327 = vmatpush.bf16.msra.mxu0 0
        %2328 = vmatpush.bf16.msra.mxu0 0
        %2329 = vmatpush.bf16.msra.mxu0 0
        %2330 = vmatpush.bf16.msra.mxu0 0
        %2331 = vmatpush.bf16.msra.mxu0 0
        %2332 = vmatpush.bf16.msra.mxu0 %v2320
        %2333 = vmatmul.bf16.gmra.mxu0 %v2323
        %v2334 = vpop.f32.mrf.mxu0
        %v2335 = vadd.f32 0.0, %v2334
        %v2336 = vpop.f32.mrf.mxu0
        %v2337 = vadd.f32 0.0, %v2336
        %2338 = vdwg.mxu0
        %v2341 = vunpack.c.l.b16 %v2254
        %v2342 = vunpack.c.l.b16 %v2255
        %v2343 = vpack.c.b16 %v2342, %v2341
        %2344 = vrot.lane.b32.xlu0 %v1941, 64
        %v2345 = vpop.permute.xlu0 %2344
        %v2348 = vsel %vm1862, %v2343, 0
        %2350 = vmatpush.bf16.msra.mxu0 0
        %2351 = vmatpush.bf16.msra.mxu0 0
        %2352 = vmatpush.bf16.msra.mxu0 0
        %2353 = vmatpush.bf16.msra.mxu0 0
        %2354 = vmatpush.bf16.msra.mxu0 0
        %2355 = vmatpush.bf16.msra.mxu0 0
        %2356 = vmatpush.bf16.msra.mxu0 0
        %2357 = vmatpush.bf16.msra.mxu0 %v2345
        %2358 = vmatmul.bf16.gmra.mxu0 %v2348
        %v2359 = vpop.f32.mrf.mxu0
        %v2360 = vadd.f32 0.0, %v2359
        %v2361 = vpop.f32.mrf.mxu0
        %v2362 = vadd.f32 0.0, %v2361
        %2363 = vdwg.mxu0
        %v2366 = vunpack.c.l.b16 %v2256
        %v2367 = vunpack.c.l.b16 %v2257
        %v2368 = vpack.c.b16 %v2367, %v2366
        %2369 = vrot.lane.b32.xlu0 %v1968, 64
        %v2370 = vpop.permute.xlu0 %2369
        %v2373 = vsel %vm1862, %v2368, 0
        %2375 = vmatpush.bf16.msra.mxu0 0
        %2376 = vmatpush.bf16.msra.mxu0 0
        %2377 = vmatpush.bf16.msra.mxu0 0
        %2378 = vmatpush.bf16.msra.mxu0 0
        %2379 = vmatpush.bf16.msra.mxu0 0
        %2380 = vmatpush.bf16.msra.mxu0 0
        %2381 = vmatpush.bf16.msra.mxu0 0
        %2382 = vmatpush.bf16.msra.mxu0 %v2370
        %2383 = vmatmul.bf16.gmra.mxu0 %v2373
        %v2384 = vpop.f32.mrf.mxu0
        %v2385 = vadd.f32 0.0, %v2384
        %v2386 = vpop.f32.mrf.mxu0
        %v2387 = vadd.f32 0.0, %v2386
        %2388 = vdwg.mxu0
        %v2391 = vunpack.c.l.b16 %v2258
        %v2392 = vunpack.c.l.b16 %v2259
        %v2393 = vpack.c.b16 %v2392, %v2391
        %2394 = vrot.lane.b32.xlu0 %v1995, 64
        %v2395 = vpop.permute.xlu0 %2394
        %v2398 = vsel %vm1862, %v2393, 0
        %2400 = vmatpush.bf16.msra.mxu0 0
        %2401 = vmatpush.bf16.msra.mxu0 0
        %2402 = vmatpush.bf16.msra.mxu0 0
        %2403 = vmatpush.bf16.msra.mxu0 0
        %2404 = vmatpush.bf16.msra.mxu0 0
        %2405 = vmatpush.bf16.msra.mxu0 0
        %2406 = vmatpush.bf16.msra.mxu0 0
        %2407 = vmatpush.bf16.msra.mxu0 %v2395
        %2408 = vmatmul.bf16.gmra.mxu0 %v2398
        %v2409 = vpop.f32.mrf.mxu0
        %v2410 = vadd.f32 0.0, %v2409
        %v2411 = vpop.f32.mrf.mxu0
        %v2412 = vadd.f32 0.0, %v2411
        %2413 = vdwg.mxu0
        %v2416 = vunpack.c.l.b16 %v2260
        %v2417 = vunpack.c.l.b16 %v2261
        %v2418 = vpack.c.b16 %v2417, %v2416
        %2419 = vrot.lane.b32.xlu0 %v2022, 64
        %v2420 = vpop.permute.xlu0 %2419
        %v2423 = vsel %vm1862, %v2418, 0
        %2425 = vmatpush.bf16.msra.mxu0 0
        %2426 = vmatpush.bf16.msra.mxu0 0
        %2427 = vmatpush.bf16.msra.mxu0 0
        %2428 = vmatpush.bf16.msra.mxu0 0
        %2429 = vmatpush.bf16.msra.mxu0 0
        %2430 = vmatpush.bf16.msra.mxu0 0
        %2431 = vmatpush.bf16.msra.mxu0 0
        %2432 = vmatpush.bf16.msra.mxu0 %v2420
        %2433 = vmatmul.bf16.gmra.mxu0 %v2423
        %v2434 = vpop.f32.mrf.mxu0
        %v2435 = vadd.f32 0.0, %v2434
        %v2436 = vpop.f32.mrf.mxu0
        %v2437 = vadd.f32 0.0, %v2436
        %2438 = vdwg.mxu0
        %v2441 = vunpack.c.l.b16 %v2262
        %v2442 = vunpack.c.l.b16 %v2263
        %v2443 = vpack.c.b16 %v2442, %v2441
        %2444 = vrot.lane.b32.xlu0 %v2049, 64
        %v2445 = vpop.permute.xlu0 %2444
        %v2448 = vsel %vm1862, %v2443, 0
        %2450 = vmatpush.bf16.msra.mxu0 0
        %2451 = vmatpush.bf16.msra.mxu0 0
        %2452 = vmatpush.bf16.msra.mxu0 0
        %2453 = vmatpush.bf16.msra.mxu0 0
        %2454 = vmatpush.bf16.msra.mxu0 0
        %2455 = vmatpush.bf16.msra.mxu0 0
        %2456 = vmatpush.bf16.msra.mxu0 0
        %2457 = vmatpush.bf16.msra.mxu0 %v2445
        %2458 = vmatmul.bf16.gmra.mxu0 %v2448
        %v2459 = vpop.f32.mrf.mxu0
        %v2460 = vadd.f32 0.0, %v2459
        %v2461 = vpop.f32.mrf.mxu0
        %v2462 = vadd.f32 0.0, %v2461
        %2463 = vdwg.mxu0
        %v2464 = vpack.c.bf16 %v2285, %v2285
        %v2465 = vpack.c.bf16 %v2287, %v2287
        %v2466 = vpack.c.bf16 %v2310, %v2310
        %v2467 = vpack.c.bf16 %v2312, %v2312
        %v2468 = vpack.c.bf16 %v2335, %v2335
        %v2469 = vpack.c.bf16 %v2337, %v2337
        %v2470 = vpack.c.bf16 %v2360, %v2360
        %v2471 = vpack.c.bf16 %v2362, %v2362
        %v2472 = vpack.c.bf16 %v2385, %v2385
        %v2473 = vpack.c.bf16 %v2387, %v2387
        %v2474 = vpack.c.bf16 %v2410, %v2410
        %v2475 = vpack.c.bf16 %v2412, %v2412
        %v2476 = vpack.c.bf16 %v2435, %v2435
        %v2477 = vpack.c.bf16 %v2437, %v2437
        %v2478 = vpack.c.bf16 %v2460, %v2460
        %v2479 = vpack.c.bf16 %v2462, %v2462
        %v2480 = vld [vmem:[%s27] sm:$0xf]
        %v2481 = vld [vmem:[%s27 + $0x4] sm:$0xf]
        %v2482 = vld [vmem:[%s27 + $0x8] sm:$0xf]
        %v2483 = vld [vmem:[%s27 + $0xc] sm:$0xf]
        %v2492 = vunpack.c.l.b16 %v2464
        %v2493 = vunpack.c.l.b16 %v2465
        %v2494 = vunpack.c.l.b16 %v2466
        %v2495 = vunpack.c.l.b16 %v2467
        %v2496 = vunpack.c.l.b16 %v2468
        %v2497 = vunpack.c.l.b16 %v2469
        %v2498 = vunpack.c.l.b16 %v2470
        %v2499 = vunpack.c.l.b16 %v2471
        %v2500 = vpack.c.b16 %v2493, %v2492
        %v2501 = vpack.c.b16 %v2495, %v2494
        %v2502 = vpack.c.b16 %v2497, %v2496
        %v2503 = vpack.c.b16 %v2499, %v2498
        %v2506 = vunpack.c.l.b16 %v2480
        %v2507 = vunpack.c.l.b16 %v2481
        %v2508 = vpack.c.b16 %v2507, %v2506
        %v2511 = vsel %vm1862, %v2500, 0
        %v2514 = vsel %vm1862, %v2501, 0
        %v2517 = vsel %vm1862, %v2502, 0
        %v2520 = vsel %vm1862, %v2503, 0
        %2522 = vmatpush.bf16.msra.mxu0 0
        %2523 = vmatpush.bf16.msra.mxu0 0
        %2524 = vmatpush.bf16.msra.mxu0 0
        %2525 = vmatpush.bf16.msra.mxu0 0
        %2526 = vmatpush.bf16.msra.mxu0 0
        %2527 = vmatpush.bf16.msra.mxu0 0
        %2528 = vmatpush.bf16.msra.mxu0 0
        %2529 = vmatpush.bf16.msra.mxu0 %v2508
        %2530 = vmatmul.bf16.gmra.mxu0 %v2511
        %v2531 = vpop.f32.mrf.mxu0
        %v2532 = vadd.f32 0.0, %v2531
        %v2533 = vpop.f32.mrf.mxu0
        %v2534 = vadd.f32 0.0, %v2533
        %2535 = vmatmul.bf16.gmra.mxu0 %v2514
        %v2536 = vpop.f32.mrf.mxu0
        %v2537 = vadd.f32 0.0, %v2536
        %v2538 = vpop.f32.mrf.mxu0
        %v2539 = vadd.f32 0.0, %v2538
        %2540 = vmatmul.bf16.gmra.mxu0 %v2517
        %v2541 = vpop.f32.mrf.mxu0
        %v2542 = vadd.f32 0.0, %v2541
        %v2543 = vpop.f32.mrf.mxu0
        %v2544 = vadd.f32 0.0, %v2543
        %2545 = vmatmul.bf16.gmra.mxu0 %v2520
        %v2546 = vpop.f32.mrf.mxu0
        %v2547 = vadd.f32 0.0, %v2546
        %v2548 = vpop.f32.mrf.mxu0
        %v2549 = vadd.f32 0.0, %v2548
        %2550 = vdwg.mxu0
        %v2559 = vunpack.c.l.b16 %v2472
        %v2560 = vunpack.c.l.b16 %v2473
        %v2561 = vunpack.c.l.b16 %v2474
        %v2562 = vunpack.c.l.b16 %v2475
        %v2563 = vunpack.c.l.b16 %v2476
        %v2564 = vunpack.c.l.b16 %v2477
        %v2565 = vunpack.c.l.b16 %v2478
        %v2566 = vunpack.c.l.b16 %v2479
        %v2567 = vpack.c.b16 %v2560, %v2559
        %v2568 = vpack.c.b16 %v2562, %v2561
        %v2569 = vpack.c.b16 %v2564, %v2563
        %v2570 = vpack.c.b16 %v2566, %v2565
        %v2573 = vunpack.c.l.b16 %v2482
        %v2574 = vunpack.c.l.b16 %v2483
        %v2575 = vpack.c.b16 %v2574, %v2573
        %v2578 = vsel %vm1862, %v2567, 0
        %v2581 = vsel %vm1862, %v2568, 0
        %v2584 = vsel %vm1862, %v2569, 0
        %v2587 = vsel %vm1862, %v2570, 0
        %2589 = vmatpush.bf16.msra.mxu0 0
        %2590 = vmatpush.bf16.msra.mxu0 0
        %2591 = vmatpush.bf16.msra.mxu0 0
        %2592 = vmatpush.bf16.msra.mxu0 0
        %2593 = vmatpush.bf16.msra.mxu0 0
        %2594 = vmatpush.bf16.msra.mxu0 0
        %2595 = vmatpush.bf16.msra.mxu0 0
        %2596 = vmatpush.bf16.msra.mxu0 %v2575
        %2597 = vmatmul.bf16.gmra.mxu0 %v2578
        %v2598 = vpop.f32.mrf.mxu0
        %v2599 = vadd.f32 0.0, %v2598
        %v2600 = vpop.f32.mrf.mxu0
        %v2601 = vadd.f32 0.0, %v2600
        %2602 = vmatmul.bf16.gmra.mxu0 %v2581
        %v2603 = vpop.f32.mrf.mxu0
        %v2604 = vadd.f32 0.0, %v2603
        %v2605 = vpop.f32.mrf.mxu0
        %v2606 = vadd.f32 0.0, %v2605
        %2607 = vmatmul.bf16.gmra.mxu0 %v2584
        %v2608 = vpop.f32.mrf.mxu0
        %v2609 = vadd.f32 0.0, %v2608
        %v2610 = vpop.f32.mrf.mxu0
        %v2611 = vadd.f32 0.0, %v2610
        %2612 = vmatmul.bf16.gmra.mxu0 %v2587
        %v2613 = vpop.f32.mrf.mxu0
        %v2614 = vadd.f32 0.0, %v2613
        %v2615 = vpop.f32.mrf.mxu0
        %v2616 = vadd.f32 0.0, %v2615
        %2617 = vdwg.mxu0
        %v2618 = vsel %vm1246, %v2532, 0.0
        %v2619 = vsel %vm1246, %v2599, 0.0
        %v2620 = vadd.f32 %v2618, %v2619
        %v2621 = vsel %vm1246, %v2534, 0.0
        %v2622 = vsel %vm1246, %v2601, 0.0
        %v2623 = vadd.f32 %v2621, %v2622
        %v2624 = vsel %vm1246, %v2537, 0.0
        %v2625 = vsel %vm1246, %v2604, 0.0
        %v2626 = vadd.f32 %v2624, %v2625
        %v2627 = vsel %vm1246, %v2539, 0.0
        %v2628 = vsel %vm1246, %v2606, 0.0
        %v2629 = vadd.f32 %v2627, %v2628
        %v2630 = vsel %vm1246, %v2542, 0.0
        %v2631 = vsel %vm1246, %v2609, 0.0
        %v2632 = vadd.f32 %v2630, %v2631
        %v2633 = vsel %vm1246, %v2544, 0.0
        %v2634 = vsel %vm1246, %v2611, 0.0
        %v2635 = vadd.f32 %v2633, %v2634
        %v2636 = vsel %vm1246, %v2547, 0.0
        %v2637 = vsel %vm1246, %v2614, 0.0
        %v2638 = vadd.f32 %v2636, %v2637
        %v2639 = vsel %vm1246, %v2549, 0.0
        %v2640 = vsel %vm1246, %v2616, 0.0
        %v2641 = vadd.f32 %v2639, %v2640
        %v2642 = vadd.f32 %v1503, %v2620
        %v2643 = vadd.f32 %v1506, %v2623
        %v2644 = vadd.f32 %v1509, %v2626
        %v2645 = vadd.f32 %v1512, %v2629
        %v2646 = vadd.f32 %v1515, %v2632
        %v2647 = vadd.f32 %v1518, %v2635
        %v2648 = vadd.f32 %v1521, %v2638
        %v2649 = vadd.f32 %v1524, %v2641
        %v2650 = vld [vmem:[%s29] sm:$0x1]
        %v2652 = vperm.slane %v2650, 0
        %v2654 = vadd.f32 %v2642, %v2652
        %v2655 = vadd.f32 %v2643, %v2652
        %v2656 = vadd.f32 %v2644, %v2652
        %v2657 = vadd.f32 %v2645, %v2652
        %v2658 = vadd.f32 %v2646, %v2652
        %v2659 = vadd.f32 %v2647, %v2652
        %v2660 = vadd.f32 %v2648, %v2652
        %v2661 = vadd.f32 %v2649, %v2652
        %v2662 = vld [vmem:[%s31] sm:$0x1]
        %v2663 = vld [vmem:[%s33] sm:$0x1]
        %v2664 = vsel %vm1246, %v2654, 0.0
        %2665 = vadd.xlane.f32.xlu0 %v2664
        %v2666 = vpop.xlane.xlu0 %2665
        %v2667 = vsel %vm1246, %v2655, 0.0
        %2668 = vadd.xlane.f32.xlu0 %v2667
        %v2669 = vpop.xlane.xlu0 %2668
        %v2670 = vsel %vm1246, %v2656, 0.0
        %2671 = vadd.xlane.f32.xlu0 %v2670
        %v2672 = vpop.xlane.xlu0 %2671
        %v2673 = vsel %vm1246, %v2657, 0.0
        %2674 = vadd.xlane.f32.xlu0 %v2673
        %v2675 = vpop.xlane.xlu0 %2674
        %v2676 = vsel %vm1246, %v2658, 0.0
        %2677 = vadd.xlane.f32.xlu0 %v2676
        %v2678 = vpop.xlane.xlu0 %2677
        %v2679 = vsel %vm1246, %v2659, 0.0
        %2680 = vadd.xlane.f32.xlu0 %v2679
        %v2681 = vpop.xlane.xlu0 %2680
        %v2682 = vsel %vm1246, %v2660, 0.0
        %2683 = vadd.xlane.f32.xlu0 %v2682
        %v2684 = vpop.xlane.xlu0 %2683
        %v2685 = vsel %vm1246, %v2661, 0.0
        %2686 = vadd.xlane.f32.xlu0 %v2685
        %v2687 = vpop.xlane.xlu0 %2686
        %v2688 = vmul.f32 %v2666, %v1277
        %v2689 = vmul.f32 %v2669, %v1277
        %v2690 = vmul.f32 %v2672, %v1277
        %v2691 = vmul.f32 %v2675, %v1277
        %v2692 = vmul.f32 %v2678, %v1277
        %v2693 = vmul.f32 %v2681, %v1277
        %v2694 = vmul.f32 %v2684, %v1277
        %v2695 = vmul.f32 %v2687, %v1277
        %v2696 = vsub.f32 %v2654, %v2688
        %v2697 = vsub.f32 %v2655, %v2689
        %v2698 = vsub.f32 %v2656, %v2690
        %v2699 = vsub.f32 %v2657, %v2691
        %v2700 = vsub.f32 %v2658, %v2692
        %v2701 = vsub.f32 %v2659, %v2693
        %v2702 = vsub.f32 %v2660, %v2694
        %v2703 = vsub.f32 %v2661, %v2695
        %v2704 = vmul.f32 %v2696, %v2696
        %v2705 = vmul.f32 %v2697, %v2697
        %v2706 = vmul.f32 %v2698, %v2698
        %v2707 = vmul.f32 %v2699, %v2699
        %v2708 = vmul.f32 %v2700, %v2700
        %v2709 = vmul.f32 %v2701, %v2701
        %v2710 = vmul.f32 %v2702, %v2702
        %v2711 = vmul.f32 %v2703, %v2703
        %v2712 = vsel %vm1246, %v2704, 0.0
        %2713 = vadd.xlane.f32.xlu0 %v2712
        %v2714 = vpop.xlane.xlu0 %2713
        %v2715 = vsel %vm1246, %v2705, 0.0
        %2716 = vadd.xlane.f32.xlu0 %v2715
        %v2717 = vpop.xlane.xlu0 %2716
        %v2718 = vsel %vm1246, %v2706, 0.0
        %2719 = vadd.xlane.f32.xlu0 %v2718
        %v2720 = vpop.xlane.xlu0 %2719
        %v2721 = vsel %vm1246, %v2707, 0.0
        %2722 = vadd.xlane.f32.xlu0 %v2721
        %v2723 = vpop.xlane.xlu0 %2722
        %v2724 = vsel %vm1246, %v2708, 0.0
        %2725 = vadd.xlane.f32.xlu0 %v2724
        %v2726 = vpop.xlane.xlu0 %2725
        %v2727 = vsel %vm1246, %v2709, 0.0
        %2728 = vadd.xlane.f32.xlu0 %v2727
        %v2729 = vpop.xlane.xlu0 %2728
        %v2730 = vsel %vm1246, %v2710, 0.0
        %2731 = vadd.xlane.f32.xlu0 %v2730
        %v2732 = vpop.xlane.xlu0 %2731
        %v2733 = vsel %vm1246, %v2711, 0.0
        %2734 = vadd.xlane.f32.xlu0 %v2733
        %v2735 = vpop.xlane.xlu0 %2734
        %v2736 = vmul.f32 %v2714, %v1277
        %v2737 = vmul.f32 %v2717, %v1277
        %v2738 = vmul.f32 %v2720, %v1277
        %v2739 = vmul.f32 %v2723, %v1277
        %v2740 = vmul.f32 %v2726, %v1277
        %v2741 = vmul.f32 %v2729, %v1277
        %v2742 = vmul.f32 %v2732, %v1277
        %v2743 = vmul.f32 %v2735, %v1277
        %v2744 = vadd.f32 %v2736, 1e-05
        %v2745 = vadd.f32 %v2737, 1e-05
        %v2746 = vadd.f32 %v2738, 1e-05
        %v2747 = vadd.f32 %v2739, 1e-05
        %v2748 = vadd.f32 %v2740, 1e-05
        %v2749 = vadd.f32 %v2741, 1e-05
        %v2750 = vadd.f32 %v2742, 1e-05
        %v2751 = vadd.f32 %v2743, 1e-05
        %v2752 = vrsqrt.pop %v2744
        %v2753 = vmul.f32 %v2752, %v2744
        %v2754 = vmul.f32 %v2753, %v2752
        %v2755 = vmul.f32 0.5, %v2754
        %v2756 = vsub.f32 1.5, %v2755
        %v2757 = vmul.f32 %v2752, %v2756
        %vm2758 = vweird.f32 %v2744
        %vm2759 = vweird.f32 %v2752
        %vm2760 = vmor %vm2758, %vm2759
        %v2761 = vsel %vm2760, %v2752, %v2757
        %v2762 = vrsqrt.pop %v2745
        %v2763 = vmul.f32 %v2762, %v2745
        %v2764 = vmul.f32 %v2763, %v2762
        %v2765 = vmul.f32 0.5, %v2764
        %v2766 = vsub.f32 1.5, %v2765
        %v2767 = vmul.f32 %v2762, %v2766
        %vm2768 = vweird.f32 %v2745
        %vm2769 = vweird.f32 %v2762
        %vm2770 = vmor %vm2768, %vm2769
        %v2771 = vsel %vm2770, %v2762, %v2767
        %v2772 = vrsqrt.pop %v2746
        %v2773 = vmul.f32 %v2772, %v2746
        %v2774 = vmul.f32 %v2773, %v2772
        %v2775 = vmul.f32 0.5, %v2774
        %v2776 = vsub.f32 1.5, %v2775
        %v2777 = vmul.f32 %v2772, %v2776
        %vm2778 = vweird.f32 %v2746
        %vm2779 = vweird.f32 %v2772
        %vm2780 = vmor %vm2778, %vm2779
        %v2781 = vsel %vm2780, %v2772, %v2777
        %v2782 = vrsqrt.pop %v2747
        %v2783 = vmul.f32 %v2782, %v2747
        %v2784 = vmul.f32 %v2783, %v2782
        %v2785 = vmul.f32 0.5, %v2784
        %v2786 = vsub.f32 1.5, %v2785
        %v2787 = vmul.f32 %v2782, %v2786
        %vm2788 = vweird.f32 %v2747
        %vm2789 = vweird.f32 %v2782
        %vm2790 = vmor %vm2788, %vm2789
        %v2791 = vsel %vm2790, %v2782, %v2787
        %v2792 = vrsqrt.pop %v2748
        %v2793 = vmul.f32 %v2792, %v2748
        %v2794 = vmul.f32 %v2793, %v2792
        %v2795 = vmul.f32 0.5, %v2794
        %v2796 = vsub.f32 1.5, %v2795
        %v2797 = vmul.f32 %v2792, %v2796
        %vm2798 = vweird.f32 %v2748
        %vm2799 = vweird.f32 %v2792
        %vm2800 = vmor %vm2798, %vm2799
        %v2801 = vsel %vm2800, %v2792, %v2797
        %v2802 = vrsqrt.pop %v2749
        %v2803 = vmul.f32 %v2802, %v2749
        %v2804 = vmul.f32 %v2803, %v2802
        %v2805 = vmul.f32 0.5, %v2804
        %v2806 = vsub.f32 1.5, %v2805
        %v2807 = vmul.f32 %v2802, %v2806
        %vm2808 = vweird.f32 %v2749
        %vm2809 = vweird.f32 %v2802
        %vm2810 = vmor %vm2808, %vm2809
        %v2811 = vsel %vm2810, %v2802, %v2807
        %v2812 = vrsqrt.pop %v2750
        %v2813 = vmul.f32 %v2812, %v2750
        %v2814 = vmul.f32 %v2813, %v2812
        %v2815 = vmul.f32 0.5, %v2814
        %v2816 = vsub.f32 1.5, %v2815
        %v2817 = vmul.f32 %v2812, %v2816
        %vm2818 = vweird.f32 %v2750
        %vm2819 = vweird.f32 %v2812
        %vm2820 = vmor %vm2818, %vm2819
        %v2821 = vsel %vm2820, %v2812, %v2817
        %v2822 = vrsqrt.pop %v2751
        %v2823 = vmul.f32 %v2822, %v2751
        %v2824 = vmul.f32 %v2823, %v2822
        %v2825 = vmul.f32 0.5, %v2824
        %v2826 = vsub.f32 1.5, %v2825
        %v2827 = vmul.f32 %v2822, %v2826
        %vm2828 = vweird.f32 %v2751
        %vm2829 = vweird.f32 %v2822
        %vm2830 = vmor %vm2828, %vm2829
        %v2831 = vsel %vm2830, %v2822, %v2827
        %v2832 = vmul.f32 %v2696, %v2761
        %v2833 = vmul.f32 %v2697, %v2771
        %v2834 = vmul.f32 %v2698, %v2781
        %v2835 = vmul.f32 %v2699, %v2791
        %v2836 = vmul.f32 %v2700, %v2801
        %v2837 = vmul.f32 %v2701, %v2811
        %v2838 = vmul.f32 %v2702, %v2821
        %v2839 = vmul.f32 %v2703, %v2831
        %v2841 = vperm.slane %v2662, 0
        %v2843 = vmul.f32 %v2832, %v2841
        %v2844 = vmul.f32 %v2833, %v2841
        %v2845 = vmul.f32 %v2834, %v2841
        %v2846 = vmul.f32 %v2835, %v2841
        %v2847 = vmul.f32 %v2836, %v2841
        %v2848 = vmul.f32 %v2837, %v2841
        %v2849 = vmul.f32 %v2838, %v2841
        %v2850 = vmul.f32 %v2839, %v2841
        %v2852 = vperm.slane %v2663, 0
        %v2854 = vadd.f32 %v2843, %v2852
        %v2855 = vadd.f32 %v2844, %v2852
        %v2856 = vadd.f32 %v2845, %v2852
        %v2857 = vadd.f32 %v2846, %v2852
        %v2858 = vadd.f32 %v2847, %v2852
        %v2859 = vadd.f32 %v2848, %v2852
        %v2860 = vadd.f32 %v2849, %v2852
        %v2861 = vadd.f32 %v2850, %v2852
        %v2862 = vpack.c.bf16 %v2855, %v2854
        %v2863 = vpack.c.bf16 %v2857, %v2856
        %v2864 = vpack.c.bf16 %v2859, %v2858
        %v2865 = vpack.c.bf16 %v2861, %v2860
        %v2866 = vld [vmem:[%s35] sm:$0xf]
        %v2867 = vld [vmem:[%s35 + $0x4] sm:$0xf]
        %v2868 = vld [vmem:[%s35 + $0x8] sm:$0xf]
        %v2869 = vld [vmem:[%s35 + $0xc] sm:$0xf]
        %v2870 = vld [vmem:[%s37] sm:$0x1]
        %v2872 = vperm.slane %v2870, 0
        %v2878 = vunpack.c.l.b16 %v2866
        %v2879 = vunpack.c.l.b16 %v2867
        %v2880 = vunpack.c.l.b16 %v2868
        %v2881 = vunpack.c.l.b16 %v2869
        %v2882 = vpack.c.b16 %v2879, %v2878
        %v2883 = vpack.c.b16 %v2881, %v2880
        %v2887 = vsel %vm1246, %v2862, 0
        %v2890 = vsel %vm1246, %v2863, 0
        %v2893 = vsel %vm1246, %v2864, 0
        %v2896 = vsel %vm1246, %v2865, 0
        %2898 = vmatpush.bf16.msra.mxu0 0
        %2899 = vmatpush.bf16.msra.mxu0 0
        %2900 = vmatpush.bf16.msra.mxu0 0
        %2901 = vmatpush.bf16.msra.mxu0 0
        %2902 = vmatpush.bf16.msra.mxu0 0
        %2903 = vmatpush.bf16.msra.mxu0 0
        %2904 = vmatpush.bf16.msra.mxu0 %v2883
        %2905 = vmatpush.bf16.msra.mxu0 %v2882
        %2906 = vmatmul.bf16.gmra.mxu0 %v2887
        %v2907 = vpop.f32.mrf.mxu0
        %v2908 = vadd.f32 %v2872, %v2907
        %v2909 = vpop.f32.mrf.mxu0
        %v2910 = vadd.f32 %v2872, %v2909
        %2911 = vmatmul.bf16.gmra.mxu0 %v2890
        %v2912 = vpop.f32.mrf.mxu0
        %v2913 = vadd.f32 %v2872, %v2912
        %v2914 = vpop.f32.mrf.mxu0
        %v2915 = vadd.f32 %v2872, %v2914
        %2916 = vmatmul.bf16.gmra.mxu0 %v2893
        %v2917 = vpop.f32.mrf.mxu0
        %v2918 = vadd.f32 %v2872, %v2917
        %v2919 = vpop.f32.mrf.mxu0
        %v2920 = vadd.f32 %v2872, %v2919
        %2921 = vmatmul.bf16.gmra.mxu0 %v2896
        %v2922 = vpop.f32.mrf.mxu0
        %v2923 = vadd.f32 %v2872, %v2922
        %v2924 = vpop.f32.mrf.mxu0
        %v2925 = vadd.f32 %v2872, %v2924
        %2926 = vdwg.mxu0
        %v2927 = vmul.f32 %v2908, %v2908
        %v2928 = vmul.f32 %v2910, %v2910
        %v2929 = vmul.f32 %v2913, %v2913
        %v2930 = vmul.f32 %v2915, %v2915
        %v2931 = vmul.f32 %v2918, %v2918
        %v2932 = vmul.f32 %v2920, %v2920
        %v2933 = vmul.f32 %v2923, %v2923
        %v2934 = vmul.f32 %v2925, %v2925
        %v2935 = vmul.f32 %v2908, %v2927
        %v2936 = vmul.f32 %v2910, %v2928
        %v2937 = vmul.f32 %v2913, %v2929
        %v2938 = vmul.f32 %v2915, %v2930
        %v2939 = vmul.f32 %v2918, %v2931
        %v2940 = vmul.f32 %v2920, %v2932
        %v2941 = vmul.f32 %v2923, %v2933
        %v2942 = vmul.f32 %v2925, %v2934
        %v2943 = vmul.f32 %v2935, 0.044715
        %v2944 = vmul.f32 %v2936, 0.044715
        %v2945 = vmul.f32 %v2937, 0.044715
        %v2946 = vmul.f32 %v2938, 0.044715
        %v2947 = vmul.f32 %v2939, 0.044715
        %v2948 = vmul.f32 %v2940, 0.044715
        %v2949 = vmul.f32 %v2941, 0.044715
        %v2950 = vmul.f32 %v2942, 0.044715
        %v2951 = vadd.f32 %v2908, %v2943
        %v2952 = vadd.f32 %v2910, %v2944
        %v2953 = vadd.f32 %v2913, %v2945
        %v2954 = vadd.f32 %v2915, %v2946
        %v2955 = vadd.f32 %v2918, %v2947
        %v2956 = vadd.f32 %v2920, %v2948
        %v2957 = vadd.f32 %v2923, %v2949
        %v2958 = vadd.f32 %v2925, %v2950
        %v2959 = vmul.f32 %v2951, 0.7978846
        %v2960 = vmul.f32 %v2952, 0.7978846
        %v2961 = vmul.f32 %v2953, 0.7978846
        %v2962 = vmul.f32 %v2954, 0.7978846
        %v2963 = vmul.f32 %v2955, 0.7978846
        %v2964 = vmul.f32 %v2956, 0.7978846
        %v2965 = vmul.f32 %v2957, 0.7978846
        %v2966 = vmul.f32 %v2958, 0.7978846
        %v2967 = vtanh.pop %v2959
        %v2968 = vtanh.pop %v2960
        %v2969 = vtanh.pop %v2961
        %v2970 = vtanh.pop %v2962
        %v2971 = vtanh.pop %v2963
        %v2972 = vtanh.pop %v2964
        %v2973 = vtanh.pop %v2965
        %v2974 = vtanh.pop %v2966
        %v2975 = vadd.f32 %v2967, 1.0
        %v2976 = vadd.f32 %v2968, 1.0
        %v2977 = vadd.f32 %v2969, 1.0
        %v2978 = vadd.f32 %v2970, 1.0
        %v2979 = vadd.f32 %v2971, 1.0
        %v2980 = vadd.f32 %v2972, 1.0
        %v2981 = vadd.f32 %v2973, 1.0
        %v2982 = vadd.f32 %v2974, 1.0
        %v2983 = vmul.f32 %v2975, 0.5
        %v2984 = vmul.f32 %v2976, 0.5
        %v2985 = vmul.f32 %v2977, 0.5
        %v2986 = vmul.f32 %v2978, 0.5
        %v2987 = vmul.f32 %v2979, 0.5
        %v2988 = vmul.f32 %v2980, 0.5
        %v2989 = vmul.f32 %v2981, 0.5
        %v2990 = vmul.f32 %v2982, 0.5
        %v2991 = vmul.f32 %v2908, %v2983
        %v2992 = vmul.f32 %v2910, %v2984
        %v2993 = vmul.f32 %v2913, %v2985
        %v2994 = vmul.f32 %v2915, %v2986
        %v2995 = vmul.f32 %v2918, %v2987
        %v2996 = vmul.f32 %v2920, %v2988
        %v2997 = vmul.f32 %v2923, %v2989
        %v2998 = vmul.f32 %v2925, %v2990
        %v2999 = vpack.c.bf16 %v2992, %v2991
        %v3000 = vpack.c.bf16 %v2994, %v2993
        %v3001 = vpack.c.bf16 %v2996, %v2995
        %v3002 = vpack.c.bf16 %v2998, %v2997
        %v3003 = vld [vmem:[%s39] sm:$0xf]
        %v3004 = vld [vmem:[%s39 + $0x4] sm:$0xf]
        %v3005 = vld [vmem:[%s39 + $0x8] sm:$0xf]
        %v3006 = vld [vmem:[%s39 + $0xc] sm:$0xf]
        %v3007 = vld [vmem:[%s39 + $0x10] sm:$0xf]
        %v3008 = vld [vmem:[%s39 + $0x14] sm:$0xf]
        %v3009 = vld [vmem:[%s39 + $0x18] sm:$0xf]
        %v3010 = vld [vmem:[%s39 + $0x1c] sm:$0xf]
        %v3011 = vld [vmem:[%s39 + $0x20] sm:$0xf]
        %v3012 = vld [vmem:[%s39 + $0x24] sm:$0xf]
        %v3013 = vld [vmem:[%s39 + $0x28] sm:$0xf]
        %v3014 = vld [vmem:[%s39 + $0x2c] sm:$0xf]
        %v3015 = vld [vmem:[%s39 + $0x30] sm:$0xf]
        %v3016 = vld [vmem:[%s39 + $0x34] sm:$0xf]
        %v3017 = vld [vmem:[%s39 + $0x38] sm:$0xf]
        %v3018 = vld [vmem:[%s39 + $0x3c] sm:$0xf]
        %v3019 = vld [vmem:[%s41] sm:$0x1]
        %v3021 = vperm.slane %v3019, 0
        %v3039 = vunpack.c.l.b16 %v3003
        %v3040 = vunpack.c.l.b16 %v3004
        %v3041 = vunpack.c.l.b16 %v3005
        %v3042 = vunpack.c.l.b16 %v3006
        %v3043 = vunpack.c.l.b16 %v3007
        %v3044 = vunpack.c.l.b16 %v3008
        %v3045 = vunpack.c.l.b16 %v3009
        %v3046 = vunpack.c.l.b16 %v3010
        %v3047 = vunpack.c.l.b16 %v3011
        %v3048 = vunpack.c.l.b16 %v3012
        %v3049 = vunpack.c.l.b16 %v3013
        %v3050 = vunpack.c.l.b16 %v3014
        %v3051 = vunpack.c.l.b16 %v3015
        %v3052 = vunpack.c.l.b16 %v3016
        %v3053 = vunpack.c.l.b16 %v3017
        %v3054 = vunpack.c.l.b16 %v3018
        %v3055 = vpack.c.b16 %v3040, %v3039
        %v3056 = vpack.c.b16 %v3042, %v3041
        %v3057 = vpack.c.b16 %v3044, %v3043
        %v3058 = vpack.c.b16 %v3046, %v3045
        %v3059 = vpack.c.b16 %v3048, %v3047
        %v3060 = vpack.c.b16 %v3050, %v3049
        %v3061 = vpack.c.b16 %v3052, %v3051
        %v3062 = vpack.c.b16 %v3054, %v3053
        %3071 = vmatpush.bf16.msra.mxu0 %v3062
        %3072 = vmatpush.bf16.msra.mxu0 %v3061
        %3073 = vmatpush.bf16.msra.mxu0 %v3060
        %3074 = vmatpush.bf16.msra.mxu0 %v3059
        %3075 = vmatpush.bf16.msra.mxu0 %v3058
        %3076 = vmatpush.bf16.msra.mxu0 %v3057
        %3077 = vmatpush.bf16.msra.mxu0 %v3056
        %3078 = vmatpush.bf16.msra.mxu0 %v3055
        %3079 = vmatmul.bf16.gmra.mxu0 %v2999
        %v3080 = vpop.f32.mrf.mxu0
        %v3081 = vadd.f32 %v3021, %v3080
        %v3082 = vpop.f32.mrf.mxu0
        %v3083 = vadd.f32 %v3021, %v3082
        %3084 = vmatmul.bf16.gmra.mxu0 %v3000
        %v3085 = vpop.f32.mrf.mxu0
        %v3086 = vadd.f32 %v3021, %v3085
        %v3087 = vpop.f32.mrf.mxu0
        %v3088 = vadd.f32 %v3021, %v3087
        %3089 = vmatmul.bf16.gmra.mxu0 %v3001
        %v3090 = vpop.f32.mrf.mxu0
        %v3091 = vadd.f32 %v3021, %v3090
        %v3092 = vpop.f32.mrf.mxu0
        %v3093 = vadd.f32 %v3021, %v3092
        %3094 = vmatmul.bf16.gmra.mxu0 %v3002
        %v3095 = vpop.f32.mrf.mxu0
        %v3096 = vadd.f32 %v3021, %v3095
        %v3097 = vpop.f32.mrf.mxu0
        %v3098 = vadd.f32 %v3021, %v3097
        %3099 = vdwg.mxu0
        %v3100 = vadd.f32 %v2654, %v3081
        %v3101 = vadd.f32 %v2655, %v3083
        %v3102 = vadd.f32 %v2656, %v3086
        %v3103 = vadd.f32 %v2657, %v3088
        %v3104 = vadd.f32 %v2658, %v3091
        %v3105 = vadd.f32 %v2659, %v3093
        %v3106 = vadd.f32 %v2660, %v3096
        %v3107 = vadd.f32 %v2661, %v3098
        %v3108 = vld [vmem:[%s13] sm:$0xff]
        %v3109 = vld [vmem:[%s13 + $0x8] sm:$0xff]
        %v3110 = vld [vmem:[%s13 + $0x10] sm:$0xff]
        %v3111 = vld [vmem:[%s13 + $0x18] sm:$0xff]
        %v3112 = vld [vmem:[%s13 + $0x20] sm:$0xff]
        %v3113 = vld [vmem:[%s13 + $0x28] sm:$0xff]
        %v3114 = vld [vmem:[%s13 + $0x30] sm:$0xff]
        %v3115 = vld [vmem:[%s13 + $0x38] sm:$0xff]
        %v3117 = vsel %vm1460, %v3108, 0
        %v3120 = vsel %vm1460, %v3109, 0
        %v3123 = vsel %vm1460, %v3110, 0
        %v3126 = vsel %vm1460, %v3111, 0
        %v3129 = vsel %vm1460, %v3112, 0
        %v3132 = vsel %vm1460, %v3113, 0
        %v3135 = vsel %vm1460, %v3114, 0
        %v3138 = vsel %vm1460, %v3115, 0
        %3140 = vmatpush.msra.mxu0 0.0
        %3141 = vmatpush.msra.mxu0 0.0
        %3142 = vmatpush.msra.mxu0 0.0
        %3143 = vmatpush.msra.mxu0 0.0
        %3144 = vmatpush.msra.mxu0 0.0
        %3145 = vmatpush.msra.mxu0 0.0
        %3146 = vmatpush.msra.mxu0 0.0
        %3147 = vmatpush.msra.mxu0 0.0
        %3148 = vmatpush.msra.mxu0 %v3107
        %3149 = vmatpush.msra.mxu0 %v3106
        %3150 = vmatpush.msra.mxu0 %v3105
        %3151 = vmatpush.msra.mxu0 %v3104
        %3152 = vmatpush.msra.mxu0 %v3103
        %3153 = vmatpush.msra.mxu0 %v3102
        %3154 = vmatpush.msra.mxu0 %v3101
        %3155 = vmatpush.msra.mxu0 %v3100
        %3156 = vmatmul.f32.gmra.mxu0 %v3117
        %v3157 = vpop.f32.mrf.mxu0
        %v3158 = vadd.f32 0.0, %v3157
        %3159 = vmatmul.f32.gmra.mxu0 %v3120
        %v3160 = vpop.f32.mrf.mxu0
        %v3161 = vadd.f32 0.0, %v3160
        %3162 = vmatmul.f32.gmra.mxu0 %v3123
        %v3163 = vpop.f32.mrf.mxu0
        %v3164 = vadd.f32 0.0, %v3163
        %3165 = vmatmul.f32.gmra.mxu0 %v3126
        %v3166 = vpop.f32.mrf.mxu0
        %v3167 = vadd.f32 0.0, %v3166
        %3168 = vmatmul.f32.gmra.mxu0 %v3129
        %v3169 = vpop.f32.mrf.mxu0
        %v3170 = vadd.f32 0.0, %v3169
        %3171 = vmatmul.f32.gmra.mxu0 %v3132
        %v3172 = vpop.f32.mrf.mxu0
        %v3173 = vadd.f32 0.0, %v3172
        %3174 = vmatmul.f32.gmra.mxu0 %v3135
        %v3175 = vpop.f32.mrf.mxu0
        %v3176 = vadd.f32 0.0, %v3175
        %3177 = vmatmul.f32.gmra.mxu0 %v3138
        %v3178 = vpop.f32.mrf.mxu0
        %v3179 = vadd.f32 0.0, %v3178
        %3180 = vdwg.mxu0
        %v3181 = vld [vmem:[%s43] sm:$0x1]
        %v3182 = vld [vmem:[#allocation2] sm:$0x1]
        %v3183 = vsel %vm1246, %v3158, 0.0
        %3184 = vadd.xlane.f32.xlu0 %v3183
        %v3185 = vpop.xlane.xlu0 %3184
        %v3186 = vsel %vm1246, %v3161, 0.0
        %3187 = vadd.xlane.f32.xlu0 %v3186
        %v3188 = vpop.xlane.xlu0 %3187
        %v3189 = vsel %vm1246, %v3164, 0.0
        %3190 = vadd.xlane.f32.xlu0 %v3189
        %v3191 = vpop.xlane.xlu0 %3190
        %v3192 = vsel %vm1246, %v3167, 0.0
        %3193 = vadd.xlane.f32.xlu0 %v3192
        %v3194 = vpop.xlane.xlu0 %3193
        %v3195 = vsel %vm1246, %v3170, 0.0
        %3196 = vadd.xlane.f32.xlu0 %v3195
        %v3197 = vpop.xlane.xlu0 %3196
        %v3198 = vsel %vm1246, %v3173, 0.0
        %3199 = vadd.xlane.f32.xlu0 %v3198
        %v3200 = vpop.xlane.xlu0 %3199
        %v3201 = vsel %vm1246, %v3176, 0.0
        %3202 = vadd.xlane.f32.xlu0 %v3201
        %v3203 = vpop.xlane.xlu0 %3202
        %v3204 = vsel %vm1246, %v3179, 0.0
        %3205 = vadd.xlane.f32.xlu0 %v3204
        %v3206 = vpop.xlane.xlu0 %3205
        %v3207 = vmul.f32 %v3185, %v1277
        %v3208 = vmul.f32 %v3188, %v1277
        %v3209 = vmul.f32 %v3191, %v1277
        %v3210 = vmul.f32 %v3194, %v1277
        %v3211 = vmul.f32 %v3197, %v1277
        %v3212 = vmul.f32 %v3200, %v1277
        %v3213 = vmul.f32 %v3203, %v1277
        %v3214 = vmul.f32 %v3206, %v1277
        %v3215 = vsub.f32 %v3158, %v3207
        %v3216 = vsub.f32 %v3161, %v3208
        %v3217 = vsub.f32 %v3164, %v3209
        %v3218 = vsub.f32 %v3167, %v3210
        %v3219 = vsub.f32 %v3170, %v3211
        %v3220 = vsub.f32 %v3173, %v3212
        %v3221 = vsub.f32 %v3176, %v3213
        %v3222 = vsub.f32 %v3179, %v3214
        %v3223 = vmul.f32 %v3215, %v3215
        %v3224 = vmul.f32 %v3216, %v3216
        %v3225 = vmul.f32 %v3217, %v3217
        %v3226 = vmul.f32 %v3218, %v3218
        %v3227 = vmul.f32 %v3219, %v3219
        %v3228 = vmul.f32 %v3220, %v3220
        %v3229 = vmul.f32 %v3221, %v3221
        %v3230 = vmul.f32 %v3222, %v3222
        %v3231 = vsel %vm1246, %v3223, 0.0
        %3232 = vadd.xlane.f32.xlu0 %v3231
        %v3233 = vpop.xlane.xlu0 %3232
        %v3234 = vsel %vm1246, %v3224, 0.0
        %3235 = vadd.xlane.f32.xlu0 %v3234
        %v3236 = vpop.xlane.xlu0 %3235
        %v3237 = vsel %vm1246, %v3225, 0.0
        %3238 = vadd.xlane.f32.xlu0 %v3237
        %v3239 = vpop.xlane.xlu0 %3238
        %v3240 = vsel %vm1246, %v3226, 0.0
        %3241 = vadd.xlane.f32.xlu0 %v3240
        %v3242 = vpop.xlane.xlu0 %3241
        %v3243 = vsel %vm1246, %v3227, 0.0
        %3244 = vadd.xlane.f32.xlu0 %v3243
        %v3245 = vpop.xlane.xlu0 %3244
        %v3246 = vsel %vm1246, %v3228, 0.0
        %3247 = vadd.xlane.f32.xlu0 %v3246
        %v3248 = vpop.xlane.xlu0 %3247
        %v3249 = vsel %vm1246, %v3229, 0.0
        %3250 = vadd.xlane.f32.xlu0 %v3249
        %v3251 = vpop.xlane.xlu0 %3250
        %v3252 = vsel %vm1246, %v3230, 0.0
        %3253 = vadd.xlane.f32.xlu0 %v3252
        %v3254 = vpop.xlane.xlu0 %3253
        %v3255 = vmul.f32 %v3233, %v1277
        %v3256 = vmul.f32 %v3236, %v1277
        %v3257 = vmul.f32 %v3239, %v1277
        %v3258 = vmul.f32 %v3242, %v1277
        %v3259 = vmul.f32 %v3245, %v1277
        %v3260 = vmul.f32 %v3248, %v1277
        %v3261 = vmul.f32 %v3251, %v1277
        %v3262 = vmul.f32 %v3254, %v1277
        %v3263 = vadd.f32 %v3255, 1e-05
        %v3264 = vadd.f32 %v3256, 1e-05
        %v3265 = vadd.f32 %v3257, 1e-05
        %v3266 = vadd.f32 %v3258, 1e-05
        %v3267 = vadd.f32 %v3259, 1e-05
        %v3268 = vadd.f32 %v3260, 1e-05
        %v3269 = vadd.f32 %v3261, 1e-05
        %v3270 = vadd.f32 %v3262, 1e-05
        %v3271 = vrsqrt.pop %v3263
        %v3272 = vmul.f32 %v3271, %v3263
        %v3273 = vmul.f32 %v3272, %v3271
        %v3274 = vmul.f32 0.5, %v3273
        %v3275 = vsub.f32 1.5, %v3274
        %v3276 = vmul.f32 %v3271, %v3275
        %vm3277 = vweird.f32 %v3263
        %vm3278 = vweird.f32 %v3271
        %vm3279 = vmor %vm3277, %vm3278
        %v3280 = vsel %vm3279, %v3271, %v3276
        %v3281 = vrsqrt.pop %v3264
        %v3282 = vmul.f32 %v3281, %v3264
        %v3283 = vmul.f32 %v3282, %v3281
        %v3284 = vmul.f32 0.5, %v3283
        %v3285 = vsub.f32 1.5, %v3284
        %v3286 = vmul.f32 %v3281, %v3285
        %vm3287 = vweird.f32 %v3264
        %vm3288 = vweird.f32 %v3281
        %vm3289 = vmor %vm3287, %vm3288
        %v3290 = vsel %vm3289, %v3281, %v3286
        %v3291 = vrsqrt.pop %v3265
        %v3292 = vmul.f32 %v3291, %v3265
        %v3293 = vmul.f32 %v3292, %v3291
        %v3294 = vmul.f32 0.5, %v3293
        %v3295 = vsub.f32 1.5, %v3294
        %v3296 = vmul.f32 %v3291, %v3295
        %vm3297 = vweird.f32 %v3265
        %vm3298 = vweird.f32 %v3291
        %vm3299 = vmor %vm3297, %vm3298
        %v3300 = vsel %vm3299, %v3291, %v3296
        %v3301 = vrsqrt.pop %v3266
        %v3302 = vmul.f32 %v3301, %v3266
        %v3303 = vmul.f32 %v3302, %v3301
        %v3304 = vmul.f32 0.5, %v3303
        %v3305 = vsub.f32 1.5, %v3304
        %v3306 = vmul.f32 %v3301, %v3305
        %vm3307 = vweird.f32 %v3266
        %vm3308 = vweird.f32 %v3301
        %vm3309 = vmor %vm3307, %vm3308
        %v3310 = vsel %vm3309, %v3301, %v3306
        %v3311 = vrsqrt.pop %v3267
        %v3312 = vmul.f32 %v3311, %v3267
        %v3313 = vmul.f32 %v3312, %v3311
        %v3314 = vmul.f32 0.5, %v3313
        %v3315 = vsub.f32 1.5, %v3314
        %v3316 = vmul.f32 %v3311, %v3315
        %vm3317 = vweird.f32 %v3267
        %vm3318 = vweird.f32 %v3311
        %vm3319 = vmor %vm3317, %vm3318
        %v3320 = vsel %vm3319, %v3311, %v3316
        %v3321 = vrsqrt.pop %v3268
        %v3322 = vmul.f32 %v3321, %v3268
        %v3323 = vmul.f32 %v3322, %v3321
        %v3324 = vmul.f32 0.5, %v3323
        %v3325 = vsub.f32 1.5, %v3324
        %v3326 = vmul.f32 %v3321, %v3325
        %vm3327 = vweird.f32 %v3268
        %vm3328 = vweird.f32 %v3321
        %vm3329 = vmor %vm3327, %vm3328
        %v3330 = vsel %vm3329, %v3321, %v3326
        %v3331 = vrsqrt.pop %v3269
        %v3332 = vmul.f32 %v3331, %v3269
        %v3333 = vmul.f32 %v3332, %v3331
        %v3334 = vmul.f32 0.5, %v3333
        %v3335 = vsub.f32 1.5, %v3334
        %v3336 = vmul.f32 %v3331, %v3335
        %vm3337 = vweird.f32 %v3269
        %vm3338 = vweird.f32 %v3331
        %vm3339 = vmor %vm3337, %vm3338
        %v3340 = vsel %vm3339, %v3331, %v3336
        %v3341 = vrsqrt.pop %v3270
        %v3342 = vmul.f32 %v3341, %v3270
        %v3343 = vmul.f32 %v3342, %v3341
        %v3344 = vmul.f32 0.5, %v3343
        %v3345 = vsub.f32 1.5, %v3344
        %v3346 = vmul.f32 %v3341, %v3345
        %vm3347 = vweird.f32 %v3270
        %vm3348 = vweird.f32 %v3341
        %vm3349 = vmor %vm3347, %vm3348
        %v3350 = vsel %vm3349, %v3341, %v3346
        %v3351 = vmul.f32 %v3215, %v3280
        %v3352 = vmul.f32 %v3216, %v3290
        %v3353 = vmul.f32 %v3217, %v3300
        %v3354 = vmul.f32 %v3218, %v3310
        %v3355 = vmul.f32 %v3219, %v3320
        %v3356 = vmul.f32 %v3220, %v3330
        %v3357 = vmul.f32 %v3221, %v3340
        %v3358 = vmul.f32 %v3222, %v3350
        %v3360 = vperm.slane %v3181, 0
        %v3362 = vmul.f32 %v3351, %v3360
        %v3363 = vmul.f32 %v3352, %v3360
        %v3364 = vmul.f32 %v3353, %v3360
        %v3365 = vmul.f32 %v3354, %v3360
        %v3366 = vmul.f32 %v3355, %v3360
        %v3367 = vmul.f32 %v3356, %v3360
        %v3368 = vmul.f32 %v3357, %v3360
        %v3369 = vmul.f32 %v3358, %v3360
        %v3371 = vperm.slane %v3182, 0
        %v3373 = vadd.f32 %v3362, %v3371
        %v3374 = vadd.f32 %v3363, %v3371
        %v3375 = vadd.f32 %v3364, %v3371
        %v3376 = vadd.f32 %v3365, %v3371
        %v3377 = vadd.f32 %v3366, %v3371
        %v3378 = vadd.f32 %v3367, %v3371
        %v3379 = vadd.f32 %v3368, %v3371
        %v3380 = vadd.f32 %v3369, %v3371
        %v3381 = vpack.c.bf16 %v3374, %v3373
        %v3382 = vpack.c.bf16 %v3376, %v3375
        %v3383 = vpack.c.bf16 %v3378, %v3377
        %v3384 = vpack.c.bf16 %v3380, %v3379
        %v3385 = vld [vmem:[%s47] sm:$0xf]
        %v3386 = vld [vmem:[%s47 + $0x4] sm:$0xf]
        %v3387 = vld [vmem:[%s47 + $0x8] sm:$0xf]
        %v3388 = vld [vmem:[%s47 + $0xc] sm:$0xf]
        %v3389 = vld [vmem:[#allocation4] sm:$0x1]
        %v3391 = vperm.slane %v3389, 0
        %v3397 = vunpack.c.l.b16 %v3385
        %v3398 = vunpack.c.l.b16 %v3386
        %v3399 = vunpack.c.l.b16 %v3387
        %v3400 = vunpack.c.l.b16 %v3388
        %v3401 = vpack.c.b16 %v3398, %v3397
        %v3402 = vpack.c.b16 %v3400, %v3399
        %v3406 = vsel %vm1246, %v3381, 0
        %v3409 = vsel %vm1246, %v3382, 0
        %v3412 = vsel %vm1246, %v3383, 0
        %v3415 = vsel %vm1246, %v3384, 0
        %3417 = vmatpush.bf16.msra.mxu0 0
        %3418 = vmatpush.bf16.msra.mxu0 0
        %3419 = vmatpush.bf16.msra.mxu0 0
        %3420 = vmatpush.bf16.msra.mxu0 0
        %3421 = vmatpush.bf16.msra.mxu0 0
        %3422 = vmatpush.bf16.msra.mxu0 0
        %3423 = vmatpush.bf16.msra.mxu0 %v3402
        %3424 = vmatpush.bf16.msra.mxu0 %v3401
        %3425 = vmatmul.bf16.gmra.mxu0 %v3406
        %v3426 = vpop.f32.mrf.mxu0
        %v3427 = vadd.f32 %v3391, %v3426
        %v3428 = vpop.f32.mrf.mxu0
        %v3429 = vadd.f32 %v3391, %v3428
        %3430 = vmatmul.bf16.gmra.mxu0 %v3409
        %v3431 = vpop.f32.mrf.mxu0
        %v3432 = vadd.f32 %v3391, %v3431
        %v3433 = vpop.f32.mrf.mxu0
        %v3434 = vadd.f32 %v3391, %v3433
        %3435 = vmatmul.bf16.gmra.mxu0 %v3412
        %v3436 = vpop.f32.mrf.mxu0
        %v3437 = vadd.f32 %v3391, %v3436
        %v3438 = vpop.f32.mrf.mxu0
        %v3439 = vadd.f32 %v3391, %v3438
        %3440 = vmatmul.bf16.gmra.mxu0 %v3415
        %v3441 = vpop.f32.mrf.mxu0
        %v3442 = vadd.f32 %v3391, %v3441
        %v3443 = vpop.f32.mrf.mxu0
        %v3444 = vadd.f32 %v3391, %v3443
        %3445 = vdwg.mxu0
        %3454 = vrot.lane.b32.xlu0 %v3427, 112
        %v3455 = vpop.permute.xlu0 %3454
        %3456 = vrot.lane.b32.xlu0 %v3429, 112
        %v3457 = vpop.permute.xlu0 %3456
        %3458 = vrot.lane.b32.xlu0 %v3432, 112
        %v3459 = vpop.permute.xlu0 %3458
        %3460 = vrot.lane.b32.xlu0 %v3434, 112
        %v3461 = vpop.permute.xlu0 %3460
        %3462 = vrot.lane.b32.xlu0 %v3437, 112
        %v3463 = vpop.permute.xlu0 %3462
        %3464 = vrot.lane.b32.xlu0 %v3439, 112
        %v3465 = vpop.permute.xlu0 %3464
        %3466 = vrot.lane.b32.xlu0 %v3442, 112
        %v3467 = vpop.permute.xlu0 %3466
        %3468 = vrot.lane.b32.xlu0 %v3444, 112
        %v3469 = vpop.permute.xlu0 %3468
        %v3478 = vpack.c.bf16 %v3427, %v3427
        %v3479 = vpack.c.bf16 %v3429, %v3429
        %v3480 = vpack.c.bf16 %v3432, %v3432
        %v3481 = vpack.c.bf16 %v3434, %v3434
        %v3482 = vpack.c.bf16 %v3437, %v3437
        %v3483 = vpack.c.bf16 %v3439, %v3439
        %v3484 = vpack.c.bf16 %v3442, %v3442
        %v3485 = vpack.c.bf16 %v3444, %v3444
        %v3486 = vpack.c.bf16 %v3455, %v3455
        %v3487 = vpack.c.bf16 %v3457, %v3457
        %v3488 = vpack.c.bf16 %v3459, %v3459
        %v3489 = vpack.c.bf16 %v3461, %v3461
        %v3490 = vpack.c.bf16 %v3463, %v3463
        %v3491 = vpack.c.bf16 %v3465, %v3465
        %v3492 = vpack.c.bf16 %v3467, %v3467
        %v3493 = vpack.c.bf16 %v3469, %v3469
        %v3494 = vld [vmem:[%s51] sm:$0xff]
        %v3495 = vld [vmem:[%s51 + $0x8] sm:$0xff]
        %v3496 = vld [vmem:[%s51 + $0x10] sm:$0xff]
        %v3497 = vld [vmem:[%s51 + $0x18] sm:$0xff]
        %v3498 = vld [vmem:[%s51 + $0x20] sm:$0xff]
        %v3499 = vld [vmem:[%s51 + $0x28] sm:$0xff]
        %v3500 = vld [vmem:[%s51 + $0x30] sm:$0xff]
        %v3501 = vld [vmem:[%s51 + $0x38] sm:$0xff]
        %v3502 = vld [vmem:[%s51 + $0x40] sm:$0xff]
        %v3503 = vld [vmem:[%s51 + $0x48] sm:$0xff]
        %v3504 = vld [vmem:[%s51 + $0x50] sm:$0xff]
        %v3505 = vld [vmem:[%s51 + $0x58] sm:$0xff]
        %v3506 = vld [vmem:[%s51 + $0x60] sm:$0xff]
        %v3507 = vld [vmem:[%s51 + $0x68] sm:$0xff]
        %v3508 = vld [vmem:[%s51 + $0x70] sm:$0xff]
        %v3509 = vld [vmem:[%s51 + $0x78] sm:$0xff]
        %v3512 = vunpack.c.l.b16 %v3478
        %v3513 = vunpack.c.l.b16 %v3479
        %v3514 = vpack.c.b16 %v3513, %v3512
        %3515 = vrot.lane.b32.xlu0 %v3514, 96
        %v3516 = vpop.permute.xlu0 %3515
        %v3518 = vsel %vm1862, %v3514, 0
        %v3521 = vsel %vm1862, %v3516, 0
        %3523 = vmatpush.bf16.xpose.msra.mxu0 0
        %3524 = vmatpush.bf16.xpose.msra.mxu0 0
        %3525 = vmatpush.bf16.xpose.msra.mxu0 0
        %3526 = vmatpush.bf16.xpose.msra.mxu0 0
        %3527 = vmatpush.bf16.xpose.msra.mxu0 0
        %3528 = vmatpush.bf16.xpose.msra.mxu0 0
        %3529 = vmatpush.bf16.xpose.msra.mxu0 0
        %3530 = vmatpush.bf16.xpose.msra.mxu0 %v3521
        %3531 = vmatmul.bf16.gmra.mxu0 %v3518
        %v3532 = vpop.f32.mrf.mxu0
        %v3533 = vadd.f32 %v3494, %v3532
        %v3534 = vpop.f32.mrf.mxu0
        %v3535 = vadd.f32 %v3495, %v3534
        %3536 = vdwg.mxu0
        %v3539 = vunpack.c.l.b16 %v3480
        %v3540 = vunpack.c.l.b16 %v3481
        %v3541 = vpack.c.b16 %v3540, %v3539
        %3542 = vrot.lane.b32.xlu0 %v3541, 96
        %v3543 = vpop.permute.xlu0 %3542
        %v3545 = vsel %vm1862, %v3541, 0
        %v3548 = vsel %vm1862, %v3543, 0
        %3550 = vmatpush.bf16.xpose.msra.mxu0 0
        %3551 = vmatpush.bf16.xpose.msra.mxu0 0
        %3552 = vmatpush.bf16.xpose.msra.mxu0 0
        %3553 = vmatpush.bf16.xpose.msra.mxu0 0
        %3554 = vmatpush.bf16.xpose.msra.mxu0 0
        %3555 = vmatpush.bf16.xpose.msra.mxu0 0
        %3556 = vmatpush.bf16.xpose.msra.mxu0 0
        %3557 = vmatpush.bf16.xpose.msra.mxu0 %v3548
        %3558 = vmatmul.bf16.gmra.mxu0 %v3545
        %v3559 = vpop.f32.mrf.mxu0
        %v3560 = vadd.f32 %v3496, %v3559
        %v3561 = vpop.f32.mrf.mxu0
        %v3562 = vadd.f32 %v3497, %v3561
        %3563 = vdwg.mxu0
        %v3566 = vunpack.c.l.b16 %v3482
        %v3567 = vunpack.c.l.b16 %v3483
        %v3568 = vpack.c.b16 %v3567, %v3566
        %3569 = vrot.lane.b32.xlu0 %v3568, 96
        %v3570 = vpop.permute.xlu0 %3569
        %v3572 = vsel %vm1862, %v3568, 0
        %v3575 = vsel %vm1862, %v3570, 0
        %3577 = vmatpush.bf16.xpose.msra.mxu0 0
        %3578 = vmatpush.bf16.xpose.msra.mxu0 0
        %3579 = vmatpush.bf16.xpose.msra.mxu0 0
        %3580 = vmatpush.bf16.xpose.msra.mxu0 0
        %3581 = vmatpush.bf16.xpose.msra.mxu0 0
        %3582 = vmatpush.bf16.xpose.msra.mxu0 0
        %3583 = vmatpush.bf16.xpose.msra.mxu0 0
        %3584 = vmatpush.bf16.xpose.msra.mxu0 %v3575
        %3585 = vmatmul.bf16.gmra.mxu0 %v3572
        %v3586 = vpop.f32.mrf.mxu0
        %v3587 = vadd.f32 %v3498, %v3586
        %v3588 = vpop.f32.mrf.mxu0
        %v3589 = vadd.f32 %v3499, %v3588
        %3590 = vdwg.mxu0
        %v3593 = vunpack.c.l.b16 %v3484
        %v3594 = vunpack.c.l.b16 %v3485
        %v3595 = vpack.c.b16 %v3594, %v3593
        %3596 = vrot.lane.b32.xlu0 %v3595, 96
        %v3597 = vpop.permute.xlu0 %3596
        %v3599 = vsel %vm1862, %v3595, 0
        %v3602 = vsel %vm1862, %v3597, 0
        %3604 = vmatpush.bf16.xpose.msra.mxu0 0
        %3605 = vmatpush.bf16.xpose.msra.mxu0 0
        %3606 = vmatpush.bf16.xpose.msra.mxu0 0
        %3607 = vmatpush.bf16.xpose.msra.mxu0 0
        %3608 = vmatpush.bf16.xpose.msra.mxu0 0
        %3609 = vmatpush.bf16.xpose.msra.mxu0 0
        %3610 = vmatpush.bf16.xpose.msra.mxu0 0
        %3611 = vmatpush.bf16.xpose.msra.mxu0 %v3602
        %3612 = vmatmul.bf16.gmra.mxu0 %v3599
        %v3613 = vpop.f32.mrf.mxu0
        %v3614 = vadd.f32 %v3500, %v3613
        %v3615 = vpop.f32.mrf.mxu0
        %v3616 = vadd.f32 %v3501, %v3615
        %3617 = vdwg.mxu0
        %v3620 = vunpack.c.l.b16 %v3486
        %v3621 = vunpack.c.l.b16 %v3487
        %v3622 = vpack.c.b16 %v3621, %v3620
        %3623 = vrot.lane.b32.xlu0 %v3622, 96
        %v3624 = vpop.permute.xlu0 %3623
        %v3626 = vsel %vm1862, %v3622, 0
        %v3629 = vsel %vm1862, %v3624, 0
        %3631 = vmatpush.bf16.xpose.msra.mxu0 0
        %3632 = vmatpush.bf16.xpose.msra.mxu0 0
        %3633 = vmatpush.bf16.xpose.msra.mxu0 0
        %3634 = vmatpush.bf16.xpose.msra.mxu0 0
        %3635 = vmatpush.bf16.xpose.msra.mxu0 0
        %3636 = vmatpush.bf16.xpose.msra.mxu0 0
        %3637 = vmatpush.bf16.xpose.msra.mxu0 0
        %3638 = vmatpush.bf16.xpose.msra.mxu0 %v3629
        %3639 = vmatmul.bf16.gmra.mxu0 %v3626
        %v3640 = vpop.f32.mrf.mxu0
        %v3641 = vadd.f32 %v3502, %v3640
        %v3642 = vpop.f32.mrf.mxu0
        %v3643 = vadd.f32 %v3503, %v3642
        %3644 = vdwg.mxu0
        %v3647 = vunpack.c.l.b16 %v3488
        %v3648 = vunpack.c.l.b16 %v3489
        %v3649 = vpack.c.b16 %v3648, %v3647
        %3650 = vrot.lane.b32.xlu0 %v3649, 96
        %v3651 = vpop.permute.xlu0 %3650
        %v3653 = vsel %vm1862, %v3649, 0
        %v3656 = vsel %vm1862, %v3651, 0
        %3658 = vmatpush.bf16.xpose.msra.mxu0 0
        %3659 = vmatpush.bf16.xpose.msra.mxu0 0
        %3660 = vmatpush.bf16.xpose.msra.mxu0 0
        %3661 = vmatpush.bf16.xpose.msra.mxu0 0
        %3662 = vmatpush.bf16.xpose.msra.mxu0 0
        %3663 = vmatpush.bf16.xpose.msra.mxu0 0
        %3664 = vmatpush.bf16.xpose.msra.mxu0 0
        %3665 = vmatpush.bf16.xpose.msra.mxu0 %v3656
        %3666 = vmatmul.bf16.gmra.mxu0 %v3653
        %v3667 = vpop.f32.mrf.mxu0
        %v3668 = vadd.f32 %v3504, %v3667
        %v3669 = vpop.f32.mrf.mxu0
        %v3670 = vadd.f32 %v3505, %v3669
        %3671 = vdwg.mxu0
        %v3674 = vunpack.c.l.b16 %v3490
        %v3675 = vunpack.c.l.b16 %v3491
        %v3676 = vpack.c.b16 %v3675, %v3674
        %3677 = vrot.lane.b32.xlu0 %v3676, 96
        %v3678 = vpop.permute.xlu0 %3677
        %v3680 = vsel %vm1862, %v3676, 0
        %v3683 = vsel %vm1862, %v3678, 0
        %3685 = vmatpush.bf16.xpose.msra.mxu0 0
        %3686 = vmatpush.bf16.xpose.msra.mxu0 0
        %3687 = vmatpush.bf16.xpose.msra.mxu0 0
        %3688 = vmatpush.bf16.xpose.msra.mxu0 0
        %3689 = vmatpush.bf16.xpose.msra.mxu0 0
        %3690 = vmatpush.bf16.xpose.msra.mxu0 0
        %3691 = vmatpush.bf16.xpose.msra.mxu0 0
        %3692 = vmatpush.bf16.xpose.msra.mxu0 %v3683
        %3693 = vmatmul.bf16.gmra.mxu0 %v3680
        %v3694 = vpop.f32.mrf.mxu0
        %v3695 = vadd.f32 %v3506, %v3694
        %v3696 = vpop.f32.mrf.mxu0
        %v3697 = vadd.f32 %v3507, %v3696
        %3698 = vdwg.mxu0
        %v3701 = vunpack.c.l.b16 %v3492
        %v3702 = vunpack.c.l.b16 %v3493
        %v3703 = vpack.c.b16 %v3702, %v3701
        %3704 = vrot.lane.b32.xlu0 %v3703, 96
        %v3705 = vpop.permute.xlu0 %3704
        %v3707 = vsel %vm1862, %v3703, 0
        %v3710 = vsel %vm1862, %v3705, 0
        %3712 = vmatpush.bf16.xpose.msra.mxu0 0
        %3713 = vmatpush.bf16.xpose.msra.mxu0 0
        %3714 = vmatpush.bf16.xpose.msra.mxu0 0
        %3715 = vmatpush.bf16.xpose.msra.mxu0 0
        %3716 = vmatpush.bf16.xpose.msra.mxu0 0
        %3717 = vmatpush.bf16.xpose.msra.mxu0 0
        %3718 = vmatpush.bf16.xpose.msra.mxu0 0
        %3719 = vmatpush.bf16.xpose.msra.mxu0 %v3710
        %3720 = vmatmul.bf16.gmra.mxu0 %v3707
        %v3721 = vpop.f32.mrf.mxu0
        %v3722 = vadd.f32 %v3508, %v3721
        %v3723 = vpop.f32.mrf.mxu0
        %v3724 = vadd.f32 %v3509, %v3723
        %3725 = vdwg.mxu0
        %v3726 = vsel %vm1862, %v3533, -inf
        %3727 = vmax.xlane.f32.xlu0 %v3726
        %v3728 = vpop.xlane.xlu0 %3727
        %v3729 = vsel %vm1862, %v3535, -inf
        %3730 = vmax.xlane.f32.xlu0 %v3729
        %v3731 = vpop.xlane.xlu0 %3730
        %v3732 = vsel %vm1862, %v3560, -inf
        %3733 = vmax.xlane.f32.xlu0 %v3732
        %v3734 = vpop.xlane.xlu0 %3733
        %v3735 = vsel %vm1862, %v3562, -inf
        %3736 = vmax.xlane.f32.xlu0 %v3735
        %v3737 = vpop.xlane.xlu0 %3736
        %v3738 = vsel %vm1862, %v3587, -inf
        %3739 = vmax.xlane.f32.xlu0 %v3738
        %v3740 = vpop.xlane.xlu0 %3739
        %v3741 = vsel %vm1862, %v3589, -inf
        %3742 = vmax.xlane.f32.xlu0 %v3741
        %v3743 = vpop.xlane.xlu0 %3742
        %v3744 = vsel %vm1862, %v3614, -inf
        %3745 = vmax.xlane.f32.xlu0 %v3744
        %v3746 = vpop.xlane.xlu0 %3745
        %v3747 = vsel %vm1862, %v3616, -inf
        %3748 = vmax.xlane.f32.xlu0 %v3747
        %v3749 = vpop.xlane.xlu0 %3748
        %v3750 = vsel %vm1862, %v3641, -inf
        %3751 = vmax.xlane.f32.xlu0 %v3750
        %v3752 = vpop.xlane.xlu0 %3751
        %v3753 = vsel %vm1862, %v3643, -inf
        %3754 = vmax.xlane.f32.xlu0 %v3753
        %v3755 = vpop.xlane.xlu0 %3754
        %v3756 = vsel %vm1862, %v3668, -inf
        %3757 = vmax.xlane.f32.xlu0 %v3756
        %v3758 = vpop.xlane.xlu0 %3757
        %v3759 = vsel %vm1862, %v3670, -inf
        %3760 = vmax.xlane.f32.xlu0 %v3759
        %v3761 = vpop.xlane.xlu0 %3760
        %v3762 = vsel %vm1862, %v3695, -inf
        %3763 = vmax.xlane.f32.xlu0 %v3762
        %v3764 = vpop.xlane.xlu0 %3763
        %v3765 = vsel %vm1862, %v3697, -inf
        %3766 = vmax.xlane.f32.xlu0 %v3765
        %v3767 = vpop.xlane.xlu0 %3766
        %v3768 = vsel %vm1862, %v3722, -inf
        %3769 = vmax.xlane.f32.xlu0 %v3768
        %v3770 = vpop.xlane.xlu0 %3769
        %v3771 = vsel %vm1862, %v3724, -inf
        %3772 = vmax.xlane.f32.xlu0 %v3771
        %v3773 = vpop.xlane.xlu0 %3772
        %v3774 = vsub.f32 %v3533, %v3728
        %v3775 = vsub.f32 %v3535, %v3731
        %v3776 = vsub.f32 %v3560, %v3734
        %v3777 = vsub.f32 %v3562, %v3737
        %v3778 = vsub.f32 %v3587, %v3740
        %v3779 = vsub.f32 %v3589, %v3743
        %v3780 = vsub.f32 %v3614, %v3746
        %v3781 = vsub.f32 %v3616, %v3749
        %v3782 = vsub.f32 %v3641, %v3752
        %v3783 = vsub.f32 %v3643, %v3755
        %v3784 = vsub.f32 %v3668, %v3758
        %v3785 = vsub.f32 %v3670, %v3761
        %v3786 = vsub.f32 %v3695, %v3764
        %v3787 = vsub.f32 %v3697, %v3767
        %v3788 = vsub.f32 %v3722, %v3770
        %v3789 = vsub.f32 %v3724, %v3773
        %v3790 = vmul.f32 %v3774, 1.442695
        %v3791 = vpow.pop %v3790
        %v3792 = vmul.f32 %v3775, 1.442695
        %v3793 = vpow.pop %v3792
        %v3794 = vmul.f32 %v3776, 1.442695
        %v3795 = vpow.pop %v3794
        %v3796 = vmul.f32 %v3777, 1.442695
        %v3797 = vpow.pop %v3796
        %v3798 = vmul.f32 %v3778, 1.442695
        %v3799 = vpow.pop %v3798
        %v3800 = vmul.f32 %v3779, 1.442695
        %v3801 = vpow.pop %v3800
        %v3802 = vmul.f32 %v3780, 1.442695
        %v3803 = vpow.pop %v3802
        %v3804 = vmul.f32 %v3781, 1.442695
        %v3805 = vpow.pop %v3804
        %v3806 = vmul.f32 %v3782, 1.442695
        %v3807 = vpow.pop %v3806
        %v3808 = vmul.f32 %v3783, 1.442695
        %v3809 = vpow.pop %v3808
        %v3810 = vmul.f32 %v3784, 1.442695
        %v3811 = vpow.pop %v3810
        %v3812 = vmul.f32 %v3785, 1.442695
        %v3813 = vpow.pop %v3812
        %v3814 = vmul.f32 %v3786, 1.442695
        %v3815 = vpow.pop %v3814
        %v3816 = vmul.f32 %v3787, 1.442695
        %v3817 = vpow.pop %v3816
        %v3818 = vmul.f32 %v3788, 1.442695
        %v3819 = vpow.pop %v3818
        %v3820 = vmul.f32 %v3789, 1.442695
        %v3821 = vpow.pop %v3820
        %v3822 = vsel %vm1862, %v3791, 0.0
        %3823 = vadd.xlane.f32.xlu0 %v3822
        %v3824 = vpop.xlane.xlu0 %3823
        %v3825 = vsel %vm1862, %v3793, 0.0
        %3826 = vadd.xlane.f32.xlu0 %v3825
        %v3827 = vpop.xlane.xlu0 %3826
        %v3828 = vsel %vm1862, %v3795, 0.0
        %3829 = vadd.xlane.f32.xlu0 %v3828
        %v3830 = vpop.xlane.xlu0 %3829
        %v3831 = vsel %vm1862, %v3797, 0.0
        %3832 = vadd.xlane.f32.xlu0 %v3831
        %v3833 = vpop.xlane.xlu0 %3832
        %v3834 = vsel %vm1862, %v3799, 0.0
        %3835 = vadd.xlane.f32.xlu0 %v3834
        %v3836 = vpop.xlane.xlu0 %3835
        %v3837 = vsel %vm1862, %v3801, 0.0
        %3838 = vadd.xlane.f32.xlu0 %v3837
        %v3839 = vpop.xlane.xlu0 %3838
        %v3840 = vsel %vm1862, %v3803, 0.0
        %3841 = vadd.xlane.f32.xlu0 %v3840
        %v3842 = vpop.xlane.xlu0 %3841
        %v3843 = vsel %vm1862, %v3805, 0.0
        %3844 = vadd.xlane.f32.xlu0 %v3843
        %v3845 = vpop.xlane.xlu0 %3844
        %v3846 = vsel %vm1862, %v3807, 0.0
        %3847 = vadd.xlane.f32.xlu0 %v3846
        %v3848 = vpop.xlane.xlu0 %3847
        %v3849 = vsel %vm1862, %v3809, 0.0
        %3850 = vadd.xlane.f32.xlu0 %v3849
        %v3851 = vpop.xlane.xlu0 %3850
        %v3852 = vsel %vm1862, %v3811, 0.0
        %3853 = vadd.xlane.f32.xlu0 %v3852
        %v3854 = vpop.xlane.xlu0 %3853
        %v3855 = vsel %vm1862, %v3813, 0.0
        %3856 = vadd.xlane.f32.xlu0 %v3855
        %v3857 = vpop.xlane.xlu0 %3856
        %v3858 = vsel %vm1862, %v3815, 0.0
        %3859 = vadd.xlane.f32.xlu0 %v3858
        %v3860 = vpop.xlane.xlu0 %3859
        %v3861 = vsel %vm1862, %v3817, 0.0
        %3862 = vadd.xlane.f32.xlu0 %v3861
        %v3863 = vpop.xlane.xlu0 %3862
        %v3864 = vsel %vm1862, %v3819, 0.0
        %3865 = vadd.xlane.f32.xlu0 %v3864
        %v3866 = vpop.xlane.xlu0 %3865
        %v3867 = vsel %vm1862, %v3821, 0.0
        %3868 = vadd.xlane.f32.xlu0 %v3867
        %v3869 = vpop.xlane.xlu0 %3868
        %v3870 = vrcp.pop %v3824
        %v3871 = vrcp.pop %v3827
        %v3872 = vrcp.pop %v3830
        %v3873 = vrcp.pop %v3833
        %v3874 = vrcp.pop %v3836
        %v3875 = vrcp.pop %v3839
        %v3876 = vrcp.pop %v3842
        %v3877 = vrcp.pop %v3845
        %v3878 = vrcp.pop %v3848
        %v3879 = vrcp.pop %v3851
        %v3880 = vrcp.pop %v3854
        %v3881 = vrcp.pop %v3857
        %v3882 = vrcp.pop %v3860
        %v3883 = vrcp.pop %v3863
        %v3884 = vrcp.pop %v3866
        %v3885 = vrcp.pop %v3869
        %v3886 = vmul.f32 %v3791, %v3870
        %v3887 = vmul.f32 %v3793, %v3871
        %v3888 = vmul.f32 %v3795, %v3872
        %v3889 = vmul.f32 %v3797, %v3873
        %v3890 = vmul.f32 %v3799, %v3874
        %v3891 = vmul.f32 %v3801, %v3875
        %v3892 = vmul.f32 %v3803, %v3876
        %v3893 = vmul.f32 %v3805, %v3877
        %v3894 = vmul.f32 %v3807, %v3878
        %v3895 = vmul.f32 %v3809, %v3879
        %v3896 = vmul.f32 %v3811, %v3880
        %v3897 = vmul.f32 %v3813, %v3881
        %v3898 = vmul.f32 %v3815, %v3882
        %v3899 = vmul.f32 %v3817, %v3883
        %v3900 = vmul.f32 %v3819, %v3884
        %v3901 = vmul.f32 %v3821, %v3885
        %v3902 = vpack.c.bf16 %v3886, %v3886
        %v3903 = vpack.c.bf16 %v3887, %v3887
        %v3904 = vpack.c.bf16 %v3888, %v3888
        %v3905 = vpack.c.bf16 %v3889, %v3889
        %v3906 = vpack.c.bf16 %v3890, %v3890
        %v3907 = vpack.c.bf16 %v3891, %v3891
        %v3908 = vpack.c.bf16 %v3892, %v3892
        %v3909 = vpack.c.bf16 %v3893, %v3893
        %v3910 = vpack.c.bf16 %v3894, %v3894
        %v3911 = vpack.c.bf16 %v3895, %v3895
        %v3912 = vpack.c.bf16 %v3896, %v3896
        %v3913 = vpack.c.bf16 %v3897, %v3897
        %v3914 = vpack.c.bf16 %v3898, %v3898
        %v3915 = vpack.c.bf16 %v3899, %v3899
        %v3916 = vpack.c.bf16 %v3900, %v3900
        %v3917 = vpack.c.bf16 %v3901, %v3901
        %v3920 = vunpack.c.l.b16 %v3902
        %v3921 = vunpack.c.l.b16 %v3903
        %v3922 = vpack.c.b16 %v3921, %v3920
        %3923 = vrot.lane.b32.xlu0 %v3514, 64
        %v3924 = vpop.permute.xlu0 %3923
        %v3927 = vsel %vm1862, %v3922, 0
        %3929 = vmatpush.bf16.msra.mxu0 0
        %3930 = vmatpush.bf16.msra.mxu0 0
        %3931 = vmatpush.bf16.msra.mxu0 0
        %3932 = vmatpush.bf16.msra.mxu0 0
        %3933 = vmatpush.bf16.msra.mxu0 0
        %3934 = vmatpush.bf16.msra.mxu0 0
        %3935 = vmatpush.bf16.msra.mxu0 0
        %3936 = vmatpush.bf16.msra.mxu0 %v3924
        %3937 = vmatmul.bf16.gmra.mxu0 %v3927
        %v3938 = vpop.f32.mrf.mxu0
        %v3939 = vadd.f32 0.0, %v3938
        %v3940 = vpop.f32.mrf.mxu0
        %v3941 = vadd.f32 0.0, %v3940
        %3942 = vdwg.mxu0
        %v3945 = vunpack.c.l.b16 %v3904
        %v3946 = vunpack.c.l.b16 %v3905
        %v3947 = vpack.c.b16 %v3946, %v3945
        %3948 = vrot.lane.b32.xlu0 %v3541, 64
        %v3949 = vpop.permute.xlu0 %3948
        %v3952 = vsel %vm1862, %v3947, 0
        %3954 = vmatpush.bf16.msra.mxu0 0
        %3955 = vmatpush.bf16.msra.mxu0 0
        %3956 = vmatpush.bf16.msra.mxu0 0
        %3957 = vmatpush.bf16.msra.mxu0 0
        %3958 = vmatpush.bf16.msra.mxu0 0
        %3959 = vmatpush.bf16.msra.mxu0 0
        %3960 = vmatpush.bf16.msra.mxu0 0
        %3961 = vmatpush.bf16.msra.mxu0 %v3949
        %3962 = vmatmul.bf16.gmra.mxu0 %v3952
        %v3963 = vpop.f32.mrf.mxu0
        %v3964 = vadd.f32 0.0, %v3963
        %v3965 = vpop.f32.mrf.mxu0
        %v3966 = vadd.f32 0.0, %v3965
        %3967 = vdwg.mxu0
        %v3970 = vunpack.c.l.b16 %v3906
        %v3971 = vunpack.c.l.b16 %v3907
        %v3972 = vpack.c.b16 %v3971, %v3970
        %3973 = vrot.lane.b32.xlu0 %v3568, 64
        %v3974 = vpop.permute.xlu0 %3973
        %v3977 = vsel %vm1862, %v3972, 0
        %3979 = vmatpush.bf16.msra.mxu0 0
        %3980 = vmatpush.bf16.msra.mxu0 0
        %3981 = vmatpush.bf16.msra.mxu0 0
        %3982 = vmatpush.bf16.msra.mxu0 0
        %3983 = vmatpush.bf16.msra.mxu0 0
        %3984 = vmatpush.bf16.msra.mxu0 0
        %3985 = vmatpush.bf16.msra.mxu0 0
        %3986 = vmatpush.bf16.msra.mxu0 %v3974
        %3987 = vmatmul.bf16.gmra.mxu0 %v3977
        %v3988 = vpop.f32.mrf.mxu0
        %v3989 = vadd.f32 0.0, %v3988
        %v3990 = vpop.f32.mrf.mxu0
        %v3991 = vadd.f32 0.0, %v3990
        %3992 = vdwg.mxu0
        %v3995 = vunpack.c.l.b16 %v3908
        %v3996 = vunpack.c.l.b16 %v3909
        %v3997 = vpack.c.b16 %v3996, %v3995
        %3998 = vrot.lane.b32.xlu0 %v3595, 64
        %v3999 = vpop.permute.xlu0 %3998
        %v4002 = vsel %vm1862, %v3997, 0
        %4004 = vmatpush.bf16.msra.mxu0 0
        %4005 = vmatpush.bf16.msra.mxu0 0
        %4006 = vmatpush.bf16.msra.mxu0 0
        %4007 = vmatpush.bf16.msra.mxu0 0
        %4008 = vmatpush.bf16.msra.mxu0 0
        %4009 = vmatpush.bf16.msra.mxu0 0
        %4010 = vmatpush.bf16.msra.mxu0 0
        %4011 = vmatpush.bf16.msra.mxu0 %v3999
        %4012 = vmatmul.bf16.gmra.mxu0 %v4002
        %v4013 = vpop.f32.mrf.mxu0
        %v4014 = vadd.f32 0.0, %v4013
        %v4015 = vpop.f32.mrf.mxu0
        %v4016 = vadd.f32 0.0, %v4015
        %4017 = vdwg.mxu0
        %v4020 = vunpack.c.l.b16 %v3910
        %v4021 = vunpack.c.l.b16 %v3911
        %v4022 = vpack.c.b16 %v4021, %v4020
        %4023 = vrot.lane.b32.xlu0 %v3622, 64
        %v4024 = vpop.permute.xlu0 %4023
        %v4027 = vsel %vm1862, %v4022, 0
        %4029 = vmatpush.bf16.msra.mxu0 0
        %4030 = vmatpush.bf16.msra.mxu0 0
        %4031 = vmatpush.bf16.msra.mxu0 0
        %4032 = vmatpush.bf16.msra.mxu0 0
        %4033 = vmatpush.bf16.msra.mxu0 0
        %4034 = vmatpush.bf16.msra.mxu0 0
        %4035 = vmatpush.bf16.msra.mxu0 0
        %4036 = vmatpush.bf16.msra.mxu0 %v4024
        %4037 = vmatmul.bf16.gmra.mxu0 %v4027
        %v4038 = vpop.f32.mrf.mxu0
        %v4039 = vadd.f32 0.0, %v4038
        %v4040 = vpop.f32.mrf.mxu0
        %v4041 = vadd.f32 0.0, %v4040
        %4042 = vdwg.mxu0
        %v4045 = vunpack.c.l.b16 %v3912
        %v4046 = vunpack.c.l.b16 %v3913
        %v4047 = vpack.c.b16 %v4046, %v4045
        %4048 = vrot.lane.b32.xlu0 %v3649, 64
        %v4049 = vpop.permute.xlu0 %4048
        %v4052 = vsel %vm1862, %v4047, 0
        %4054 = vmatpush.bf16.msra.mxu0 0
        %4055 = vmatpush.bf16.msra.mxu0 0
        %4056 = vmatpush.bf16.msra.mxu0 0
        %4057 = vmatpush.bf16.msra.mxu0 0
        %4058 = vmatpush.bf16.msra.mxu0 0
        %4059 = vmatpush.bf16.msra.mxu0 0
        %4060 = vmatpush.bf16.msra.mxu0 0
        %4061 = vmatpush.bf16.msra.mxu0 %v4049
        %4062 = vmatmul.bf16.gmra.mxu0 %v4052
        %v4063 = vpop.f32.mrf.mxu0
        %v4064 = vadd.f32 0.0, %v4063
        %v4065 = vpop.f32.mrf.mxu0
        %v4066 = vadd.f32 0.0, %v4065
        %4067 = vdwg.mxu0
        %v4070 = vunpack.c.l.b16 %v3914
        %v4071 = vunpack.c.l.b16 %v3915
        %v4072 = vpack.c.b16 %v4071, %v4070
        %4073 = vrot.lane.b32.xlu0 %v3676, 64
        %v4074 = vpop.permute.xlu0 %4073
        %v4077 = vsel %vm1862, %v4072, 0
        %4079 = vmatpush.bf16.msra.mxu0 0
        %4080 = vmatpush.bf16.msra.mxu0 0
        %4081 = vmatpush.bf16.msra.mxu0 0
        %4082 = vmatpush.bf16.msra.mxu0 0
        %4083 = vmatpush.bf16.msra.mxu0 0
        %4084 = vmatpush.bf16.msra.mxu0 0
        %4085 = vmatpush.bf16.msra.mxu0 0
        %4086 = vmatpush.bf16.msra.mxu0 %v4074
        %4087 = vmatmul.bf16.gmra.mxu0 %v4077
        %v4088 = vpop.f32.mrf.mxu0
        %v4089 = vadd.f32 0.0, %v4088
        %v4090 = vpop.f32.mrf.mxu0
        %v4091 = vadd.f32 0.0, %v4090
        %4092 = vdwg.mxu0
        %v4095 = vunpack.c.l.b16 %v3916
        %v4096 = vunpack.c.l.b16 %v3917
        %v4097 = vpack.c.b16 %v4096, %v4095
        %4098 = vrot.lane.b32.xlu0 %v3703, 64
        %v4099 = vpop.permute.xlu0 %4098
        %v4102 = vsel %vm1862, %v4097, 0
        %4104 = vmatpush.bf16.msra.mxu0 0
        %4105 = vmatpush.bf16.msra.mxu0 0
        %4106 = vmatpush.bf16.msra.mxu0 0
        %4107 = vmatpush.bf16.msra.mxu0 0
        %4108 = vmatpush.bf16.msra.mxu0 0
        %4109 = vmatpush.bf16.msra.mxu0 0
        %4110 = vmatpush.bf16.msra.mxu0 0
        %4111 = vmatpush.bf16.msra.mxu0 %v4099
        %4112 = vmatmul.bf16.gmra.mxu0 %v4102
        %v4113 = vpop.f32.mrf.mxu0
        %v4114 = vadd.f32 0.0, %v4113
        %v4115 = vpop.f32.mrf.mxu0
        %v4116 = vadd.f32 0.0, %v4115
        %4117 = vdwg.mxu0
        %v4118 = vpack.c.bf16 %v3939, %v3939
        %v4119 = vpack.c.bf16 %v3941, %v3941
        %v4120 = vpack.c.bf16 %v3964, %v3964
        %v4121 = vpack.c.bf16 %v3966, %v3966
        %v4122 = vpack.c.bf16 %v3989, %v3989
        %v4123 = vpack.c.bf16 %v3991, %v3991
        %v4124 = vpack.c.bf16 %v4014, %v4014
        %v4125 = vpack.c.bf16 %v4016, %v4016
        %v4126 = vpack.c.bf16 %v4039, %v4039
        %v4127 = vpack.c.bf16 %v4041, %v4041
        %v4128 = vpack.c.bf16 %v4064, %v4064
        %v4129 = vpack.c.bf16 %v4066, %v4066
        %v4130 = vpack.c.bf16 %v4089, %v4089
        %v4131 = vpack.c.bf16 %v4091, %v4091
        %v4132 = vpack.c.bf16 %v4114, %v4114
        %v4133 = vpack.c.bf16 %v4116, %v4116
        %v4134 = vld [vmem:[%s53] sm:$0xf]
        %v4135 = vld [vmem:[%s53 + $0x4] sm:$0xf]
        %v4136 = vld [vmem:[%s53 + $0x8] sm:$0xf]
        %v4137 = vld [vmem:[%s53 + $0xc] sm:$0xf]
        %v4146 = vunpack.c.l.b16 %v4118
        %v4147 = vunpack.c.l.b16 %v4119
        %v4148 = vunpack.c.l.b16 %v4120
        %v4149 = vunpack.c.l.b16 %v4121
        %v4150 = vunpack.c.l.b16 %v4122
        %v4151 = vunpack.c.l.b16 %v4123
        %v4152 = vunpack.c.l.b16 %v4124
        %v4153 = vunpack.c.l.b16 %v4125
        %v4154 = vpack.c.b16 %v4147, %v4146
        %v4155 = vpack.c.b16 %v4149, %v4148
        %v4156 = vpack.c.b16 %v4151, %v4150
        %v4157 = vpack.c.b16 %v4153, %v4152
        %v4160 = vunpack.c.l.b16 %v4134
        %v4161 = vunpack.c.l.b16 %v4135
        %v4162 = vpack.c.b16 %v4161, %v4160
        %v4165 = vsel %vm1862, %v4154, 0
        %v4168 = vsel %vm1862, %v4155, 0
        %v4171 = vsel %vm1862, %v4156, 0
        %v4174 = vsel %vm1862, %v4157, 0
        %4176 = vmatpush.bf16.msra.mxu0 0
        %4177 = vmatpush.bf16.msra.mxu0 0
        %4178 = vmatpush.bf16.msra.mxu0 0
        %4179 = vmatpush.bf16.msra.mxu0 0
        %4180 = vmatpush.bf16.msra.mxu0 0
        %4181 = vmatpush.bf16.msra.mxu0 0
        %4182 = vmatpush.bf16.msra.mxu0 0
        %4183 = vmatpush.bf16.msra.mxu0 %v4162
        %4184 = vmatmul.bf16.gmra.mxu0 %v4165
        %v4185 = vpop.f32.mrf.mxu0
        %v4186 = vadd.f32 0.0, %v4185
        %v4187 = vpop.f32.mrf.mxu0
        %v4188 = vadd.f32 0.0, %v4187
        %4189 = vmatmul.bf16.gmra.mxu0 %v4168
        %v4190 = vpop.f32.mrf.mxu0
        %v4191 = vadd.f32 0.0, %v4190
        %v4192 = vpop.f32.mrf.mxu0
        %v4193 = vadd.f32 0.0, %v4192
        %4194 = vmatmul.bf16.gmra.mxu0 %v4171
        %v4195 = vpop.f32.mrf.mxu0
        %v4196 = vadd.f32 0.0, %v4195
        %v4197 = vpop.f32.mrf.mxu0
        %v4198 = vadd.f32 0.0, %v4197
        %4199 = vmatmul.bf16.gmra.mxu0 %v4174
        %v4200 = vpop.f32.mrf.mxu0
        %v4201 = vadd.f32 0.0, %v4200
        %v4202 = vpop.f32.mrf.mxu0
        %v4203 = vadd.f32 0.0, %v4202
        %4204 = vdwg.mxu0
        %v4213 = vunpack.c.l.b16 %v4126
        %v4214 = vunpack.c.l.b16 %v4127
        %v4215 = vunpack.c.l.b16 %v4128
        %v4216 = vunpack.c.l.b16 %v4129
        %v4217 = vunpack.c.l.b16 %v4130
        %v4218 = vunpack.c.l.b16 %v4131
        %v4219 = vunpack.c.l.b16 %v4132
        %v4220 = vunpack.c.l.b16 %v4133
        %v4221 = vpack.c.b16 %v4214, %v4213
        %v4222 = vpack.c.b16 %v4216, %v4215
        %v4223 = vpack.c.b16 %v4218, %v4217
        %v4224 = vpack.c.b16 %v4220, %v4219
        %v4227 = vunpack.c.l.b16 %v4136
        %v4228 = vunpack.c.l.b16 %v4137
        %v4229 = vpack.c.b16 %v4228, %v4227
        %v4232 = vsel %vm1862, %v4221, 0
        %v4235 = vsel %vm1862, %v4222, 0
        %v4238 = vsel %vm1862, %v4223, 0
        %v4241 = vsel %vm1862, %v4224, 0
        %4243 = vmatpush.bf16.msra.mxu0 0
        %4244 = vmatpush.bf16.msra.mxu0 0
        %4245 = vmatpush.bf16.msra.mxu0 0
        %4246 = vmatpush.bf16.msra.mxu0 0
        %4247 = vmatpush.bf16.msra.mxu0 0
        %4248 = vmatpush.bf16.msra.mxu0 0
        %4249 = vmatpush.bf16.msra.mxu0 0
        %4250 = vmatpush.bf16.msra.mxu0 %v4229
        %4251 = vmatmul.bf16.gmra.mxu0 %v4232
        %v4252 = vpop.f32.mrf.mxu0
        %v4253 = vadd.f32 0.0, %v4252
        %v4254 = vpop.f32.mrf.mxu0
        %v4255 = vadd.f32 0.0, %v4254
        %4256 = vmatmul.bf16.gmra.mxu0 %v4235
        %v4257 = vpop.f32.mrf.mxu0
        %v4258 = vadd.f32 0.0, %v4257
        %v4259 = vpop.f32.mrf.mxu0
        %v4260 = vadd.f32 0.0, %v4259
        %4261 = vmatmul.bf16.gmra.mxu0 %v4238
        %v4262 = vpop.f32.mrf.mxu0
        %v4263 = vadd.f32 0.0, %v4262
        %v4264 = vpop.f32.mrf.mxu0
        %v4265 = vadd.f32 0.0, %v4264
        %4266 = vmatmul.bf16.gmra.mxu0 %v4241
        %v4267 = vpop.f32.mrf.mxu0
        %v4268 = vadd.f32 0.0, %v4267
        %v4269 = vpop.f32.mrf.mxu0
        %v4270 = vadd.f32 0.0, %v4269
        %4271 = vdwg.mxu0
        %v4272 = vsel %vm1246, %v4186, 0.0
        %v4273 = vsel %vm1246, %v4253, 0.0
        %v4274 = vadd.f32 %v4272, %v4273
        %v4275 = vsel %vm1246, %v4188, 0.0
        %v4276 = vsel %vm1246, %v4255, 0.0
        %v4277 = vadd.f32 %v4275, %v4276
        %v4278 = vsel %vm1246, %v4191, 0.0
        %v4279 = vsel %vm1246, %v4258, 0.0
        %v4280 = vadd.f32 %v4278, %v4279
        %v4281 = vsel %vm1246, %v4193, 0.0
        %v4282 = vsel %vm1246, %v4260, 0.0
        %v4283 = vadd.f32 %v4281, %v4282
        %v4284 = vsel %vm1246, %v4196, 0.0
        %v4285 = vsel %vm1246, %v4263, 0.0
        %v4286 = vadd.f32 %v4284, %v4285
        %v4287 = vsel %vm1246, %v4198, 0.0
        %v4288 = vsel %vm1246, %v4265, 0.0
        %v4289 = vadd.f32 %v4287, %v4288
        %v4290 = vsel %vm1246, %v4201, 0.0
        %v4291 = vsel %vm1246, %v4268, 0.0
        %v4292 = vadd.f32 %v4290, %v4291
        %v4293 = vsel %vm1246, %v4203, 0.0
        %v4294 = vsel %vm1246, %v4270, 0.0
        %v4295 = vadd.f32 %v4293, %v4294
        %v4296 = vadd.f32 %v3158, %v4274
        %v4297 = vadd.f32 %v3161, %v4277
        %v4298 = vadd.f32 %v3164, %v4280
        %v4299 = vadd.f32 %v3167, %v4283
        %v4300 = vadd.f32 %v3170, %v4286
        %v4301 = vadd.f32 %v3173, %v4289
        %v4302 = vadd.f32 %v3176, %v4292
        %v4303 = vadd.f32 %v3179, %v4295
        %v4304 = vld [vmem:[#allocation6] sm:$0x1]
        %v4306 = vperm.slane %v4304, 0
        %v4308 = vadd.f32 %v4296, %v4306
        %v4309 = vadd.f32 %v4297, %v4306
        %v4310 = vadd.f32 %v4298, %v4306
        %v4311 = vadd.f32 %v4299, %v4306
        %v4312 = vadd.f32 %v4300, %v4306
        %v4313 = vadd.f32 %v4301, %v4306
        %v4314 = vadd.f32 %v4302, %v4306
        %v4315 = vadd.f32 %v4303, %v4306
        %v4316 = vld [vmem:[#allocation7] sm:$0x1]
        %v4317 = vld [vmem:[#allocation9] sm:$0x1]
        %v4318 = vsel %vm1246, %v4308, 0.0
        %4319 = vadd.xlane.f32.xlu0 %v4318
        %v4320 = vpop.xlane.xlu0 %4319
        %v4321 = vsel %vm1246, %v4309, 0.0
        %4322 = vadd.xlane.f32.xlu0 %v4321
        %v4323 = vpop.xlane.xlu0 %4322
        %v4324 = vsel %vm1246, %v4310, 0.0
        %4325 = vadd.xlane.f32.xlu0 %v4324
        %v4326 = vpop.xlane.xlu0 %4325
        %v4327 = vsel %vm1246, %v4311, 0.0
        %4328 = vadd.xlane.f32.xlu0 %v4327
        %v4329 = vpop.xlane.xlu0 %4328
        %v4330 = vsel %vm1246, %v4312, 0.0
        %4331 = vadd.xlane.f32.xlu0 %v4330
        %v4332 = vpop.xlane.xlu0 %4331
        %v4333 = vsel %vm1246, %v4313, 0.0
        %4334 = vadd.xlane.f32.xlu0 %v4333
        %v4335 = vpop.xlane.xlu0 %4334
        %v4336 = vsel %vm1246, %v4314, 0.0
        %4337 = vadd.xlane.f32.xlu0 %v4336
        %v4338 = vpop.xlane.xlu0 %4337
        %v4339 = vsel %vm1246, %v4315, 0.0
        %4340 = vadd.xlane.f32.xlu0 %v4339
        %v4341 = vpop.xlane.xlu0 %4340
        %v4342 = vmul.f32 %v4320, %v1277
        %v4343 = vmul.f32 %v4323, %v1277
        %v4344 = vmul.f32 %v4326, %v1277
        %v4345 = vmul.f32 %v4329, %v1277
        %v4346 = vmul.f32 %v4332, %v1277
        %v4347 = vmul.f32 %v4335, %v1277
        %v4348 = vmul.f32 %v4338, %v1277
        %v4349 = vmul.f32 %v4341, %v1277
        %v4350 = vsub.f32 %v4308, %v4342
        %v4351 = vsub.f32 %v4309, %v4343
        %v4352 = vsub.f32 %v4310, %v4344
        %v4353 = vsub.f32 %v4311, %v4345
        %v4354 = vsub.f32 %v4312, %v4346
        %v4355 = vsub.f32 %v4313, %v4347
        %v4356 = vsub.f32 %v4314, %v4348
        %v4357 = vsub.f32 %v4315, %v4349
        %v4358 = vmul.f32 %v4350, %v4350
        %v4359 = vmul.f32 %v4351, %v4351
        %v4360 = vmul.f32 %v4352, %v4352
        %v4361 = vmul.f32 %v4353, %v4353
        %v4362 = vmul.f32 %v4354, %v4354
        %v4363 = vmul.f32 %v4355, %v4355
        %v4364 = vmul.f32 %v4356, %v4356
        %v4365 = vmul.f32 %v4357, %v4357
        %v4366 = vsel %vm1246, %v4358, 0.0
        %4367 = vadd.xlane.f32.xlu0 %v4366
        %v4368 = vpop.xlane.xlu0 %4367
        %v4369 = vsel %vm1246, %v4359, 0.0
        %4370 = vadd.xlane.f32.xlu0 %v4369
        %v4371 = vpop.xlane.xlu0 %4370
        %v4372 = vsel %vm1246, %v4360, 0.0
        %4373 = vadd.xlane.f32.xlu0 %v4372
        %v4374 = vpop.xlane.xlu0 %4373
        %v4375 = vsel %vm1246, %v4361, 0.0
        %4376 = vadd.xlane.f32.xlu0 %v4375
        %v4377 = vpop.xlane.xlu0 %4376
        %v4378 = vsel %vm1246, %v4362, 0.0
        %4379 = vadd.xlane.f32.xlu0 %v4378
        %v4380 = vpop.xlane.xlu0 %4379
        %v4381 = vsel %vm1246, %v4363, 0.0
        %4382 = vadd.xlane.f32.xlu0 %v4381
        %v4383 = vpop.xlane.xlu0 %4382
        %v4384 = vsel %vm1246, %v4364, 0.0
        %4385 = vadd.xlane.f32.xlu0 %v4384
        %v4386 = vpop.xlane.xlu0 %4385
        %v4387 = vsel %vm1246, %v4365, 0.0
        %4388 = vadd.xlane.f32.xlu0 %v4387
        %v4389 = vpop.xlane.xlu0 %4388
        %v4390 = vmul.f32 %v4368, %v1277
        %v4391 = vmul.f32 %v4371, %v1277
        %v4392 = vmul.f32 %v4374, %v1277
        %v4393 = vmul.f32 %v4377, %v1277
        %v4394 = vmul.f32 %v4380, %v1277
        %v4395 = vmul.f32 %v4383, %v1277
        %v4396 = vmul.f32 %v4386, %v1277
        %v4397 = vmul.f32 %v4389, %v1277
        %v4398 = vadd.f32 %v4390, 1e-05
        %v4399 = vadd.f32 %v4391, 1e-05
        %v4400 = vadd.f32 %v4392, 1e-05
        %v4401 = vadd.f32 %v4393, 1e-05
        %v4402 = vadd.f32 %v4394, 1e-05
        %v4403 = vadd.f32 %v4395, 1e-05
        %v4404 = vadd.f32 %v4396, 1e-05
        %v4405 = vadd.f32 %v4397, 1e-05
        %v4406 = vrsqrt.pop %v4398
        %v4407 = vmul.f32 %v4406, %v4398
        %v4408 = vmul.f32 %v4407, %v4406
        %v4409 = vmul.f32 0.5, %v4408
        %v4410 = vsub.f32 1.5, %v4409
        %v4411 = vmul.f32 %v4406, %v4410
        %vm4412 = vweird.f32 %v4398
        %vm4413 = vweird.f32 %v4406
        %vm4414 = vmor %vm4412, %vm4413
        %v4415 = vsel %vm4414, %v4406, %v4411
        %v4416 = vrsqrt.pop %v4399
        %v4417 = vmul.f32 %v4416, %v4399
        %v4418 = vmul.f32 %v4417, %v4416
        %v4419 = vmul.f32 0.5, %v4418
        %v4420 = vsub.f32 1.5, %v4419
        %v4421 = vmul.f32 %v4416, %v4420
        %vm4422 = vweird.f32 %v4399
        %vm4423 = vweird.f32 %v4416
        %vm4424 = vmor %vm4422, %vm4423
        %v4425 = vsel %vm4424, %v4416, %v4421
        %v4426 = vrsqrt.pop %v4400
        %v4427 = vmul.f32 %v4426, %v4400
        %v4428 = vmul.f32 %v4427, %v4426
        %v4429 = vmul.f32 0.5, %v4428
        %v4430 = vsub.f32 1.5, %v4429
        %v4431 = vmul.f32 %v4426, %v4430
        %vm4432 = vweird.f32 %v4400
        %vm4433 = vweird.f32 %v4426
        %vm4434 = vmor %vm4432, %vm4433
        %v4435 = vsel %vm4434, %v4426, %v4431
        %v4436 = vrsqrt.pop %v4401
        %v4437 = vmul.f32 %v4436, %v4401
        %v4438 = vmul.f32 %v4437, %v4436
        %v4439 = vmul.f32 0.5, %v4438
        %v4440 = vsub.f32 1.5, %v4439
        %v4441 = vmul.f32 %v4436, %v4440
        %vm4442 = vweird.f32 %v4401
        %vm4443 = vweird.f32 %v4436
        %vm4444 = vmor %vm4442, %vm4443
        %v4445 = vsel %vm4444, %v4436, %v4441
        %v4446 = vrsqrt.pop %v4402
        %v4447 = vmul.f32 %v4446, %v4402
        %v4448 = vmul.f32 %v4447, %v4446
        %v4449 = vmul.f32 0.5, %v4448
        %v4450 = vsub.f32 1.5, %v4449
        %v4451 = vmul.f32 %v4446, %v4450
        %vm4452 = vweird.f32 %v4402
        %vm4453 = vweird.f32 %v4446
        %vm4454 = vmor %vm4452, %vm4453
        %v4455 = vsel %vm4454, %v4446, %v4451
        %v4456 = vrsqrt.pop %v4403
        %v4457 = vmul.f32 %v4456, %v4403
        %v4458 = vmul.f32 %v4457, %v4456
        %v4459 = vmul.f32 0.5, %v4458
        %v4460 = vsub.f32 1.5, %v4459
        %v4461 = vmul.f32 %v4456, %v4460
        %vm4462 = vweird.f32 %v4403
        %vm4463 = vweird.f32 %v4456
        %vm4464 = vmor %vm4462, %vm4463
        %v4465 = vsel %vm4464, %v4456, %v4461
        %v4466 = vrsqrt.pop %v4404
        %v4467 = vmul.f32 %v4466, %v4404
        %v4468 = vmul.f32 %v4467, %v4466
        %v4469 = vmul.f32 0.5, %v4468
        %v4470 = vsub.f32 1.5, %v4469
        %v4471 = vmul.f32 %v4466, %v4470
        %vm4472 = vweird.f32 %v4404
        %vm4473 = vweird.f32 %v4466
        %vm4474 = vmor %vm4472, %vm4473
        %v4475 = vsel %vm4474, %v4466, %v4471
        %v4476 = vrsqrt.pop %v4405
        %v4477 = vmul.f32 %v4476, %v4405
        %v4478 = vmul.f32 %v4477, %v4476
        %v4479 = vmul.f32 0.5, %v4478
        %v4480 = vsub.f32 1.5, %v4479
        %v4481 = vmul.f32 %v4476, %v4480
        %vm4482 = vweird.f32 %v4405
        %vm4483 = vweird.f32 %v4476
        %vm4484 = vmor %vm4482, %vm4483
        %v4485 = vsel %vm4484, %v4476, %v4481
        %v4486 = vmul.f32 %v4350, %v4415
        %v4487 = vmul.f32 %v4351, %v4425
        %v4488 = vmul.f32 %v4352, %v4435
        %v4489 = vmul.f32 %v4353, %v4445
        %v4490 = vmul.f32 %v4354, %v4455
        %v4491 = vmul.f32 %v4355, %v4465
        %v4492 = vmul.f32 %v4356, %v4475
        %v4493 = vmul.f32 %v4357, %v4485
        %v4495 = vperm.slane %v4316, 0
        %v4497 = vmul.f32 %v4486, %v4495
        %v4498 = vmul.f32 %v4487, %v4495
        %v4499 = vmul.f32 %v4488, %v4495
        %v4500 = vmul.f32 %v4489, %v4495
        %v4501 = vmul.f32 %v4490, %v4495
        %v4502 = vmul.f32 %v4491, %v4495
        %v4503 = vmul.f32 %v4492, %v4495
        %v4504 = vmul.f32 %v4493, %v4495
        %v4506 = vperm.slane %v4317, 0
        %v4508 = vadd.f32 %v4497, %v4506
        %v4509 = vadd.f32 %v4498, %v4506
        %v4510 = vadd.f32 %v4499, %v4506
        %v4511 = vadd.f32 %v4500, %v4506
        %v4512 = vadd.f32 %v4501, %v4506
        %v4513 = vadd.f32 %v4502, %v4506
        %v4514 = vadd.f32 %v4503, %v4506
        %v4515 = vadd.f32 %v4504, %v4506
        %v4516 = vpack.c.bf16 %v4509, %v4508
        %v4517 = vpack.c.bf16 %v4511, %v4510
        %v4518 = vpack.c.bf16 %v4513, %v4512
        %v4519 = vpack.c.bf16 %v4515, %v4514
        %v4520 = vld [vmem:[%s61] sm:$0xf]
        %v4521 = vld [vmem:[%s61 + $0x4] sm:$0xf]
        %v4522 = vld [vmem:[%s61 + $0x8] sm:$0xf]
        %v4523 = vld [vmem:[%s61 + $0xc] sm:$0xf]
        %v4524 = vld [vmem:[#allocation10] sm:$0x1]
        %v4526 = vperm.slane %v4524, 0
        %v4532 = vunpack.c.l.b16 %v4520
        %v4533 = vunpack.c.l.b16 %v4521
        %v4534 = vunpack.c.l.b16 %v4522
        %v4535 = vunpack.c.l.b16 %v4523
        %v4536 = vpack.c.b16 %v4533, %v4532
        %v4537 = vpack.c.b16 %v4535, %v4534
        %v4541 = vsel %vm1246, %v4516, 0
        %v4544 = vsel %vm1246, %v4517, 0
        %v4547 = vsel %vm1246, %v4518, 0
        %v4550 = vsel %vm1246, %v4519, 0
        %4552 = vmatpush.bf16.msra.mxu0 0
        %4553 = vmatpush.bf16.msra.mxu0 0
        %4554 = vmatpush.bf16.msra.mxu0 0
        %4555 = vmatpush.bf16.msra.mxu0 0
        %4556 = vmatpush.bf16.msra.mxu0 0
        %4557 = vmatpush.bf16.msra.mxu0 0
        %4558 = vmatpush.bf16.msra.mxu0 %v4537
        %4559 = vmatpush.bf16.msra.mxu0 %v4536
        %4560 = vmatmul.bf16.gmra.mxu0 %v4541
        %v4561 = vpop.f32.mrf.mxu0
        %v4562 = vadd.f32 %v4526, %v4561
        %v4563 = vpop.f32.mrf.mxu0
        %v4564 = vadd.f32 %v4526, %v4563
        %4565 = vmatmul.bf16.gmra.mxu0 %v4544
        %v4566 = vpop.f32.mrf.mxu0
        %v4567 = vadd.f32 %v4526, %v4566
        %v4568 = vpop.f32.mrf.mxu0
        %v4569 = vadd.f32 %v4526, %v4568
        %4570 = vmatmul.bf16.gmra.mxu0 %v4547
        %v4571 = vpop.f32.mrf.mxu0
        %v4572 = vadd.f32 %v4526, %v4571
        %v4573 = vpop.f32.mrf.mxu0
        %v4574 = vadd.f32 %v4526, %v4573
        %4575 = vmatmul.bf16.gmra.mxu0 %v4550
        %v4576 = vpop.f32.mrf.mxu0
        %v4577 = vadd.f32 %v4526, %v4576
        %v4578 = vpop.f32.mrf.mxu0
        %v4579 = vadd.f32 %v4526, %v4578
        %4580 = vdwg.mxu0
        %v4581 = vmul.f32 %v4562, %v4562
        %v4582 = vmul.f32 %v4564, %v4564
        %v4583 = vmul.f32 %v4567, %v4567
        %v4584 = vmul.f32 %v4569, %v4569
        %v4585 = vmul.f32 %v4572, %v4572
        %v4586 = vmul.f32 %v4574, %v4574
        %v4587 = vmul.f32 %v4577, %v4577
        %v4588 = vmul.f32 %v4579, %v4579
        %v4589 = vmul.f32 %v4562, %v4581
        %v4590 = vmul.f32 %v4564, %v4582
        %v4591 = vmul.f32 %v4567, %v4583
        %v4592 = vmul.f32 %v4569, %v4584
        %v4593 = vmul.f32 %v4572, %v4585
        %v4594 = vmul.f32 %v4574, %v4586
        %v4595 = vmul.f32 %v4577, %v4587
        %v4596 = vmul.f32 %v4579, %v4588
        %v4597 = vmul.f32 %v4589, 0.044715
        %v4598 = vmul.f32 %v4590, 0.044715
        %v4599 = vmul.f32 %v4591, 0.044715
        %v4600 = vmul.f32 %v4592, 0.044715
        %v4601 = vmul.f32 %v4593, 0.044715
        %v4602 = vmul.f32 %v4594, 0.044715
        %v4603 = vmul.f32 %v4595, 0.044715
        %v4604 = vmul.f32 %v4596, 0.044715
        %v4605 = vadd.f32 %v4562, %v4597
        %v4606 = vadd.f32 %v4564, %v4598
        %v4607 = vadd.f32 %v4567, %v4599
        %v4608 = vadd.f32 %v4569, %v4600
        %v4609 = vadd.f32 %v4572, %v4601
        %v4610 = vadd.f32 %v4574, %v4602
        %v4611 = vadd.f32 %v4577, %v4603
        %v4612 = vadd.f32 %v4579, %v4604
        %v4613 = vmul.f32 %v4605, 0.7978846
        %v4614 = vmul.f32 %v4606, 0.7978846
        %v4615 = vmul.f32 %v4607, 0.7978846
        %v4616 = vmul.f32 %v4608, 0.7978846
        %v4617 = vmul.f32 %v4609, 0.7978846
        %v4618 = vmul.f32 %v4610, 0.7978846
        %v4619 = vmul.f32 %v4611, 0.7978846
        %v4620 = vmul.f32 %v4612, 0.7978846
        %v4621 = vtanh.pop %v4613
        %v4622 = vtanh.pop %v4614
        %v4623 = vtanh.pop %v4615
        %v4624 = vtanh.pop %v4616
        %v4625 = vtanh.pop %v4617
        %v4626 = vtanh.pop %v4618
        %v4627 = vtanh.pop %v4619
        %v4628 = vtanh.pop %v4620
        %v4629 = vadd.f32 %v4621, 1.0
        %v4630 = vadd.f32 %v4622, 1.0
        %v4631 = vadd.f32 %v4623, 1.0
        %v4632 = vadd.f32 %v4624, 1.0
        %v4633 = vadd.f32 %v4625, 1.0
        %v4634 = vadd.f32 %v4626, 1.0
        %v4635 = vadd.f32 %v4627, 1.0
        %v4636 = vadd.f32 %v4628, 1.0
        %v4637 = vmul.f32 %v4629, 0.5
        %v4638 = vmul.f32 %v4630, 0.5
        %v4639 = vmul.f32 %v4631, 0.5
        %v4640 = vmul.f32 %v4632, 0.5
        %v4641 = vmul.f32 %v4633, 0.5
        %v4642 = vmul.f32 %v4634, 0.5
        %v4643 = vmul.f32 %v4635, 0.5
        %v4644 = vmul.f32 %v4636, 0.5
        %v4645 = vmul.f32 %v4562, %v4637
        %v4646 = vmul.f32 %v4564, %v4638
        %v4647 = vmul.f32 %v4567, %v4639
        %v4648 = vmul.f32 %v4569, %v4640
        %v4649 = vmul.f32 %v4572, %v4641
        %v4650 = vmul.f32 %v4574, %v4642
        %v4651 = vmul.f32 %v4577, %v4643
        %v4652 = vmul.f32 %v4579, %v4644
        %v4653 = vpack.c.bf16 %v4646, %v4645
        %v4654 = vpack.c.bf16 %v4648, %v4647
        %v4655 = vpack.c.bf16 %v4650, %v4649
        %v4656 = vpack.c.bf16 %v4652, %v4651
        %v4657 = vld [vmem:[%s65] sm:$0xf]
        %v4658 = vld [vmem:[%s65 + $0x4] sm:$0xf]
        %v4659 = vld [vmem:[%s65 + $0x8] sm:$0xf]
        %v4660 = vld [vmem:[%s65 + $0xc] sm:$0xf]
        %v4661 = vld [vmem:[%s65 + $0x10] sm:$0xf]
        %v4662 = vld [vmem:[%s65 + $0x14] sm:$0xf]
        %v4663 = vld [vmem:[%s65 + $0x18] sm:$0xf]
        %v4664 = vld [vmem:[%s65 + $0x1c] sm:$0xf]
        %v4665 = vld [vmem:[%s65 + $0x20] sm:$0xf]
        %v4666 = vld [vmem:[%s65 + $0x24] sm:$0xf]
        %v4667 = vld [vmem:[%s65 + $0x28] sm:$0xf]
        %v4668 = vld [vmem:[%s65 + $0x2c] sm:$0xf]
        %v4669 = vld [vmem:[%s65 + $0x30] sm:$0xf]
        %v4670 = vld [vmem:[%s65 + $0x34] sm:$0xf]
        %v4671 = vld [vmem:[%s65 + $0x38] sm:$0xf]
        %v4672 = vld [vmem:[%s65 + $0x3c] sm:$0xf]
        %v4673 = vld [vmem:[#allocation12] sm:$0x1]
        %v4675 = vperm.slane %v4673, 0
        %v4693 = vunpack.c.l.b16 %v4657
        %v4694 = vunpack.c.l.b16 %v4658
        %v4695 = vunpack.c.l.b16 %v4659
        %v4696 = vunpack.c.l.b16 %v4660
        %v4697 = vunpack.c.l.b16 %v4661
        %v4698 = vunpack.c.l.b16 %v4662
        %v4699 = vunpack.c.l.b16 %v4663
        %v4700 = vunpack.c.l.b16 %v4664
        %v4701 = vunpack.c.l.b16 %v4665
        %v4702 = vunpack.c.l.b16 %v4666
        %v4703 = vunpack.c.l.b16 %v4667
        %v4704 = vunpack.c.l.b16 %v4668
        %v4705 = vunpack.c.l.b16 %v4669
        %v4706 = vunpack.c.l.b16 %v4670
        %v4707 = vunpack.c.l.b16 %v4671
        %v4708 = vunpack.c.l.b16 %v4672
        %v4709 = vpack.c.b16 %v4694, %v4693
        %v4710 = vpack.c.b16 %v4696, %v4695
        %v4711 = vpack.c.b16 %v4698, %v4697
        %v4712 = vpack.c.b16 %v4700, %v4699
        %v4713 = vpack.c.b16 %v4702, %v4701
        %v4714 = vpack.c.b16 %v4704, %v4703
        %v4715 = vpack.c.b16 %v4706, %v4705
        %v4716 = vpack.c.b16 %v4708, %v4707
        %4725 = vmatpush.bf16.msra.mxu0 %v4716
        %4726 = vmatpush.bf16.msra.mxu0 %v4715
        %4727 = vmatpush.bf16.msra.mxu0 %v4714
        %4728 = vmatpush.bf16.msra.mxu0 %v4713
        %4729 = vmatpush.bf16.msra.mxu0 %v4712
        %4730 = vmatpush.bf16.msra.mxu0 %v4711
        %4731 = vmatpush.bf16.msra.mxu0 %v4710
        %4732 = vmatpush.bf16.msra.mxu0 %v4709
        %4733 = vmatmul.bf16.gmra.mxu0 %v4653
        %v4734 = vpop.f32.mrf.mxu0
        %v4735 = vadd.f32 %v4675, %v4734
        %v4736 = vpop.f32.mrf.mxu0
        %v4737 = vadd.f32 %v4675, %v4736
        %4738 = vmatmul.bf16.gmra.mxu0 %v4654
        %v4739 = vpop.f32.mrf.mxu0
        %v4740 = vadd.f32 %v4675, %v4739
        %v4741 = vpop.f32.mrf.mxu0
        %v4742 = vadd.f32 %v4675, %v4741
        %4743 = vmatmul.bf16.gmra.mxu0 %v4655
        %v4744 = vpop.f32.mrf.mxu0
        %v4745 = vadd.f32 %v4675, %v4744
        %v4746 = vpop.f32.mrf.mxu0
        %v4747 = vadd.f32 %v4675, %v4746
        %4748 = vmatmul.bf16.gmra.mxu0 %v4656
        %v4749 = vpop.f32.mrf.mxu0
        %v4750 = vadd.f32 %v4675, %v4749
        %v4751 = vpop.f32.mrf.mxu0
        %v4752 = vadd.f32 %v4675, %v4751
        %4753 = vdwg.mxu0
        %v4754 = vadd.f32 %v4308, %v4735
        %v4755 = vadd.f32 %v4309, %v4737
        %v4756 = vadd.f32 %v4310, %v4740
        %v4757 = vadd.f32 %v4311, %v4742
        %v4758 = vadd.f32 %v4312, %v4745
        %v4759 = vadd.f32 %v4313, %v4747
        %v4760 = vadd.f32 %v4314, %v4750
        %v4761 = vadd.f32 %v4315, %v4752
        %v4762 = vld [vmem:[%s15] sm:$0xff]
        %v4763 = vld [vmem:[%s15 + $0x8] sm:$0xff]
        %v4764 = vld [vmem:[%s15 + $0x10] sm:$0xff]
        %v4765 = vld [vmem:[%s15 + $0x18] sm:$0xff]
        %v4766 = vld [vmem:[%s15 + $0x20] sm:$0xff]
        %v4767 = vld [vmem:[%s15 + $0x28] sm:$0xff]
        %v4768 = vld [vmem:[%s15 + $0x30] sm:$0xff]
        %v4769 = vld [vmem:[%s15 + $0x38] sm:$0xff]
        %v4771 = vsel %vm1460, %v4762, 0
        %v4774 = vsel %vm1460, %v4763, 0
        %v4777 = vsel %vm1460, %v4764, 0
        %v4780 = vsel %vm1460, %v4765, 0
        %v4783 = vsel %vm1460, %v4766, 0
        %v4786 = vsel %vm1460, %v4767, 0
        %v4789 = vsel %vm1460, %v4768, 0
        %v4792 = vsel %vm1460, %v4769, 0
        %4794 = vmatpush.msra.mxu0 0.0
        %4795 = vmatpush.msra.mxu0 0.0
        %4796 = vmatpush.msra.mxu0 0.0
        %4797 = vmatpush.msra.mxu0 0.0
        %4798 = vmatpush.msra.mxu0 0.0
        %4799 = vmatpush.msra.mxu0 0.0
        %4800 = vmatpush.msra.mxu0 0.0
        %4801 = vmatpush.msra.mxu0 0.0
        %4802 = vmatpush.msra.mxu0 %v4761
        %4803 = vmatpush.msra.mxu0 %v4760
        %4804 = vmatpush.msra.mxu0 %v4759
        %4805 = vmatpush.msra.mxu0 %v4758
        %4806 = vmatpush.msra.mxu0 %v4757
        %4807 = vmatpush.msra.mxu0 %v4756
        %4808 = vmatpush.msra.mxu0 %v4755
        %4809 = vmatpush.msra.mxu0 %v4754
        %4810 = vmatmul.f32.gmra.mxu0 %v4771
        %v4811 = vpop.f32.mrf.mxu0
        %v4812 = vadd.f32 0.0, %v4811
        %4813 = vmatmul.f32.gmra.mxu0 %v4774
        %v4814 = vpop.f32.mrf.mxu0
        %v4815 = vadd.f32 0.0, %v4814
        %4816 = vmatmul.f32.gmra.mxu0 %v4777
        %v4817 = vpop.f32.mrf.mxu0
        %v4818 = vadd.f32 0.0, %v4817
        %4819 = vmatmul.f32.gmra.mxu0 %v4780
        %v4820 = vpop.f32.mrf.mxu0
        %v4821 = vadd.f32 0.0, %v4820
        %4822 = vmatmul.f32.gmra.mxu0 %v4783
        %v4823 = vpop.f32.mrf.mxu0
        %v4824 = vadd.f32 0.0, %v4823
        %4825 = vmatmul.f32.gmra.mxu0 %v4786
        %v4826 = vpop.f32.mrf.mxu0
        %v4827 = vadd.f32 0.0, %v4826
        %4828 = vmatmul.f32.gmra.mxu0 %v4789
        %v4829 = vpop.f32.mrf.mxu0
        %v4830 = vadd.f32 0.0, %v4829
        %4831 = vmatmul.f32.gmra.mxu0 %v4792
        %v4832 = vpop.f32.mrf.mxu0
        %v4833 = vadd.f32 0.0, %v4832
        %4834 = vdwg.mxu0
        %v4835 = vpack.c.bf16 %v4812, %v4812
        %v4836 = vpack.c.bf16 %v4815, %v4815
        %v4837 = vpack.c.bf16 %v4818, %v4818
        %v4838 = vpack.c.bf16 %v4821, %v4821
        %v4839 = vpack.c.bf16 %v4824, %v4824
        %v4840 = vpack.c.bf16 %v4827, %v4827
        %v4841 = vpack.c.bf16 %v4830, %v4830
        %v4842 = vpack.c.bf16 %v4833, %v4833
        %vm4843 = vcmask 257024
        %4844 = vst.msk [vmem:[%s1144] sm:$0xf] %vm4843, %v4835
        %4845 = vst.msk [vmem:[%s1144 + $0x4] sm:$0xf] %vm4843, %v4836
        %4846 = vst.msk [vmem:[%s1144 + $0x8] sm:$0xf] %vm4843, %v4837
        %4847 = vst.msk [vmem:[%s1144 + $0xc] sm:$0xf] %vm4843, %v4838
        %4848 = vst.msk [vmem:[%s1144 + $0x10] sm:$0xf] %vm4843, %v4839
        %4849 = vst.msk [vmem:[%s1144 + $0x14] sm:$0xf] %vm4843, %v4840
        %4850 = vst.msk [vmem:[%s1144 + $0x18] sm:$0xf] %vm4843, %v4841
        %4851 = vst.msk [vmem:[%s1144 + $0x1c] sm:$0xf] %vm4843, %v4842
        %p4852 = scmp.lt.s32.totalorder %s84, 1
        %s4853 = scalar_select %p4852, %s84, 1
        %s4854 = smul.addr %s4853, 8
        %s4855 = smul.addr %s4854, 4
        %s4856 = scalar_lea.vmem %s69, %s4855
        // Predicated region
        $region185: #{swin_m3sda_forward.3} parent=155 // pred_check
          %p4857 = pneg %p821
        $region186: #{swin_m3sda_forward.3} parent=155 // pred_check_branch
          %4859 = sbr.rel (%p4857) target = $region188
        $region187: #{swin_m3sda_forward.3} parent=155 // pred_region
          _
        $region188: #{swin_m3sda_forward.3} parent=155 // pred_fallthru
          _
      $region156: #{swin_m3sda_forward.3} parent=5 // pred_fallthru
        _
      %p4860 = scmp.le.s32.totalorder 2, %s79
      // Predicated region
      $region189: #{swin_m3sda_forward.3} parent=5 // pred_check
        %p4861 = pneg %p4860
      $region190: #{swin_m3sda_forward.3} parent=5 // pred_check_branch
        %4863 = sbr.rel (%p4861) target = $region192
      $region191: #{swin_m3sda_forward.3} parent=5 // pred_region
        %s4864 = ssub.s32 %s79, 2
        // Predicated region
        $region193: #{swin_m3sda_forward.3} parent=191 // pred_check
          %p4865 = pneg %p827
        $region194: #{swin_m3sda_forward.3} parent=191 // pred_check_branch
          %4867 = sbr.rel (%p4865) target = $region196
        $region195: #{swin_m3sda_forward.3} parent=191 // pred_region
          %p4868 = scmp.lt.s32.totalorder %s85, 1
          %s4869 = scalar_select %p4868, %s85, 1
          %s4870 = smul.addr %s4869, 8
          %s4871 = smul.addr %s4870, 4
          %s4872 = scalar_lea.vmem %s69, %s4871
        $region196: #{swin_m3sda_forward.3} parent=191 // pred_fallthru
          _
      $region192: #{swin_m3sda_forward.3} parent=5 // pred_fallthru
        _
    $region6: #{swin_m3sda_forward.3} parent=1 // loop_footer
      %s83 = sadd.s32 1, %s79
    $region7: #{swin_m3sda_forward.3} parent=1 // loop_footer_branch
      %78 = sbr.rel target = $region3
    $region8: #{swin_m3sda_forward.3} parent=1 // loop_exit
      _
    %4873 = vsyncpa [#allocation3], 1
    %s4874 = scalar_lea.sflag [#allocation3], 1
    %4875 = vsyncpa %s4874, 1
    %4876 = vsyncpa [#allocation5], 1
    %4877 = vsyncpa [#allocation8], 1
    %4878 = vsyncpa [#allocation11], 1

</llo_original>
